<compile_context>
chip_gen: v5e
topology: v5e:2x2
jax: 0.10.0
libtpu: 0.0.40
codegen_flags: <defaults>
</compile_context>

<pallas_src>
import math

import jax
import jax.numpy as jnp
from jax.experimental import pallas as pl
from jax.experimental.pallas import tpu as pltpu

NEG_SLOPE = 0.01   # F.leaky_relu default
BB = 8             # samples per grid step (must be a multiple of 8)


# ----------------------------------------------------------------------------
# Fused kernel: one grid step == BB samples, end-to-end.
# ----------------------------------------------------------------------------
def _fused_forward_kernel(xs_ref, br_ref,
                          u1_ref, b1t_ref,
                          rs2_ref, u2_ref, b2t_ref,
                          w1fc_ref, w1fcbr_ref, b1fc_ref,
                          w2fc_ref, w2fcbr_ref, b2fc_ref,
                          w3fc_ref, b3fc_ref,
                          o_ref):
    f32, bf16 = jnp.float32, jnp.bfloat16
    bb = br_ref.shape[0]

    def leaky(v):
        return jnp.where(v > 0, v, NEG_SLOPE * v)

    def mm(a, w):  # bf16 MXU matmul, f32 accumulation
        return jnp.dot(a.astype(bf16), w, preferred_element_type=f32)

    # ---- conv1 + leaky_relu ------------------------------------------------
    # xs_ref[kh] holds, for every sample in the block, the 15 stride-2 input
    # rows touched by kernel-row kh (16-row stride per sample, row 15 = zero).
    acc1 = mm(xs_ref[0], u1_ref[0])
    for kh in range(1, u1_ref.shape[0]):
        acc1 = acc1 + mm(xs_ref[kh], u1_ref[kh])
    h1 = leaky(acc1 + b1t_ref[...])              # (bb*16, 512), row = 16*b + oh1
    h1b = h1.astype(bf16)

    # ---- conv2 + leaky_relu ------------------------------------------------
    # rs2[kh2] is a block-diagonal 0/1 row-selection operator producing rows
    # ordered (bb*oh2 + b) so that fc1 below uses tile-aligned static slices.
    acc2 = None
    for kh2 in range(rs2_ref.shape[0]):
        rows = jnp.dot(rs2_ref[kh2], h1b, preferred_element_type=f32)  # (6*bb, 512)
        part = mm(rows, u2_ref[kh2])                                   # (6*bb, 256)
        acc2 = part if acc2 is None else acc2 + part
    h2 = leaky(acc2 + b2t_ref[...])              # (6*bb, 256), row = bb*oh2 + b

    # ---- fc1 (+ br column) + leaky_relu: 6 x (bb,256)x(256,128) GEMMs ------
    f1 = b1fc_ref[...] + br_ref[...] * w1fcbr_ref[...]                 # (bb, 128)
    for r in range(w1fc_ref.shape[0]):
        f1 = f1 + mm(h2[r * bb:(r + 1) * bb], w1fc_ref[r])
    h3 = leaky(f1)

    # ---- fc2 (+ br column) + leaky_relu ------------------------------------
    h4 = leaky(b2fc_ref[...] + br_ref[...] * w2fcbr_ref[...] + mm(h3, w2fc_ref[...]))

    # ---- fc3 and mean / (abs + 0.01) stddev epilogue ------------------------
    y = mm(h4, w3fc_ref[...]) + b3fc_ref[...]
    col = jax.lax.broadcasted_iota(jnp.int32, y.shape, 1)
    o_ref[...] = jnp.where(col == 1, jnp.abs(y) + 0.01, y)  # lane0=mean, lane1=std


# ----------------------------------------------------------------------------
# One-time parameter preparation (outside the hot path).
# ----------------------------------------------------------------------------
def prepare_params(params, bb=BB):
    assert bb % 8 == 0
    f32, bf16 = jnp.float32, jnp.bfloat16
    W1, b1 = params["conv1_w"], params["conv1_b"]      # (32, C, 3, 3), (32,)
    W2, b2 = params["conv2_w"], params["conv2_b"]      # (32, 32, 5, 5), (32,)
    fc1_w, fc1_b = params["fc1_w"], params["fc1_b"]    # (100, 1153), (100,)
    fc2_w, fc2_b = params["fc2_w"], params["fc2_b"]    # (100, 101), (100,)
    fc3_w, fc3_b = params["fc3_w"], params["fc3_b"]    # (2, 100), (2,)
    C = W1.shape[1]
    P = ((32 * C + 127) // 128) * 128                  # lane-padded (w,ci) width

    # conv1 operator U1[kh][w*C+ci, ow*32+co] = W1[co, ci, kh, w-2*ow]
    kw = jnp.arange(3); w_ = jnp.arange(32); ow = jnp.arange(15)
    sel1 = (w_[None, :, None] == 2 * ow[None, None, :] + kw[:, None, None]).astype(f32)
    u1 = jnp.einsum("kwv,oihk->hwivo", sel1, W1).reshape(3, 32 * C, 15 * 32)
    u1 = jnp.pad(u1, ((0, 0), (0, P - 32 * C), (0, 512 - 480))).astype(bf16)
    b1t = jnp.pad(jnp.tile(b1, 15), (0, 512 - 480)).reshape(1, 512).astype(f32)

    # conv2 block-diagonal row selection: rows (bb*oh2 + b), cols (16*b + oh1)
    oh2 = jnp.arange(6); oh1 = jnp.arange(16); kh2 = jnp.arange(5)
    bidx = jnp.arange(bb)
    pick = (oh1[None, None, :] == 2 * oh2[None, :, None] + kh2[:, None, None])  # (5,6,16)
    eye = (bidx[:, None] == bidx[None, :])                                      # (bb,bb)
    rs2 = (pick[:, :, None, None, :] & eye[None, None, :, :, None])
    rs2 = rs2.reshape(5, 6 * bb, bb * 16).astype(bf16)

    # conv2 operator U2[kh2][ow*32+ci, ow2*32+co]
    kw2 = jnp.arange(5); ow1 = jnp.arange(15); ow2 = jnp.arange(6)
    sel2 = (ow1[None, :, None] == 2 * ow2[None, None, :] + kw2[:, None, None]).astype(f32)
    u2 = jnp.einsum("kwv,oihk->hwivo", sel2, W2).reshape(5, 15 * 32, 6 * 32)
    u2 = jnp.pad(u2, ((0, 0), (0, 512 - 480), (0, 256 - 192))).astype(bf16)
    b2t = jnp.pad(jnp.tile(b2, 6), (0, 256 - 192)).reshape(1, 256).astype(f32)

    # fc1: permute from PyTorch NCHW flatten (co, oh2, ow2) to (oh2)[ow2*32+co]
    w1fc = fc1_w[:, :1152].reshape(100, 32, 6, 6)            # (n, co, oh2, ow2)
    w1fc = jnp.transpose(w1fc, (2, 3, 1, 0)).reshape(6, 192, 100)
    w1fc = jnp.pad(w1fc, ((0, 0), (0, 256 - 192), (0, 128 - 100))).astype(bf16)
    w1fc_br = jnp.pad(fc1_w[:, 1152], (0, 28)).reshape(1, 128).astype(f32)
    b1fc = jnp.pad(fc1_b, (0, 28)).reshape(1, 128).astype(f32)

    # fc2 / fc3: transposed + zero-padded to lane-dense 128x128
    w2fc = jnp.zeros((128, 128), f32).at[:100, :100].set(fc2_w[:, :100].T).astype(bf16)
    w2fc_br = jnp.pad(fc2_w[:, 100], (0, 28)).reshape(1, 128).astype(f32)
    b2fc = jnp.pad(fc2_b, (0, 28)).reshape(1, 128).astype(f32)
    w3fc = jnp.zeros((128, 128), f32).at[:100, :2].set(fc3_w.T).astype(bf16)
    b3fc = jnp.pad(fc3_b, (0, 126)).reshape(1, 128).astype(f32)

    return dict(u1=u1, b1t=b1t, rs2=rs2, u2=u2, b2t=b2t,
                w1fc=w1fc, w1fc_br=w1fc_br, b1fc=b1fc,
                w2fc=w2fc, w2fc_br=w2fc_br, b2fc=b2fc,
                w3fc=w3fc, b3fc=b3fc)


# ----------------------------------------------------------------------------
# Forward wrapper (jit-able): thin layout glue + one pallas_call.
# ----------------------------------------------------------------------------
def conv_mid_forward(prep, bx, br):
    f32 = jnp.float32
    bb = prep["rs2"].shape[1] // 6            # batch block (static)
    B, C, H, W = bx.shape
    P = prep["u1"].shape[1]
    assert H == 32 and W == 32, "ConvMid's fc1 hard-codes 32x32 spatial input"

    Bp = ((B + bb - 1) // bb) * bb
    nblk = Bp // bb

    # channel-last flatten, lane pad, batch pad (cheap layout glue, fused in jit)
    x = jnp.transpose(bx, (0, 2, 3, 1)).reshape(B, H, W * C).astype(f32)
    x = jnp.pad(x, ((0, Bp - B), (0, 0), (0, P - W * C)))
    # per-kernel-row stride-2 row extraction; 16 rows/sample (16th row = zero)
    xs = jnp.stack([x[:, kh:kh + 29:2, :] for kh in range(3)], axis=0)   # (3,Bp,15,P)
    xs = jnp.pad(xs, ((0, 0), (0, 0), (0, 1), (0, 0))).reshape(3, Bp * 16, P)
    brp = jnp.pad(br.astype(f32), ((0, Bp - B), (0, 0)))                 # (Bp, 1)

    weights = (prep["u1"], prep["b1t"], prep["rs2"], prep["u2"], prep["b2t"],
               prep["w1fc"], prep["w1fc_br"], prep["b1fc"],
               prep["w2fc"], prep["w2fc_br"], prep["b2fc"],
               prep["w3fc"], prep["b3fc"])

    def full_spec(a):
        return pl.BlockSpec(a.shape, lambda i, _n=a.ndim: (0,) * _n)

    in_specs = ([pl.BlockSpec((3, bb * 16, P), lambda i: (0, i, 0)),
                 pl.BlockSpec((bb, 1), lambda i: (i, 0))]
                + [full_spec(a) for a in weights])

    flops_blk = (3 * 2 * (bb * 16) * P * 512
                 + 5 * (2 * (6 * bb) * (bb * 16) * 512 + 2 * (6 * bb) * 512 * 256)
                 + 6 * 2 * bb * 256 * 128 + 2 * 2 * bb * 128 * 128)
    bytes_acc = int(xs.size * 4 + brp.size * 4 + Bp * 128 * 4
                    + sum(int(a.size) * a.dtype.itemsize for a in weights))

    out = pl.pallas_call(
        _fused_forward_kernel,
        out_shape=jax.ShapeDtypeStruct((Bp, 128), f32),
        grid=(nblk,),
        in_specs=in_specs,
        out_specs=pl.BlockSpec((bb, 128), lambda i: (i, 0)),
        compiler_params=pltpu.CompilerParams(
            dimension_semantics=("parallel",)),
        cost_estimate=pl.CostEstimate(flops=int(nblk * flops_blk),
                                      transcendentals=0,
                                      bytes_accessed=bytes_acc),
    )(xs, brp, *weights)

    return out[:B, 0:1], out[:B, 1:2]   # mean, stddev (abs+0.01 applied in-kernel)


# ----------------------------------------------------------------------------
# Plain-JAX reference (validation) and deterministic init.
# ----------------------------------------------------------------------------
def conv_mid_reference(params, bx, br):
    def leaky(v):
        return jnp.where(v > 0, v, NEG_SLOPE * v)
    dn = ("NCHW", "OIHW", "NCHW")
    h = jax.lax.conv_general_dilated(bx, params["conv1_w"], (2, 2), "VALID",
                                     dimension_numbers=dn)
    h = leaky(h + params["conv1_b"][None, :, None, None])
    h = jax.lax.conv_general_dilated(h, params["conv2_w"], (2, 2), "VALID",
                                     dimension_numbers=dn)
    h = leaky(h + params["conv2_b"][None, :, None, None])
    h = h.reshape(bx.shape[0], -1)
    h = jnp.concatenate([h, br], axis=1)
    h = leaky(h @ params["fc1_w"].T + params["fc1_b"])
    h = jnp.concatenate([h, br], axis=1)
    h = leaky(h @ params["fc2_w"].T + params["fc2_b"])
    h = h @ params["fc3_w"].T + params["fc3_b"]
    return h[:, 0:1], jnp.abs(h[:, 1:2]) + 0.01


def init_params(key, x_dim):
    def uniform(k, shape, fan_in):
        bound = 1.0 / math.sqrt(fan_in)
        return jax.random.uniform(k, shape, jnp.float32, -bound, bound)
    keys = jax.random.split(key, 10)
    p = {}
    p["conv1_w"] = uniform(keys[0], (32, x_dim, 3, 3), x_dim * 9)
    p["conv1_b"] = uniform(keys[1], (32,), x_dim * 9)
    p["conv2_w"] = uniform(keys[2], (32, 32, 5, 5), 32 * 25)
    p["conv2_b"] = uniform(keys[3], (32,), 32 * 25)
    p["fc1_w"] = uniform(keys[4], (100, 6 * 6 * 32 + 1), 6 * 6 * 32 + 1)
    p["fc1_b"] = uniform(keys[5], (100,), 6 * 6 * 32 + 1)
    p["fc2_w"] = uniform(keys[6], (100, 101), 101)
    p["fc2_b"] = uniform(keys[7], (100,), 101)
    p["fc3_w"] = uniform(keys[8], (2, 100), 100)
    p["fc3_b"] = uniform(keys[9], (2,), 100)
    return p


if __name__ == "__main__":
    key = jax.random.PRNGKey(0)
    k_params, k_x, k_r = jax.random.split(key, 3)
    B, x_dim = 16, 3   # 32x32 spatial is required by fc1's 6*6*32 flatten size
    bx = jax.random.normal(k_x, (B, x_dim, 32, 32), jnp.float32)
    # br is torch.rand(B,1) in the module; provided explicitly here (deterministic)
    br = jax.random.uniform(k_r, (B, 1), jnp.float32)

    params = init_params(k_params, x_dim)
    prep = prepare_params(params, bb=BB)

    mean, stddev = jax.jit(conv_mid_forward)(prep, bx, br)
    jax.block_until_ready((mean, stddev))

    ref_mean, ref_std = jax.jit(conv_mid_reference)(params, bx, br)
    jax.block_until_ready((ref_mean, ref_std))

    assert mean.shape == (B, 1) and stddev.shape == (B, 1)
    assert bool(jnp.all(stddev >= 0.0099))
    # Tolerance covers default-precision / bf16 MXU operand rounding differences
    # between the fused kernel and the XLA reference path.
    assert bool(jnp.allclose(mean, ref_mean, atol=2e-2, rtol=2e-2)), "mean mismatch"
    assert bool(jnp.allclose(stddev, ref_std, atol=2e-2, rtol=2e-2)), "stddev mismatch"
    print("KERNEL_OK")
</pallas_src>

<mosaic_0001>
module attributes {stable_mosaic.version = 11 : i64} {
  func.func @_fused_forward_kernel(%arg0: i32, %arg1: memref<3x128x128xf32, #tpu.memory_space<vmem>>, %arg2: memref<8x1xf32, #tpu.memory_space<vmem>>, %arg3: memref<3x128x512xbf16, #tpu.memory_space<vmem>>, %arg4: memref<1x512xf32, #tpu.memory_space<vmem>>, %arg5: memref<5x48x128xbf16, #tpu.memory_space<vmem>>, %arg6: memref<5x512x256xbf16, #tpu.memory_space<vmem>>, %arg7: memref<1x256xf32, #tpu.memory_space<vmem>>, %arg8: memref<6x256x128xbf16, #tpu.memory_space<vmem>>, %arg9: memref<1x128xf32, #tpu.memory_space<vmem>>, %arg10: memref<1x128xf32, #tpu.memory_space<vmem>>, %arg11: memref<128x128xbf16, #tpu.memory_space<vmem>>, %arg12: memref<1x128xf32, #tpu.memory_space<vmem>>, %arg13: memref<1x128xf32, #tpu.memory_space<vmem>>, %arg14: memref<128x128xbf16, #tpu.memory_space<vmem>>, %arg15: memref<1x128xf32, #tpu.memory_space<vmem>>, %arg16: memref<8x128xf32, #tpu.memory_space<vmem>>) attributes {dimension_semantics = [#tpu.dimension_semantics<parallel>], iteration_bounds = array<i64: 2>, scalar_prefetch = 0 : i64, scratch_operands = 0 : i64, tpu.core_type = #tpu.core_type<tc>, window_params = [{transform_indices = @transform_0, window_bounds = array<i64: 3, 128, 128>}, {transform_indices = @transform_1, window_bounds = array<i64: 8, 1>}, {pipeline_mode = #tpu.pipeline_mode<synchronous>, transform_indices = @transform_2, window_bounds = array<i64: 3, 128, 512>}, {pipeline_mode = #tpu.pipeline_mode<synchronous>, transform_indices = @transform_3, window_bounds = array<i64: 1, 512>}, {pipeline_mode = #tpu.pipeline_mode<synchronous>, transform_indices = @transform_4, window_bounds = array<i64: 5, 48, 128>}, {pipeline_mode = #tpu.pipeline_mode<synchronous>, transform_indices = @transform_5, window_bounds = array<i64: 5, 512, 256>}, {pipeline_mode = #tpu.pipeline_mode<synchronous>, transform_indices = @transform_6, window_bounds = array<i64: 1, 256>}, {pipeline_mode = #tpu.pipeline_mode<synchronous>, transform_indices = @transform_7, window_bounds = array<i64: 6, 256, 128>}, {pipeline_mode = #tpu.pipeline_mode<synchronous>, transform_indices = @transform_8, window_bounds = array<i64: 1, 128>}, {pipeline_mode = #tpu.pipeline_mode<synchronous>, transform_indices = @transform_9, window_bounds = array<i64: 1, 128>}, {pipeline_mode = #tpu.pipeline_mode<synchronous>, transform_indices = @transform_10, window_bounds = array<i64: 128, 128>}, {pipeline_mode = #tpu.pipeline_mode<synchronous>, transform_indices = @transform_11, window_bounds = array<i64: 1, 128>}, {pipeline_mode = #tpu.pipeline_mode<synchronous>, transform_indices = @transform_12, window_bounds = array<i64: 1, 128>}, {pipeline_mode = #tpu.pipeline_mode<synchronous>, transform_indices = @transform_13, window_bounds = array<i64: 128, 128>}, {pipeline_mode = #tpu.pipeline_mode<synchronous>, transform_indices = @transform_14, window_bounds = array<i64: 1, 128>}, {transform_indices = @transform_15, window_bounds = array<i64: 8, 128>}]} {
    %c0 = arith.constant 0 : index
    %c0_0 = arith.constant 0 : index
    %c0_1 = arith.constant 0 : index
    %0 = vector.load %arg1[%c0, %c0_0, %c0_1] : memref<3x128x128xf32, #tpu.memory_space<vmem>>, vector<1x128x128xf32>
    %1 = vector.shape_cast %0 : vector<1x128x128xf32> to vector<128x128xf32>
    %c0_2 = arith.constant 0 : index
    %c0_3 = arith.constant 0 : index
    %c0_4 = arith.constant 0 : index
    %2 = vector.load %arg3[%c0_2, %c0_3, %c0_4] : memref<3x128x512xbf16, #tpu.memory_space<vmem>>, vector<1x128x512xbf16>
    %3 = vector.shape_cast %2 : vector<1x128x512xbf16> to vector<128x512xbf16>
    %4 = arith.truncf %1 : vector<128x128xf32> to vector<128x128xbf16>
    %cst = arith.constant dense<0.000000e+00> : vector<128x512xf32>
    %5 = tpu.matmul %4, %3, %cst {dimension_numbers = #tpu.dot_dimension_numbers<[1], [0], [0], [1], [0, 0, 1, 1], [], []>} : vector<128x128xbf16>, vector<128x512xbf16>, vector<128x512xf32> -> vector<128x512xf32>
    %c1 = arith.constant 1 : index
    %c0_5 = arith.constant 0 : index
    %c0_6 = arith.constant 0 : index
    %6 = vector.load %arg1[%c1, %c0_5, %c0_6] : memref<3x128x128xf32, #tpu.memory_space<vmem>>, vector<1x128x128xf32>
    %7 = vector.shape_cast %6 : vector<1x128x128xf32> to vector<128x128xf32>
    %c1_7 = arith.constant 1 : index
    %c0_8 = arith.constant 0 : index
    %c0_9 = arith.constant 0 : index
    %8 = vector.load %arg3[%c1_7, %c0_8, %c0_9] : memref<3x128x512xbf16, #tpu.memory_space<vmem>>, vector<1x128x512xbf16>
    %9 = vector.shape_cast %8 : vector<1x128x512xbf16> to vector<128x512xbf16>
    %10 = arith.truncf %7 : vector<128x128xf32> to vector<128x128xbf16>
    %cst_10 = arith.constant dense<0.000000e+00> : vector<128x512xf32>
    %11 = tpu.matmul %10, %9, %cst_10 {dimension_numbers = #tpu.dot_dimension_numbers<[1], [0], [0], [1], [0, 0, 1, 1], [], []>} : vector<128x128xbf16>, vector<128x512xbf16>, vector<128x512xf32> -> vector<128x512xf32>
    %12 = arith.addf %5, %11 : vector<128x512xf32>
    %c2 = arith.constant 2 : index
    %c0_11 = arith.constant 0 : index
    %c0_12 = arith.constant 0 : index
    %13 = vector.load %arg1[%c2, %c0_11, %c0_12] : memref<3x128x128xf32, #tpu.memory_space<vmem>>, vector<1x128x128xf32>
    %14 = vector.shape_cast %13 : vector<1x128x128xf32> to vector<128x128xf32>
    %c2_13 = arith.constant 2 : index
    %c0_14 = arith.constant 0 : index
    %c0_15 = arith.constant 0 : index
    %15 = vector.load %arg3[%c2_13, %c0_14, %c0_15] : memref<3x128x512xbf16, #tpu.memory_space<vmem>>, vector<1x128x512xbf16>
    %16 = vector.shape_cast %15 : vector<1x128x512xbf16> to vector<128x512xbf16>
    %17 = arith.truncf %14 : vector<128x128xf32> to vector<128x128xbf16>
    %cst_16 = arith.constant dense<0.000000e+00> : vector<128x512xf32>
    %18 = tpu.matmul %17, %16, %cst_16 {dimension_numbers = #tpu.dot_dimension_numbers<[1], [0], [0], [1], [0, 0, 1, 1], [], []>} : vector<128x128xbf16>, vector<128x512xbf16>, vector<128x512xf32> -> vector<128x512xf32>
    %19 = arith.addf %12, %18 : vector<128x512xf32>
    %c0_17 = arith.constant 0 : index
    %c0_18 = arith.constant 0 : index
    %20 = vector.load %arg4[%c0_17, %c0_18] : memref<1x512xf32, #tpu.memory_space<vmem>>, vector<1x512xf32>
    %21 = vector.broadcast %20 : vector<1x512xf32> to vector<128x512xf32>
    %22 = arith.addf %19, %21 : vector<128x512xf32>
    %cst_19 = arith.constant 0.000000e+00 : f32
    %23 = vector.broadcast %cst_19 : f32 to vector<128x512xf32>
    %24 = arith.cmpf ogt, %22, %23 : vector<128x512xf32>
    %cst_20 = arith.constant 0.00999999977 : f32
    %25 = vector.broadcast %cst_20 : f32 to vector<128x512xf32>
    %26 = arith.mulf %25, %22 : vector<128x512xf32>
    %27 = arith.select %24, %22, %26 : vector<128x512xi1>, vector<128x512xf32>
    %28 = arith.truncf %27 : vector<128x512xf32> to vector<128x512xbf16>
    %c0_21 = arith.constant 0 : index
    %c0_22 = arith.constant 0 : index
    %c0_23 = arith.constant 0 : index
    %29 = vector.load %arg5[%c0_21, %c0_22, %c0_23] : memref<5x48x128xbf16, #tpu.memory_space<vmem>>, vector<1x48x128xbf16>
    %30 = vector.shape_cast %29 : vector<1x48x128xbf16> to vector<48x128xbf16>
    %cst_24 = arith.constant dense<0.000000e+00> : vector<48x512xf32>
    %31 = tpu.matmul %30, %28, %cst_24 {dimension_numbers = #tpu.dot_dimension_numbers<[1], [0], [0], [1], [0, 0, 1, 1], [], []>} : vector<48x128xbf16>, vector<128x512xbf16>, vector<48x512xf32> -> vector<48x512xf32>
    %c0_25 = arith.constant 0 : index
    %c0_26 = arith.constant 0 : index
    %c0_27 = arith.constant 0 : index
    %32 = vector.load %arg6[%c0_25, %c0_26, %c0_27] : memref<5x512x256xbf16, #tpu.memory_space<vmem>>, vector<1x512x256xbf16>
    %33 = vector.shape_cast %32 : vector<1x512x256xbf16> to vector<512x256xbf16>
    %34 = arith.truncf %31 : vector<48x512xf32> to vector<48x512xbf16>
    %cst_28 = arith.constant dense<0.000000e+00> : vector<48x256xf32>
    %35 = tpu.matmul %34, %33, %cst_28 {dimension_numbers = #tpu.dot_dimension_numbers<[1], [0], [0], [1], [0, 0, 1, 1], [], []>} : vector<48x512xbf16>, vector<512x256xbf16>, vector<48x256xf32> -> vector<48x256xf32>
    %c1_29 = arith.constant 1 : index
    %c0_30 = arith.constant 0 : index
    %c0_31 = arith.constant 0 : index
    %36 = vector.load %arg5[%c1_29, %c0_30, %c0_31] : memref<5x48x128xbf16, #tpu.memory_space<vmem>>, vector<1x48x128xbf16>
    %37 = vector.shape_cast %36 : vector<1x48x128xbf16> to vector<48x128xbf16>
    %cst_32 = arith.constant dense<0.000000e+00> : vector<48x512xf32>
    %38 = tpu.matmul %37, %28, %cst_32 {dimension_numbers = #tpu.dot_dimension_numbers<[1], [0], [0], [1], [0, 0, 1, 1], [], []>} : vector<48x128xbf16>, vector<128x512xbf16>, vector<48x512xf32> -> vector<48x512xf32>
    %c1_33 = arith.constant 1 : index
    %c0_34 = arith.constant 0 : index
    %c0_35 = arith.constant 0 : index
    %39 = vector.load %arg6[%c1_33, %c0_34, %c0_35] : memref<5x512x256xbf16, #tpu.memory_space<vmem>>, vector<1x512x256xbf16>
    %40 = vector.shape_cast %39 : vector<1x512x256xbf16> to vector<512x256xbf16>
    %41 = arith.truncf %38 : vector<48x512xf32> to vector<48x512xbf16>
    %cst_36 = arith.constant dense<0.000000e+00> : vector<48x256xf32>
    %42 = tpu.matmul %41, %40, %cst_36 {dimension_numbers = #tpu.dot_dimension_numbers<[1], [0], [0], [1], [0, 0, 1, 1], [], []>} : vector<48x512xbf16>, vector<512x256xbf16>, vector<48x256xf32> -> vector<48x256xf32>
    %43 = arith.addf %35, %42 : vector<48x256xf32>
    %c2_37 = arith.constant 2 : index
    %c0_38 = arith.constant 0 : index
    %c0_39 = arith.constant 0 : index
    %44 = vector.load %arg5[%c2_37, %c0_38, %c0_39] : memref<5x48x128xbf16, #tpu.memory_space<vmem>>, vector<1x48x128xbf16>
    %45 = vector.shape_cast %44 : vector<1x48x128xbf16> to vector<48x128xbf16>
    %cst_40 = arith.constant dense<0.000000e+00> : vector<48x512xf32>
    %46 = tpu.matmul %45, %28, %cst_40 {dimension_numbers = #tpu.dot_dimension_numbers<[1], [0], [0], [1], [0, 0, 1, 1], [], []>} : vector<48x128xbf16>, vector<128x512xbf16>, vector<48x512xf32> -> vector<48x512xf32>
    %c2_41 = arith.constant 2 : index
    %c0_42 = arith.constant 0 : index
    %c0_43 = arith.constant 0 : index
    %47 = vector.load %arg6[%c2_41, %c0_42, %c0_43] : memref<5x512x256xbf16, #tpu.memory_space<vmem>>, vector<1x512x256xbf16>
    %48 = vector.shape_cast %47 : vector<1x512x256xbf16> to vector<512x256xbf16>
    %49 = arith.truncf %46 : vector<48x512xf32> to vector<48x512xbf16>
    %cst_44 = arith.constant dense<0.000000e+00> : vector<48x256xf32>
    %50 = tpu.matmul %49, %48, %cst_44 {dimension_numbers = #tpu.dot_dimension_numbers<[1], [0], [0], [1], [0, 0, 1, 1], [], []>} : vector<48x512xbf16>, vector<512x256xbf16>, vector<48x256xf32> -> vector<48x256xf32>
    %51 = arith.addf %43, %50 : vector<48x256xf32>
    %c3 = arith.constant 3 : index
    %c0_45 = arith.constant 0 : index
    %c0_46 = arith.constant 0 : index
    %52 = vector.load %arg5[%c3, %c0_45, %c0_46] : memref<5x48x128xbf16, #tpu.memory_space<vmem>>, vector<1x48x128xbf16>
    %53 = vector.shape_cast %52 : vector<1x48x128xbf16> to vector<48x128xbf16>
    %cst_47 = arith.constant dense<0.000000e+00> : vector<48x512xf32>
    %54 = tpu.matmul %53, %28, %cst_47 {dimension_numbers = #tpu.dot_dimension_numbers<[1], [0], [0], [1], [0, 0, 1, 1], [], []>} : vector<48x128xbf16>, vector<128x512xbf16>, vector<48x512xf32> -> vector<48x512xf32>
    %c3_48 = arith.constant 3 : index
    %c0_49 = arith.constant 0 : index
    %c0_50 = arith.constant 0 : index
    %55 = vector.load %arg6[%c3_48, %c0_49, %c0_50] : memref<5x512x256xbf16, #tpu.memory_space<vmem>>, vector<1x512x256xbf16>
    %56 = vector.shape_cast %55 : vector<1x512x256xbf16> to vector<512x256xbf16>
    %57 = arith.truncf %54 : vector<48x512xf32> to vector<48x512xbf16>
    %cst_51 = arith.constant dense<0.000000e+00> : vector<48x256xf32>
    %58 = tpu.matmul %57, %56, %cst_51 {dimension_numbers = #tpu.dot_dimension_numbers<[1], [0], [0], [1], [0, 0, 1, 1], [], []>} : vector<48x512xbf16>, vector<512x256xbf16>, vector<48x256xf32> -> vector<48x256xf32>
    %59 = arith.addf %51, %58 : vector<48x256xf32>
    %c4 = arith.constant 4 : index
    %c0_52 = arith.constant 0 : index
    %c0_53 = arith.constant 0 : index
    %60 = vector.load %arg5[%c4, %c0_52, %c0_53] : memref<5x48x128xbf16, #tpu.memory_space<vmem>>, vector<1x48x128xbf16>
    %61 = vector.shape_cast %60 : vector<1x48x128xbf16> to vector<48x128xbf16>
    %cst_54 = arith.constant dense<0.000000e+00> : vector<48x512xf32>
    %62 = tpu.matmul %61, %28, %cst_54 {dimension_numbers = #tpu.dot_dimension_numbers<[1], [0], [0], [1], [0, 0, 1, 1], [], []>} : vector<48x128xbf16>, vector<128x512xbf16>, vector<48x512xf32> -> vector<48x512xf32>
    %c4_55 = arith.constant 4 : index
    %c0_56 = arith.constant 0 : index
    %c0_57 = arith.constant 0 : index
    %63 = vector.load %arg6[%c4_55, %c0_56, %c0_57] : memref<5x512x256xbf16, #tpu.memory_space<vmem>>, vector<1x512x256xbf16>
    %64 = vector.shape_cast %63 : vector<1x512x256xbf16> to vector<512x256xbf16>
    %65 = arith.truncf %62 : vector<48x512xf32> to vector<48x512xbf16>
    %cst_58 = arith.constant dense<0.000000e+00> : vector<48x256xf32>
    %66 = tpu.matmul %65, %64, %cst_58 {dimension_numbers = #tpu.dot_dimension_numbers<[1], [0], [0], [1], [0, 0, 1, 1], [], []>} : vector<48x512xbf16>, vector<512x256xbf16>, vector<48x256xf32> -> vector<48x256xf32>
    %67 = arith.addf %59, %66 : vector<48x256xf32>
    %c0_59 = arith.constant 0 : index
    %c0_60 = arith.constant 0 : index
    %68 = vector.load %arg7[%c0_59, %c0_60] : memref<1x256xf32, #tpu.memory_space<vmem>>, vector<1x256xf32>
    %69 = vector.broadcast %68 : vector<1x256xf32> to vector<48x256xf32>
    %70 = arith.addf %67, %69 : vector<48x256xf32>
    %cst_61 = arith.constant 0.000000e+00 : f32
    %71 = vector.broadcast %cst_61 : f32 to vector<48x256xf32>
    %72 = arith.cmpf ogt, %70, %71 : vector<48x256xf32>
    %cst_62 = arith.constant 0.00999999977 : f32
    %73 = vector.broadcast %cst_62 : f32 to vector<48x256xf32>
    %74 = arith.mulf %73, %70 : vector<48x256xf32>
    %75 = arith.select %72, %70, %74 : vector<48x256xi1>, vector<48x256xf32>
    %c0_63 = arith.constant 0 : index
    %c0_64 = arith.constant 0 : index
    %76 = vector.load %arg10[%c0_63, %c0_64] : memref<1x128xf32, #tpu.memory_space<vmem>>, vector<1x128xf32>
    %c0_65 = arith.constant 0 : index
    %c0_66 = arith.constant 0 : index
    %77 = vector.load %arg2[%c0_65, %c0_66] : memref<8x1xf32, #tpu.memory_space<vmem>>, vector<8x1xf32>
    %c0_67 = arith.constant 0 : index
    %c0_68 = arith.constant 0 : index
    %78 = vector.load %arg9[%c0_67, %c0_68] : memref<1x128xf32, #tpu.memory_space<vmem>>, vector<1x128xf32>
    %79 = vector.broadcast %77 : vector<8x1xf32> to vector<8x128xf32>
    %80 = vector.broadcast %78 : vector<1x128xf32> to vector<8x128xf32>
    %81 = arith.mulf %79, %80 : vector<8x128xf32>
    %82 = vector.broadcast %76 : vector<1x128xf32> to vector<8x128xf32>
    %83 = arith.addf %82, %81 : vector<8x128xf32>
    %84 = vector.extract_strided_slice %75 {offsets = [0, 0], sizes = [8, 256], strides = [1, 1]} : vector<48x256xf32> to vector<8x256xf32>
    %c0_69 = arith.constant 0 : index
    %c0_70 = arith.constant 0 : index
    %c0_71 = arith.constant 0 : index
    %85 = vector.load %arg8[%c0_69, %c0_70, %c0_71] : memref<6x256x128xbf16, #tpu.memory_space<vmem>>, vector<1x256x128xbf16>
    %86 = vector.shape_cast %85 : vector<1x256x128xbf16> to vector<256x128xbf16>
    %87 = arith.truncf %84 : vector<8x256xf32> to vector<8x256xbf16>
    %cst_72 = arith.constant dense<0.000000e+00> : vector<8x128xf32>
    %88 = tpu.matmul %87, %86, %cst_72 {dimension_numbers = #tpu.dot_dimension_numbers<[1], [0], [0], [1], [0, 0, 1, 1], [], []>} : vector<8x256xbf16>, vector<256x128xbf16>, vector<8x128xf32> -> vector<8x128xf32>
    %89 = arith.addf %83, %88 : vector<8x128xf32>
    %90 = vector.extract_strided_slice %75 {offsets = [8, 0], sizes = [8, 256], strides = [1, 1]} : vector<48x256xf32> to vector<8x256xf32>
    %c1_73 = arith.constant 1 : index
    %c0_74 = arith.constant 0 : index
    %c0_75 = arith.constant 0 : index
    %91 = vector.load %arg8[%c1_73, %c0_74, %c0_75] : memref<6x256x128xbf16, #tpu.memory_space<vmem>>, vector<1x256x128xbf16>
    %92 = vector.shape_cast %91 : vector<1x256x128xbf16> to vector<256x128xbf16>
    %93 = arith.truncf %90 : vector<8x256xf32> to vector<8x256xbf16>
    %cst_76 = arith.constant dense<0.000000e+00> : vector<8x128xf32>
    %94 = tpu.matmul %93, %92, %cst_76 {dimension_numbers = #tpu.dot_dimension_numbers<[1], [0], [0], [1], [0, 0, 1, 1], [], []>} : vector<8x256xbf16>, vector<256x128xbf16>, vector<8x128xf32> -> vector<8x128xf32>
    %95 = arith.addf %89, %94 : vector<8x128xf32>
    %96 = vector.extract_strided_slice %75 {offsets = [16, 0], sizes = [8, 256], strides = [1, 1]} : vector<48x256xf32> to vector<8x256xf32>
    %c2_77 = arith.constant 2 : index
    %c0_78 = arith.constant 0 : index
    %c0_79 = arith.constant 0 : index
    %97 = vector.load %arg8[%c2_77, %c0_78, %c0_79] : memref<6x256x128xbf16, #tpu.memory_space<vmem>>, vector<1x256x128xbf16>
    %98 = vector.shape_cast %97 : vector<1x256x128xbf16> to vector<256x128xbf16>
    %99 = arith.truncf %96 : vector<8x256xf32> to vector<8x256xbf16>
    %cst_80 = arith.constant dense<0.000000e+00> : vector<8x128xf32>
    %100 = tpu.matmul %99, %98, %cst_80 {dimension_numbers = #tpu.dot_dimension_numbers<[1], [0], [0], [1], [0, 0, 1, 1], [], []>} : vector<8x256xbf16>, vector<256x128xbf16>, vector<8x128xf32> -> vector<8x128xf32>
    %101 = arith.addf %95, %100 : vector<8x128xf32>
    %102 = vector.extract_strided_slice %75 {offsets = [24, 0], sizes = [8, 256], strides = [1, 1]} : vector<48x256xf32> to vector<8x256xf32>
    %c3_81 = arith.constant 3 : index
    %c0_82 = arith.constant 0 : index
    %c0_83 = arith.constant 0 : index
    %103 = vector.load %arg8[%c3_81, %c0_82, %c0_83] : memref<6x256x128xbf16, #tpu.memory_space<vmem>>, vector<1x256x128xbf16>
    %104 = vector.shape_cast %103 : vector<1x256x128xbf16> to vector<256x128xbf16>
    %105 = arith.truncf %102 : vector<8x256xf32> to vector<8x256xbf16>
    %cst_84 = arith.constant dense<0.000000e+00> : vector<8x128xf32>
    %106 = tpu.matmul %105, %104, %cst_84 {dimension_numbers = #tpu.dot_dimension_numbers<[1], [0], [0], [1], [0, 0, 1, 1], [], []>} : vector<8x256xbf16>, vector<256x128xbf16>, vector<8x128xf32> -> vector<8x128xf32>
    %107 = arith.addf %101, %106 : vector<8x128xf32>
    %108 = vector.extract_strided_slice %75 {offsets = [32, 0], sizes = [8, 256], strides = [1, 1]} : vector<48x256xf32> to vector<8x256xf32>
    %c4_85 = arith.constant 4 : index
    %c0_86 = arith.constant 0 : index
    %c0_87 = arith.constant 0 : index
    %109 = vector.load %arg8[%c4_85, %c0_86, %c0_87] : memref<6x256x128xbf16, #tpu.memory_space<vmem>>, vector<1x256x128xbf16>
    %110 = vector.shape_cast %109 : vector<1x256x128xbf16> to vector<256x128xbf16>
    %111 = arith.truncf %108 : vector<8x256xf32> to vector<8x256xbf16>
    %cst_88 = arith.constant dense<0.000000e+00> : vector<8x128xf32>
    %112 = tpu.matmul %111, %110, %cst_88 {dimension_numbers = #tpu.dot_dimension_numbers<[1], [0], [0], [1], [0, 0, 1, 1], [], []>} : vector<8x256xbf16>, vector<256x128xbf16>, vector<8x128xf32> -> vector<8x128xf32>
    %113 = arith.addf %107, %112 : vector<8x128xf32>
    %114 = vector.extract_strided_slice %75 {offsets = [40, 0], sizes = [8, 256], strides = [1, 1]} : vector<48x256xf32> to vector<8x256xf32>
    %c5 = arith.constant 5 : index
    %c0_89 = arith.constant 0 : index
    %c0_90 = arith.constant 0 : index
    %115 = vector.load %arg8[%c5, %c0_89, %c0_90] : memref<6x256x128xbf16, #tpu.memory_space<vmem>>, vector<1x256x128xbf16>
    %116 = vector.shape_cast %115 : vector<1x256x128xbf16> to vector<256x128xbf16>
    %117 = arith.truncf %114 : vector<8x256xf32> to vector<8x256xbf16>
    %cst_91 = arith.constant dense<0.000000e+00> : vector<8x128xf32>
    %118 = tpu.matmul %117, %116, %cst_91 {dimension_numbers = #tpu.dot_dimension_numbers<[1], [0], [0], [1], [0, 0, 1, 1], [], []>} : vector<8x256xbf16>, vector<256x128xbf16>, vector<8x128xf32> -> vector<8x128xf32>
    %119 = arith.addf %113, %118 : vector<8x128xf32>
    %cst_92 = arith.constant 0.000000e+00 : f32
    %120 = vector.broadcast %cst_92 : f32 to vector<8x128xf32>
    %121 = arith.cmpf ogt, %119, %120 : vector<8x128xf32>
    %cst_93 = arith.constant 0.00999999977 : f32
    %122 = vector.broadcast %cst_93 : f32 to vector<8x128xf32>
    %123 = arith.mulf %122, %119 : vector<8x128xf32>
    %124 = arith.select %121, %119, %123 : vector<8x128xi1>, vector<8x128xf32>
    %c0_94 = arith.constant 0 : index
    %c0_95 = arith.constant 0 : index
    %125 = vector.load %arg13[%c0_94, %c0_95] : memref<1x128xf32, #tpu.memory_space<vmem>>, vector<1x128xf32>
    %c0_96 = arith.constant 0 : index
    %c0_97 = arith.constant 0 : index
    %126 = vector.load %arg2[%c0_96, %c0_97] : memref<8x1xf32, #tpu.memory_space<vmem>>, vector<8x1xf32>
    %c0_98 = arith.constant 0 : index
    %c0_99 = arith.constant 0 : index
    %127 = vector.load %arg12[%c0_98, %c0_99] : memref<1x128xf32, #tpu.memory_space<vmem>>, vector<1x128xf32>
    %128 = vector.broadcast %126 : vector<8x1xf32> to vector<8x128xf32>
    %129 = vector.broadcast %127 : vector<1x128xf32> to vector<8x128xf32>
    %130 = arith.mulf %128, %129 : vector<8x128xf32>
    %131 = vector.broadcast %125 : vector<1x128xf32> to vector<8x128xf32>
    %132 = arith.addf %131, %130 : vector<8x128xf32>
    %c0_100 = arith.constant 0 : index
    %c0_101 = arith.constant 0 : index
    %133 = vector.load %arg11[%c0_100, %c0_101] : memref<128x128xbf16, #tpu.memory_space<vmem>>, vector<128x128xbf16>
    %134 = arith.truncf %124 : vector<8x128xf32> to vector<8x128xbf16>
    %cst_102 = arith.constant dense<0.000000e+00> : vector<8x128xf32>
    %135 = tpu.matmul %134, %133, %cst_102 {dimension_numbers = #tpu.dot_dimension_numbers<[1], [0], [0], [1], [0, 0, 1, 1], [], []>} : vector<8x128xbf16>, vector<128x128xbf16>, vector<8x128xf32> -> vector<8x128xf32>
    %136 = arith.addf %132, %135 : vector<8x128xf32>
    %cst_103 = arith.constant 0.000000e+00 : f32
    %137 = vector.broadcast %cst_103 : f32 to vector<8x128xf32>
    %138 = arith.cmpf ogt, %136, %137 : vector<8x128xf32>
    %cst_104 = arith.constant 0.00999999977 : f32
    %139 = vector.broadcast %cst_104 : f32 to vector<8x128xf32>
    %140 = arith.mulf %139, %136 : vector<8x128xf32>
    %141 = arith.select %138, %136, %140 : vector<8x128xi1>, vector<8x128xf32>
    %c0_105 = arith.constant 0 : index
    %c0_106 = arith.constant 0 : index
    %142 = vector.load %arg14[%c0_105, %c0_106] : memref<128x128xbf16, #tpu.memory_space<vmem>>, vector<128x128xbf16>
    %143 = arith.truncf %141 : vector<8x128xf32> to vector<8x128xbf16>
    %cst_107 = arith.constant dense<0.000000e+00> : vector<8x128xf32>
    %144 = tpu.matmul %143, %142, %cst_107 {dimension_numbers = #tpu.dot_dimension_numbers<[1], [0], [0], [1], [0, 0, 1, 1], [], []>} : vector<8x128xbf16>, vector<128x128xbf16>, vector<8x128xf32> -> vector<8x128xf32>
    %c0_108 = arith.constant 0 : index
    %c0_109 = arith.constant 0 : index
    %145 = vector.load %arg15[%c0_108, %c0_109] : memref<1x128xf32, #tpu.memory_space<vmem>>, vector<1x128xf32>
    %146 = vector.broadcast %145 : vector<1x128xf32> to vector<8x128xf32>
    %147 = arith.addf %144, %146 : vector<8x128xf32>
    %148 = tpu.iota {dimensions = array<i32: 1>} : vector<8x128xi32>
    %c1_i32 = arith.constant 1 : i32
    %149 = vector.broadcast %c1_i32 : i32 to vector<8x128xi32>
    %150 = arith.cmpi eq, %148, %149 : vector<8x128xi32>
    %151 = math.absf %147 : vector<8x128xf32>
    %cst_110 = arith.constant 0.00999999977 : f32
    %152 = vector.broadcast %cst_110 : f32 to vector<8x128xf32>
    %153 = arith.addf %151, %152 : vector<8x128xf32>
    %154 = arith.select %150, %153, %147 : vector<8x128xi1>, vector<8x128xf32>
    %c0_111 = arith.constant 0 : index
    %c0_112 = arith.constant 0 : index
    %155 = vector.load %arg16[%c0_111, %c0_112] : memref<8x128xf32, #tpu.memory_space<vmem>>, vector<8x128xf32>
    tpu.vector_store %arg16[%c0_111, %c0_112], %154 {strides = array<i32>} : memref<8x128xf32, #tpu.memory_space<vmem>>, vector<8x128xf32>,
    return
  }
  func.func @transform_0(%arg0: i32) -> (i32, i32, i32) {
    %c0_i32 = arith.constant 0 : i32
    %c0_i32_0 = arith.constant 0 : i32
    %c0_i32_1 = arith.constant 0 : i32
    return %c0_i32, %arg0, %c0_i32_0 : i32, i32, i32
  }
  func.func @transform_1(%arg0: i32) -> (i32, i32) {
    %c0_i32 = arith.constant 0 : i32
    %c0_i32_0 = arith.constant 0 : i32
    return %arg0, %c0_i32 : i32, i32
  }
  func.func @transform_2(%arg0: i32) -> (i32, i32, i32) {
    %c0_i32 = arith.constant 0 : i32
    %c0_i32_0 = arith.constant 0 : i32
    %c0_i32_1 = arith.constant 0 : i32
    %c0_i32_2 = arith.constant 0 : i32
    return %c0_i32, %c0_i32_0, %c0_i32_1 : i32, i32, i32
  }
  func.func @transform_3(%arg0: i32) -> (i32, i32) {
    %c0_i32 = arith.constant 0 : i32
    %c0_i32_0 = arith.constant 0 : i32
    %c0_i32_1 = arith.constant 0 : i32
    return %c0_i32, %c0_i32_0 : i32, i32
  }
  func.func @transform_4(%arg0: i32) -> (i32, i32, i32) {
    %c0_i32 = arith.constant 0 : i32
    %c0_i32_0 = arith.constant 0 : i32
    %c0_i32_1 = arith.constant 0 : i32
    %c0_i32_2 = arith.constant 0 : i32
    return %c0_i32, %c0_i32_0, %c0_i32_1 : i32, i32, i32
  }
  func.func @transform_5(%arg0: i32) -> (i32, i32, i32) {
    %c0_i32 = arith.constant 0 : i32
    %c0_i32_0 = arith.constant 0 : i32
    %c0_i32_1 = arith.constant 0 : i32
    %c0_i32_2 = arith.constant 0 : i32
    return %c0_i32, %c0_i32_0, %c0_i32_1 : i32, i32, i32
  }
  func.func @transform_6(%arg0: i32) -> (i32, i32) {
    %c0_i32 = arith.constant 0 : i32
    %c0_i32_0 = arith.constant 0 : i32
    %c0_i32_1 = arith.constant 0 : i32
    return %c0_i32, %c0_i32_0 : i32, i32
  }
  func.func @transform_7(%arg0: i32) -> (i32, i32, i32) {
    %c0_i32 = arith.constant 0 : i32
    %c0_i32_0 = arith.constant 0 : i32
    %c0_i32_1 = arith.constant 0 : i32
    %c0_i32_2 = arith.constant 0 : i32
    return %c0_i32, %c0_i32_0, %c0_i32_1 : i32, i32, i32
  }
  func.func @transform_8(%arg0: i32) -> (i32, i32) {
    %c0_i32 = arith.constant 0 : i32
    %c0_i32_0 = arith.constant 0 : i32
    %c0_i32_1 = arith.constant 0 : i32
    return %c0_i32, %c0_i32_0 : i32, i32
  }
  func.func @transform_9(%arg0: i32) -> (i32, i32) {
    %c0_i32 = arith.constant 0 : i32
    %c0_i32_0 = arith.constant 0 : i32
    %c0_i32_1 = arith.constant 0 : i32
    return %c0_i32, %c0_i32_0 : i32, i32
  }
  func.func @transform_10(%arg0: i32) -> (i32, i32) {
    %c0_i32 = arith.constant 0 : i32
    %c0_i32_0 = arith.constant 0 : i32
    %c0_i32_1 = arith.constant 0 : i32
    return %c0_i32, %c0_i32_0 : i32, i32
  }
  func.func @transform_11(%arg0: i32) -> (i32, i32) {
    %c0_i32 = arith.constant 0 : i32
    %c0_i32_0 = arith.constant 0 : i32
    %c0_i32_1 = arith.constant 0 : i32
    return %c0_i32, %c0_i32_0 : i32, i32
  }
  func.func @transform_12(%arg0: i32) -> (i32, i32) {
    %c0_i32 = arith.constant 0 : i32
    %c0_i32_0 = arith.constant 0 : i32
    %c0_i32_1 = arith.constant 0 : i32
    return %c0_i32, %c0_i32_0 : i32, i32
  }
  func.func @transform_13(%arg0: i32) -> (i32, i32) {
    %c0_i32 = arith.constant 0 : i32
    %c0_i32_0 = arith.constant 0 : i32
    %c0_i32_1 = arith.constant 0 : i32
    return %c0_i32, %c0_i32_0 : i32, i32
  }
  func.func @transform_14(%arg0: i32) -> (i32, i32) {
    %c0_i32 = arith.constant 0 : i32
    %c0_i32_0 = arith.constant 0 : i32
    %c0_i32_1 = arith.constant 0 : i32
    return %c0_i32, %c0_i32_0 : i32, i32
  }
  func.func @transform_15(%arg0: i32) -> (i32, i32) {
    %c0_i32 = arith.constant 0 : i32
    %c0_i32_0 = arith.constant 0 : i32
    return %arg0, %c0_i32 : i32, i32
  }
}

</mosaic_0001>

<llo_original>
// kernel: conv_mid_forward.1
$region0: #{conv_mid_forward.1}
  #allocation0 [shape = 'u32[]', space=smem, size = 0x4, offset = 0x4, fixed_abs, tag = 'smem constant byte address 0x4 - core index']
  #allocation1 [shape = 'u32[72,128]{1,0:T(1,128)}', space=vmem, size = 0x9000, scoped, tag = 'internal scratch']
  %s0 = inlined_call_operand.vmem [shape: f32[3,256,128], index: 0, kind: input, shape index: {}]
  %s1 = inlined_call_operand.vmem [shape: f32[16,1], index: 1, kind: input, shape index: {}]
  %s2 = inlined_call_operand.vmem [shape: bf16[3,128,512], index: 2, kind: input, shape index: {}]
  %s3 = inlined_call_operand.vmem [shape: f32[1,512], index: 3, kind: input, shape index: {}]
  %s4 = inlined_call_operand.vmem [shape: bf16[5,48,128], index: 4, kind: input, shape index: {}]
  %s5 = inlined_call_operand.vmem [shape: bf16[5,512,256], index: 5, kind: input, shape index: {}]
  %s6 = inlined_call_operand.vmem [shape: f32[1,256], index: 6, kind: input, shape index: {}]
  %s7 = inlined_call_operand.vmem [shape: bf16[6,256,128], index: 7, kind: input, shape index: {}]
  %s8 = inlined_call_operand.vmem [shape: f32[1,128], index: 8, kind: input, shape index: {}]
  %s9 = inlined_call_operand.vmem [shape: f32[1,128], index: 9, kind: input, shape index: {}]
  %s10 = inlined_call_operand.vmem [shape: bf16[128,128], index: 10, kind: input, shape index: {}]
  %s11 = inlined_call_operand.vmem [shape: f32[1,128], index: 11, kind: input, shape index: {}]
  %s12 = inlined_call_operand.vmem [shape: f32[1,128], index: 12, kind: input, shape index: {}]
  %s13 = inlined_call_operand.vmem [shape: bf16[128,128], index: 13, kind: input, shape index: {}]
  %s14 = inlined_call_operand.vmem [shape: f32[1,128], index: 14, kind: input, shape index: {}]
  %s15 = inlined_call_operand.vmem [shape: f32[16,128], index: 15, kind: output, shape index: {}]
  %s16 = sld [smem:[#allocation0]]
  $region131: #{conv_mid_forward.1} parent=0
    _
  %s18 = ssub.s32 1, %s16
  %s19 = scalar_select 0, %s18, %s16
  $region1: #{conv_mid_forward.1} parent=0
    #allocation2 [shape = 'u8[393216]{0}', space=vmem, size = 0x60000, scoped, tag = 'input window, operand 0']
    loop: start=0, step=1, limit=4
    $region2: #{conv_mid_forward.1} parent=1 // loop_pre_header
      _
    $region3: #{conv_mid_forward.1} parent=1 // loop_header
      %s21 = sphi 0, %s25
      %p22 = scmp.ge.s32.totalorder %s21, 4
      %s31 = sphi 0, %s33
      %s34 = sphi 0, %s31
      %s35 = sphi 0, %s34
      %s51 = sphi 0, %s35
      %s57 = sphi 0, %s59
      %s60 = sphi 0, %s57
      %s61 = sphi 0, %s60
      %s77 = sphi 0, %s61
      %s81 = sphi 0, %s81
      %s83 = sphi 0, %s81
      %s84 = sphi 0, %s83
      %s98 = sphi 0, %s84
      %s102 = sphi 0, %s102
      %s104 = sphi 0, %s102
      %s105 = sphi 0, %s104
      %s119 = sphi 0, %s105
      %s123 = sphi 0, %s123
      %s125 = sphi 0, %s123
      %s126 = sphi 0, %s125
      %s140 = sphi 0, %s126
      %s144 = sphi 0, %s144
      %s146 = sphi 0, %s144
      %s147 = sphi 0, %s146
      %s161 = sphi 0, %s147
      %s165 = sphi 0, %s165
      %s167 = sphi 0, %s165
      %s168 = sphi 0, %s167
      %s182 = sphi 0, %s168
      %s186 = sphi 0, %s186
      %s188 = sphi 0, %s186
      %s189 = sphi 0, %s188
      %s203 = sphi 0, %s189
      %s207 = sphi 0, %s207
      %s209 = sphi 0, %s207
      %s210 = sphi 0, %s209
      %s224 = sphi 0, %s210
      %s228 = sphi 0, %s228
      %s230 = sphi 0, %s228
      %s231 = sphi 0, %s230
      %s245 = sphi 0, %s231
      %s249 = sphi 0, %s249
      %s251 = sphi 0, %s249
      %s252 = sphi 0, %s251
      %s266 = sphi 0, %s252
      %s270 = sphi 0, %s270
      %s272 = sphi 0, %s270
      %s273 = sphi 0, %s272
      %s287 = sphi 0, %s273
      %s291 = sphi 0, %s291
      %s293 = sphi 0, %s291
      %s294 = sphi 0, %s293
      %s308 = sphi 0, %s294
      %s312 = sphi 0, %s312
      %s314 = sphi 0, %s312
      %s315 = sphi 0, %s314
      %s329 = sphi 0, %s315
      %s333 = sphi 0, %s333
      %s335 = sphi 0, %s333
      %s336 = sphi 0, %s335
      %s350 = sphi 0, %s336
      %s356 = sphi 0, %s358
      %s359 = sphi 0, %s356
      %s360 = sphi 0, %s359
      %s376 = sphi 0, %s360
    $region4: #{conv_mid_forward.1} parent=1 // loop_header_branch
      %24 = sbr.rel (%p22) target = $region8
    $region5: #{conv_mid_forward.1} parent=1 // loop_body
      %s26 = ssub.s32 %s21, 1
      %s27 = ssub.s32 %s21, 2
      %s28 = sadd.s32 %s21, 1
      %s29 = ssub.s32 %s21, %s28
      %p30 = scmp.eq.s32.totalorder %s29, 0
      %s32 = sadd.s32 %s31, 1
      %s33 = scalar_select %p30, %s31, %s32
      %p36 = pneg %p30
      %p37 = scmp.eq.s32.totalorder %s21, 1
      %p38 = por %p36, %p37
      %p39 = scmp.ne.s32.totalorder %s31, %s34
      %p40 = scmp.eq.s32.totalorder %s21, 0
      %p41 = por %p39, %p40
      %p42 = scmp.ne.s32.totalorder %s31, %s34
      %p43 = scmp.eq.s32.totalorder %s26, 1
      %p44 = por %p42, %p43
      %p45 = scmp.ne.s32.totalorder %s34, %s35
      %p46 = scmp.eq.s32.totalorder %s26, 0
      %p47 = por %p45, %p46
      %p48 = scmp.ne.s32.totalorder %s34, %s35
      %p49 = scmp.eq.s32.totalorder %s27, 1
      %p50 = por %p48, %p49
      %p52 = scmp.ne.s32.totalorder %s35, %s51
      %p53 = scmp.eq.s32.totalorder %s27, 0
      %p54 = por %p52, %p53
      %s55 = ssub.s32 %s21, %s28
      %p56 = scmp.eq.s32.totalorder %s55, 0
      %s58 = sadd.s32 %s57, 1
      %s59 = scalar_select %p56, %s57, %s58
      %p62 = pneg %p56
      %p63 = scmp.eq.s32.totalorder %s21, 1
      %p64 = por %p62, %p63
      %p65 = scmp.ne.s32.totalorder %s57, %s60
      %p66 = scmp.eq.s32.totalorder %s21, 0
      %p67 = por %p65, %p66
      %p68 = scmp.ne.s32.totalorder %s57, %s60
      %p69 = scmp.eq.s32.totalorder %s26, 1
      %p70 = por %p68, %p69
      %p71 = scmp.ne.s32.totalorder %s60, %s61
      %p72 = scmp.eq.s32.totalorder %s26, 0
      %p73 = por %p71, %p72
      %p74 = scmp.ne.s32.totalorder %s60, %s61
      %p75 = scmp.eq.s32.totalorder %s27, 1
      %p76 = por %p74, %p75
      %p78 = scmp.ne.s32.totalorder %s61, %s77
      %p79 = scmp.eq.s32.totalorder %s27, 0
      %p80 = por %p78, %p79
      %s82 = sadd.s32 %s81, 1
      %p85 = scmp.eq.s32.totalorder %s21, 1
      %p86 = scmp.ne.s32.totalorder %s81, %s83
      %p87 = scmp.eq.s32.totalorder %s21, 0
      %p88 = por %p86, %p87
      %p89 = scmp.ne.s32.totalorder %s81, %s83
      %p90 = scmp.eq.s32.totalorder %s26, 1
      %p91 = por %p89, %p90
      %p92 = scmp.ne.s32.totalorder %s83, %s84
      %p93 = scmp.eq.s32.totalorder %s26, 0
      %p94 = por %p92, %p93
      %p95 = scmp.ne.s32.totalorder %s83, %s84
      %p96 = scmp.eq.s32.totalorder %s27, 1
      %p97 = por %p95, %p96
      %p99 = scmp.ne.s32.totalorder %s84, %s98
      %p100 = scmp.eq.s32.totalorder %s27, 0
      %p101 = por %p99, %p100
      %s103 = sadd.s32 %s102, 1
      %p106 = scmp.eq.s32.totalorder %s21, 1
      %p107 = scmp.ne.s32.totalorder %s102, %s104
      %p108 = scmp.eq.s32.totalorder %s21, 0
      %p109 = por %p107, %p108
      %p110 = scmp.ne.s32.totalorder %s102, %s104
      %p111 = scmp.eq.s32.totalorder %s26, 1
      %p112 = por %p110, %p111
      %p113 = scmp.ne.s32.totalorder %s104, %s105
      %p114 = scmp.eq.s32.totalorder %s26, 0
      %p115 = por %p113, %p114
      %p116 = scmp.ne.s32.totalorder %s104, %s105
      %p117 = scmp.eq.s32.totalorder %s27, 1
      %p118 = por %p116, %p117
      %p120 = scmp.ne.s32.totalorder %s105, %s119
      %p121 = scmp.eq.s32.totalorder %s27, 0
      %p122 = por %p120, %p121
      %s124 = sadd.s32 %s123, 1
      %p127 = scmp.eq.s32.totalorder %s21, 1
      %p128 = scmp.ne.s32.totalorder %s123, %s125
      %p129 = scmp.eq.s32.totalorder %s21, 0
      %p130 = por %p128, %p129
      %p131 = scmp.ne.s32.totalorder %s123, %s125
      %p132 = scmp.eq.s32.totalorder %s26, 1
      %p133 = por %p131, %p132
      %p134 = scmp.ne.s32.totalorder %s125, %s126
      %p135 = scmp.eq.s32.totalorder %s26, 0
      %p136 = por %p134, %p135
      %p137 = scmp.ne.s32.totalorder %s125, %s126
      %p138 = scmp.eq.s32.totalorder %s27, 1
      %p139 = por %p137, %p138
      %p141 = scmp.ne.s32.totalorder %s126, %s140
      %p142 = scmp.eq.s32.totalorder %s27, 0
      %p143 = por %p141, %p142
      %s145 = sadd.s32 %s144, 1
      %p148 = scmp.eq.s32.totalorder %s21, 1
      %p149 = scmp.ne.s32.totalorder %s144, %s146
      %p150 = scmp.eq.s32.totalorder %s21, 0
      %p151 = por %p149, %p150
      %p152 = scmp.ne.s32.totalorder %s144, %s146
      %p153 = scmp.eq.s32.totalorder %s26, 1
      %p154 = por %p152, %p153
      %p155 = scmp.ne.s32.totalorder %s146, %s147
      %p156 = scmp.eq.s32.totalorder %s26, 0
      %p157 = por %p155, %p156
      %p158 = scmp.ne.s32.totalorder %s146, %s147
      %p159 = scmp.eq.s32.totalorder %s27, 1
      %p160 = por %p158, %p159
      %p162 = scmp.ne.s32.totalorder %s147, %s161
      %p163 = scmp.eq.s32.totalorder %s27, 0
      %p164 = por %p162, %p163
      %s166 = sadd.s32 %s165, 1
      %p169 = scmp.eq.s32.totalorder %s21, 1
      %p170 = scmp.ne.s32.totalorder %s165, %s167
      %p171 = scmp.eq.s32.totalorder %s21, 0
      %p172 = por %p170, %p171
      %p173 = scmp.ne.s32.totalorder %s165, %s167
      %p174 = scmp.eq.s32.totalorder %s26, 1
      %p175 = por %p173, %p174
      %p176 = scmp.ne.s32.totalorder %s167, %s168
      %p177 = scmp.eq.s32.totalorder %s26, 0
      %p178 = por %p176, %p177
      %p179 = scmp.ne.s32.totalorder %s167, %s168
      %p180 = scmp.eq.s32.totalorder %s27, 1
      %p181 = por %p179, %p180
      %p183 = scmp.ne.s32.totalorder %s168, %s182
      %p184 = scmp.eq.s32.totalorder %s27, 0
      %p185 = por %p183, %p184
      %s187 = sadd.s32 %s186, 1
      %p190 = scmp.eq.s32.totalorder %s21, 1
      %p191 = scmp.ne.s32.totalorder %s186, %s188
      %p192 = scmp.eq.s32.totalorder %s21, 0
      %p193 = por %p191, %p192
      %p194 = scmp.ne.s32.totalorder %s186, %s188
      %p195 = scmp.eq.s32.totalorder %s26, 1
      %p196 = por %p194, %p195
      %p197 = scmp.ne.s32.totalorder %s188, %s189
      %p198 = scmp.eq.s32.totalorder %s26, 0
      %p199 = por %p197, %p198
      %p200 = scmp.ne.s32.totalorder %s188, %s189
      %p201 = scmp.eq.s32.totalorder %s27, 1
      %p202 = por %p200, %p201
      %p204 = scmp.ne.s32.totalorder %s189, %s203
      %p205 = scmp.eq.s32.totalorder %s27, 0
      %p206 = por %p204, %p205
      %s208 = sadd.s32 %s207, 1
      %p211 = scmp.eq.s32.totalorder %s21, 1
      %p212 = scmp.ne.s32.totalorder %s207, %s209
      %p213 = scmp.eq.s32.totalorder %s21, 0
      %p214 = por %p212, %p213
      %p215 = scmp.ne.s32.totalorder %s207, %s209
      %p216 = scmp.eq.s32.totalorder %s26, 1
      %p217 = por %p215, %p216
      %p218 = scmp.ne.s32.totalorder %s209, %s210
      %p219 = scmp.eq.s32.totalorder %s26, 0
      %p220 = por %p218, %p219
      %p221 = scmp.ne.s32.totalorder %s209, %s210
      %p222 = scmp.eq.s32.totalorder %s27, 1
      %p223 = por %p221, %p222
      %p225 = scmp.ne.s32.totalorder %s210, %s224
      %p226 = scmp.eq.s32.totalorder %s27, 0
      %p227 = por %p225, %p226
      %s229 = sadd.s32 %s228, 1
      %p232 = scmp.eq.s32.totalorder %s21, 1
      %p233 = scmp.ne.s32.totalorder %s228, %s230
      %p234 = scmp.eq.s32.totalorder %s21, 0
      %p235 = por %p233, %p234
      %p236 = scmp.ne.s32.totalorder %s228, %s230
      %p237 = scmp.eq.s32.totalorder %s26, 1
      %p238 = por %p236, %p237
      %p239 = scmp.ne.s32.totalorder %s230, %s231
      %p240 = scmp.eq.s32.totalorder %s26, 0
      %p241 = por %p239, %p240
      %p242 = scmp.ne.s32.totalorder %s230, %s231
      %p243 = scmp.eq.s32.totalorder %s27, 1
      %p244 = por %p242, %p243
      %p246 = scmp.ne.s32.totalorder %s231, %s245
      %p247 = scmp.eq.s32.totalorder %s27, 0
      %p248 = por %p246, %p247
      %s250 = sadd.s32 %s249, 1
      %p253 = scmp.eq.s32.totalorder %s21, 1
      %p254 = scmp.ne.s32.totalorder %s249, %s251
      %p255 = scmp.eq.s32.totalorder %s21, 0
      %p256 = por %p254, %p255
      %p257 = scmp.ne.s32.totalorder %s249, %s251
      %p258 = scmp.eq.s32.totalorder %s26, 1
      %p259 = por %p257, %p258
      %p260 = scmp.ne.s32.totalorder %s251, %s252
      %p261 = scmp.eq.s32.totalorder %s26, 0
      %p262 = por %p260, %p261
      %p263 = scmp.ne.s32.totalorder %s251, %s252
      %p264 = scmp.eq.s32.totalorder %s27, 1
      %p265 = por %p263, %p264
      %p267 = scmp.ne.s32.totalorder %s252, %s266
      %p268 = scmp.eq.s32.totalorder %s27, 0
      %p269 = por %p267, %p268
      %s271 = sadd.s32 %s270, 1
      %p274 = scmp.eq.s32.totalorder %s21, 1
      %p275 = scmp.ne.s32.totalorder %s270, %s272
      %p276 = scmp.eq.s32.totalorder %s21, 0
      %p277 = por %p275, %p276
      %p278 = scmp.ne.s32.totalorder %s270, %s272
      %p279 = scmp.eq.s32.totalorder %s26, 1
      %p280 = por %p278, %p279
      %p281 = scmp.ne.s32.totalorder %s272, %s273
      %p282 = scmp.eq.s32.totalorder %s26, 0
      %p283 = por %p281, %p282
      %p284 = scmp.ne.s32.totalorder %s272, %s273
      %p285 = scmp.eq.s32.totalorder %s27, 1
      %p286 = por %p284, %p285
      %p288 = scmp.ne.s32.totalorder %s273, %s287
      %p289 = scmp.eq.s32.totalorder %s27, 0
      %p290 = por %p288, %p289
      %s292 = sadd.s32 %s291, 1
      %p295 = scmp.eq.s32.totalorder %s21, 1
      %p296 = scmp.ne.s32.totalorder %s291, %s293
      %p297 = scmp.eq.s32.totalorder %s21, 0
      %p298 = por %p296, %p297
      %p299 = scmp.ne.s32.totalorder %s291, %s293
      %p300 = scmp.eq.s32.totalorder %s26, 1
      %p301 = por %p299, %p300
      %p302 = scmp.ne.s32.totalorder %s293, %s294
      %p303 = scmp.eq.s32.totalorder %s26, 0
      %p304 = por %p302, %p303
      %p305 = scmp.ne.s32.totalorder %s293, %s294
      %p306 = scmp.eq.s32.totalorder %s27, 1
      %p307 = por %p305, %p306
      %p309 = scmp.ne.s32.totalorder %s294, %s308
      %p310 = scmp.eq.s32.totalorder %s27, 0
      %p311 = por %p309, %p310
      %s313 = sadd.s32 %s312, 1
      %p316 = scmp.eq.s32.totalorder %s21, 1
      %p317 = scmp.ne.s32.totalorder %s312, %s314
      %p318 = scmp.eq.s32.totalorder %s21, 0
      %p319 = por %p317, %p318
      %p320 = scmp.ne.s32.totalorder %s312, %s314
      %p321 = scmp.eq.s32.totalorder %s26, 1
      %p322 = por %p320, %p321
      %p323 = scmp.ne.s32.totalorder %s314, %s315
      %p324 = scmp.eq.s32.totalorder %s26, 0
      %p325 = por %p323, %p324
      %p326 = scmp.ne.s32.totalorder %s314, %s315
      %p327 = scmp.eq.s32.totalorder %s27, 1
      %p328 = por %p326, %p327
      %p330 = scmp.ne.s32.totalorder %s315, %s329
      %p331 = scmp.eq.s32.totalorder %s27, 0
      %p332 = por %p330, %p331
      %s334 = sadd.s32 %s333, 1
      %p337 = scmp.eq.s32.totalorder %s21, 1
      %p338 = scmp.ne.s32.totalorder %s333, %s335
      %p339 = scmp.eq.s32.totalorder %s21, 0
      %p340 = por %p338, %p339
      %p341 = scmp.ne.s32.totalorder %s333, %s335
      %p342 = scmp.eq.s32.totalorder %s26, 1
      %p343 = por %p341, %p342
      %p344 = scmp.ne.s32.totalorder %s335, %s336
      %p345 = scmp.eq.s32.totalorder %s26, 0
      %p346 = por %p344, %p345
      %p347 = scmp.ne.s32.totalorder %s335, %s336
      %p348 = scmp.eq.s32.totalorder %s27, 1
      %p349 = por %p347, %p348
      %p351 = scmp.ne.s32.totalorder %s336, %s350
      %p352 = scmp.eq.s32.totalorder %s27, 0
      %p353 = por %p351, %p352
      %s354 = ssub.s32 %s21, %s28
      %p355 = scmp.eq.s32.totalorder %s354, 0
      %s357 = sadd.s32 %s356, 1
      %s358 = scalar_select %p355, %s356, %s357
      %p361 = pneg %p355
      %p362 = scmp.eq.s32.totalorder %s21, 1
      %p363 = por %p361, %p362
      %p364 = scmp.ne.s32.totalorder %s356, %s359
      %p365 = scmp.eq.s32.totalorder %s21, 0
      %p366 = por %p364, %p365
      %p367 = scmp.ne.s32.totalorder %s356, %s359
      %p368 = scmp.eq.s32.totalorder %s26, 1
      %p369 = por %p367, %p368
      %p370 = scmp.ne.s32.totalorder %s359, %s360
      %p371 = scmp.eq.s32.totalorder %s26, 0
      %p372 = por %p370, %p371
      %p373 = scmp.ne.s32.totalorder %s359, %s360
      %p374 = scmp.eq.s32.totalorder %s27, 1
      %p375 = por %p373, %p374
      %p377 = scmp.ne.s32.totalorder %s360, %s376
      %p378 = scmp.eq.s32.totalorder %s27, 0
      %p379 = por %p377, %p378
      %p380 = scmp.le.s32.totalorder 1, %s21
      %p381 = scmp.lt.s32.totalorder %s21, 3
      %p382 = pnand %p380, %p381
      %p383 = pneg %p382
      // Predicated region
      $region9: #{conv_mid_forward.1} parent=5 // pred_check
        _
      $region10: #{conv_mid_forward.1} parent=5 // pred_check_branch
        %385 = sbr.rel (%p382) target = $region12
      $region11: #{conv_mid_forward.1} parent=5 // pred_region
        %s386 = ssub.s32 %s21, 1
        // Predicated region
        $region13: #{conv_mid_forward.1} parent=11 // pred_check
          %p387 = pneg %p94
        $region14: #{conv_mid_forward.1} parent=11 // pred_check_branch
          %389 = sbr.rel (%p387) target = $region16
        $region15: #{conv_mid_forward.1} parent=11 // pred_region
          _
        $region16: #{conv_mid_forward.1} parent=11 // pred_fallthru
          _
        // Predicated region
        $region17: #{conv_mid_forward.1} parent=11 // pred_check
          %p390 = pneg %p115
        $region18: #{conv_mid_forward.1} parent=11 // pred_check_branch
          %392 = sbr.rel (%p390) target = $region20
        $region19: #{conv_mid_forward.1} parent=11 // pred_region
          _
        $region20: #{conv_mid_forward.1} parent=11 // pred_fallthru
          _
        // Predicated region
        $region21: #{conv_mid_forward.1} parent=11 // pred_check
          %p393 = pneg %p136
        $region22: #{conv_mid_forward.1} parent=11 // pred_check_branch
          %395 = sbr.rel (%p393) target = $region24
        $region23: #{conv_mid_forward.1} parent=11 // pred_region
          _
        $region24: #{conv_mid_forward.1} parent=11 // pred_fallthru
          _
        // Predicated region
        $region25: #{conv_mid_forward.1} parent=11 // pred_check
          %p396 = pneg %p157
        $region26: #{conv_mid_forward.1} parent=11 // pred_check_branch
          %398 = sbr.rel (%p396) target = $region28
        $region27: #{conv_mid_forward.1} parent=11 // pred_region
          _
        $region28: #{conv_mid_forward.1} parent=11 // pred_fallthru
          _
        // Predicated region
        $region29: #{conv_mid_forward.1} parent=11 // pred_check
          %p399 = pneg %p178
        $region30: #{conv_mid_forward.1} parent=11 // pred_check_branch
          %401 = sbr.rel (%p399) target = $region32
        $region31: #{conv_mid_forward.1} parent=11 // pred_region
          _
        $region32: #{conv_mid_forward.1} parent=11 // pred_fallthru
          _
        // Predicated region
        $region33: #{conv_mid_forward.1} parent=11 // pred_check
          %p402 = pneg %p199
        $region34: #{conv_mid_forward.1} parent=11 // pred_check_branch
          %404 = sbr.rel (%p402) target = $region36
        $region35: #{conv_mid_forward.1} parent=11 // pred_region
          _
        $region36: #{conv_mid_forward.1} parent=11 // pred_fallthru
          _
        // Predicated region
        $region37: #{conv_mid_forward.1} parent=11 // pred_check
          %p405 = pneg %p220
        $region38: #{conv_mid_forward.1} parent=11 // pred_check_branch
          %407 = sbr.rel (%p405) target = $region40
        $region39: #{conv_mid_forward.1} parent=11 // pred_region
          _
        $region40: #{conv_mid_forward.1} parent=11 // pred_fallthru
          _
        // Predicated region
        $region41: #{conv_mid_forward.1} parent=11 // pred_check
          %p408 = pneg %p241
        $region42: #{conv_mid_forward.1} parent=11 // pred_check_branch
          %410 = sbr.rel (%p408) target = $region44
        $region43: #{conv_mid_forward.1} parent=11 // pred_region
          _
        $region44: #{conv_mid_forward.1} parent=11 // pred_fallthru
          _
        // Predicated region
        $region45: #{conv_mid_forward.1} parent=11 // pred_check
          %p411 = pneg %p262
        $region46: #{conv_mid_forward.1} parent=11 // pred_check_branch
          %413 = sbr.rel (%p411) target = $region48
        $region47: #{conv_mid_forward.1} parent=11 // pred_region
          _
        $region48: #{conv_mid_forward.1} parent=11 // pred_fallthru
          _
        // Predicated region
        $region49: #{conv_mid_forward.1} parent=11 // pred_check
          %p414 = pneg %p283
        $region50: #{conv_mid_forward.1} parent=11 // pred_check_branch
          %416 = sbr.rel (%p414) target = $region52
        $region51: #{conv_mid_forward.1} parent=11 // pred_region
          _
        $region52: #{conv_mid_forward.1} parent=11 // pred_fallthru
          _
        // Predicated region
        $region53: #{conv_mid_forward.1} parent=11 // pred_check
          %p417 = pneg %p304
        $region54: #{conv_mid_forward.1} parent=11 // pred_check_branch
          %419 = sbr.rel (%p417) target = $region56
        $region55: #{conv_mid_forward.1} parent=11 // pred_region
          _
        $region56: #{conv_mid_forward.1} parent=11 // pred_fallthru
          _
        // Predicated region
        $region57: #{conv_mid_forward.1} parent=11 // pred_check
          %p420 = pneg %p325
        $region58: #{conv_mid_forward.1} parent=11 // pred_check_branch
          %422 = sbr.rel (%p420) target = $region60
        $region59: #{conv_mid_forward.1} parent=11 // pred_region
          _
        $region60: #{conv_mid_forward.1} parent=11 // pred_fallthru
          _
        // Predicated region
        $region61: #{conv_mid_forward.1} parent=11 // pred_check
          %p423 = pneg %p346
        $region62: #{conv_mid_forward.1} parent=11 // pred_check_branch
          %425 = sbr.rel (%p423) target = $region64
        $region63: #{conv_mid_forward.1} parent=11 // pred_region
          _
        $region64: #{conv_mid_forward.1} parent=11 // pred_fallthru
          _
      $region12: #{conv_mid_forward.1} parent=5 // pred_fallthru
        _
      %p426 = scmp.lt.s32.totalorder %s21, 2
      // Predicated region
      $region65: #{conv_mid_forward.1} parent=5 // pred_check
        %p427 = pneg %p426
      $region66: #{conv_mid_forward.1} parent=5 // pred_check_branch
        %429 = sbr.rel (%p427) target = $region68
      $region67: #{conv_mid_forward.1} parent=5 // pred_region
        // Predicated region
        $region69: #{conv_mid_forward.1} parent=67 // pred_check
          %p430 = pneg %p41
        $region70: #{conv_mid_forward.1} parent=67 // pred_check_branch
          %432 = sbr.rel (%p430) target = $region72
        $region71: #{conv_mid_forward.1} parent=67 // pred_region
          %s433 = sand.u32 %s31, 1
          %s434 = sand.u32 %s31, 1
          %s435 = smul.addr %s434, 384
          %s436 = scalar_lea.vmem [#allocation2], %s435
          %s437 = smul.u32 16, %s21
          %s438 = smul.addr %s437, 8
          %s439 = scalar_lea.vmem %s0, %s438
          // Predicated region
          $region73: #{conv_mid_forward.1} parent=71 // pred_check
            _
          $region74: #{conv_mid_forward.1} parent=71 // pred_check_branch
            %441 = sbr.rel (0) target = $region76
          $region75: #{conv_mid_forward.1} parent=71 // pred_region
            // Predicated region
            $region77: #{conv_mid_forward.1} parent=75 // pred_check
              _
            $region78: #{conv_mid_forward.1} parent=75 // pred_check_branch
              %443 = sbr.rel (0) target = $region80
            $region79: #{conv_mid_forward.1} parent=75 // pred_region
              // Predicated region
              $region92: #{conv_mid_forward.1} parent=79 // pred_check
                _
              $region93: #{conv_mid_forward.1} parent=79 // pred_check_branch
                %553 = sbr.rel (0) target = $region95
              $region94: #{conv_mid_forward.1} parent=79 // pred_region
                loop: start=0, step=1, limit=1
                $region96: #{conv_mid_forward.1} parent=94 // loop_pre_header
                  _
                $region97: #{conv_mid_forward.1} parent=94 // loop_header
                  %s555 = sphi 0, %s559
                  %p556 = scmp.ge.s32.totalorder %s555, 1
                  %s560 = sphi %s439, %s439
                  %s561 = sphi %s436, %s436
                $region98: #{conv_mid_forward.1} parent=94 // loop_header_branch
                  %558 = sbr.rel (%p556) target = $region102
                $region99: #{conv_mid_forward.1} parent=94 // loop_body
                  %v562 = vld [vmem:[%s560] sm:$0xff]
                  %563 = vst [vmem:[%s561] sm:$0xff] %v562
                  %v564 = vld [vmem:[%s560 + $0x8] sm:$0xff]
                  %565 = vst [vmem:[%s561 + $0x8] sm:$0xff] %v564
                  %v566 = vld [vmem:[%s560 + $0x10] sm:$0xff]
                  %567 = vst [vmem:[%s561 + $0x10] sm:$0xff] %v566
                  %v568 = vld [vmem:[%s560 + $0x18] sm:$0xff]
                  %569 = vst [vmem:[%s561 + $0x18] sm:$0xff] %v568
                  %v570 = vld [vmem:[%s560 + $0x20] sm:$0xff]
                  %571 = vst [vmem:[%s561 + $0x20] sm:$0xff] %v570
                  %v572 = vld [vmem:[%s560 + $0x28] sm:$0xff]
                  %573 = vst [vmem:[%s561 + $0x28] sm:$0xff] %v572
                  %v574 = vld [vmem:[%s560 + $0x30] sm:$0xff]
                  %575 = vst [vmem:[%s561 + $0x30] sm:$0xff] %v574
                  %v576 = vld [vmem:[%s560 + $0x38] sm:$0xff]
                  %577 = vst [vmem:[%s561 + $0x38] sm:$0xff] %v576
                  %v578 = vld [vmem:[%s560 + $0x40] sm:$0xff]
                  %579 = vst [vmem:[%s561 + $0x40] sm:$0xff] %v578
                  %v580 = vld [vmem:[%s560 + $0x48] sm:$0xff]
                  %581 = vst [vmem:[%s561 + $0x48] sm:$0xff] %v580
                  %v582 = vld [vmem:[%s560 + $0x50] sm:$0xff]
                  %583 = vst [vmem:[%s561 + $0x50] sm:$0xff] %v582
                  %v584 = vld [vmem:[%s560 + $0x58] sm:$0xff]
                  %585 = vst [vmem:[%s561 + $0x58] sm:$0xff] %v584
                  %v586 = vld [vmem:[%s560 + $0x60] sm:$0xff]
                  %587 = vst [vmem:[%s561 + $0x60] sm:$0xff] %v586
                  %v588 = vld [vmem:[%s560 + $0x68] sm:$0xff]
                  %589 = vst [vmem:[%s561 + $0x68] sm:$0xff] %v588
                  %v590 = vld [vmem:[%s560 + $0x70] sm:$0xff]
                  %591 = vst [vmem:[%s561 + $0x70] sm:$0xff] %v590
                  %v592 = vld [vmem:[%s560 + $0x78] sm:$0xff]
                  %593 = vst [vmem:[%s561 + $0x78] sm:$0xff] %v592
                  %v594 = vld [vmem:[%s560 + $0x100] sm:$0xff]
                  %595 = vst [vmem:[%s561 + $0x80] sm:$0xff] %v594
                  %v596 = vld [vmem:[%s560 + $0x108] sm:$0xff]
                  %597 = vst [vmem:[%s561 + $0x88] sm:$0xff] %v596
                  %v598 = vld [vmem:[%s560 + $0x110] sm:$0xff]
                  %599 = vst [vmem:[%s561 + $0x90] sm:$0xff] %v598
                  %v600 = vld [vmem:[%s560 + $0x118] sm:$0xff]
                  %601 = vst [vmem:[%s561 + $0x98] sm:$0xff] %v600
                  %v602 = vld [vmem:[%s560 + $0x120] sm:$0xff]
                  %603 = vst [vmem:[%s561 + $0xa0] sm:$0xff] %v602
                  %v604 = vld [vmem:[%s560 + $0x128] sm:$0xff]
                  %605 = vst [vmem:[%s561 + $0xa8] sm:$0xff] %v604
                  %v606 = vld [vmem:[%s560 + $0x130] sm:$0xff]
                  %607 = vst [vmem:[%s561 + $0xb0] sm:$0xff] %v606
                  %v608 = vld [vmem:[%s560 + $0x138] sm:$0xff]
                  %609 = vst [vmem:[%s561 + $0xb8] sm:$0xff] %v608
                  %v610 = vld [vmem:[%s560 + $0x140] sm:$0xff]
                  %611 = vst [vmem:[%s561 + $0xc0] sm:$0xff] %v610
                  %v612 = vld [vmem:[%s560 + $0x148] sm:$0xff]
                  %613 = vst [vmem:[%s561 + $0xc8] sm:$0xff] %v612
                  %v614 = vld [vmem:[%s560 + $0x150] sm:$0xff]
                  %615 = vst [vmem:[%s561 + $0xd0] sm:$0xff] %v614
                  %v616 = vld [vmem:[%s560 + $0x158] sm:$0xff]
                  %617 = vst [vmem:[%s561 + $0xd8] sm:$0xff] %v616
                  %v618 = vld [vmem:[%s560 + $0x160] sm:$0xff]
                  %619 = vst [vmem:[%s561 + $0xe0] sm:$0xff] %v618
                  %v620 = vld [vmem:[%s560 + $0x168] sm:$0xff]
                  %621 = vst [vmem:[%s561 + $0xe8] sm:$0xff] %v620
                  %v622 = vld [vmem:[%s560 + $0x170] sm:$0xff]
                  %623 = vst [vmem:[%s561 + $0xf0] sm:$0xff] %v622
                  %v624 = vld [vmem:[%s560 + $0x178] sm:$0xff]
                  %625 = vst [vmem:[%s561 + $0xf8] sm:$0xff] %v624
                  %v626 = vld [vmem:[%s560 + $0x200] sm:$0xff]
                  %627 = vst [vmem:[%s561 + $0x100] sm:$0xff] %v626
                  %v628 = vld [vmem:[%s560 + $0x208] sm:$0xff]
                  %629 = vst [vmem:[%s561 + $0x108] sm:$0xff] %v628
                  %v630 = vld [vmem:[%s560 + $0x210] sm:$0xff]
                  %631 = vst [vmem:[%s561 + $0x110] sm:$0xff] %v630
                  %v632 = vld [vmem:[%s560 + $0x218] sm:$0xff]
                  %633 = vst [vmem:[%s561 + $0x118] sm:$0xff] %v632
                  %v634 = vld [vmem:[%s560 + $0x220] sm:$0xff]
                  %635 = vst [vmem:[%s561 + $0x120] sm:$0xff] %v634
                  %v636 = vld [vmem:[%s560 + $0x228] sm:$0xff]
                  %637 = vst [vmem:[%s561 + $0x128] sm:$0xff] %v636
                  %v638 = vld [vmem:[%s560 + $0x230] sm:$0xff]
                  %639 = vst [vmem:[%s561 + $0x130] sm:$0xff] %v638
                  %v640 = vld [vmem:[%s560 + $0x238] sm:$0xff]
                  %641 = vst [vmem:[%s561 + $0x138] sm:$0xff] %v640
                  %v642 = vld [vmem:[%s560 + $0x240] sm:$0xff]
                  %643 = vst [vmem:[%s561 + $0x140] sm:$0xff] %v642
                  %v644 = vld [vmem:[%s560 + $0x248] sm:$0xff]
                  %645 = vst [vmem:[%s561 + $0x148] sm:$0xff] %v644
                  %v646 = vld [vmem:[%s560 + $0x250] sm:$0xff]
                  %647 = vst [vmem:[%s561 + $0x150] sm:$0xff] %v646
                  %v648 = vld [vmem:[%s560 + $0x258] sm:$0xff]
                  %649 = vst [vmem:[%s561 + $0x158] sm:$0xff] %v648
                  %v650 = vld [vmem:[%s560 + $0x260] sm:$0xff]
                  %651 = vst [vmem:[%s561 + $0x160] sm:$0xff] %v650
                  %v652 = vld [vmem:[%s560 + $0x268] sm:$0xff]
                  %653 = vst [vmem:[%s561 + $0x168] sm:$0xff] %v652
                  %v654 = vld [vmem:[%s560 + $0x270] sm:$0xff]
                  %655 = vst [vmem:[%s561 + $0x170] sm:$0xff] %v654
                  %v656 = vld [vmem:[%s560 + $0x278] sm:$0xff]
                  %657 = vst [vmem:[%s561 + $0x178] sm:$0xff] %v656
                $region100: #{conv_mid_forward.1} parent=94 // loop_footer
                  %s559 = sadd.s32 1, %s555
                $region101: #{conv_mid_forward.1} parent=94 // loop_footer_branch
                  %554 = sbr.rel target = $region97
                $region102: #{conv_mid_forward.1} parent=94 // loop_exit
                  _
              $region95: #{conv_mid_forward.1} parent=79 // pred_fallthru
                _
              // Predicated region
              $region103: #{conv_mid_forward.1} parent=79 // pred_check
                _
              $region104: #{conv_mid_forward.1} parent=79 // pred_check_branch
                %659 = sbr.rel target = $region106
              $region105: #{conv_mid_forward.1} parent=79 // pred_region
                _
              $region106: #{conv_mid_forward.1} parent=79 // pred_fallthru
                _
            $region80: #{conv_mid_forward.1} parent=75 // pred_fallthru
              _
            // Predicated region
            $region81: #{conv_mid_forward.1} parent=75 // pred_check
              _
            $region82: #{conv_mid_forward.1} parent=75 // pred_check_branch
              %445 = sbr.rel target = $region84
            $region83: #{conv_mid_forward.1} parent=75 // pred_region
              %s447 = ssub.s32 256, 1
              loop: start=0, step=1, limit=1
              $region85: #{conv_mid_forward.1} parent=83 // loop_pre_header
                _
              $region86: #{conv_mid_forward.1} parent=83 // loop_header
                %s449 = sphi 0, %s453
                %p450 = scmp.ge.s32.totalorder %s449, 1
                %s454 = sphi %s439, %s439
                %s455 = sphi %s436, %s436
              $region87: #{conv_mid_forward.1} parent=83 // loop_header_branch
                %452 = sbr.rel (%p450) target = $region91
              $region88: #{conv_mid_forward.1} parent=83 // loop_body
                %v456 = vld [vmem:[%s454] sm:%s447]
                %457 = vst [vmem:[%s455] sm:%s447] %v456
                %v458 = vld [vmem:[%s454 + $0x8] sm:%s447]
                %459 = vst [vmem:[%s455 + $0x8] sm:%s447] %v458
                %v460 = vld [vmem:[%s454 + $0x10] sm:%s447]
                %461 = vst [vmem:[%s455 + $0x10] sm:%s447] %v460
                %v462 = vld [vmem:[%s454 + $0x18] sm:%s447]
                %463 = vst [vmem:[%s455 + $0x18] sm:%s447] %v462
                %v464 = vld [vmem:[%s454 + $0x20] sm:%s447]
                %465 = vst [vmem:[%s455 + $0x20] sm:%s447] %v464
                %v466 = vld [vmem:[%s454 + $0x28] sm:%s447]
                %467 = vst [vmem:[%s455 + $0x28] sm:%s447] %v466
                %v468 = vld [vmem:[%s454 + $0x30] sm:%s447]
                %469 = vst [vmem:[%s455 + $0x30] sm:%s447] %v468
                %v470 = vld [vmem:[%s454 + $0x38] sm:%s447]
                %471 = vst [vmem:[%s455 + $0x38] sm:%s447] %v470
                %v472 = vld [vmem:[%s454 + $0x40] sm:%s447]
                %473 = vst [vmem:[%s455 + $0x40] sm:%s447] %v472
                %v474 = vld [vmem:[%s454 + $0x48] sm:%s447]
                %475 = vst [vmem:[%s455 + $0x48] sm:%s447] %v474
                %v476 = vld [vmem:[%s454 + $0x50] sm:%s447]
                %477 = vst [vmem:[%s455 + $0x50] sm:%s447] %v476
                %v478 = vld [vmem:[%s454 + $0x58] sm:%s447]
                %479 = vst [vmem:[%s455 + $0x58] sm:%s447] %v478
                %v480 = vld [vmem:[%s454 + $0x60] sm:%s447]
                %481 = vst [vmem:[%s455 + $0x60] sm:%s447] %v480
                %v482 = vld [vmem:[%s454 + $0x68] sm:%s447]
                %483 = vst [vmem:[%s455 + $0x68] sm:%s447] %v482
                %v484 = vld [vmem:[%s454 + $0x70] sm:%s447]
                %485 = vst [vmem:[%s455 + $0x70] sm:%s447] %v484
                %v486 = vld [vmem:[%s454 + $0x78] sm:%s447]
                %487 = vst [vmem:[%s455 + $0x78] sm:%s447] %v486
                %v488 = vld [vmem:[%s454 + $0x100] sm:%s447]
                %489 = vst [vmem:[%s455 + $0x80] sm:%s447] %v488
                %v490 = vld [vmem:[%s454 + $0x108] sm:%s447]
                %491 = vst [vmem:[%s455 + $0x88] sm:%s447] %v490
                %v492 = vld [vmem:[%s454 + $0x110] sm:%s447]
                %493 = vst [vmem:[%s455 + $0x90] sm:%s447] %v492
                %v494 = vld [vmem:[%s454 + $0x118] sm:%s447]
                %495 = vst [vmem:[%s455 + $0x98] sm:%s447] %v494
                %v496 = vld [vmem:[%s454 + $0x120] sm:%s447]
                %497 = vst [vmem:[%s455 + $0xa0] sm:%s447] %v496
                %v498 = vld [vmem:[%s454 + $0x128] sm:%s447]
                %499 = vst [vmem:[%s455 + $0xa8] sm:%s447] %v498
                %v500 = vld [vmem:[%s454 + $0x130] sm:%s447]
                %501 = vst [vmem:[%s455 + $0xb0] sm:%s447] %v500
                %v502 = vld [vmem:[%s454 + $0x138] sm:%s447]
                %503 = vst [vmem:[%s455 + $0xb8] sm:%s447] %v502
                %v504 = vld [vmem:[%s454 + $0x140] sm:%s447]
                %505 = vst [vmem:[%s455 + $0xc0] sm:%s447] %v504
                %v506 = vld [vmem:[%s454 + $0x148] sm:%s447]
                %507 = vst [vmem:[%s455 + $0xc8] sm:%s447] %v506
                %v508 = vld [vmem:[%s454 + $0x150] sm:%s447]
                %509 = vst [vmem:[%s455 + $0xd0] sm:%s447] %v508
                %v510 = vld [vmem:[%s454 + $0x158] sm:%s447]
                %511 = vst [vmem:[%s455 + $0xd8] sm:%s447] %v510
                %v512 = vld [vmem:[%s454 + $0x160] sm:%s447]
                %513 = vst [vmem:[%s455 + $0xe0] sm:%s447] %v512
                %v514 = vld [vmem:[%s454 + $0x168] sm:%s447]
                %515 = vst [vmem:[%s455 + $0xe8] sm:%s447] %v514
                %v516 = vld [vmem:[%s454 + $0x170] sm:%s447]
                %517 = vst [vmem:[%s455 + $0xf0] sm:%s447] %v516
                %v518 = vld [vmem:[%s454 + $0x178] sm:%s447]
                %519 = vst [vmem:[%s455 + $0xf8] sm:%s447] %v518
                %v520 = vld [vmem:[%s454 + $0x200] sm:%s447]
                %521 = vst [vmem:[%s455 + $0x100] sm:%s447] %v520
                %v522 = vld [vmem:[%s454 + $0x208] sm:%s447]
                %523 = vst [vmem:[%s455 + $0x108] sm:%s447] %v522
                %v524 = vld [vmem:[%s454 + $0x210] sm:%s447]
                %525 = vst [vmem:[%s455 + $0x110] sm:%s447] %v524
                %v526 = vld [vmem:[%s454 + $0x218] sm:%s447]
                %527 = vst [vmem:[%s455 + $0x118] sm:%s447] %v526
                %v528 = vld [vmem:[%s454 + $0x220] sm:%s447]
                %529 = vst [vmem:[%s455 + $0x120] sm:%s447] %v528
                %v530 = vld [vmem:[%s454 + $0x228] sm:%s447]
                %531 = vst [vmem:[%s455 + $0x128] sm:%s447] %v530
                %v532 = vld [vmem:[%s454 + $0x230] sm:%s447]
                %533 = vst [vmem:[%s455 + $0x130] sm:%s447] %v532
                %v534 = vld [vmem:[%s454 + $0x238] sm:%s447]
                %535 = vst [vmem:[%s455 + $0x138] sm:%s447] %v534
                %v536 = vld [vmem:[%s454 + $0x240] sm:%s447]
                %537 = vst [vmem:[%s455 + $0x140] sm:%s447] %v536
                %v538 = vld [vmem:[%s454 + $0x248] sm:%s447]
                %539 = vst [vmem:[%s455 + $0x148] sm:%s447] %v538
                %v540 = vld [vmem:[%s454 + $0x250] sm:%s447]
                %541 = vst [vmem:[%s455 + $0x150] sm:%s447] %v540
                %v542 = vld [vmem:[%s454 + $0x258] sm:%s447]
                %543 = vst [vmem:[%s455 + $0x158] sm:%s447] %v542
                %v544 = vld [vmem:[%s454 + $0x260] sm:%s447]
                %545 = vst [vmem:[%s455 + $0x160] sm:%s447] %v544
                %v546 = vld [vmem:[%s454 + $0x268] sm:%s447]
                %547 = vst [vmem:[%s455 + $0x168] sm:%s447] %v546
                %v548 = vld [vmem:[%s454 + $0x270] sm:%s447]
                %549 = vst [vmem:[%s455 + $0x170] sm:%s447] %v548
                %v550 = vld [vmem:[%s454 + $0x278] sm:%s447]
                %551 = vst [vmem:[%s455 + $0x178] sm:%s447] %v550
              $region89: #{conv_mid_forward.1} parent=83 // loop_footer
                %s453 = sadd.s32 1, %s449
              $region90: #{conv_mid_forward.1} parent=83 // loop_footer_branch
                %448 = sbr.rel target = $region86
              $region91: #{conv_mid_forward.1} parent=83 // loop_exit
                _
            $region84: #{conv_mid_forward.1} parent=75 // pred_fallthru
              _
          $region76: #{conv_mid_forward.1} parent=71 // pred_fallthru
            _
          %660 = vnop
        $region72: #{conv_mid_forward.1} parent=67 // pred_fallthru
          _
        // Predicated region
        $region107: #{conv_mid_forward.1} parent=67 // pred_check
          %p661 = pneg %p67
        $region108: #{conv_mid_forward.1} parent=67 // pred_check_branch
          %663 = sbr.rel (%p661) target = $region110
        $region109: #{conv_mid_forward.1} parent=67 // pred_region
          %p664 = scmp.lt.s32.totalorder %s21, 1
          %s665 = scalar_select %p664, %s21, 1
          %s666 = smul.addr %s665, 8
          %s667 = scalar_lea.vmem %s1, %s666
        $region110: #{conv_mid_forward.1} parent=67 // pred_fallthru
          _
      $region68: #{conv_mid_forward.1} parent=5 // pred_fallthru
        _
      %p668 = scmp.le.s32.totalorder 1, %s21
      %p669 = scmp.lt.s32.totalorder %s21, 3
      %p670 = pnand %p668, %p669
      %p671 = pneg %p670
      // Predicated region
      $region111: #{conv_mid_forward.1} parent=5 // pred_check
        _
      $region112: #{conv_mid_forward.1} parent=5 // pred_check_branch
        %673 = sbr.rel (%p670) target = $region114
      $region113: #{conv_mid_forward.1} parent=5 // pred_region
        %s674 = ssub.s32 %s21, 1
        %s675 = sand.u32 %s34, 1
        %s676 = sand.u32 %s34, 1
        %s677 = smul.addr %s676, 384
        %s678 = scalar_lea.vmem [#allocation2], %s677
        // Predicated region
        $region115: #{conv_mid_forward.1} parent=113 // pred_check
          %p679 = pneg %p47
        $region116: #{conv_mid_forward.1} parent=113 // pred_check_branch
          %681 = sbr.rel (%p679) target = $region118
        $region117: #{conv_mid_forward.1} parent=113 // pred_region
          _
        $region118: #{conv_mid_forward.1} parent=113 // pred_fallthru
          _
        %s682 = sand.u32 %s34, 1
        %s683 = sand.u32 %s34, 1
        %s684 = smul.addr %s683, 384
        %s685 = scalar_lea.vmem [#allocation2], %s684
        %p686 = pneg %p47
        %p687 = pneg %p44
        %p688 = scmp.lt.s32.totalorder %s26, 1
        %s689 = scalar_select %p688, %s26, 1
        %s690 = smul.addr %s689, 8
        %s691 = scalar_lea.vmem %s1, %s690
        %p692 = pneg %p73
        %p693 = pneg %p70
        %p694 = pneg %p94
        %p695 = pneg %p91
        %p696 = pneg %p115
        %p697 = pneg %p112
        %p698 = pneg %p136
        %p699 = pneg %p133
        %p700 = pneg %p157
        %p701 = pneg %p154
        %p702 = pneg %p178
        %p703 = pneg %p175
        %p704 = pneg %p199
        %p705 = pneg %p196
        %p706 = pneg %p220
        %p707 = pneg %p217
        %p708 = pneg %p241
        %p709 = pneg %p238
        %p710 = pneg %p262
        %p711 = pneg %p259
        %p712 = pneg %p283
        %p713 = pneg %p280
        %p714 = pneg %p304
        %p715 = pneg %p301
        %p716 = pneg %p325
        %p717 = pneg %p322
        %p718 = pneg %p346
        %p719 = pneg %p343
        %p720 = pneg %p372
        %p721 = pneg %p369
        %p722 = scmp.lt.s32.totalorder %s26, 1
        %s723 = scalar_select %p722, %s26, 1
        %s724 = smul.addr %s723, 8
        %s725 = scalar_lea.vmem %s15, %s724
        %s726 = smul.u32 16, %s26
        %p727 = scmp.lt.s32.totalorder %s26, 1
        %s728 = scalar_select %p727, %s26, 1
        %s729 = smul.addr %s728, 8
        %s730 = scalar_lea.vmem %s1, %s729
        %p731 = scmp.lt.s32.totalorder %s26, 1
        %s732 = scalar_select %p731, %s26, 1
        %s733 = smul.addr %s732, 8
        %s734 = scalar_lea.vmem %s15, %s733
        %v735 = vld [vmem:[%s678] sm:$0xff]
        %v736 = vld [vmem:[%s678 + $0x8] sm:$0xff]
        %v737 = vld [vmem:[%s678 + $0x10] sm:$0xff]
        %v738 = vld [vmem:[%s678 + $0x18] sm:$0xff]
        %v739 = vld [vmem:[%s678 + $0x20] sm:$0xff]
        %v740 = vld [vmem:[%s678 + $0x28] sm:$0xff]
        %v741 = vld [vmem:[%s678 + $0x30] sm:$0xff]
        %v742 = vld [vmem:[%s678 + $0x38] sm:$0xff]
        %v743 = vld [vmem:[%s678 + $0x40] sm:$0xff]
        %v744 = vld [vmem:[%s678 + $0x48] sm:$0xff]
        %v745 = vld [vmem:[%s678 + $0x50] sm:$0xff]
        %v746 = vld [vmem:[%s678 + $0x58] sm:$0xff]
        %v747 = vld [vmem:[%s678 + $0x60] sm:$0xff]
        %v748 = vld [vmem:[%s678 + $0x68] sm:$0xff]
        %v749 = vld [vmem:[%s678 + $0x70] sm:$0xff]
        %v750 = vld [vmem:[%s678 + $0x78] sm:$0xff]
        %v751 = vld [vmem:[%s2] sm:$0xff]
        %v752 = vld [vmem:[%s2 + $0x8] sm:$0xff]
        %v753 = vld [vmem:[%s2 + $0x10] sm:$0xff]
        %v754 = vld [vmem:[%s2 + $0x18] sm:$0xff]
        %v755 = vld [vmem:[%s2 + $0x20] sm:$0xff]
        %v756 = vld [vmem:[%s2 + $0x28] sm:$0xff]
        %v757 = vld [vmem:[%s2 + $0x30] sm:$0xff]
        %v758 = vld [vmem:[%s2 + $0x38] sm:$0xff]
        %v759 = vld [vmem:[%s2 + $0x40] sm:$0xff]
        %v760 = vld [vmem:[%s2 + $0x48] sm:$0xff]
        %v761 = vld [vmem:[%s2 + $0x50] sm:$0xff]
        %v762 = vld [vmem:[%s2 + $0x58] sm:$0xff]
        %v763 = vld [vmem:[%s2 + $0x60] sm:$0xff]
        %v764 = vld [vmem:[%s2 + $0x68] sm:$0xff]
        %v765 = vld [vmem:[%s2 + $0x70] sm:$0xff]
        %v766 = vld [vmem:[%s2 + $0x78] sm:$0xff]
        %v767 = vld [vmem:[%s2 + $0x80] sm:$0xff]
        %v768 = vld [vmem:[%s2 + $0x88] sm:$0xff]
        %v769 = vld [vmem:[%s2 + $0x90] sm:$0xff]
        %v770 = vld [vmem:[%s2 + $0x98] sm:$0xff]
        %v771 = vld [vmem:[%s2 + $0xa0] sm:$0xff]
        %v772 = vld [vmem:[%s2 + $0xa8] sm:$0xff]
        %v773 = vld [vmem:[%s2 + $0xb0] sm:$0xff]
        %v774 = vld [vmem:[%s2 + $0xb8] sm:$0xff]
        %v775 = vld [vmem:[%s2 + $0xc0] sm:$0xff]
        %v776 = vld [vmem:[%s2 + $0xc8] sm:$0xff]
        %v777 = vld [vmem:[%s2 + $0xd0] sm:$0xff]
        %v778 = vld [vmem:[%s2 + $0xd8] sm:$0xff]
        %v779 = vld [vmem:[%s2 + $0xe0] sm:$0xff]
        %v780 = vld [vmem:[%s2 + $0xe8] sm:$0xff]
        %v781 = vld [vmem:[%s2 + $0xf0] sm:$0xff]
        %v782 = vld [vmem:[%s2 + $0xf8] sm:$0xff]
        %v783 = vpack.c.bf16 %v736, %v735
        %v784 = vpack.c.bf16 %v738, %v737
        %v785 = vpack.c.bf16 %v740, %v739
        %v786 = vpack.c.bf16 %v742, %v741
        %v787 = vpack.c.bf16 %v744, %v743
        %v788 = vpack.c.bf16 %v746, %v745
        %v789 = vpack.c.bf16 %v748, %v747
        %v790 = vpack.c.bf16 %v750, %v749
        %s791 = scalar_lea.vmem %s678, 128 [#allocation2]
        %v792 = vld [vmem:[%s791] sm:$0xff]
        %v793 = vld [vmem:[%s791 + $0x8] sm:$0xff]
        %v794 = vld [vmem:[%s791 + $0x10] sm:$0xff]
        %v795 = vld [vmem:[%s791 + $0x18] sm:$0xff]
        %v796 = vld [vmem:[%s791 + $0x20] sm:$0xff]
        %v797 = vld [vmem:[%s791 + $0x28] sm:$0xff]
        %v798 = vld [vmem:[%s791 + $0x30] sm:$0xff]
        %v799 = vld [vmem:[%s791 + $0x38] sm:$0xff]
        %v800 = vld [vmem:[%s791 + $0x40] sm:$0xff]
        %v801 = vld [vmem:[%s791 + $0x48] sm:$0xff]
        %v802 = vld [vmem:[%s791 + $0x50] sm:$0xff]
        %v803 = vld [vmem:[%s791 + $0x58] sm:$0xff]
        %v804 = vld [vmem:[%s791 + $0x60] sm:$0xff]
        %v805 = vld [vmem:[%s791 + $0x68] sm:$0xff]
        %v806 = vld [vmem:[%s791 + $0x70] sm:$0xff]
        %v807 = vld [vmem:[%s791 + $0x78] sm:$0xff]
        %s808 = scalar_lea.vmem %s2, 256
        %v809 = vld [vmem:[%s808] sm:$0xff]
        %v810 = vld [vmem:[%s808 + $0x8] sm:$0xff]
        %v811 = vld [vmem:[%s808 + $0x10] sm:$0xff]
        %v812 = vld [vmem:[%s808 + $0x18] sm:$0xff]
        %v813 = vld [vmem:[%s808 + $0x20] sm:$0xff]
        %v814 = vld [vmem:[%s808 + $0x28] sm:$0xff]
        %v815 = vld [vmem:[%s808 + $0x30] sm:$0xff]
        %v816 = vld [vmem:[%s808 + $0x38] sm:$0xff]
        %v817 = vld [vmem:[%s808 + $0x40] sm:$0xff]
        %v818 = vld [vmem:[%s808 + $0x48] sm:$0xff]
        %v819 = vld [vmem:[%s808 + $0x50] sm:$0xff]
        %v820 = vld [vmem:[%s808 + $0x58] sm:$0xff]
        %v821 = vld [vmem:[%s808 + $0x60] sm:$0xff]
        %v822 = vld [vmem:[%s808 + $0x68] sm:$0xff]
        %v823 = vld [vmem:[%s808 + $0x70] sm:$0xff]
        %v824 = vld [vmem:[%s808 + $0x78] sm:$0xff]
        %v825 = vld [vmem:[%s808 + $0x80] sm:$0xff]
        %v826 = vld [vmem:[%s808 + $0x88] sm:$0xff]
        %v827 = vld [vmem:[%s808 + $0x90] sm:$0xff]
        %v828 = vld [vmem:[%s808 + $0x98] sm:$0xff]
        %v829 = vld [vmem:[%s808 + $0xa0] sm:$0xff]
        %v830 = vld [vmem:[%s808 + $0xa8] sm:$0xff]
        %v831 = vld [vmem:[%s808 + $0xb0] sm:$0xff]
        %v832 = vld [vmem:[%s808 + $0xb8] sm:$0xff]
        %v833 = vld [vmem:[%s808 + $0xc0] sm:$0xff]
        %v834 = vld [vmem:[%s808 + $0xc8] sm:$0xff]
        %v835 = vld [vmem:[%s808 + $0xd0] sm:$0xff]
        %v836 = vld [vmem:[%s808 + $0xd8] sm:$0xff]
        %v837 = vld [vmem:[%s808 + $0xe0] sm:$0xff]
        %v838 = vld [vmem:[%s808 + $0xe8] sm:$0xff]
        %v839 = vld [vmem:[%s808 + $0xf0] sm:$0xff]
        %v840 = vld [vmem:[%s808 + $0xf8] sm:$0xff]
        %v841 = vpack.c.bf16 %v793, %v792
        %v842 = vpack.c.bf16 %v795, %v794
        %v843 = vpack.c.bf16 %v797, %v796
        %v844 = vpack.c.bf16 %v799, %v798
        %v845 = vpack.c.bf16 %v801, %v800
        %v846 = vpack.c.bf16 %v803, %v802
        %v847 = vpack.c.bf16 %v805, %v804
        %v848 = vpack.c.bf16 %v807, %v806
        %v881 = vunpack.c.l.b16 %v809
        %v882 = vunpack.c.h.b16 %v809
        %v883 = vunpack.c.l.b16 %v810
        %v884 = vunpack.c.h.b16 %v810
        %v885 = vunpack.c.l.b16 %v811
        %v886 = vunpack.c.h.b16 %v811
        %v887 = vunpack.c.l.b16 %v812
        %v888 = vunpack.c.h.b16 %v812
        %v889 = vunpack.c.l.b16 %v813
        %v890 = vunpack.c.h.b16 %v813
        %v891 = vunpack.c.l.b16 %v814
        %v892 = vunpack.c.h.b16 %v814
        %v893 = vunpack.c.l.b16 %v815
        %v894 = vunpack.c.h.b16 %v815
        %v895 = vunpack.c.l.b16 %v816
        %v896 = vunpack.c.h.b16 %v816
        %v897 = vunpack.c.l.b16 %v817
        %v898 = vunpack.c.h.b16 %v817
        %v899 = vunpack.c.l.b16 %v818
        %v900 = vunpack.c.h.b16 %v818
        %v901 = vunpack.c.l.b16 %v819
        %v902 = vunpack.c.h.b16 %v819
        %v903 = vunpack.c.l.b16 %v820
        %v904 = vunpack.c.h.b16 %v820
        %v905 = vunpack.c.l.b16 %v821
        %v906 = vunpack.c.h.b16 %v821
        %v907 = vunpack.c.l.b16 %v822
        %v908 = vunpack.c.h.b16 %v822
        %v909 = vunpack.c.l.b16 %v823
        %v910 = vunpack.c.h.b16 %v823
        %v911 = vunpack.c.l.b16 %v824
        %v912 = vunpack.c.h.b16 %v824
        %v913 = vunpack.c.l.b16 %v825
        %v914 = vunpack.c.h.b16 %v825
        %v915 = vunpack.c.l.b16 %v826
        %v916 = vunpack.c.h.b16 %v826
        %v917 = vunpack.c.l.b16 %v827
        %v918 = vunpack.c.h.b16 %v827
        %v919 = vunpack.c.l.b16 %v828
        %v920 = vunpack.c.h.b16 %v828
        %v921 = vunpack.c.l.b16 %v829
        %v922 = vunpack.c.h.b16 %v829
        %v923 = vunpack.c.l.b16 %v830
        %v924 = vunpack.c.h.b16 %v830
        %v925 = vunpack.c.l.b16 %v831
        %v926 = vunpack.c.h.b16 %v831
        %v927 = vunpack.c.l.b16 %v832
        %v928 = vunpack.c.h.b16 %v832
        %v929 = vunpack.c.l.b16 %v833
        %v930 = vunpack.c.h.b16 %v833
        %v931 = vunpack.c.l.b16 %v834
        %v932 = vunpack.c.h.b16 %v834
        %v933 = vunpack.c.l.b16 %v835
        %v934 = vunpack.c.h.b16 %v835
        %v935 = vunpack.c.l.b16 %v836
        %v936 = vunpack.c.h.b16 %v836
        %v937 = vunpack.c.l.b16 %v837
        %v938 = vunpack.c.h.b16 %v837
        %v939 = vunpack.c.l.b16 %v838
        %v940 = vunpack.c.h.b16 %v838
        %v941 = vunpack.c.l.b16 %v839
        %v942 = vunpack.c.h.b16 %v839
        %v943 = vunpack.c.l.b16 %v840
        %v944 = vunpack.c.h.b16 %v840
        %v945 = vpack.c.b16 %v885, %v881
        %v946 = vpack.c.b16 %v886, %v882
        %v947 = vpack.c.b16 %v887, %v883
        %v948 = vpack.c.b16 %v888, %v884
        %v949 = vpack.c.b16 %v893, %v889
        %v950 = vpack.c.b16 %v894, %v890
        %v951 = vpack.c.b16 %v895, %v891
        %v952 = vpack.c.b16 %v896, %v892
        %v953 = vpack.c.b16 %v901, %v897
        %v954 = vpack.c.b16 %v902, %v898
        %v955 = vpack.c.b16 %v903, %v899
        %v956 = vpack.c.b16 %v904, %v900
        %v957 = vpack.c.b16 %v909, %v905
        %v958 = vpack.c.b16 %v910, %v906
        %v959 = vpack.c.b16 %v911, %v907
        %v960 = vpack.c.b16 %v912, %v908
        %v961 = vpack.c.b16 %v917, %v913
        %v962 = vpack.c.b16 %v918, %v914
        %v963 = vpack.c.b16 %v919, %v915
        %v964 = vpack.c.b16 %v920, %v916
        %v965 = vpack.c.b16 %v925, %v921
        %v966 = vpack.c.b16 %v926, %v922
        %v967 = vpack.c.b16 %v927, %v923
        %v968 = vpack.c.b16 %v928, %v924
        %v969 = vpack.c.b16 %v933, %v929
        %v970 = vpack.c.b16 %v934, %v930
        %v971 = vpack.c.b16 %v935, %v931
        %v972 = vpack.c.b16 %v936, %v932
        %v973 = vpack.c.b16 %v941, %v937
        %v974 = vpack.c.b16 %v942, %v938
        %v975 = vpack.c.b16 %v943, %v939
        %v976 = vpack.c.b16 %v944, %v940
        %1009 = vmatpush.bf16.msra.mxu0 %v973
        %1010 = vmatpush.bf16.msra.mxu0 %v969
        %1011 = vmatpush.bf16.msra.mxu0 %v965
        %1012 = vmatpush.bf16.msra.mxu0 %v961
        %1013 = vmatpush.bf16.msra.mxu0 %v957
        %1014 = vmatpush.bf16.msra.mxu0 %v953
        %1015 = vmatpush.bf16.msra.mxu0 %v949
        %1016 = vmatpush.bf16.msra.mxu0 %v945
        %1017 = vmatmul.bf16.gmra.mxu0 %v841
        %v1018 = vpop.f32.mrf.mxu0
        %v1019 = vadd.f32 0.0, %v1018
        %v1020 = vpop.f32.mrf.mxu0
        %v1021 = vadd.f32 0.0, %v1020
        %1022 = vmatmul.bf16.gmra.mxu0 %v842
        %v1023 = vpop.f32.mrf.mxu0
        %v1024 = vadd.f32 0.0, %v1023
        %v1025 = vpop.f32.mrf.mxu0
        %v1026 = vadd.f32 0.0, %v1025
        %1027 = vmatmul.bf16.gmra.mxu0 %v843
        %v1028 = vpop.f32.mrf.mxu0
        %v1029 = vadd.f32 0.0, %v1028
        %v1030 = vpop.f32.mrf.mxu0
        %v1031 = vadd.f32 0.0, %v1030
        %1032 = vmatmul.bf16.gmra.mxu0 %v844
        %v1033 = vpop.f32.mrf.mxu0
        %v1034 = vadd.f32 0.0, %v1033
        %v1035 = vpop.f32.mrf.mxu0
        %v1036 = vadd.f32 0.0, %v1035
        %1037 = vmatmul.bf16.gmra.mxu0 %v845
        %v1038 = vpop.f32.mrf.mxu0
        %v1039 = vadd.f32 0.0, %v1038
        %v1040 = vpop.f32.mrf.mxu0
        %v1041 = vadd.f32 0.0, %v1040
        %1042 = vmatmul.bf16.gmra.mxu0 %v846
        %v1043 = vpop.f32.mrf.mxu0
        %v1044 = vadd.f32 0.0, %v1043
        %v1045 = vpop.f32.mrf.mxu0
        %v1046 = vadd.f32 0.0, %v1045
        %1047 = vmatmul.bf16.gmra.mxu0 %v847
        %v1048 = vpop.f32.mrf.mxu0
        %v1049 = vadd.f32 0.0, %v1048
        %v1050 = vpop.f32.mrf.mxu0
        %v1051 = vadd.f32 0.0, %v1050
        %1052 = vmatmul.bf16.gmra.mxu0 %v848
        %v1053 = vpop.f32.mrf.mxu0
        %v1054 = vadd.f32 0.0, %v1053
        %v1055 = vpop.f32.mrf.mxu0
        %v1056 = vadd.f32 0.0, %v1055
        %1057 = vdwg.mxu0
        %1058 = vmatpush.bf16.msra.mxu0 %v974
        %1059 = vmatpush.bf16.msra.mxu0 %v970
        %1060 = vmatpush.bf16.msra.mxu0 %v966
        %1061 = vmatpush.bf16.msra.mxu0 %v962
        %1062 = vmatpush.bf16.msra.mxu0 %v958
        %1063 = vmatpush.bf16.msra.mxu0 %v954
        %1064 = vmatpush.bf16.msra.mxu0 %v950
        %1065 = vmatpush.bf16.msra.mxu0 %v946
        %1066 = vmatmul.bf16.gmra.mxu0 %v841
        %v1067 = vpop.f32.mrf.mxu0
        %v1068 = vadd.f32 0.0, %v1067
        %v1069 = vpop.f32.mrf.mxu0
        %v1070 = vadd.f32 0.0, %v1069
        %1071 = vmatmul.bf16.gmra.mxu0 %v842
        %v1072 = vpop.f32.mrf.mxu0
        %v1073 = vadd.f32 0.0, %v1072
        %v1074 = vpop.f32.mrf.mxu0
        %v1075 = vadd.f32 0.0, %v1074
        %1076 = vmatmul.bf16.gmra.mxu0 %v843
        %v1077 = vpop.f32.mrf.mxu0
        %v1078 = vadd.f32 0.0, %v1077
        %v1079 = vpop.f32.mrf.mxu0
        %v1080 = vadd.f32 0.0, %v1079
        %1081 = vmatmul.bf16.gmra.mxu0 %v844
        %v1082 = vpop.f32.mrf.mxu0
        %v1083 = vadd.f32 0.0, %v1082
        %v1084 = vpop.f32.mrf.mxu0
        %v1085 = vadd.f32 0.0, %v1084
        %1086 = vmatmul.bf16.gmra.mxu0 %v845
        %v1087 = vpop.f32.mrf.mxu0
        %v1088 = vadd.f32 0.0, %v1087
        %v1089 = vpop.f32.mrf.mxu0
        %v1090 = vadd.f32 0.0, %v1089
        %1091 = vmatmul.bf16.gmra.mxu0 %v846
        %v1092 = vpop.f32.mrf.mxu0
        %v1093 = vadd.f32 0.0, %v1092
        %v1094 = vpop.f32.mrf.mxu0
        %v1095 = vadd.f32 0.0, %v1094
        %1096 = vmatmul.bf16.gmra.mxu0 %v847
        %v1097 = vpop.f32.mrf.mxu0
        %v1098 = vadd.f32 0.0, %v1097
        %v1099 = vpop.f32.mrf.mxu0
        %v1100 = vadd.f32 0.0, %v1099
        %1101 = vmatmul.bf16.gmra.mxu0 %v848
        %v1102 = vpop.f32.mrf.mxu0
        %v1103 = vadd.f32 0.0, %v1102
        %v1104 = vpop.f32.mrf.mxu0
        %v1105 = vadd.f32 0.0, %v1104
        %1106 = vdwg.mxu0
        %1107 = vmatpush.bf16.msra.mxu0 %v975
        %1108 = vmatpush.bf16.msra.mxu0 %v971
        %1109 = vmatpush.bf16.msra.mxu0 %v967
        %1110 = vmatpush.bf16.msra.mxu0 %v963
        %1111 = vmatpush.bf16.msra.mxu0 %v959
        %1112 = vmatpush.bf16.msra.mxu0 %v955
        %1113 = vmatpush.bf16.msra.mxu0 %v951
        %1114 = vmatpush.bf16.msra.mxu0 %v947
        %1115 = vmatmul.bf16.gmra.mxu0 %v841
        %v1116 = vpop.f32.mrf.mxu0
        %v1117 = vadd.f32 0.0, %v1116
        %v1118 = vpop.f32.mrf.mxu0
        %v1119 = vadd.f32 0.0, %v1118
        %1120 = vmatmul.bf16.gmra.mxu0 %v842
        %v1121 = vpop.f32.mrf.mxu0
        %v1122 = vadd.f32 0.0, %v1121
        %v1123 = vpop.f32.mrf.mxu0
        %v1124 = vadd.f32 0.0, %v1123
        %1125 = vmatmul.bf16.gmra.mxu0 %v843
        %v1126 = vpop.f32.mrf.mxu0
        %v1127 = vadd.f32 0.0, %v1126
        %v1128 = vpop.f32.mrf.mxu0
        %v1129 = vadd.f32 0.0, %v1128
        %1130 = vmatmul.bf16.gmra.mxu0 %v844
        %v1131 = vpop.f32.mrf.mxu0
        %v1132 = vadd.f32 0.0, %v1131
        %v1133 = vpop.f32.mrf.mxu0
        %v1134 = vadd.f32 0.0, %v1133
        %1135 = vmatmul.bf16.gmra.mxu0 %v845
        %v1136 = vpop.f32.mrf.mxu0
        %v1137 = vadd.f32 0.0, %v1136
        %v1138 = vpop.f32.mrf.mxu0
        %v1139 = vadd.f32 0.0, %v1138
        %1140 = vmatmul.bf16.gmra.mxu0 %v846
        %v1141 = vpop.f32.mrf.mxu0
        %v1142 = vadd.f32 0.0, %v1141
        %v1143 = vpop.f32.mrf.mxu0
        %v1144 = vadd.f32 0.0, %v1143
        %1145 = vmatmul.bf16.gmra.mxu0 %v847
        %v1146 = vpop.f32.mrf.mxu0
        %v1147 = vadd.f32 0.0, %v1146
        %v1148 = vpop.f32.mrf.mxu0
        %v1149 = vadd.f32 0.0, %v1148
        %1150 = vmatmul.bf16.gmra.mxu0 %v848
        %v1151 = vpop.f32.mrf.mxu0
        %v1152 = vadd.f32 0.0, %v1151
        %v1153 = vpop.f32.mrf.mxu0
        %v1154 = vadd.f32 0.0, %v1153
        %1155 = vdwg.mxu0
        %1156 = vmatpush.bf16.msra.mxu0 %v976
        %1157 = vmatpush.bf16.msra.mxu0 %v972
        %1158 = vmatpush.bf16.msra.mxu0 %v968
        %1159 = vmatpush.bf16.msra.mxu0 %v964
        %1160 = vmatpush.bf16.msra.mxu0 %v960
        %1161 = vmatpush.bf16.msra.mxu0 %v956
        %1162 = vmatpush.bf16.msra.mxu0 %v952
        %1163 = vmatpush.bf16.msra.mxu0 %v948
        %1164 = vmatmul.bf16.gmra.mxu0 %v841
        %v1165 = vpop.f32.mrf.mxu0
        %v1166 = vadd.f32 0.0, %v1165
        %v1167 = vpop.f32.mrf.mxu0
        %v1168 = vadd.f32 0.0, %v1167
        %1169 = vmatmul.bf16.gmra.mxu0 %v842
        %v1170 = vpop.f32.mrf.mxu0
        %v1171 = vadd.f32 0.0, %v1170
        %v1172 = vpop.f32.mrf.mxu0
        %v1173 = vadd.f32 0.0, %v1172
        %1174 = vmatmul.bf16.gmra.mxu0 %v843
        %v1175 = vpop.f32.mrf.mxu0
        %v1176 = vadd.f32 0.0, %v1175
        %v1177 = vpop.f32.mrf.mxu0
        %v1178 = vadd.f32 0.0, %v1177
        %1179 = vmatmul.bf16.gmra.mxu0 %v844
        %v1180 = vpop.f32.mrf.mxu0
        %v1181 = vadd.f32 0.0, %v1180
        %v1182 = vpop.f32.mrf.mxu0
        %v1183 = vadd.f32 0.0, %v1182
        %1184 = vmatmul.bf16.gmra.mxu0 %v845
        %v1185 = vpop.f32.mrf.mxu0
        %v1186 = vadd.f32 0.0, %v1185
        %v1187 = vpop.f32.mrf.mxu0
        %v1188 = vadd.f32 0.0, %v1187
        %1189 = vmatmul.bf16.gmra.mxu0 %v846
        %v1190 = vpop.f32.mrf.mxu0
        %v1191 = vadd.f32 0.0, %v1190
        %v1192 = vpop.f32.mrf.mxu0
        %v1193 = vadd.f32 0.0, %v1192
        %1194 = vmatmul.bf16.gmra.mxu0 %v847
        %v1195 = vpop.f32.mrf.mxu0
        %v1196 = vadd.f32 0.0, %v1195
        %v1197 = vpop.f32.mrf.mxu0
        %v1198 = vadd.f32 0.0, %v1197
        %1199 = vmatmul.bf16.gmra.mxu0 %v848
        %v1200 = vpop.f32.mrf.mxu0
        %v1201 = vadd.f32 0.0, %v1200
        %v1202 = vpop.f32.mrf.mxu0
        %v1203 = vadd.f32 0.0, %v1202
        %1204 = vdwg.mxu0
        %v1237 = vunpack.c.l.b16 %v751
        %v1238 = vunpack.c.h.b16 %v751
        %v1239 = vunpack.c.l.b16 %v752
        %v1240 = vunpack.c.h.b16 %v752
        %v1241 = vunpack.c.l.b16 %v753
        %v1242 = vunpack.c.h.b16 %v753
        %v1243 = vunpack.c.l.b16 %v754
        %v1244 = vunpack.c.h.b16 %v754
        %v1245 = vunpack.c.l.b16 %v755
        %v1246 = vunpack.c.h.b16 %v755
        %v1247 = vunpack.c.l.b16 %v756
        %v1248 = vunpack.c.h.b16 %v756
        %v1249 = vunpack.c.l.b16 %v757
        %v1250 = vunpack.c.h.b16 %v757
        %v1251 = vunpack.c.l.b16 %v758
        %v1252 = vunpack.c.h.b16 %v758
        %v1253 = vunpack.c.l.b16 %v759
        %v1254 = vunpack.c.h.b16 %v759
        %v1255 = vunpack.c.l.b16 %v760
        %v1256 = vunpack.c.h.b16 %v760
        %v1257 = vunpack.c.l.b16 %v761
        %v1258 = vunpack.c.h.b16 %v761
        %v1259 = vunpack.c.l.b16 %v762
        %v1260 = vunpack.c.h.b16 %v762
        %v1261 = vunpack.c.l.b16 %v763
        %v1262 = vunpack.c.h.b16 %v763
        %v1263 = vunpack.c.l.b16 %v764
        %v1264 = vunpack.c.h.b16 %v764
        %v1265 = vunpack.c.l.b16 %v765
        %v1266 = vunpack.c.h.b16 %v765
        %v1267 = vunpack.c.l.b16 %v766
        %v1268 = vunpack.c.h.b16 %v766
        %v1269 = vunpack.c.l.b16 %v767
        %v1270 = vunpack.c.h.b16 %v767
        %v1271 = vunpack.c.l.b16 %v768
        %v1272 = vunpack.c.h.b16 %v768
        %v1273 = vunpack.c.l.b16 %v769
        %v1274 = vunpack.c.h.b16 %v769
        %v1275 = vunpack.c.l.b16 %v770
        %v1276 = vunpack.c.h.b16 %v770
        %v1277 = vunpack.c.l.b16 %v771
        %v1278 = vunpack.c.h.b16 %v771
        %v1279 = vunpack.c.l.b16 %v772
        %v1280 = vunpack.c.h.b16 %v772
        %v1281 = vunpack.c.l.b16 %v773
        %v1282 = vunpack.c.h.b16 %v773
        %v1283 = vunpack.c.l.b16 %v774
        %v1284 = vunpack.c.h.b16 %v774
        %v1285 = vunpack.c.l.b16 %v775
        %v1286 = vunpack.c.h.b16 %v775
        %v1287 = vunpack.c.l.b16 %v776
        %v1288 = vunpack.c.h.b16 %v776
        %v1289 = vunpack.c.l.b16 %v777
        %v1290 = vunpack.c.h.b16 %v777
        %v1291 = vunpack.c.l.b16 %v778
        %v1292 = vunpack.c.h.b16 %v778
        %v1293 = vunpack.c.l.b16 %v779
        %v1294 = vunpack.c.h.b16 %v779
        %v1295 = vunpack.c.l.b16 %v780
        %v1296 = vunpack.c.h.b16 %v780
        %v1297 = vunpack.c.l.b16 %v781
        %v1298 = vunpack.c.h.b16 %v781
        %v1299 = vunpack.c.l.b16 %v782
        %v1300 = vunpack.c.h.b16 %v782
        %v1301 = vpack.c.b16 %v1241, %v1237
        %v1302 = vpack.c.b16 %v1242, %v1238
        %v1303 = vpack.c.b16 %v1243, %v1239
        %v1304 = vpack.c.b16 %v1244, %v1240
        %v1305 = vpack.c.b16 %v1249, %v1245
        %v1306 = vpack.c.b16 %v1250, %v1246
        %v1307 = vpack.c.b16 %v1251, %v1247
        %v1308 = vpack.c.b16 %v1252, %v1248
        %v1309 = vpack.c.b16 %v1257, %v1253
        %v1310 = vpack.c.b16 %v1258, %v1254
        %v1311 = vpack.c.b16 %v1259, %v1255
        %v1312 = vpack.c.b16 %v1260, %v1256
        %v1313 = vpack.c.b16 %v1265, %v1261
        %v1314 = vpack.c.b16 %v1266, %v1262
        %v1315 = vpack.c.b16 %v1267, %v1263
        %v1316 = vpack.c.b16 %v1268, %v1264
        %v1317 = vpack.c.b16 %v1273, %v1269
        %v1318 = vpack.c.b16 %v1274, %v1270
        %v1319 = vpack.c.b16 %v1275, %v1271
        %v1320 = vpack.c.b16 %v1276, %v1272
        %v1321 = vpack.c.b16 %v1281, %v1277
        %v1322 = vpack.c.b16 %v1282, %v1278
        %v1323 = vpack.c.b16 %v1283, %v1279
        %v1324 = vpack.c.b16 %v1284, %v1280
        %v1325 = vpack.c.b16 %v1289, %v1285
        %v1326 = vpack.c.b16 %v1290, %v1286
        %v1327 = vpack.c.b16 %v1291, %v1287
        %v1328 = vpack.c.b16 %v1292, %v1288
        %v1329 = vpack.c.b16 %v1297, %v1293
        %v1330 = vpack.c.b16 %v1298, %v1294
        %v1331 = vpack.c.b16 %v1299, %v1295
        %v1332 = vpack.c.b16 %v1300, %v1296
        %1365 = vmatpush.bf16.msra.mxu0 %v1329
        %1366 = vmatpush.bf16.msra.mxu0 %v1325
        %1367 = vmatpush.bf16.msra.mxu0 %v1321
        %1368 = vmatpush.bf16.msra.mxu0 %v1317
        %1369 = vmatpush.bf16.msra.mxu0 %v1313
        %1370 = vmatpush.bf16.msra.mxu0 %v1309
        %1371 = vmatpush.bf16.msra.mxu0 %v1305
        %1372 = vmatpush.bf16.msra.mxu0 %v1301
        %1373 = vmatmul.bf16.gmra.mxu0 %v783
        %v1374 = vpop.f32.mrf.mxu0
        %v1375 = vadd.f32 %v1019, %v1374
        %v1376 = vpop.f32.mrf.mxu0
        %v1377 = vadd.f32 %v1021, %v1376
        %1378 = vmatmul.bf16.gmra.mxu0 %v784
        %v1379 = vpop.f32.mrf.mxu0
        %v1380 = vadd.f32 %v1024, %v1379
        %v1381 = vpop.f32.mrf.mxu0
        %v1382 = vadd.f32 %v1026, %v1381
        %1383 = vmatmul.bf16.gmra.mxu0 %v785
        %v1384 = vpop.f32.mrf.mxu0
        %v1385 = vadd.f32 %v1029, %v1384
        %v1386 = vpop.f32.mrf.mxu0
        %v1387 = vadd.f32 %v1031, %v1386
        %1388 = vmatmul.bf16.gmra.mxu0 %v786
        %v1389 = vpop.f32.mrf.mxu0
        %v1390 = vadd.f32 %v1034, %v1389
        %v1391 = vpop.f32.mrf.mxu0
        %v1392 = vadd.f32 %v1036, %v1391
        %1393 = vmatmul.bf16.gmra.mxu0 %v787
        %v1394 = vpop.f32.mrf.mxu0
        %v1395 = vadd.f32 %v1039, %v1394
        %v1396 = vpop.f32.mrf.mxu0
        %v1397 = vadd.f32 %v1041, %v1396
        %1398 = vmatmul.bf16.gmra.mxu0 %v788
        %v1399 = vpop.f32.mrf.mxu0
        %v1400 = vadd.f32 %v1044, %v1399
        %v1401 = vpop.f32.mrf.mxu0
        %v1402 = vadd.f32 %v1046, %v1401
        %1403 = vmatmul.bf16.gmra.mxu0 %v789
        %v1404 = vpop.f32.mrf.mxu0
        %v1405 = vadd.f32 %v1049, %v1404
        %v1406 = vpop.f32.mrf.mxu0
        %v1407 = vadd.f32 %v1051, %v1406
        %1408 = vmatmul.bf16.gmra.mxu0 %v790
        %v1409 = vpop.f32.mrf.mxu0
        %v1410 = vadd.f32 %v1054, %v1409
        %v1411 = vpop.f32.mrf.mxu0
        %v1412 = vadd.f32 %v1056, %v1411
        %1413 = vdwg.mxu0
        %1414 = vmatpush.bf16.msra.mxu0 %v1330
        %1415 = vmatpush.bf16.msra.mxu0 %v1326
        %1416 = vmatpush.bf16.msra.mxu0 %v1322
        %1417 = vmatpush.bf16.msra.mxu0 %v1318
        %1418 = vmatpush.bf16.msra.mxu0 %v1314
        %1419 = vmatpush.bf16.msra.mxu0 %v1310
        %1420 = vmatpush.bf16.msra.mxu0 %v1306
        %1421 = vmatpush.bf16.msra.mxu0 %v1302
        %1422 = vmatmul.bf16.gmra.mxu0 %v783
        %v1423 = vpop.f32.mrf.mxu0
        %v1424 = vadd.f32 %v1068, %v1423
        %v1425 = vpop.f32.mrf.mxu0
        %v1426 = vadd.f32 %v1070, %v1425
        %1427 = vmatmul.bf16.gmra.mxu0 %v784
        %v1428 = vpop.f32.mrf.mxu0
        %v1429 = vadd.f32 %v1073, %v1428
        %v1430 = vpop.f32.mrf.mxu0
        %v1431 = vadd.f32 %v1075, %v1430
        %1432 = vmatmul.bf16.gmra.mxu0 %v785
        %v1433 = vpop.f32.mrf.mxu0
        %v1434 = vadd.f32 %v1078, %v1433
        %v1435 = vpop.f32.mrf.mxu0
        %v1436 = vadd.f32 %v1080, %v1435
        %1437 = vmatmul.bf16.gmra.mxu0 %v786
        %v1438 = vpop.f32.mrf.mxu0
        %v1439 = vadd.f32 %v1083, %v1438
        %v1440 = vpop.f32.mrf.mxu0
        %v1441 = vadd.f32 %v1085, %v1440
        %1442 = vmatmul.bf16.gmra.mxu0 %v787
        %v1443 = vpop.f32.mrf.mxu0
        %v1444 = vadd.f32 %v1088, %v1443
        %v1445 = vpop.f32.mrf.mxu0
        %v1446 = vadd.f32 %v1090, %v1445
        %1447 = vmatmul.bf16.gmra.mxu0 %v788
        %v1448 = vpop.f32.mrf.mxu0
        %v1449 = vadd.f32 %v1093, %v1448
        %v1450 = vpop.f32.mrf.mxu0
        %v1451 = vadd.f32 %v1095, %v1450
        %1452 = vmatmul.bf16.gmra.mxu0 %v789
        %v1453 = vpop.f32.mrf.mxu0
        %v1454 = vadd.f32 %v1098, %v1453
        %v1455 = vpop.f32.mrf.mxu0
        %v1456 = vadd.f32 %v1100, %v1455
        %1457 = vmatmul.bf16.gmra.mxu0 %v790
        %v1458 = vpop.f32.mrf.mxu0
        %v1459 = vadd.f32 %v1103, %v1458
        %v1460 = vpop.f32.mrf.mxu0
        %v1461 = vadd.f32 %v1105, %v1460
        %1462 = vdwg.mxu0
        %1463 = vmatpush.bf16.msra.mxu0 %v1331
        %1464 = vmatpush.bf16.msra.mxu0 %v1327
        %1465 = vmatpush.bf16.msra.mxu0 %v1323
        %1466 = vmatpush.bf16.msra.mxu0 %v1319
        %1467 = vmatpush.bf16.msra.mxu0 %v1315
        %1468 = vmatpush.bf16.msra.mxu0 %v1311
        %1469 = vmatpush.bf16.msra.mxu0 %v1307
        %1470 = vmatpush.bf16.msra.mxu0 %v1303
        %1471 = vmatmul.bf16.gmra.mxu0 %v783
        %v1472 = vpop.f32.mrf.mxu0
        %v1473 = vadd.f32 %v1117, %v1472
        %v1474 = vpop.f32.mrf.mxu0
        %v1475 = vadd.f32 %v1119, %v1474
        %1476 = vmatmul.bf16.gmra.mxu0 %v784
        %v1477 = vpop.f32.mrf.mxu0
        %v1478 = vadd.f32 %v1122, %v1477
        %v1479 = vpop.f32.mrf.mxu0
        %v1480 = vadd.f32 %v1124, %v1479
        %1481 = vmatmul.bf16.gmra.mxu0 %v785
        %v1482 = vpop.f32.mrf.mxu0
        %v1483 = vadd.f32 %v1127, %v1482
        %v1484 = vpop.f32.mrf.mxu0
        %v1485 = vadd.f32 %v1129, %v1484
        %1486 = vmatmul.bf16.gmra.mxu0 %v786
        %v1487 = vpop.f32.mrf.mxu0
        %v1488 = vadd.f32 %v1132, %v1487
        %v1489 = vpop.f32.mrf.mxu0
        %v1490 = vadd.f32 %v1134, %v1489
        %1491 = vmatmul.bf16.gmra.mxu0 %v787
        %v1492 = vpop.f32.mrf.mxu0
        %v1493 = vadd.f32 %v1137, %v1492
        %v1494 = vpop.f32.mrf.mxu0
        %v1495 = vadd.f32 %v1139, %v1494
        %1496 = vmatmul.bf16.gmra.mxu0 %v788
        %v1497 = vpop.f32.mrf.mxu0
        %v1498 = vadd.f32 %v1142, %v1497
        %v1499 = vpop.f32.mrf.mxu0
        %v1500 = vadd.f32 %v1144, %v1499
        %1501 = vmatmul.bf16.gmra.mxu0 %v789
        %v1502 = vpop.f32.mrf.mxu0
        %v1503 = vadd.f32 %v1147, %v1502
        %v1504 = vpop.f32.mrf.mxu0
        %v1505 = vadd.f32 %v1149, %v1504
        %1506 = vmatmul.bf16.gmra.mxu0 %v790
        %v1507 = vpop.f32.mrf.mxu0
        %v1508 = vadd.f32 %v1152, %v1507
        %v1509 = vpop.f32.mrf.mxu0
        %v1510 = vadd.f32 %v1154, %v1509
        %1511 = vdwg.mxu0
        %1512 = vmatpush.bf16.msra.mxu0 %v1332
        %1513 = vmatpush.bf16.msra.mxu0 %v1328
        %1514 = vmatpush.bf16.msra.mxu0 %v1324
        %1515 = vmatpush.bf16.msra.mxu0 %v1320
        %1516 = vmatpush.bf16.msra.mxu0 %v1316
        %1517 = vmatpush.bf16.msra.mxu0 %v1312
        %1518 = vmatpush.bf16.msra.mxu0 %v1308
        %1519 = vmatpush.bf16.msra.mxu0 %v1304
        %1520 = vmatmul.bf16.gmra.mxu0 %v783
        %v1521 = vpop.f32.mrf.mxu0
        %v1522 = vadd.f32 %v1166, %v1521
        %v1523 = vpop.f32.mrf.mxu0
        %v1524 = vadd.f32 %v1168, %v1523
        %1525 = vmatmul.bf16.gmra.mxu0 %v784
        %v1526 = vpop.f32.mrf.mxu0
        %v1527 = vadd.f32 %v1171, %v1526
        %v1528 = vpop.f32.mrf.mxu0
        %v1529 = vadd.f32 %v1173, %v1528
        %1530 = vmatmul.bf16.gmra.mxu0 %v785
        %v1531 = vpop.f32.mrf.mxu0
        %v1532 = vadd.f32 %v1176, %v1531
        %v1533 = vpop.f32.mrf.mxu0
        %v1534 = vadd.f32 %v1178, %v1533
        %1535 = vmatmul.bf16.gmra.mxu0 %v786
        %v1536 = vpop.f32.mrf.mxu0
        %v1537 = vadd.f32 %v1181, %v1536
        %v1538 = vpop.f32.mrf.mxu0
        %v1539 = vadd.f32 %v1183, %v1538
        %1540 = vmatmul.bf16.gmra.mxu0 %v787
        %v1541 = vpop.f32.mrf.mxu0
        %v1542 = vadd.f32 %v1186, %v1541
        %v1543 = vpop.f32.mrf.mxu0
        %v1544 = vadd.f32 %v1188, %v1543
        %1545 = vmatmul.bf16.gmra.mxu0 %v788
        %v1546 = vpop.f32.mrf.mxu0
        %v1547 = vadd.f32 %v1191, %v1546
        %v1548 = vpop.f32.mrf.mxu0
        %v1549 = vadd.f32 %v1193, %v1548
        %1550 = vmatmul.bf16.gmra.mxu0 %v789
        %v1551 = vpop.f32.mrf.mxu0
        %v1552 = vadd.f32 %v1196, %v1551
        %v1553 = vpop.f32.mrf.mxu0
        %v1554 = vadd.f32 %v1198, %v1553
        %1555 = vmatmul.bf16.gmra.mxu0 %v790
        %v1556 = vpop.f32.mrf.mxu0
        %v1557 = vadd.f32 %v1201, %v1556
        %v1558 = vpop.f32.mrf.mxu0
        %v1559 = vadd.f32 %v1203, %v1558
        %1560 = vdwg.mxu0
        %s1561 = scalar_lea.vmem %s678, 256 [#allocation2]
        %v1562 = vld [vmem:[%s1561] sm:$0xff]
        %v1563 = vld [vmem:[%s1561 + $0x8] sm:$0xff]
        %v1564 = vld [vmem:[%s1561 + $0x10] sm:$0xff]
        %v1565 = vld [vmem:[%s1561 + $0x18] sm:$0xff]
        %v1566 = vld [vmem:[%s1561 + $0x20] sm:$0xff]
        %v1567 = vld [vmem:[%s1561 + $0x28] sm:$0xff]
        %v1568 = vld [vmem:[%s1561 + $0x30] sm:$0xff]
        %v1569 = vld [vmem:[%s1561 + $0x38] sm:$0xff]
        %v1570 = vld [vmem:[%s1561 + $0x40] sm:$0xff]
        %v1571 = vld [vmem:[%s1561 + $0x48] sm:$0xff]
        %v1572 = vld [vmem:[%s1561 + $0x50] sm:$0xff]
        %v1573 = vld [vmem:[%s1561 + $0x58] sm:$0xff]
        %v1574 = vld [vmem:[%s1561 + $0x60] sm:$0xff]
        %v1575 = vld [vmem:[%s1561 + $0x68] sm:$0xff]
        %v1576 = vld [vmem:[%s1561 + $0x70] sm:$0xff]
        %v1577 = vld [vmem:[%s1561 + $0x78] sm:$0xff]
        %s1578 = scalar_lea.vmem %s2, 512
        %v1579 = vld [vmem:[%s1578] sm:$0xff]
        %v1580 = vld [vmem:[%s1578 + $0x8] sm:$0xff]
        %v1581 = vld [vmem:[%s1578 + $0x10] sm:$0xff]
        %v1582 = vld [vmem:[%s1578 + $0x18] sm:$0xff]
        %v1583 = vld [vmem:[%s1578 + $0x20] sm:$0xff]
        %v1584 = vld [vmem:[%s1578 + $0x28] sm:$0xff]
        %v1585 = vld [vmem:[%s1578 + $0x30] sm:$0xff]
        %v1586 = vld [vmem:[%s1578 + $0x38] sm:$0xff]
        %v1587 = vld [vmem:[%s1578 + $0x40] sm:$0xff]
        %v1588 = vld [vmem:[%s1578 + $0x48] sm:$0xff]
        %v1589 = vld [vmem:[%s1578 + $0x50] sm:$0xff]
        %v1590 = vld [vmem:[%s1578 + $0x58] sm:$0xff]
        %v1591 = vld [vmem:[%s1578 + $0x60] sm:$0xff]
        %v1592 = vld [vmem:[%s1578 + $0x68] sm:$0xff]
        %v1593 = vld [vmem:[%s1578 + $0x70] sm:$0xff]
        %v1594 = vld [vmem:[%s1578 + $0x78] sm:$0xff]
        %v1595 = vld [vmem:[%s1578 + $0x80] sm:$0xff]
        %v1596 = vld [vmem:[%s1578 + $0x88] sm:$0xff]
        %v1597 = vld [vmem:[%s1578 + $0x90] sm:$0xff]
        %v1598 = vld [vmem:[%s1578 + $0x98] sm:$0xff]
        %v1599 = vld [vmem:[%s1578 + $0xa0] sm:$0xff]
        %v1600 = vld [vmem:[%s1578 + $0xa8] sm:$0xff]
        %v1601 = vld [vmem:[%s1578 + $0xb0] sm:$0xff]
        %v1602 = vld [vmem:[%s1578 + $0xb8] sm:$0xff]
        %v1603 = vld [vmem:[%s1578 + $0xc0] sm:$0xff]
        %v1604 = vld [vmem:[%s1578 + $0xc8] sm:$0xff]
        %v1605 = vld [vmem:[%s1578 + $0xd0] sm:$0xff]
        %v1606 = vld [vmem:[%s1578 + $0xd8] sm:$0xff]
        %v1607 = vld [vmem:[%s1578 + $0xe0] sm:$0xff]
        %v1608 = vld [vmem:[%s1578 + $0xe8] sm:$0xff]
        %v1609 = vld [vmem:[%s1578 + $0xf0] sm:$0xff]
        %v1610 = vld [vmem:[%s1578 + $0xf8] sm:$0xff]
        %v1611 = vpack.c.bf16 %v1563, %v1562
        %v1612 = vpack.c.bf16 %v1565, %v1564
        %v1613 = vpack.c.bf16 %v1567, %v1566
        %v1614 = vpack.c.bf16 %v1569, %v1568
        %v1615 = vpack.c.bf16 %v1571, %v1570
        %v1616 = vpack.c.bf16 %v1573, %v1572
        %v1617 = vpack.c.bf16 %v1575, %v1574
        %v1618 = vpack.c.bf16 %v1577, %v1576
        %v1651 = vunpack.c.l.b16 %v1579
        %v1652 = vunpack.c.h.b16 %v1579
        %v1653 = vunpack.c.l.b16 %v1580
        %v1654 = vunpack.c.h.b16 %v1580
        %v1655 = vunpack.c.l.b16 %v1581
        %v1656 = vunpack.c.h.b16 %v1581
        %v1657 = vunpack.c.l.b16 %v1582
        %v1658 = vunpack.c.h.b16 %v1582
        %v1659 = vunpack.c.l.b16 %v1583
        %v1660 = vunpack.c.h.b16 %v1583
        %v1661 = vunpack.c.l.b16 %v1584
        %v1662 = vunpack.c.h.b16 %v1584
        %v1663 = vunpack.c.l.b16 %v1585
        %v1664 = vunpack.c.h.b16 %v1585
        %v1665 = vunpack.c.l.b16 %v1586
        %v1666 = vunpack.c.h.b16 %v1586
        %v1667 = vunpack.c.l.b16 %v1587
        %v1668 = vunpack.c.h.b16 %v1587
        %v1669 = vunpack.c.l.b16 %v1588
        %v1670 = vunpack.c.h.b16 %v1588
        %v1671 = vunpack.c.l.b16 %v1589
        %v1672 = vunpack.c.h.b16 %v1589
        %v1673 = vunpack.c.l.b16 %v1590
        %v1674 = vunpack.c.h.b16 %v1590
        %v1675 = vunpack.c.l.b16 %v1591
        %v1676 = vunpack.c.h.b16 %v1591
        %v1677 = vunpack.c.l.b16 %v1592
        %v1678 = vunpack.c.h.b16 %v1592
        %v1679 = vunpack.c.l.b16 %v1593
        %v1680 = vunpack.c.h.b16 %v1593
        %v1681 = vunpack.c.l.b16 %v1594
        %v1682 = vunpack.c.h.b16 %v1594
        %v1683 = vunpack.c.l.b16 %v1595
        %v1684 = vunpack.c.h.b16 %v1595
        %v1685 = vunpack.c.l.b16 %v1596
        %v1686 = vunpack.c.h.b16 %v1596
        %v1687 = vunpack.c.l.b16 %v1597
        %v1688 = vunpack.c.h.b16 %v1597
        %v1689 = vunpack.c.l.b16 %v1598
        %v1690 = vunpack.c.h.b16 %v1598
        %v1691 = vunpack.c.l.b16 %v1599
        %v1692 = vunpack.c.h.b16 %v1599
        %v1693 = vunpack.c.l.b16 %v1600
        %v1694 = vunpack.c.h.b16 %v1600
        %v1695 = vunpack.c.l.b16 %v1601
        %v1696 = vunpack.c.h.b16 %v1601
        %v1697 = vunpack.c.l.b16 %v1602
        %v1698 = vunpack.c.h.b16 %v1602
        %v1699 = vunpack.c.l.b16 %v1603
        %v1700 = vunpack.c.h.b16 %v1603
        %v1701 = vunpack.c.l.b16 %v1604
        %v1702 = vunpack.c.h.b16 %v1604
        %v1703 = vunpack.c.l.b16 %v1605
        %v1704 = vunpack.c.h.b16 %v1605
        %v1705 = vunpack.c.l.b16 %v1606
        %v1706 = vunpack.c.h.b16 %v1606
        %v1707 = vunpack.c.l.b16 %v1607
        %v1708 = vunpack.c.h.b16 %v1607
        %v1709 = vunpack.c.l.b16 %v1608
        %v1710 = vunpack.c.h.b16 %v1608
        %v1711 = vunpack.c.l.b16 %v1609
        %v1712 = vunpack.c.h.b16 %v1609
        %v1713 = vunpack.c.l.b16 %v1610
        %v1714 = vunpack.c.h.b16 %v1610
        %v1715 = vpack.c.b16 %v1655, %v1651
        %v1716 = vpack.c.b16 %v1656, %v1652
        %v1717 = vpack.c.b16 %v1657, %v1653
        %v1718 = vpack.c.b16 %v1658, %v1654
        %v1719 = vpack.c.b16 %v1663, %v1659
        %v1720 = vpack.c.b16 %v1664, %v1660
        %v1721 = vpack.c.b16 %v1665, %v1661
        %v1722 = vpack.c.b16 %v1666, %v1662
        %v1723 = vpack.c.b16 %v1671, %v1667
        %v1724 = vpack.c.b16 %v1672, %v1668
        %v1725 = vpack.c.b16 %v1673, %v1669
        %v1726 = vpack.c.b16 %v1674, %v1670
        %v1727 = vpack.c.b16 %v1679, %v1675
        %v1728 = vpack.c.b16 %v1680, %v1676
        %v1729 = vpack.c.b16 %v1681, %v1677
        %v1730 = vpack.c.b16 %v1682, %v1678
        %v1731 = vpack.c.b16 %v1687, %v1683
        %v1732 = vpack.c.b16 %v1688, %v1684
        %v1733 = vpack.c.b16 %v1689, %v1685
        %v1734 = vpack.c.b16 %v1690, %v1686
        %v1735 = vpack.c.b16 %v1695, %v1691
        %v1736 = vpack.c.b16 %v1696, %v1692
        %v1737 = vpack.c.b16 %v1697, %v1693
        %v1738 = vpack.c.b16 %v1698, %v1694
        %v1739 = vpack.c.b16 %v1703, %v1699
        %v1740 = vpack.c.b16 %v1704, %v1700
        %v1741 = vpack.c.b16 %v1705, %v1701
        %v1742 = vpack.c.b16 %v1706, %v1702
        %v1743 = vpack.c.b16 %v1711, %v1707
        %v1744 = vpack.c.b16 %v1712, %v1708
        %v1745 = vpack.c.b16 %v1713, %v1709
        %v1746 = vpack.c.b16 %v1714, %v1710
        %1779 = vmatpush.bf16.msra.mxu0 %v1743
        %1780 = vmatpush.bf16.msra.mxu0 %v1739
        %1781 = vmatpush.bf16.msra.mxu0 %v1735
        %1782 = vmatpush.bf16.msra.mxu0 %v1731
        %1783 = vmatpush.bf16.msra.mxu0 %v1727
        %1784 = vmatpush.bf16.msra.mxu0 %v1723
        %1785 = vmatpush.bf16.msra.mxu0 %v1719
        %1786 = vmatpush.bf16.msra.mxu0 %v1715
        %1787 = vmatmul.bf16.gmra.mxu0 %v1611
        %v1788 = vpop.f32.mrf.mxu0
        %v1789 = vadd.f32 0.0, %v1788
        %v1790 = vpop.f32.mrf.mxu0
        %v1791 = vadd.f32 0.0, %v1790
        %1792 = vmatmul.bf16.gmra.mxu0 %v1612
        %v1793 = vpop.f32.mrf.mxu0
        %v1794 = vadd.f32 0.0, %v1793
        %v1795 = vpop.f32.mrf.mxu0
        %v1796 = vadd.f32 0.0, %v1795
        %1797 = vmatmul.bf16.gmra.mxu0 %v1613
        %v1798 = vpop.f32.mrf.mxu0
        %v1799 = vadd.f32 0.0, %v1798
        %v1800 = vpop.f32.mrf.mxu0
        %v1801 = vadd.f32 0.0, %v1800
        %1802 = vmatmul.bf16.gmra.mxu0 %v1614
        %v1803 = vpop.f32.mrf.mxu0
        %v1804 = vadd.f32 0.0, %v1803
        %v1805 = vpop.f32.mrf.mxu0
        %v1806 = vadd.f32 0.0, %v1805
        %1807 = vmatmul.bf16.gmra.mxu0 %v1615
        %v1808 = vpop.f32.mrf.mxu0
        %v1809 = vadd.f32 0.0, %v1808
        %v1810 = vpop.f32.mrf.mxu0
        %v1811 = vadd.f32 0.0, %v1810
        %1812 = vmatmul.bf16.gmra.mxu0 %v1616
        %v1813 = vpop.f32.mrf.mxu0
        %v1814 = vadd.f32 0.0, %v1813
        %v1815 = vpop.f32.mrf.mxu0
        %v1816 = vadd.f32 0.0, %v1815
        %1817 = vmatmul.bf16.gmra.mxu0 %v1617
        %v1818 = vpop.f32.mrf.mxu0
        %v1819 = vadd.f32 0.0, %v1818
        %v1820 = vpop.f32.mrf.mxu0
        %v1821 = vadd.f32 0.0, %v1820
        %1822 = vmatmul.bf16.gmra.mxu0 %v1618
        %v1823 = vpop.f32.mrf.mxu0
        %v1824 = vadd.f32 0.0, %v1823
        %v1825 = vpop.f32.mrf.mxu0
        %v1826 = vadd.f32 0.0, %v1825
        %1827 = vdwg.mxu0
        %1828 = vmatpush.bf16.msra.mxu0 %v1744
        %1829 = vmatpush.bf16.msra.mxu0 %v1740
        %1830 = vmatpush.bf16.msra.mxu0 %v1736
        %1831 = vmatpush.bf16.msra.mxu0 %v1732
        %1832 = vmatpush.bf16.msra.mxu0 %v1728
        %1833 = vmatpush.bf16.msra.mxu0 %v1724
        %1834 = vmatpush.bf16.msra.mxu0 %v1720
        %1835 = vmatpush.bf16.msra.mxu0 %v1716
        %1836 = vmatmul.bf16.gmra.mxu0 %v1611
        %v1837 = vpop.f32.mrf.mxu0
        %v1838 = vadd.f32 0.0, %v1837
        %v1839 = vpop.f32.mrf.mxu0
        %v1840 = vadd.f32 0.0, %v1839
        %1841 = vmatmul.bf16.gmra.mxu0 %v1612
        %v1842 = vpop.f32.mrf.mxu0
        %v1843 = vadd.f32 0.0, %v1842
        %v1844 = vpop.f32.mrf.mxu0
        %v1845 = vadd.f32 0.0, %v1844
        %1846 = vmatmul.bf16.gmra.mxu0 %v1613
        %v1847 = vpop.f32.mrf.mxu0
        %v1848 = vadd.f32 0.0, %v1847
        %v1849 = vpop.f32.mrf.mxu0
        %v1850 = vadd.f32 0.0, %v1849
        %1851 = vmatmul.bf16.gmra.mxu0 %v1614
        %v1852 = vpop.f32.mrf.mxu0
        %v1853 = vadd.f32 0.0, %v1852
        %v1854 = vpop.f32.mrf.mxu0
        %v1855 = vadd.f32 0.0, %v1854
        %1856 = vmatmul.bf16.gmra.mxu0 %v1615
        %v1857 = vpop.f32.mrf.mxu0
        %v1858 = vadd.f32 0.0, %v1857
        %v1859 = vpop.f32.mrf.mxu0
        %v1860 = vadd.f32 0.0, %v1859
        %1861 = vmatmul.bf16.gmra.mxu0 %v1616
        %v1862 = vpop.f32.mrf.mxu0
        %v1863 = vadd.f32 0.0, %v1862
        %v1864 = vpop.f32.mrf.mxu0
        %v1865 = vadd.f32 0.0, %v1864
        %1866 = vmatmul.bf16.gmra.mxu0 %v1617
        %v1867 = vpop.f32.mrf.mxu0
        %v1868 = vadd.f32 0.0, %v1867
        %v1869 = vpop.f32.mrf.mxu0
        %v1870 = vadd.f32 0.0, %v1869
        %1871 = vmatmul.bf16.gmra.mxu0 %v1618
        %v1872 = vpop.f32.mrf.mxu0
        %v1873 = vadd.f32 0.0, %v1872
        %v1874 = vpop.f32.mrf.mxu0
        %v1875 = vadd.f32 0.0, %v1874
        %1876 = vdwg.mxu0
        %1877 = vmatpush.bf16.msra.mxu0 %v1745
        %1878 = vmatpush.bf16.msra.mxu0 %v1741
        %1879 = vmatpush.bf16.msra.mxu0 %v1737
        %1880 = vmatpush.bf16.msra.mxu0 %v1733
        %1881 = vmatpush.bf16.msra.mxu0 %v1729
        %1882 = vmatpush.bf16.msra.mxu0 %v1725
        %1883 = vmatpush.bf16.msra.mxu0 %v1721
        %1884 = vmatpush.bf16.msra.mxu0 %v1717
        %1885 = vmatmul.bf16.gmra.mxu0 %v1611
        %v1886 = vpop.f32.mrf.mxu0
        %v1887 = vadd.f32 0.0, %v1886
        %v1888 = vpop.f32.mrf.mxu0
        %v1889 = vadd.f32 0.0, %v1888
        %1890 = vmatmul.bf16.gmra.mxu0 %v1612
        %v1891 = vpop.f32.mrf.mxu0
        %v1892 = vadd.f32 0.0, %v1891
        %v1893 = vpop.f32.mrf.mxu0
        %v1894 = vadd.f32 0.0, %v1893
        %1895 = vmatmul.bf16.gmra.mxu0 %v1613
        %v1896 = vpop.f32.mrf.mxu0
        %v1897 = vadd.f32 0.0, %v1896
        %v1898 = vpop.f32.mrf.mxu0
        %v1899 = vadd.f32 0.0, %v1898
        %1900 = vmatmul.bf16.gmra.mxu0 %v1614
        %v1901 = vpop.f32.mrf.mxu0
        %v1902 = vadd.f32 0.0, %v1901
        %v1903 = vpop.f32.mrf.mxu0
        %v1904 = vadd.f32 0.0, %v1903
        %1905 = vmatmul.bf16.gmra.mxu0 %v1615
        %v1906 = vpop.f32.mrf.mxu0
        %v1907 = vadd.f32 0.0, %v1906
        %v1908 = vpop.f32.mrf.mxu0
        %v1909 = vadd.f32 0.0, %v1908
        %1910 = vmatmul.bf16.gmra.mxu0 %v1616
        %v1911 = vpop.f32.mrf.mxu0
        %v1912 = vadd.f32 0.0, %v1911
        %v1913 = vpop.f32.mrf.mxu0
        %v1914 = vadd.f32 0.0, %v1913
        %1915 = vmatmul.bf16.gmra.mxu0 %v1617
        %v1916 = vpop.f32.mrf.mxu0
        %v1917 = vadd.f32 0.0, %v1916
        %v1918 = vpop.f32.mrf.mxu0
        %v1919 = vadd.f32 0.0, %v1918
        %1920 = vmatmul.bf16.gmra.mxu0 %v1618
        %v1921 = vpop.f32.mrf.mxu0
        %v1922 = vadd.f32 0.0, %v1921
        %v1923 = vpop.f32.mrf.mxu0
        %v1924 = vadd.f32 0.0, %v1923
        %1925 = vdwg.mxu0
        %1926 = vmatpush.bf16.msra.mxu0 %v1746
        %1927 = vmatpush.bf16.msra.mxu0 %v1742
        %1928 = vmatpush.bf16.msra.mxu0 %v1738
        %1929 = vmatpush.bf16.msra.mxu0 %v1734
        %1930 = vmatpush.bf16.msra.mxu0 %v1730
        %1931 = vmatpush.bf16.msra.mxu0 %v1726
        %1932 = vmatpush.bf16.msra.mxu0 %v1722
        %1933 = vmatpush.bf16.msra.mxu0 %v1718
        %1934 = vmatmul.bf16.gmra.mxu0 %v1611
        %v1935 = vpop.f32.mrf.mxu0
        %v1936 = vadd.f32 0.0, %v1935
        %v1937 = vpop.f32.mrf.mxu0
        %v1938 = vadd.f32 0.0, %v1937
        %1939 = vmatmul.bf16.gmra.mxu0 %v1612
        %v1940 = vpop.f32.mrf.mxu0
        %v1941 = vadd.f32 0.0, %v1940
        %v1942 = vpop.f32.mrf.mxu0
        %v1943 = vadd.f32 0.0, %v1942
        %1944 = vmatmul.bf16.gmra.mxu0 %v1613
        %v1945 = vpop.f32.mrf.mxu0
        %v1946 = vadd.f32 0.0, %v1945
        %v1947 = vpop.f32.mrf.mxu0
        %v1948 = vadd.f32 0.0, %v1947
        %1949 = vmatmul.bf16.gmra.mxu0 %v1614
        %v1950 = vpop.f32.mrf.mxu0
        %v1951 = vadd.f32 0.0, %v1950
        %v1952 = vpop.f32.mrf.mxu0
        %v1953 = vadd.f32 0.0, %v1952
        %1954 = vmatmul.bf16.gmra.mxu0 %v1615
        %v1955 = vpop.f32.mrf.mxu0
        %v1956 = vadd.f32 0.0, %v1955
        %v1957 = vpop.f32.mrf.mxu0
        %v1958 = vadd.f32 0.0, %v1957
        %1959 = vmatmul.bf16.gmra.mxu0 %v1616
        %v1960 = vpop.f32.mrf.mxu0
        %v1961 = vadd.f32 0.0, %v1960
        %v1962 = vpop.f32.mrf.mxu0
        %v1963 = vadd.f32 0.0, %v1962
        %1964 = vmatmul.bf16.gmra.mxu0 %v1617
        %v1965 = vpop.f32.mrf.mxu0
        %v1966 = vadd.f32 0.0, %v1965
        %v1967 = vpop.f32.mrf.mxu0
        %v1968 = vadd.f32 0.0, %v1967
        %1969 = vmatmul.bf16.gmra.mxu0 %v1618
        %v1970 = vpop.f32.mrf.mxu0
        %v1971 = vadd.f32 0.0, %v1970
        %v1972 = vpop.f32.mrf.mxu0
        %v1973 = vadd.f32 0.0, %v1972
        %1974 = vdwg.mxu0
        %v1975 = vadd.f32 %v1375, %v1789
        %v1976 = vadd.f32 %v1424, %v1838
        %v1977 = vadd.f32 %v1473, %v1887
        %v1978 = vadd.f32 %v1522, %v1936
        %v1979 = vadd.f32 %v1377, %v1791
        %v1980 = vadd.f32 %v1426, %v1840
        %v1981 = vadd.f32 %v1475, %v1889
        %v1982 = vadd.f32 %v1524, %v1938
        %v1983 = vadd.f32 %v1380, %v1794
        %v1984 = vadd.f32 %v1429, %v1843
        %v1985 = vadd.f32 %v1478, %v1892
        %v1986 = vadd.f32 %v1527, %v1941
        %v1987 = vadd.f32 %v1382, %v1796
        %v1988 = vadd.f32 %v1431, %v1845
        %v1989 = vadd.f32 %v1480, %v1894
        %v1990 = vadd.f32 %v1529, %v1943
        %v1991 = vadd.f32 %v1385, %v1799
        %v1992 = vadd.f32 %v1434, %v1848
        %v1993 = vadd.f32 %v1483, %v1897
        %v1994 = vadd.f32 %v1532, %v1946
        %v1995 = vadd.f32 %v1387, %v1801
        %v1996 = vadd.f32 %v1436, %v1850
        %v1997 = vadd.f32 %v1485, %v1899
        %v1998 = vadd.f32 %v1534, %v1948
        %v1999 = vadd.f32 %v1390, %v1804
        %v2000 = vadd.f32 %v1439, %v1853
        %v2001 = vadd.f32 %v1488, %v1902
        %v2002 = vadd.f32 %v1537, %v1951
        %v2003 = vadd.f32 %v1392, %v1806
        %v2004 = vadd.f32 %v1441, %v1855
        %v2005 = vadd.f32 %v1490, %v1904
        %v2006 = vadd.f32 %v1539, %v1953
        %v2007 = vadd.f32 %v1395, %v1809
        %v2008 = vadd.f32 %v1444, %v1858
        %v2009 = vadd.f32 %v1493, %v1907
        %v2010 = vadd.f32 %v1542, %v1956
        %v2011 = vadd.f32 %v1397, %v1811
        %v2012 = vadd.f32 %v1446, %v1860
        %v2013 = vadd.f32 %v1495, %v1909
        %v2014 = vadd.f32 %v1544, %v1958
        %v2015 = vadd.f32 %v1400, %v1814
        %v2016 = vadd.f32 %v1449, %v1863
        %v2017 = vadd.f32 %v1498, %v1912
        %v2018 = vadd.f32 %v1547, %v1961
        %v2019 = vadd.f32 %v1402, %v1816
        %v2020 = vadd.f32 %v1451, %v1865
        %v2021 = vadd.f32 %v1500, %v1914
        %v2022 = vadd.f32 %v1549, %v1963
        %v2023 = vadd.f32 %v1405, %v1819
        %v2024 = vadd.f32 %v1454, %v1868
        %v2025 = vadd.f32 %v1503, %v1917
        %v2026 = vadd.f32 %v1552, %v1966
        %v2027 = vadd.f32 %v1407, %v1821
        %v2028 = vadd.f32 %v1456, %v1870
        %v2029 = vadd.f32 %v1505, %v1919
        %v2030 = vadd.f32 %v1554, %v1968
        %v2031 = vadd.f32 %v1410, %v1824
        %v2032 = vadd.f32 %v1459, %v1873
        %v2033 = vadd.f32 %v1508, %v1922
        %v2034 = vadd.f32 %v1557, %v1971
        %v2035 = vadd.f32 %v1412, %v1826
        %v2036 = vadd.f32 %v1461, %v1875
        %v2037 = vadd.f32 %v1510, %v1924
        %v2038 = vadd.f32 %v1559, %v1973
        %v2039 = vld [vmem:[%s3] sm:$0xf]
        %v2041 = vperm.slane %v2039, 0
        %v2042 = vperm.slane %v2039, 1
        %v2043 = vperm.slane %v2039, 2
        %v2044 = vperm.slane %v2039, 3
        %v2049 = vadd.f32 %v1975, %v2041
        %v2050 = vadd.f32 %v1976, %v2042
        %v2051 = vadd.f32 %v1977, %v2043
        %v2052 = vadd.f32 %v1978, %v2044
        %v2053 = vadd.f32 %v1979, %v2041
        %v2054 = vadd.f32 %v1980, %v2042
        %v2055 = vadd.f32 %v1981, %v2043
        %v2056 = vadd.f32 %v1982, %v2044
        %v2057 = vadd.f32 %v1983, %v2041
        %v2058 = vadd.f32 %v1984, %v2042
        %v2059 = vadd.f32 %v1985, %v2043
        %v2060 = vadd.f32 %v1986, %v2044
        %v2061 = vadd.f32 %v1987, %v2041
        %v2062 = vadd.f32 %v1988, %v2042
        %v2063 = vadd.f32 %v1989, %v2043
        %v2064 = vadd.f32 %v1990, %v2044
        %v2065 = vadd.f32 %v1991, %v2041
        %v2066 = vadd.f32 %v1992, %v2042
        %v2067 = vadd.f32 %v1993, %v2043
        %v2068 = vadd.f32 %v1994, %v2044
        %v2069 = vadd.f32 %v1995, %v2041
        %v2070 = vadd.f32 %v1996, %v2042
        %v2071 = vadd.f32 %v1997, %v2043
        %v2072 = vadd.f32 %v1998, %v2044
        %v2073 = vadd.f32 %v1999, %v2041
        %v2074 = vadd.f32 %v2000, %v2042
        %v2075 = vadd.f32 %v2001, %v2043
        %v2076 = vadd.f32 %v2002, %v2044
        %v2077 = vadd.f32 %v2003, %v2041
        %v2078 = vadd.f32 %v2004, %v2042
        %v2079 = vadd.f32 %v2005, %v2043
        %v2080 = vadd.f32 %v2006, %v2044
        %v2081 = vadd.f32 %v2007, %v2041
        %v2082 = vadd.f32 %v2008, %v2042
        %v2083 = vadd.f32 %v2009, %v2043
        %v2084 = vadd.f32 %v2010, %v2044
        %v2085 = vadd.f32 %v2011, %v2041
        %v2086 = vadd.f32 %v2012, %v2042
        %v2087 = vadd.f32 %v2013, %v2043
        %v2088 = vadd.f32 %v2014, %v2044
        %v2089 = vadd.f32 %v2015, %v2041
        %v2090 = vadd.f32 %v2016, %v2042
        %v2091 = vadd.f32 %v2017, %v2043
        %v2092 = vadd.f32 %v2018, %v2044
        %v2093 = vadd.f32 %v2019, %v2041
        %v2094 = vadd.f32 %v2020, %v2042
        %v2095 = vadd.f32 %v2021, %v2043
        %v2096 = vadd.f32 %v2022, %v2044
        %v2097 = vadd.f32 %v2023, %v2041
        %v2098 = vadd.f32 %v2024, %v2042
        %v2099 = vadd.f32 %v2025, %v2043
        %v2100 = vadd.f32 %v2026, %v2044
        %v2101 = vadd.f32 %v2027, %v2041
        %v2102 = vadd.f32 %v2028, %v2042
        %v2103 = vadd.f32 %v2029, %v2043
        %v2104 = vadd.f32 %v2030, %v2044
        %v2105 = vadd.f32 %v2031, %v2041
        %v2106 = vadd.f32 %v2032, %v2042
        %v2107 = vadd.f32 %v2033, %v2043
        %v2108 = vadd.f32 %v2034, %v2044
        %v2109 = vadd.f32 %v2035, %v2041
        %v2110 = vadd.f32 %v2036, %v2042
        %v2111 = vadd.f32 %v2037, %v2043
        %v2112 = vadd.f32 %v2038, %v2044
        %vm2113 = vcmp.gt.f32.partialorder %v2049, 0.0
        %vm2114 = vcmp.gt.f32.partialorder %v2050, 0.0
        %vm2115 = vcmp.gt.f32.partialorder %v2051, 0.0
        %vm2116 = vcmp.gt.f32.partialorder %v2052, 0.0
        %vm2117 = vcmp.gt.f32.partialorder %v2053, 0.0
        %vm2118 = vcmp.gt.f32.partialorder %v2054, 0.0
        %vm2119 = vcmp.gt.f32.partialorder %v2055, 0.0
        %vm2120 = vcmp.gt.f32.partialorder %v2056, 0.0
        %vm2121 = vcmp.gt.f32.partialorder %v2057, 0.0
        %vm2122 = vcmp.gt.f32.partialorder %v2058, 0.0
        %vm2123 = vcmp.gt.f32.partialorder %v2059, 0.0
        %vm2124 = vcmp.gt.f32.partialorder %v2060, 0.0
        %vm2125 = vcmp.gt.f32.partialorder %v2061, 0.0
        %vm2126 = vcmp.gt.f32.partialorder %v2062, 0.0
        %vm2127 = vcmp.gt.f32.partialorder %v2063, 0.0
        %vm2128 = vcmp.gt.f32.partialorder %v2064, 0.0
        %vm2129 = vcmp.gt.f32.partialorder %v2065, 0.0
        %vm2130 = vcmp.gt.f32.partialorder %v2066, 0.0
        %vm2131 = vcmp.gt.f32.partialorder %v2067, 0.0
        %vm2132 = vcmp.gt.f32.partialorder %v2068, 0.0
        %vm2133 = vcmp.gt.f32.partialorder %v2069, 0.0
        %vm2134 = vcmp.gt.f32.partialorder %v2070, 0.0
        %vm2135 = vcmp.gt.f32.partialorder %v2071, 0.0
        %vm2136 = vcmp.gt.f32.partialorder %v2072, 0.0
        %vm2137 = vcmp.gt.f32.partialorder %v2073, 0.0
        %vm2138 = vcmp.gt.f32.partialorder %v2074, 0.0
        %vm2139 = vcmp.gt.f32.partialorder %v2075, 0.0
        %vm2140 = vcmp.gt.f32.partialorder %v2076, 0.0
        %vm2141 = vcmp.gt.f32.partialorder %v2077, 0.0
        %vm2142 = vcmp.gt.f32.partialorder %v2078, 0.0
        %vm2143 = vcmp.gt.f32.partialorder %v2079, 0.0
        %vm2144 = vcmp.gt.f32.partialorder %v2080, 0.0
        %vm2145 = vcmp.gt.f32.partialorder %v2081, 0.0
        %vm2146 = vcmp.gt.f32.partialorder %v2082, 0.0
        %vm2147 = vcmp.gt.f32.partialorder %v2083, 0.0
        %vm2148 = vcmp.gt.f32.partialorder %v2084, 0.0
        %vm2149 = vcmp.gt.f32.partialorder %v2085, 0.0
        %vm2150 = vcmp.gt.f32.partialorder %v2086, 0.0
        %vm2151 = vcmp.gt.f32.partialorder %v2087, 0.0
        %vm2152 = vcmp.gt.f32.partialorder %v2088, 0.0
        %vm2153 = vcmp.gt.f32.partialorder %v2089, 0.0
        %vm2154 = vcmp.gt.f32.partialorder %v2090, 0.0
        %vm2155 = vcmp.gt.f32.partialorder %v2091, 0.0
        %vm2156 = vcmp.gt.f32.partialorder %v2092, 0.0
        %vm2157 = vcmp.gt.f32.partialorder %v2093, 0.0
        %vm2158 = vcmp.gt.f32.partialorder %v2094, 0.0
        %vm2159 = vcmp.gt.f32.partialorder %v2095, 0.0
        %vm2160 = vcmp.gt.f32.partialorder %v2096, 0.0
        %vm2161 = vcmp.gt.f32.partialorder %v2097, 0.0
        %vm2162 = vcmp.gt.f32.partialorder %v2098, 0.0
        %vm2163 = vcmp.gt.f32.partialorder %v2099, 0.0
        %vm2164 = vcmp.gt.f32.partialorder %v2100, 0.0
        %vm2165 = vcmp.gt.f32.partialorder %v2101, 0.0
        %vm2166 = vcmp.gt.f32.partialorder %v2102, 0.0
        %vm2167 = vcmp.gt.f32.partialorder %v2103, 0.0
        %vm2168 = vcmp.gt.f32.partialorder %v2104, 0.0
        %vm2169 = vcmp.gt.f32.partialorder %v2105, 0.0
        %vm2170 = vcmp.gt.f32.partialorder %v2106, 0.0
        %vm2171 = vcmp.gt.f32.partialorder %v2107, 0.0
        %vm2172 = vcmp.gt.f32.partialorder %v2108, 0.0
        %vm2173 = vcmp.gt.f32.partialorder %v2109, 0.0
        %vm2174 = vcmp.gt.f32.partialorder %v2110, 0.0
        %vm2175 = vcmp.gt.f32.partialorder %v2111, 0.0
        %vm2176 = vcmp.gt.f32.partialorder %v2112, 0.0
        %v2177 = vmul.f32 %v2049, 0.01
        %v2178 = vmul.f32 %v2050, 0.01
        %v2179 = vmul.f32 %v2051, 0.01
        %v2180 = vmul.f32 %v2052, 0.01
        %v2181 = vmul.f32 %v2053, 0.01
        %v2182 = vmul.f32 %v2054, 0.01
        %v2183 = vmul.f32 %v2055, 0.01
        %v2184 = vmul.f32 %v2056, 0.01
        %v2185 = vmul.f32 %v2057, 0.01
        %v2186 = vmul.f32 %v2058, 0.01
        %v2187 = vmul.f32 %v2059, 0.01
        %v2188 = vmul.f32 %v2060, 0.01
        %v2189 = vmul.f32 %v2061, 0.01
        %v2190 = vmul.f32 %v2062, 0.01
        %v2191 = vmul.f32 %v2063, 0.01
        %v2192 = vmul.f32 %v2064, 0.01
        %v2193 = vmul.f32 %v2065, 0.01
        %v2194 = vmul.f32 %v2066, 0.01
        %v2195 = vmul.f32 %v2067, 0.01
        %v2196 = vmul.f32 %v2068, 0.01
        %v2197 = vmul.f32 %v2069, 0.01
        %v2198 = vmul.f32 %v2070, 0.01
        %v2199 = vmul.f32 %v2071, 0.01
        %v2200 = vmul.f32 %v2072, 0.01
        %v2201 = vmul.f32 %v2073, 0.01
        %v2202 = vmul.f32 %v2074, 0.01
        %v2203 = vmul.f32 %v2075, 0.01
        %v2204 = vmul.f32 %v2076, 0.01
        %v2205 = vmul.f32 %v2077, 0.01
        %v2206 = vmul.f32 %v2078, 0.01
        %v2207 = vmul.f32 %v2079, 0.01
        %v2208 = vmul.f32 %v2080, 0.01
        %v2209 = vmul.f32 %v2081, 0.01
        %v2210 = vmul.f32 %v2082, 0.01
        %v2211 = vmul.f32 %v2083, 0.01
        %v2212 = vmul.f32 %v2084, 0.01
        %v2213 = vmul.f32 %v2085, 0.01
        %v2214 = vmul.f32 %v2086, 0.01
        %v2215 = vmul.f32 %v2087, 0.01
        %v2216 = vmul.f32 %v2088, 0.01
        %v2217 = vmul.f32 %v2089, 0.01
        %v2218 = vmul.f32 %v2090, 0.01
        %v2219 = vmul.f32 %v2091, 0.01
        %v2220 = vmul.f32 %v2092, 0.01
        %v2221 = vmul.f32 %v2093, 0.01
        %v2222 = vmul.f32 %v2094, 0.01
        %v2223 = vmul.f32 %v2095, 0.01
        %v2224 = vmul.f32 %v2096, 0.01
        %v2225 = vmul.f32 %v2097, 0.01
        %v2226 = vmul.f32 %v2098, 0.01
        %v2227 = vmul.f32 %v2099, 0.01
        %v2228 = vmul.f32 %v2100, 0.01
        %v2229 = vmul.f32 %v2101, 0.01
        %v2230 = vmul.f32 %v2102, 0.01
        %v2231 = vmul.f32 %v2103, 0.01
        %v2232 = vmul.f32 %v2104, 0.01
        %v2233 = vmul.f32 %v2105, 0.01
        %v2234 = vmul.f32 %v2106, 0.01
        %v2235 = vmul.f32 %v2107, 0.01
        %v2236 = vmul.f32 %v2108, 0.01
        %v2237 = vmul.f32 %v2109, 0.01
        %v2238 = vmul.f32 %v2110, 0.01
        %v2239 = vmul.f32 %v2111, 0.01
        %v2240 = vmul.f32 %v2112, 0.01
        %v2241 = vsel %vm2113, %v2049, %v2177
        %v2242 = vsel %vm2114, %v2050, %v2178
        %v2243 = vsel %vm2115, %v2051, %v2179
        %v2244 = vsel %vm2116, %v2052, %v2180
        %v2245 = vsel %vm2117, %v2053, %v2181
        %v2246 = vsel %vm2118, %v2054, %v2182
        %v2247 = vsel %vm2119, %v2055, %v2183
        %v2248 = vsel %vm2120, %v2056, %v2184
        %v2249 = vsel %vm2121, %v2057, %v2185
        %v2250 = vsel %vm2122, %v2058, %v2186
        %v2251 = vsel %vm2123, %v2059, %v2187
        %v2252 = vsel %vm2124, %v2060, %v2188
        %v2253 = vsel %vm2125, %v2061, %v2189
        %v2254 = vsel %vm2126, %v2062, %v2190
        %v2255 = vsel %vm2127, %v2063, %v2191
        %v2256 = vsel %vm2128, %v2064, %v2192
        %v2257 = vsel %vm2129, %v2065, %v2193
        %v2258 = vsel %vm2130, %v2066, %v2194
        %v2259 = vsel %vm2131, %v2067, %v2195
        %v2260 = vsel %vm2132, %v2068, %v2196
        %v2261 = vsel %vm2133, %v2069, %v2197
        %v2262 = vsel %vm2134, %v2070, %v2198
        %v2263 = vsel %vm2135, %v2071, %v2199
        %v2264 = vsel %vm2136, %v2072, %v2200
        %v2265 = vsel %vm2137, %v2073, %v2201
        %v2266 = vsel %vm2138, %v2074, %v2202
        %v2267 = vsel %vm2139, %v2075, %v2203
        %v2268 = vsel %vm2140, %v2076, %v2204
        %v2269 = vsel %vm2141, %v2077, %v2205
        %v2270 = vsel %vm2142, %v2078, %v2206
        %v2271 = vsel %vm2143, %v2079, %v2207
        %v2272 = vsel %vm2144, %v2080, %v2208
        %v2273 = vsel %vm2145, %v2081, %v2209
        %v2274 = vsel %vm2146, %v2082, %v2210
        %v2275 = vsel %vm2147, %v2083, %v2211
        %v2276 = vsel %vm2148, %v2084, %v2212
        %v2277 = vsel %vm2149, %v2085, %v2213
        %v2278 = vsel %vm2150, %v2086, %v2214
        %v2279 = vsel %vm2151, %v2087, %v2215
        %v2280 = vsel %vm2152, %v2088, %v2216
        %v2281 = vsel %vm2153, %v2089, %v2217
        %v2282 = vsel %vm2154, %v2090, %v2218
        %v2283 = vsel %vm2155, %v2091, %v2219
        %v2284 = vsel %vm2156, %v2092, %v2220
        %v2285 = vsel %vm2157, %v2093, %v2221
        %v2286 = vsel %vm2158, %v2094, %v2222
        %v2287 = vsel %vm2159, %v2095, %v2223
        %v2288 = vsel %vm2160, %v2096, %v2224
        %v2289 = vsel %vm2161, %v2097, %v2225
        %v2290 = vsel %vm2162, %v2098, %v2226
        %v2291 = vsel %vm2163, %v2099, %v2227
        %v2292 = vsel %vm2164, %v2100, %v2228
        %v2293 = vsel %vm2165, %v2101, %v2229
        %v2294 = vsel %vm2166, %v2102, %v2230
        %v2295 = vsel %vm2167, %v2103, %v2231
        %v2296 = vsel %vm2168, %v2104, %v2232
        %v2297 = vsel %vm2169, %v2105, %v2233
        %v2298 = vsel %vm2170, %v2106, %v2234
        %v2299 = vsel %vm2171, %v2107, %v2235
        %v2300 = vsel %vm2172, %v2108, %v2236
        %v2301 = vsel %vm2173, %v2109, %v2237
        %v2302 = vsel %vm2174, %v2110, %v2238
        %v2303 = vsel %vm2175, %v2111, %v2239
        %v2304 = vsel %vm2176, %v2112, %v2240
        %v2305 = vpack.c.bf16 %v2245, %v2241
        %v2306 = vpack.c.bf16 %v2246, %v2242
        %v2307 = vpack.c.bf16 %v2247, %v2243
        %v2308 = vpack.c.bf16 %v2248, %v2244
        %v2309 = vpack.c.bf16 %v2253, %v2249
        %v2310 = vpack.c.bf16 %v2254, %v2250
        %v2311 = vpack.c.bf16 %v2255, %v2251
        %v2312 = vpack.c.bf16 %v2256, %v2252
        %v2313 = vpack.c.bf16 %v2261, %v2257
        %v2314 = vpack.c.bf16 %v2262, %v2258
        %v2315 = vpack.c.bf16 %v2263, %v2259
        %v2316 = vpack.c.bf16 %v2264, %v2260
        %v2317 = vpack.c.bf16 %v2269, %v2265
        %v2318 = vpack.c.bf16 %v2270, %v2266
        %v2319 = vpack.c.bf16 %v2271, %v2267
        %v2320 = vpack.c.bf16 %v2272, %v2268
        %v2321 = vpack.c.bf16 %v2277, %v2273
        %v2322 = vpack.c.bf16 %v2278, %v2274
        %v2323 = vpack.c.bf16 %v2279, %v2275
        %v2324 = vpack.c.bf16 %v2280, %v2276
        %v2325 = vpack.c.bf16 %v2285, %v2281
        %v2326 = vpack.c.bf16 %v2286, %v2282
        %v2327 = vpack.c.bf16 %v2287, %v2283
        %v2328 = vpack.c.bf16 %v2288, %v2284
        %v2329 = vpack.c.bf16 %v2293, %v2289
        %v2330 = vpack.c.bf16 %v2294, %v2290
        %v2331 = vpack.c.bf16 %v2295, %v2291
        %v2332 = vpack.c.bf16 %v2296, %v2292
        %v2333 = vpack.c.bf16 %v2301, %v2297
        %v2334 = vpack.c.bf16 %v2302, %v2298
        %v2335 = vpack.c.bf16 %v2303, %v2299
        %v2336 = vpack.c.bf16 %v2304, %v2300
        %v2337 = vld [vmem:[%s4] sm:$0xf]
        %v2338 = vld [vmem:[%s4 + $0x4] sm:$0xf]
        %v2339 = vld [vmem:[%s4 + $0x8] sm:$0xf]
        %v2340 = vld [vmem:[%s4 + $0xc] sm:$0xf]
        %v2341 = vld [vmem:[%s4 + $0x10] sm:$0xf]
        %v2342 = vld [vmem:[%s4 + $0x14] sm:$0xf]
        %v2349 = vunpack.c.l.b16 %v2337
        %v2350 = vunpack.c.l.b16 %v2338
        %v2351 = vunpack.c.l.b16 %v2339
        %v2352 = vunpack.c.l.b16 %v2340
        %v2353 = vunpack.c.l.b16 %v2341
        %v2354 = vunpack.c.l.b16 %v2342
        %v2355 = vpack.c.b16 %v2350, %v2349
        %v2356 = vpack.c.b16 %v2352, %v2351
        %v2357 = vpack.c.b16 %v2354, %v2353
        %2361 = vmatpush.bf16.msra.mxu0 %v2333
        %2362 = vmatpush.bf16.msra.mxu0 %v2329
        %2363 = vmatpush.bf16.msra.mxu0 %v2325
        %2364 = vmatpush.bf16.msra.mxu0 %v2321
        %2365 = vmatpush.bf16.msra.mxu0 %v2317
        %2366 = vmatpush.bf16.msra.mxu0 %v2313
        %2367 = vmatpush.bf16.msra.mxu0 %v2309
        %2368 = vmatpush.bf16.msra.mxu0 %v2305
        %2369 = vmatmul.bf16.gmra.mxu0 %v2355
        %v2370 = vpop.f32.mrf.mxu0
        %v2371 = vadd.f32 0.0, %v2370
        %v2372 = vpop.f32.mrf.mxu0
        %v2373 = vadd.f32 0.0, %v2372
        %2374 = vmatmul.bf16.gmra.mxu0 %v2356
        %v2375 = vpop.f32.mrf.mxu0
        %v2376 = vadd.f32 0.0, %v2375
        %v2377 = vpop.f32.mrf.mxu0
        %v2378 = vadd.f32 0.0, %v2377
        %2379 = vmatmul.bf16.gmra.mxu0 %v2357
        %v2380 = vpop.f32.mrf.mxu0
        %v2381 = vadd.f32 0.0, %v2380
        %v2382 = vpop.f32.mrf.mxu0
        %v2383 = vadd.f32 0.0, %v2382
        %2384 = vdwg.mxu0
        %2385 = vmatpush.bf16.msra.mxu0 %v2334
        %2386 = vmatpush.bf16.msra.mxu0 %v2330
        %2387 = vmatpush.bf16.msra.mxu0 %v2326
        %2388 = vmatpush.bf16.msra.mxu0 %v2322
        %2389 = vmatpush.bf16.msra.mxu0 %v2318
        %2390 = vmatpush.bf16.msra.mxu0 %v2314
        %2391 = vmatpush.bf16.msra.mxu0 %v2310
        %2392 = vmatpush.bf16.msra.mxu0 %v2306
        %2393 = vmatmul.bf16.gmra.mxu0 %v2355
        %v2394 = vpop.f32.mrf.mxu0
        %v2395 = vadd.f32 0.0, %v2394
        %v2396 = vpop.f32.mrf.mxu0
        %v2397 = vadd.f32 0.0, %v2396
        %2398 = vmatmul.bf16.gmra.mxu0 %v2356
        %v2399 = vpop.f32.mrf.mxu0
        %v2400 = vadd.f32 0.0, %v2399
        %v2401 = vpop.f32.mrf.mxu0
        %v2402 = vadd.f32 0.0, %v2401
        %2403 = vmatmul.bf16.gmra.mxu0 %v2357
        %v2404 = vpop.f32.mrf.mxu0
        %v2405 = vadd.f32 0.0, %v2404
        %v2406 = vpop.f32.mrf.mxu0
        %v2407 = vadd.f32 0.0, %v2406
        %2408 = vdwg.mxu0
        %2409 = vmatpush.bf16.msra.mxu0 %v2335
        %2410 = vmatpush.bf16.msra.mxu0 %v2331
        %2411 = vmatpush.bf16.msra.mxu0 %v2327
        %2412 = vmatpush.bf16.msra.mxu0 %v2323
        %2413 = vmatpush.bf16.msra.mxu0 %v2319
        %2414 = vmatpush.bf16.msra.mxu0 %v2315
        %2415 = vmatpush.bf16.msra.mxu0 %v2311
        %2416 = vmatpush.bf16.msra.mxu0 %v2307
        %2417 = vmatmul.bf16.gmra.mxu0 %v2355
        %v2418 = vpop.f32.mrf.mxu0
        %v2419 = vadd.f32 0.0, %v2418
        %v2420 = vpop.f32.mrf.mxu0
        %v2421 = vadd.f32 0.0, %v2420
        %2422 = vmatmul.bf16.gmra.mxu0 %v2356
        %v2423 = vpop.f32.mrf.mxu0
        %v2424 = vadd.f32 0.0, %v2423
        %v2425 = vpop.f32.mrf.mxu0
        %v2426 = vadd.f32 0.0, %v2425
        %2427 = vmatmul.bf16.gmra.mxu0 %v2357
        %v2428 = vpop.f32.mrf.mxu0
        %v2429 = vadd.f32 0.0, %v2428
        %v2430 = vpop.f32.mrf.mxu0
        %v2431 = vadd.f32 0.0, %v2430
        %2432 = vdwg.mxu0
        %2433 = vmatpush.bf16.msra.mxu0 %v2336
        %2434 = vmatpush.bf16.msra.mxu0 %v2332
        %2435 = vmatpush.bf16.msra.mxu0 %v2328
        %2436 = vmatpush.bf16.msra.mxu0 %v2324
        %2437 = vmatpush.bf16.msra.mxu0 %v2320
        %2438 = vmatpush.bf16.msra.mxu0 %v2316
        %2439 = vmatpush.bf16.msra.mxu0 %v2312
        %2440 = vmatpush.bf16.msra.mxu0 %v2308
        %2441 = vmatmul.bf16.gmra.mxu0 %v2355
        %v2442 = vpop.f32.mrf.mxu0
        %v2443 = vadd.f32 0.0, %v2442
        %v2444 = vpop.f32.mrf.mxu0
        %v2445 = vadd.f32 0.0, %v2444
        %2446 = vmatmul.bf16.gmra.mxu0 %v2356
        %v2447 = vpop.f32.mrf.mxu0
        %v2448 = vadd.f32 0.0, %v2447
        %v2449 = vpop.f32.mrf.mxu0
        %v2450 = vadd.f32 0.0, %v2449
        %2451 = vmatmul.bf16.gmra.mxu0 %v2357
        %v2452 = vpop.f32.mrf.mxu0
        %v2453 = vadd.f32 0.0, %v2452
        %v2454 = vpop.f32.mrf.mxu0
        %v2455 = vadd.f32 0.0, %v2454
        %2456 = vdwg.mxu0
        %v2457 = vld [vmem:[%s5] sm:$0xff]
        %v2458 = vld [vmem:[%s5 + $0x8] sm:$0xff]
        %v2459 = vld [vmem:[%s5 + $0x10] sm:$0xff]
        %v2460 = vld [vmem:[%s5 + $0x18] sm:$0xff]
        %v2461 = vld [vmem:[%s5 + $0x20] sm:$0xff]
        %v2462 = vld [vmem:[%s5 + $0x28] sm:$0xff]
        %v2463 = vld [vmem:[%s5 + $0x30] sm:$0xff]
        %v2464 = vld [vmem:[%s5 + $0x38] sm:$0xff]
        %v2465 = vld [vmem:[%s5 + $0x40] sm:$0xff]
        %v2466 = vld [vmem:[%s5 + $0x48] sm:$0xff]
        %v2467 = vld [vmem:[%s5 + $0x50] sm:$0xff]
        %v2468 = vld [vmem:[%s5 + $0x58] sm:$0xff]
        %v2469 = vld [vmem:[%s5 + $0x60] sm:$0xff]
        %v2470 = vld [vmem:[%s5 + $0x68] sm:$0xff]
        %v2471 = vld [vmem:[%s5 + $0x70] sm:$0xff]
        %v2472 = vld [vmem:[%s5 + $0x78] sm:$0xff]
        %v2473 = vld [vmem:[%s5 + $0x80] sm:$0xff]
        %v2474 = vld [vmem:[%s5 + $0x88] sm:$0xff]
        %v2475 = vld [vmem:[%s5 + $0x90] sm:$0xff]
        %v2476 = vld [vmem:[%s5 + $0x98] sm:$0xff]
        %v2477 = vld [vmem:[%s5 + $0xa0] sm:$0xff]
        %v2478 = vld [vmem:[%s5 + $0xa8] sm:$0xff]
        %v2479 = vld [vmem:[%s5 + $0xb0] sm:$0xff]
        %v2480 = vld [vmem:[%s5 + $0xb8] sm:$0xff]
        %v2481 = vld [vmem:[%s5 + $0xc0] sm:$0xff]
        %v2482 = vld [vmem:[%s5 + $0xc8] sm:$0xff]
        %v2483 = vld [vmem:[%s5 + $0xd0] sm:$0xff]
        %v2484 = vld [vmem:[%s5 + $0xd8] sm:$0xff]
        %v2485 = vld [vmem:[%s5 + $0xe0] sm:$0xff]
        %v2486 = vld [vmem:[%s5 + $0xe8] sm:$0xff]
        %v2487 = vld [vmem:[%s5 + $0xf0] sm:$0xff]
        %v2488 = vld [vmem:[%s5 + $0xf8] sm:$0xff]
        %v2489 = vld [vmem:[%s5 + $0x100] sm:$0xff]
        %v2490 = vld [vmem:[%s5 + $0x108] sm:$0xff]
        %v2491 = vld [vmem:[%s5 + $0x110] sm:$0xff]
        %v2492 = vld [vmem:[%s5 + $0x118] sm:$0xff]
        %v2493 = vld [vmem:[%s5 + $0x120] sm:$0xff]
        %v2494 = vld [vmem:[%s5 + $0x128] sm:$0xff]
        %v2495 = vld [vmem:[%s5 + $0x130] sm:$0xff]
        %v2496 = vld [vmem:[%s5 + $0x138] sm:$0xff]
        %v2497 = vld [vmem:[%s5 + $0x140] sm:$0xff]
        %v2498 = vld [vmem:[%s5 + $0x148] sm:$0xff]
        %v2499 = vld [vmem:[%s5 + $0x150] sm:$0xff]
        %v2500 = vld [vmem:[%s5 + $0x158] sm:$0xff]
        %v2501 = vld [vmem:[%s5 + $0x160] sm:$0xff]
        %v2502 = vld [vmem:[%s5 + $0x168] sm:$0xff]
        %v2503 = vld [vmem:[%s5 + $0x170] sm:$0xff]
        %v2504 = vld [vmem:[%s5 + $0x178] sm:$0xff]
        %v2505 = vld [vmem:[%s5 + $0x180] sm:$0xff]
        %v2506 = vld [vmem:[%s5 + $0x188] sm:$0xff]
        %v2507 = vld [vmem:[%s5 + $0x190] sm:$0xff]
        %v2508 = vld [vmem:[%s5 + $0x198] sm:$0xff]
        %v2509 = vld [vmem:[%s5 + $0x1a0] sm:$0xff]
        %v2510 = vld [vmem:[%s5 + $0x1a8] sm:$0xff]
        %v2511 = vld [vmem:[%s5 + $0x1b0] sm:$0xff]
        %v2512 = vld [vmem:[%s5 + $0x1b8] sm:$0xff]
        %v2513 = vld [vmem:[%s5 + $0x1c0] sm:$0xff]
        %v2514 = vld [vmem:[%s5 + $0x1c8] sm:$0xff]
        %v2515 = vld [vmem:[%s5 + $0x1d0] sm:$0xff]
        %v2516 = vld [vmem:[%s5 + $0x1d8] sm:$0xff]
        %v2517 = vld [vmem:[%s5 + $0x1e0] sm:$0xff]
        %v2518 = vld [vmem:[%s5 + $0x1e8] sm:$0xff]
        %v2519 = vld [vmem:[%s5 + $0x1f0] sm:$0xff]
        %v2520 = vld [vmem:[%s5 + $0x1f8] sm:$0xff]
        %v2521 = vpack.c.bf16 %v2373, %v2371
        %v2522 = vpack.c.bf16 %v2397, %v2395
        %v2523 = vpack.c.bf16 %v2421, %v2419
        %v2524 = vpack.c.bf16 %v2445, %v2443
        %v2525 = vpack.c.bf16 %v2378, %v2376
        %v2526 = vpack.c.bf16 %v2402, %v2400
        %v2527 = vpack.c.bf16 %v2426, %v2424
        %v2528 = vpack.c.bf16 %v2450, %v2448
        %v2529 = vpack.c.bf16 %v2383, %v2381
        %v2530 = vpack.c.bf16 %v2407, %v2405
        %v2531 = vpack.c.bf16 %v2431, %v2429
        %v2532 = vpack.c.bf16 %v2455, %v2453
        %s2533 = scalar_lea.vmem %s4, 24
        %v2534 = vld [vmem:[%s2533] sm:$0xf]
        %v2535 = vld [vmem:[%s2533 + $0x4] sm:$0xf]
        %v2536 = vld [vmem:[%s2533 + $0x8] sm:$0xf]
        %v2537 = vld [vmem:[%s2533 + $0xc] sm:$0xf]
        %v2538 = vld [vmem:[%s2533 + $0x10] sm:$0xf]
        %v2539 = vld [vmem:[%s2533 + $0x14] sm:$0xf]
        %v2546 = vunpack.c.l.b16 %v2534
        %v2547 = vunpack.c.l.b16 %v2535
        %v2548 = vunpack.c.l.b16 %v2536
        %v2549 = vunpack.c.l.b16 %v2537
        %v2550 = vunpack.c.l.b16 %v2538
        %v2551 = vunpack.c.l.b16 %v2539
        %v2552 = vpack.c.b16 %v2547, %v2546
        %v2553 = vpack.c.b16 %v2549, %v2548
        %v2554 = vpack.c.b16 %v2551, %v2550
        %2558 = vmatpush.bf16.msra.mxu0 %v2333
        %2559 = vmatpush.bf16.msra.mxu0 %v2329
        %2560 = vmatpush.bf16.msra.mxu0 %v2325
        %2561 = vmatpush.bf16.msra.mxu0 %v2321
        %2562 = vmatpush.bf16.msra.mxu0 %v2317
        %2563 = vmatpush.bf16.msra.mxu0 %v2313
        %2564 = vmatpush.bf16.msra.mxu0 %v2309
        %2565 = vmatpush.bf16.msra.mxu0 %v2305
        %2566 = vmatmul.bf16.gmra.mxu0 %v2552
        %v2567 = vpop.f32.mrf.mxu0
        %v2568 = vadd.f32 0.0, %v2567
        %v2569 = vpop.f32.mrf.mxu0
        %v2570 = vadd.f32 0.0, %v2569
        %2571 = vmatmul.bf16.gmra.mxu0 %v2553
        %v2572 = vpop.f32.mrf.mxu0
        %v2573 = vadd.f32 0.0, %v2572
        %v2574 = vpop.f32.mrf.mxu0
        %v2575 = vadd.f32 0.0, %v2574
        %2576 = vmatmul.bf16.gmra.mxu0 %v2554
        %v2577 = vpop.f32.mrf.mxu0
        %v2578 = vadd.f32 0.0, %v2577
        %v2579 = vpop.f32.mrf.mxu0
        %v2580 = vadd.f32 0.0, %v2579
        %2581 = vdwg.mxu0
        %2582 = vmatpush.bf16.msra.mxu0 %v2334
        %2583 = vmatpush.bf16.msra.mxu0 %v2330
        %2584 = vmatpush.bf16.msra.mxu0 %v2326
        %2585 = vmatpush.bf16.msra.mxu0 %v2322
        %2586 = vmatpush.bf16.msra.mxu0 %v2318
        %2587 = vmatpush.bf16.msra.mxu0 %v2314
        %2588 = vmatpush.bf16.msra.mxu0 %v2310
        %2589 = vmatpush.bf16.msra.mxu0 %v2306
        %2590 = vmatmul.bf16.gmra.mxu0 %v2552
        %v2591 = vpop.f32.mrf.mxu0
        %v2592 = vadd.f32 0.0, %v2591
        %v2593 = vpop.f32.mrf.mxu0
        %v2594 = vadd.f32 0.0, %v2593
        %2595 = vmatmul.bf16.gmra.mxu0 %v2553
        %v2596 = vpop.f32.mrf.mxu0
        %v2597 = vadd.f32 0.0, %v2596
        %v2598 = vpop.f32.mrf.mxu0
        %v2599 = vadd.f32 0.0, %v2598
        %2600 = vmatmul.bf16.gmra.mxu0 %v2554
        %v2601 = vpop.f32.mrf.mxu0
        %v2602 = vadd.f32 0.0, %v2601
        %v2603 = vpop.f32.mrf.mxu0
        %v2604 = vadd.f32 0.0, %v2603
        %2605 = vdwg.mxu0
        %2606 = vmatpush.bf16.msra.mxu0 %v2335
        %2607 = vmatpush.bf16.msra.mxu0 %v2331
        %2608 = vmatpush.bf16.msra.mxu0 %v2327
        %2609 = vmatpush.bf16.msra.mxu0 %v2323
        %2610 = vmatpush.bf16.msra.mxu0 %v2319
        %2611 = vmatpush.bf16.msra.mxu0 %v2315
        %2612 = vmatpush.bf16.msra.mxu0 %v2311
        %2613 = vmatpush.bf16.msra.mxu0 %v2307
        %2614 = vmatmul.bf16.gmra.mxu0 %v2552
        %v2615 = vpop.f32.mrf.mxu0
        %v2616 = vadd.f32 0.0, %v2615
        %v2617 = vpop.f32.mrf.mxu0
        %v2618 = vadd.f32 0.0, %v2617
        %2619 = vmatmul.bf16.gmra.mxu0 %v2553
        %v2620 = vpop.f32.mrf.mxu0
        %v2621 = vadd.f32 0.0, %v2620
        %v2622 = vpop.f32.mrf.mxu0
        %v2623 = vadd.f32 0.0, %v2622
        %2624 = vmatmul.bf16.gmra.mxu0 %v2554
        %v2625 = vpop.f32.mrf.mxu0
        %v2626 = vadd.f32 0.0, %v2625
        %v2627 = vpop.f32.mrf.mxu0
        %v2628 = vadd.f32 0.0, %v2627
        %2629 = vdwg.mxu0
        %2630 = vmatpush.bf16.msra.mxu0 %v2336
        %2631 = vmatpush.bf16.msra.mxu0 %v2332
        %2632 = vmatpush.bf16.msra.mxu0 %v2328
        %2633 = vmatpush.bf16.msra.mxu0 %v2324
        %2634 = vmatpush.bf16.msra.mxu0 %v2320
        %2635 = vmatpush.bf16.msra.mxu0 %v2316
        %2636 = vmatpush.bf16.msra.mxu0 %v2312
        %2637 = vmatpush.bf16.msra.mxu0 %v2308
        %2638 = vmatmul.bf16.gmra.mxu0 %v2552
        %v2639 = vpop.f32.mrf.mxu0
        %v2640 = vadd.f32 0.0, %v2639
        %v2641 = vpop.f32.mrf.mxu0
        %v2642 = vadd.f32 0.0, %v2641
        %2643 = vmatmul.bf16.gmra.mxu0 %v2553
        %v2644 = vpop.f32.mrf.mxu0
        %v2645 = vadd.f32 0.0, %v2644
        %v2646 = vpop.f32.mrf.mxu0
        %v2647 = vadd.f32 0.0, %v2646
        %2648 = vmatmul.bf16.gmra.mxu0 %v2554
        %v2649 = vpop.f32.mrf.mxu0
        %v2650 = vadd.f32 0.0, %v2649
        %v2651 = vpop.f32.mrf.mxu0
        %v2652 = vadd.f32 0.0, %v2651
        %2653 = vdwg.mxu0
        %s2654 = scalar_lea.vmem %s5, 512
        %v2655 = vld [vmem:[%s2654] sm:$0xff]
        %v2656 = vld [vmem:[%s2654 + $0x8] sm:$0xff]
        %v2657 = vld [vmem:[%s2654 + $0x10] sm:$0xff]
        %v2658 = vld [vmem:[%s2654 + $0x18] sm:$0xff]
        %v2659 = vld [vmem:[%s2654 + $0x20] sm:$0xff]
        %v2660 = vld [vmem:[%s2654 + $0x28] sm:$0xff]
        %v2661 = vld [vmem:[%s2654 + $0x30] sm:$0xff]
        %v2662 = vld [vmem:[%s2654 + $0x38] sm:$0xff]
        %v2663 = vld [vmem:[%s2654 + $0x40] sm:$0xff]
        %v2664 = vld [vmem:[%s2654 + $0x48] sm:$0xff]
        %v2665 = vld [vmem:[%s2654 + $0x50] sm:$0xff]
        %v2666 = vld [vmem:[%s2654 + $0x58] sm:$0xff]
        %v2667 = vld [vmem:[%s2654 + $0x60] sm:$0xff]
        %v2668 = vld [vmem:[%s2654 + $0x68] sm:$0xff]
        %v2669 = vld [vmem:[%s2654 + $0x70] sm:$0xff]
        %v2670 = vld [vmem:[%s2654 + $0x78] sm:$0xff]
        %v2671 = vld [vmem:[%s2654 + $0x80] sm:$0xff]
        %v2672 = vld [vmem:[%s2654 + $0x88] sm:$0xff]
        %v2673 = vld [vmem:[%s2654 + $0x90] sm:$0xff]
        %v2674 = vld [vmem:[%s2654 + $0x98] sm:$0xff]
        %v2675 = vld [vmem:[%s2654 + $0xa0] sm:$0xff]
        %v2676 = vld [vmem:[%s2654 + $0xa8] sm:$0xff]
        %v2677 = vld [vmem:[%s2654 + $0xb0] sm:$0xff]
        %v2678 = vld [vmem:[%s2654 + $0xb8] sm:$0xff]
        %v2679 = vld [vmem:[%s2654 + $0xc0] sm:$0xff]
        %v2680 = vld [vmem:[%s2654 + $0xc8] sm:$0xff]
        %v2681 = vld [vmem:[%s2654 + $0xd0] sm:$0xff]
        %v2682 = vld [vmem:[%s2654 + $0xd8] sm:$0xff]
        %v2683 = vld [vmem:[%s2654 + $0xe0] sm:$0xff]
        %v2684 = vld [vmem:[%s2654 + $0xe8] sm:$0xff]
        %v2685 = vld [vmem:[%s2654 + $0xf0] sm:$0xff]
        %v2686 = vld [vmem:[%s2654 + $0xf8] sm:$0xff]
        %v2687 = vld [vmem:[%s2654 + $0x100] sm:$0xff]
        %v2688 = vld [vmem:[%s2654 + $0x108] sm:$0xff]
        %v2689 = vld [vmem:[%s2654 + $0x110] sm:$0xff]
        %v2690 = vld [vmem:[%s2654 + $0x118] sm:$0xff]
        %v2691 = vld [vmem:[%s2654 + $0x120] sm:$0xff]
        %v2692 = vld [vmem:[%s2654 + $0x128] sm:$0xff]
        %v2693 = vld [vmem:[%s2654 + $0x130] sm:$0xff]
        %v2694 = vld [vmem:[%s2654 + $0x138] sm:$0xff]
        %v2695 = vld [vmem:[%s2654 + $0x140] sm:$0xff]
        %v2696 = vld [vmem:[%s2654 + $0x148] sm:$0xff]
        %v2697 = vld [vmem:[%s2654 + $0x150] sm:$0xff]
        %v2698 = vld [vmem:[%s2654 + $0x158] sm:$0xff]
        %v2699 = vld [vmem:[%s2654 + $0x160] sm:$0xff]
        %v2700 = vld [vmem:[%s2654 + $0x168] sm:$0xff]
        %v2701 = vld [vmem:[%s2654 + $0x170] sm:$0xff]
        %v2702 = vld [vmem:[%s2654 + $0x178] sm:$0xff]
        %v2703 = vld [vmem:[%s2654 + $0x180] sm:$0xff]
        %v2704 = vld [vmem:[%s2654 + $0x188] sm:$0xff]
        %v2705 = vld [vmem:[%s2654 + $0x190] sm:$0xff]
        %v2706 = vld [vmem:[%s2654 + $0x198] sm:$0xff]
        %v2707 = vld [vmem:[%s2654 + $0x1a0] sm:$0xff]
        %v2708 = vld [vmem:[%s2654 + $0x1a8] sm:$0xff]
        %v2709 = vld [vmem:[%s2654 + $0x1b0] sm:$0xff]
        %v2710 = vld [vmem:[%s2654 + $0x1b8] sm:$0xff]
        %v2711 = vld [vmem:[%s2654 + $0x1c0] sm:$0xff]
        %v2712 = vld [vmem:[%s2654 + $0x1c8] sm:$0xff]
        %v2713 = vld [vmem:[%s2654 + $0x1d0] sm:$0xff]
        %v2714 = vld [vmem:[%s2654 + $0x1d8] sm:$0xff]
        %v2715 = vld [vmem:[%s2654 + $0x1e0] sm:$0xff]
        %v2716 = vld [vmem:[%s2654 + $0x1e8] sm:$0xff]
        %v2717 = vld [vmem:[%s2654 + $0x1f0] sm:$0xff]
        %v2718 = vld [vmem:[%s2654 + $0x1f8] sm:$0xff]
        %v2719 = vpack.c.bf16 %v2570, %v2568
        %v2720 = vpack.c.bf16 %v2594, %v2592
        %v2721 = vpack.c.bf16 %v2618, %v2616
        %v2722 = vpack.c.bf16 %v2642, %v2640
        %v2723 = vpack.c.bf16 %v2575, %v2573
        %v2724 = vpack.c.bf16 %v2599, %v2597
        %v2725 = vpack.c.bf16 %v2623, %v2621
        %v2726 = vpack.c.bf16 %v2647, %v2645
        %v2727 = vpack.c.bf16 %v2580, %v2578
        %v2728 = vpack.c.bf16 %v2604, %v2602
        %v2729 = vpack.c.bf16 %v2628, %v2626
        %v2730 = vpack.c.bf16 %v2652, %v2650
        %v2795 = vunpack.c.l.b16 %v2655
        %v2796 = vunpack.c.h.b16 %v2655
        %v2797 = vunpack.c.l.b16 %v2656
        %v2798 = vunpack.c.h.b16 %v2656
        %v2799 = vunpack.c.l.b16 %v2657
        %v2800 = vunpack.c.h.b16 %v2657
        %v2801 = vunpack.c.l.b16 %v2658
        %v2802 = vunpack.c.h.b16 %v2658
        %v2803 = vunpack.c.l.b16 %v2659
        %v2804 = vunpack.c.h.b16 %v2659
        %v2805 = vunpack.c.l.b16 %v2660
        %v2806 = vunpack.c.h.b16 %v2660
        %v2807 = vunpack.c.l.b16 %v2661
        %v2808 = vunpack.c.h.b16 %v2661
        %v2809 = vunpack.c.l.b16 %v2662
        %v2810 = vunpack.c.h.b16 %v2662
        %v2811 = vunpack.c.l.b16 %v2663
        %v2812 = vunpack.c.h.b16 %v2663
        %v2813 = vunpack.c.l.b16 %v2664
        %v2814 = vunpack.c.h.b16 %v2664
        %v2815 = vunpack.c.l.b16 %v2665
        %v2816 = vunpack.c.h.b16 %v2665
        %v2817 = vunpack.c.l.b16 %v2666
        %v2818 = vunpack.c.h.b16 %v2666
        %v2819 = vunpack.c.l.b16 %v2667
        %v2820 = vunpack.c.h.b16 %v2667
        %v2821 = vunpack.c.l.b16 %v2668
        %v2822 = vunpack.c.h.b16 %v2668
        %v2823 = vunpack.c.l.b16 %v2669
        %v2824 = vunpack.c.h.b16 %v2669
        %v2825 = vunpack.c.l.b16 %v2670
        %v2826 = vunpack.c.h.b16 %v2670
        %v2827 = vunpack.c.l.b16 %v2671
        %v2828 = vunpack.c.h.b16 %v2671
        %v2829 = vunpack.c.l.b16 %v2672
        %v2830 = vunpack.c.h.b16 %v2672
        %v2831 = vunpack.c.l.b16 %v2673
        %v2832 = vunpack.c.h.b16 %v2673
        %v2833 = vunpack.c.l.b16 %v2674
        %v2834 = vunpack.c.h.b16 %v2674
        %v2835 = vunpack.c.l.b16 %v2675
        %v2836 = vunpack.c.h.b16 %v2675
        %v2837 = vunpack.c.l.b16 %v2676
        %v2838 = vunpack.c.h.b16 %v2676
        %v2839 = vunpack.c.l.b16 %v2677
        %v2840 = vunpack.c.h.b16 %v2677
        %v2841 = vunpack.c.l.b16 %v2678
        %v2842 = vunpack.c.h.b16 %v2678
        %v2843 = vunpack.c.l.b16 %v2679
        %v2844 = vunpack.c.h.b16 %v2679
        %v2845 = vunpack.c.l.b16 %v2680
        %v2846 = vunpack.c.h.b16 %v2680
        %v2847 = vunpack.c.l.b16 %v2681
        %v2848 = vunpack.c.h.b16 %v2681
        %v2849 = vunpack.c.l.b16 %v2682
        %v2850 = vunpack.c.h.b16 %v2682
        %v2851 = vunpack.c.l.b16 %v2683
        %v2852 = vunpack.c.h.b16 %v2683
        %v2853 = vunpack.c.l.b16 %v2684
        %v2854 = vunpack.c.h.b16 %v2684
        %v2855 = vunpack.c.l.b16 %v2685
        %v2856 = vunpack.c.h.b16 %v2685
        %v2857 = vunpack.c.l.b16 %v2686
        %v2858 = vunpack.c.h.b16 %v2686
        %v2859 = vunpack.c.l.b16 %v2687
        %v2860 = vunpack.c.h.b16 %v2687
        %v2861 = vunpack.c.l.b16 %v2688
        %v2862 = vunpack.c.h.b16 %v2688
        %v2863 = vunpack.c.l.b16 %v2689
        %v2864 = vunpack.c.h.b16 %v2689
        %v2865 = vunpack.c.l.b16 %v2690
        %v2866 = vunpack.c.h.b16 %v2690
        %v2867 = vunpack.c.l.b16 %v2691
        %v2868 = vunpack.c.h.b16 %v2691
        %v2869 = vunpack.c.l.b16 %v2692
        %v2870 = vunpack.c.h.b16 %v2692
        %v2871 = vunpack.c.l.b16 %v2693
        %v2872 = vunpack.c.h.b16 %v2693
        %v2873 = vunpack.c.l.b16 %v2694
        %v2874 = vunpack.c.h.b16 %v2694
        %v2875 = vunpack.c.l.b16 %v2695
        %v2876 = vunpack.c.h.b16 %v2695
        %v2877 = vunpack.c.l.b16 %v2696
        %v2878 = vunpack.c.h.b16 %v2696
        %v2879 = vunpack.c.l.b16 %v2697
        %v2880 = vunpack.c.h.b16 %v2697
        %v2881 = vunpack.c.l.b16 %v2698
        %v2882 = vunpack.c.h.b16 %v2698
        %v2883 = vunpack.c.l.b16 %v2699
        %v2884 = vunpack.c.h.b16 %v2699
        %v2885 = vunpack.c.l.b16 %v2700
        %v2886 = vunpack.c.h.b16 %v2700
        %v2887 = vunpack.c.l.b16 %v2701
        %v2888 = vunpack.c.h.b16 %v2701
        %v2889 = vunpack.c.l.b16 %v2702
        %v2890 = vunpack.c.h.b16 %v2702
        %v2891 = vunpack.c.l.b16 %v2703
        %v2892 = vunpack.c.h.b16 %v2703
        %v2893 = vunpack.c.l.b16 %v2704
        %v2894 = vunpack.c.h.b16 %v2704
        %v2895 = vunpack.c.l.b16 %v2705
        %v2896 = vunpack.c.h.b16 %v2705
        %v2897 = vunpack.c.l.b16 %v2706
        %v2898 = vunpack.c.h.b16 %v2706
        %v2899 = vunpack.c.l.b16 %v2707
        %v2900 = vunpack.c.h.b16 %v2707
        %v2901 = vunpack.c.l.b16 %v2708
        %v2902 = vunpack.c.h.b16 %v2708
        %v2903 = vunpack.c.l.b16 %v2709
        %v2904 = vunpack.c.h.b16 %v2709
        %v2905 = vunpack.c.l.b16 %v2710
        %v2906 = vunpack.c.h.b16 %v2710
        %v2907 = vunpack.c.l.b16 %v2711
        %v2908 = vunpack.c.h.b16 %v2711
        %v2909 = vunpack.c.l.b16 %v2712
        %v2910 = vunpack.c.h.b16 %v2712
        %v2911 = vunpack.c.l.b16 %v2713
        %v2912 = vunpack.c.h.b16 %v2713
        %v2913 = vunpack.c.l.b16 %v2714
        %v2914 = vunpack.c.h.b16 %v2714
        %v2915 = vunpack.c.l.b16 %v2715
        %v2916 = vunpack.c.h.b16 %v2715
        %v2917 = vunpack.c.l.b16 %v2716
        %v2918 = vunpack.c.h.b16 %v2716
        %v2919 = vunpack.c.l.b16 %v2717
        %v2920 = vunpack.c.h.b16 %v2717
        %v2921 = vunpack.c.l.b16 %v2718
        %v2922 = vunpack.c.h.b16 %v2718
        %v2923 = vpack.c.b16 %v2797, %v2795
        %v2924 = vpack.c.b16 %v2798, %v2796
        %v2925 = vpack.c.b16 %v2801, %v2799
        %v2926 = vpack.c.b16 %v2802, %v2800
        %v2927 = vpack.c.b16 %v2805, %v2803
        %v2928 = vpack.c.b16 %v2806, %v2804
        %v2929 = vpack.c.b16 %v2809, %v2807
        %v2930 = vpack.c.b16 %v2810, %v2808
        %v2931 = vpack.c.b16 %v2813, %v2811
        %v2932 = vpack.c.b16 %v2814, %v2812
        %v2933 = vpack.c.b16 %v2817, %v2815
        %v2934 = vpack.c.b16 %v2818, %v2816
        %v2935 = vpack.c.b16 %v2821, %v2819
        %v2936 = vpack.c.b16 %v2822, %v2820
        %v2937 = vpack.c.b16 %v2825, %v2823
        %v2938 = vpack.c.b16 %v2826, %v2824
        %v2939 = vpack.c.b16 %v2829, %v2827
        %v2940 = vpack.c.b16 %v2830, %v2828
        %v2941 = vpack.c.b16 %v2833, %v2831
        %v2942 = vpack.c.b16 %v2834, %v2832
        %v2943 = vpack.c.b16 %v2837, %v2835
        %v2944 = vpack.c.b16 %v2838, %v2836
        %v2945 = vpack.c.b16 %v2841, %v2839
        %v2946 = vpack.c.b16 %v2842, %v2840
        %v2947 = vpack.c.b16 %v2845, %v2843
        %v2948 = vpack.c.b16 %v2846, %v2844
        %v2949 = vpack.c.b16 %v2849, %v2847
        %v2950 = vpack.c.b16 %v2850, %v2848
        %v2951 = vpack.c.b16 %v2853, %v2851
        %v2952 = vpack.c.b16 %v2854, %v2852
        %v2953 = vpack.c.b16 %v2857, %v2855
        %v2954 = vpack.c.b16 %v2858, %v2856
        %v2955 = vpack.c.b16 %v2861, %v2859
        %v2956 = vpack.c.b16 %v2862, %v2860
        %v2957 = vpack.c.b16 %v2865, %v2863
        %v2958 = vpack.c.b16 %v2866, %v2864
        %v2959 = vpack.c.b16 %v2869, %v2867
        %v2960 = vpack.c.b16 %v2870, %v2868
        %v2961 = vpack.c.b16 %v2873, %v2871
        %v2962 = vpack.c.b16 %v2874, %v2872
        %v2963 = vpack.c.b16 %v2877, %v2875
        %v2964 = vpack.c.b16 %v2878, %v2876
        %v2965 = vpack.c.b16 %v2881, %v2879
        %v2966 = vpack.c.b16 %v2882, %v2880
        %v2967 = vpack.c.b16 %v2885, %v2883
        %v2968 = vpack.c.b16 %v2886, %v2884
        %v2969 = vpack.c.b16 %v2889, %v2887
        %v2970 = vpack.c.b16 %v2890, %v2888
        %v2971 = vpack.c.b16 %v2893, %v2891
        %v2972 = vpack.c.b16 %v2894, %v2892
        %v2973 = vpack.c.b16 %v2897, %v2895
        %v2974 = vpack.c.b16 %v2898, %v2896
        %v2975 = vpack.c.b16 %v2901, %v2899
        %v2976 = vpack.c.b16 %v2902, %v2900
        %v2977 = vpack.c.b16 %v2905, %v2903
        %v2978 = vpack.c.b16 %v2906, %v2904
        %v2979 = vpack.c.b16 %v2909, %v2907
        %v2980 = vpack.c.b16 %v2910, %v2908
        %v2981 = vpack.c.b16 %v2913, %v2911
        %v2982 = vpack.c.b16 %v2914, %v2912
        %v2983 = vpack.c.b16 %v2917, %v2915
        %v2984 = vpack.c.b16 %v2918, %v2916
        %v2985 = vpack.c.b16 %v2921, %v2919
        %v2986 = vpack.c.b16 %v2922, %v2920
        %3051 = vmatpush.bf16.msra.mxu0 %v2937
        %3052 = vmatpush.bf16.msra.mxu0 %v2935
        %3053 = vmatpush.bf16.msra.mxu0 %v2933
        %3054 = vmatpush.bf16.msra.mxu0 %v2931
        %3055 = vmatpush.bf16.msra.mxu0 %v2929
        %3056 = vmatpush.bf16.msra.mxu0 %v2927
        %3057 = vmatpush.bf16.msra.mxu0 %v2925
        %3058 = vmatpush.bf16.msra.mxu0 %v2923
        %3059 = vmatmul.bf16.gmra.mxu0 %v2719
        %v3060 = vpop.f32.mrf.mxu0
        %v3061 = vadd.f32 0.0, %v3060
        %v3062 = vpop.f32.mrf.mxu0
        %v3063 = vadd.f32 0.0, %v3062
        %3064 = vmatmul.bf16.gmra.mxu0 %v2723
        %v3065 = vpop.f32.mrf.mxu0
        %v3066 = vadd.f32 0.0, %v3065
        %v3067 = vpop.f32.mrf.mxu0
        %v3068 = vadd.f32 0.0, %v3067
        %3069 = vmatmul.bf16.gmra.mxu0 %v2727
        %v3070 = vpop.f32.mrf.mxu0
        %v3071 = vadd.f32 0.0, %v3070
        %v3072 = vpop.f32.mrf.mxu0
        %v3073 = vadd.f32 0.0, %v3072
        %3074 = vdwg.mxu0
        %3075 = vmatpush.bf16.msra.mxu0 %v2953
        %3076 = vmatpush.bf16.msra.mxu0 %v2951
        %3077 = vmatpush.bf16.msra.mxu0 %v2949
        %3078 = vmatpush.bf16.msra.mxu0 %v2947
        %3079 = vmatpush.bf16.msra.mxu0 %v2945
        %3080 = vmatpush.bf16.msra.mxu0 %v2943
        %3081 = vmatpush.bf16.msra.mxu0 %v2941
        %3082 = vmatpush.bf16.msra.mxu0 %v2939
        %3083 = vmatmul.bf16.gmra.mxu0 %v2720
        %v3084 = vpop.f32.mrf.mxu0
        %v3085 = vadd.f32 %v3061, %v3084
        %v3086 = vpop.f32.mrf.mxu0
        %v3087 = vadd.f32 %v3063, %v3086
        %3088 = vmatmul.bf16.gmra.mxu0 %v2724
        %v3089 = vpop.f32.mrf.mxu0
        %v3090 = vadd.f32 %v3066, %v3089
        %v3091 = vpop.f32.mrf.mxu0
        %v3092 = vadd.f32 %v3068, %v3091
        %3093 = vmatmul.bf16.gmra.mxu0 %v2728
        %v3094 = vpop.f32.mrf.mxu0
        %v3095 = vadd.f32 %v3071, %v3094
        %v3096 = vpop.f32.mrf.mxu0
        %v3097 = vadd.f32 %v3073, %v3096
        %3098 = vdwg.mxu0
        %3099 = vmatpush.bf16.msra.mxu0 %v2969
        %3100 = vmatpush.bf16.msra.mxu0 %v2967
        %3101 = vmatpush.bf16.msra.mxu0 %v2965
        %3102 = vmatpush.bf16.msra.mxu0 %v2963
        %3103 = vmatpush.bf16.msra.mxu0 %v2961
        %3104 = vmatpush.bf16.msra.mxu0 %v2959
        %3105 = vmatpush.bf16.msra.mxu0 %v2957
        %3106 = vmatpush.bf16.msra.mxu0 %v2955
        %3107 = vmatmul.bf16.gmra.mxu0 %v2721
        %v3108 = vpop.f32.mrf.mxu0
        %v3109 = vadd.f32 %v3085, %v3108
        %v3110 = vpop.f32.mrf.mxu0
        %v3111 = vadd.f32 %v3087, %v3110
        %3112 = vmatmul.bf16.gmra.mxu0 %v2725
        %v3113 = vpop.f32.mrf.mxu0
        %v3114 = vadd.f32 %v3090, %v3113
        %v3115 = vpop.f32.mrf.mxu0
        %v3116 = vadd.f32 %v3092, %v3115
        %3117 = vmatmul.bf16.gmra.mxu0 %v2729
        %v3118 = vpop.f32.mrf.mxu0
        %v3119 = vadd.f32 %v3095, %v3118
        %v3120 = vpop.f32.mrf.mxu0
        %v3121 = vadd.f32 %v3097, %v3120
        %3122 = vdwg.mxu0
        %3123 = vmatpush.bf16.msra.mxu0 %v2985
        %3124 = vmatpush.bf16.msra.mxu0 %v2983
        %3125 = vmatpush.bf16.msra.mxu0 %v2981
        %3126 = vmatpush.bf16.msra.mxu0 %v2979
        %3127 = vmatpush.bf16.msra.mxu0 %v2977
        %3128 = vmatpush.bf16.msra.mxu0 %v2975
        %3129 = vmatpush.bf16.msra.mxu0 %v2973
        %3130 = vmatpush.bf16.msra.mxu0 %v2971
        %3131 = vmatmul.bf16.gmra.mxu0 %v2722
        %v3132 = vpop.f32.mrf.mxu0
        %v3133 = vadd.f32 %v3109, %v3132
        %v3134 = vpop.f32.mrf.mxu0
        %v3135 = vadd.f32 %v3111, %v3134
        %3136 = vmatmul.bf16.gmra.mxu0 %v2726
        %v3137 = vpop.f32.mrf.mxu0
        %v3138 = vadd.f32 %v3114, %v3137
        %v3139 = vpop.f32.mrf.mxu0
        %v3140 = vadd.f32 %v3116, %v3139
        %3141 = vmatmul.bf16.gmra.mxu0 %v2730
        %v3142 = vpop.f32.mrf.mxu0
        %v3143 = vadd.f32 %v3119, %v3142
        %v3144 = vpop.f32.mrf.mxu0
        %v3145 = vadd.f32 %v3121, %v3144
        %3146 = vdwg.mxu0
        %3147 = vmatpush.bf16.msra.mxu0 %v2938
        %3148 = vmatpush.bf16.msra.mxu0 %v2936
        %3149 = vmatpush.bf16.msra.mxu0 %v2934
        %3150 = vmatpush.bf16.msra.mxu0 %v2932
        %3151 = vmatpush.bf16.msra.mxu0 %v2930
        %3152 = vmatpush.bf16.msra.mxu0 %v2928
        %3153 = vmatpush.bf16.msra.mxu0 %v2926
        %3154 = vmatpush.bf16.msra.mxu0 %v2924
        %3155 = vmatmul.bf16.gmra.mxu0 %v2719
        %v3156 = vpop.f32.mrf.mxu0
        %v3157 = vadd.f32 0.0, %v3156
        %v3158 = vpop.f32.mrf.mxu0
        %v3159 = vadd.f32 0.0, %v3158
        %3160 = vmatmul.bf16.gmra.mxu0 %v2723
        %v3161 = vpop.f32.mrf.mxu0
        %v3162 = vadd.f32 0.0, %v3161
        %v3163 = vpop.f32.mrf.mxu0
        %v3164 = vadd.f32 0.0, %v3163
        %3165 = vmatmul.bf16.gmra.mxu0 %v2727
        %v3166 = vpop.f32.mrf.mxu0
        %v3167 = vadd.f32 0.0, %v3166
        %v3168 = vpop.f32.mrf.mxu0
        %v3169 = vadd.f32 0.0, %v3168
        %3170 = vdwg.mxu0
        %3171 = vmatpush.bf16.msra.mxu0 %v2954
        %3172 = vmatpush.bf16.msra.mxu0 %v2952
        %3173 = vmatpush.bf16.msra.mxu0 %v2950
        %3174 = vmatpush.bf16.msra.mxu0 %v2948
        %3175 = vmatpush.bf16.msra.mxu0 %v2946
        %3176 = vmatpush.bf16.msra.mxu0 %v2944
        %3177 = vmatpush.bf16.msra.mxu0 %v2942
        %3178 = vmatpush.bf16.msra.mxu0 %v2940
        %3179 = vmatmul.bf16.gmra.mxu0 %v2720
        %v3180 = vpop.f32.mrf.mxu0
        %v3181 = vadd.f32 %v3157, %v3180
        %v3182 = vpop.f32.mrf.mxu0
        %v3183 = vadd.f32 %v3159, %v3182
        %3184 = vmatmul.bf16.gmra.mxu0 %v2724
        %v3185 = vpop.f32.mrf.mxu0
        %v3186 = vadd.f32 %v3162, %v3185
        %v3187 = vpop.f32.mrf.mxu0
        %v3188 = vadd.f32 %v3164, %v3187
        %3189 = vmatmul.bf16.gmra.mxu0 %v2728
        %v3190 = vpop.f32.mrf.mxu0
        %v3191 = vadd.f32 %v3167, %v3190
        %v3192 = vpop.f32.mrf.mxu0
        %v3193 = vadd.f32 %v3169, %v3192
        %3194 = vdwg.mxu0
        %3195 = vmatpush.bf16.msra.mxu0 %v2970
        %3196 = vmatpush.bf16.msra.mxu0 %v2968
        %3197 = vmatpush.bf16.msra.mxu0 %v2966
        %3198 = vmatpush.bf16.msra.mxu0 %v2964
        %3199 = vmatpush.bf16.msra.mxu0 %v2962
        %3200 = vmatpush.bf16.msra.mxu0 %v2960
        %3201 = vmatpush.bf16.msra.mxu0 %v2958
        %3202 = vmatpush.bf16.msra.mxu0 %v2956
        %3203 = vmatmul.bf16.gmra.mxu0 %v2721
        %v3204 = vpop.f32.mrf.mxu0
        %v3205 = vadd.f32 %v3181, %v3204
        %v3206 = vpop.f32.mrf.mxu0
        %v3207 = vadd.f32 %v3183, %v3206
        %3208 = vmatmul.bf16.gmra.mxu0 %v2725
        %v3209 = vpop.f32.mrf.mxu0
        %v3210 = vadd.f32 %v3186, %v3209
        %v3211 = vpop.f32.mrf.mxu0
        %v3212 = vadd.f32 %v3188, %v3211
        %3213 = vmatmul.bf16.gmra.mxu0 %v2729
        %v3214 = vpop.f32.mrf.mxu0
        %v3215 = vadd.f32 %v3191, %v3214
        %v3216 = vpop.f32.mrf.mxu0
        %v3217 = vadd.f32 %v3193, %v3216
        %3218 = vdwg.mxu0
        %3219 = vmatpush.bf16.msra.mxu0 %v2986
        %3220 = vmatpush.bf16.msra.mxu0 %v2984
        %3221 = vmatpush.bf16.msra.mxu0 %v2982
        %3222 = vmatpush.bf16.msra.mxu0 %v2980
        %3223 = vmatpush.bf16.msra.mxu0 %v2978
        %3224 = vmatpush.bf16.msra.mxu0 %v2976
        %3225 = vmatpush.bf16.msra.mxu0 %v2974
        %3226 = vmatpush.bf16.msra.mxu0 %v2972
        %3227 = vmatmul.bf16.gmra.mxu0 %v2722
        %v3228 = vpop.f32.mrf.mxu0
        %v3229 = vadd.f32 %v3205, %v3228
        %v3230 = vpop.f32.mrf.mxu0
        %v3231 = vadd.f32 %v3207, %v3230
        %3232 = vmatmul.bf16.gmra.mxu0 %v2726
        %v3233 = vpop.f32.mrf.mxu0
        %v3234 = vadd.f32 %v3210, %v3233
        %v3235 = vpop.f32.mrf.mxu0
        %v3236 = vadd.f32 %v3212, %v3235
        %3237 = vmatmul.bf16.gmra.mxu0 %v2730
        %v3238 = vpop.f32.mrf.mxu0
        %v3239 = vadd.f32 %v3215, %v3238
        %v3240 = vpop.f32.mrf.mxu0
        %v3241 = vadd.f32 %v3217, %v3240
        %3242 = vdwg.mxu0
        %v3307 = vunpack.c.l.b16 %v2457
        %v3308 = vunpack.c.h.b16 %v2457
        %v3309 = vunpack.c.l.b16 %v2458
        %v3310 = vunpack.c.h.b16 %v2458
        %v3311 = vunpack.c.l.b16 %v2459
        %v3312 = vunpack.c.h.b16 %v2459
        %v3313 = vunpack.c.l.b16 %v2460
        %v3314 = vunpack.c.h.b16 %v2460
        %v3315 = vunpack.c.l.b16 %v2461
        %v3316 = vunpack.c.h.b16 %v2461
        %v3317 = vunpack.c.l.b16 %v2462
        %v3318 = vunpack.c.h.b16 %v2462
        %v3319 = vunpack.c.l.b16 %v2463
        %v3320 = vunpack.c.h.b16 %v2463
        %v3321 = vunpack.c.l.b16 %v2464
        %v3322 = vunpack.c.h.b16 %v2464
        %v3323 = vunpack.c.l.b16 %v2465
        %v3324 = vunpack.c.h.b16 %v2465
        %v3325 = vunpack.c.l.b16 %v2466
        %v3326 = vunpack.c.h.b16 %v2466
        %v3327 = vunpack.c.l.b16 %v2467
        %v3328 = vunpack.c.h.b16 %v2467
        %v3329 = vunpack.c.l.b16 %v2468
        %v3330 = vunpack.c.h.b16 %v2468
        %v3331 = vunpack.c.l.b16 %v2469
        %v3332 = vunpack.c.h.b16 %v2469
        %v3333 = vunpack.c.l.b16 %v2470
        %v3334 = vunpack.c.h.b16 %v2470
        %v3335 = vunpack.c.l.b16 %v2471
        %v3336 = vunpack.c.h.b16 %v2471
        %v3337 = vunpack.c.l.b16 %v2472
        %v3338 = vunpack.c.h.b16 %v2472
        %v3339 = vunpack.c.l.b16 %v2473
        %v3340 = vunpack.c.h.b16 %v2473
        %v3341 = vunpack.c.l.b16 %v2474
        %v3342 = vunpack.c.h.b16 %v2474
        %v3343 = vunpack.c.l.b16 %v2475
        %v3344 = vunpack.c.h.b16 %v2475
        %v3345 = vunpack.c.l.b16 %v2476
        %v3346 = vunpack.c.h.b16 %v2476
        %v3347 = vunpack.c.l.b16 %v2477
        %v3348 = vunpack.c.h.b16 %v2477
        %v3349 = vunpack.c.l.b16 %v2478
        %v3350 = vunpack.c.h.b16 %v2478
        %v3351 = vunpack.c.l.b16 %v2479
        %v3352 = vunpack.c.h.b16 %v2479
        %v3353 = vunpack.c.l.b16 %v2480
        %v3354 = vunpack.c.h.b16 %v2480
        %v3355 = vunpack.c.l.b16 %v2481
        %v3356 = vunpack.c.h.b16 %v2481
        %v3357 = vunpack.c.l.b16 %v2482
        %v3358 = vunpack.c.h.b16 %v2482
        %v3359 = vunpack.c.l.b16 %v2483
        %v3360 = vunpack.c.h.b16 %v2483
        %v3361 = vunpack.c.l.b16 %v2484
        %v3362 = vunpack.c.h.b16 %v2484
        %v3363 = vunpack.c.l.b16 %v2485
        %v3364 = vunpack.c.h.b16 %v2485
        %v3365 = vunpack.c.l.b16 %v2486
        %v3366 = vunpack.c.h.b16 %v2486
        %v3367 = vunpack.c.l.b16 %v2487
        %v3368 = vunpack.c.h.b16 %v2487
        %v3369 = vunpack.c.l.b16 %v2488
        %v3370 = vunpack.c.h.b16 %v2488
        %v3371 = vunpack.c.l.b16 %v2489
        %v3372 = vunpack.c.h.b16 %v2489
        %v3373 = vunpack.c.l.b16 %v2490
        %v3374 = vunpack.c.h.b16 %v2490
        %v3375 = vunpack.c.l.b16 %v2491
        %v3376 = vunpack.c.h.b16 %v2491
        %v3377 = vunpack.c.l.b16 %v2492
        %v3378 = vunpack.c.h.b16 %v2492
        %v3379 = vunpack.c.l.b16 %v2493
        %v3380 = vunpack.c.h.b16 %v2493
        %v3381 = vunpack.c.l.b16 %v2494
        %v3382 = vunpack.c.h.b16 %v2494
        %v3383 = vunpack.c.l.b16 %v2495
        %v3384 = vunpack.c.h.b16 %v2495
        %v3385 = vunpack.c.l.b16 %v2496
        %v3386 = vunpack.c.h.b16 %v2496
        %v3387 = vunpack.c.l.b16 %v2497
        %v3388 = vunpack.c.h.b16 %v2497
        %v3389 = vunpack.c.l.b16 %v2498
        %v3390 = vunpack.c.h.b16 %v2498
        %v3391 = vunpack.c.l.b16 %v2499
        %v3392 = vunpack.c.h.b16 %v2499
        %v3393 = vunpack.c.l.b16 %v2500
        %v3394 = vunpack.c.h.b16 %v2500
        %v3395 = vunpack.c.l.b16 %v2501
        %v3396 = vunpack.c.h.b16 %v2501
        %v3397 = vunpack.c.l.b16 %v2502
        %v3398 = vunpack.c.h.b16 %v2502
        %v3399 = vunpack.c.l.b16 %v2503
        %v3400 = vunpack.c.h.b16 %v2503
        %v3401 = vunpack.c.l.b16 %v2504
        %v3402 = vunpack.c.h.b16 %v2504
        %v3403 = vunpack.c.l.b16 %v2505
        %v3404 = vunpack.c.h.b16 %v2505
        %v3405 = vunpack.c.l.b16 %v2506
        %v3406 = vunpack.c.h.b16 %v2506
        %v3407 = vunpack.c.l.b16 %v2507
        %v3408 = vunpack.c.h.b16 %v2507
        %v3409 = vunpack.c.l.b16 %v2508
        %v3410 = vunpack.c.h.b16 %v2508
        %v3411 = vunpack.c.l.b16 %v2509
        %v3412 = vunpack.c.h.b16 %v2509
        %v3413 = vunpack.c.l.b16 %v2510
        %v3414 = vunpack.c.h.b16 %v2510
        %v3415 = vunpack.c.l.b16 %v2511
        %v3416 = vunpack.c.h.b16 %v2511
        %v3417 = vunpack.c.l.b16 %v2512
        %v3418 = vunpack.c.h.b16 %v2512
        %v3419 = vunpack.c.l.b16 %v2513
        %v3420 = vunpack.c.h.b16 %v2513
        %v3421 = vunpack.c.l.b16 %v2514
        %v3422 = vunpack.c.h.b16 %v2514
        %v3423 = vunpack.c.l.b16 %v2515
        %v3424 = vunpack.c.h.b16 %v2515
        %v3425 = vunpack.c.l.b16 %v2516
        %v3426 = vunpack.c.h.b16 %v2516
        %v3427 = vunpack.c.l.b16 %v2517
        %v3428 = vunpack.c.h.b16 %v2517
        %v3429 = vunpack.c.l.b16 %v2518
        %v3430 = vunpack.c.h.b16 %v2518
        %v3431 = vunpack.c.l.b16 %v2519
        %v3432 = vunpack.c.h.b16 %v2519
        %v3433 = vunpack.c.l.b16 %v2520
        %v3434 = vunpack.c.h.b16 %v2520
        %v3435 = vpack.c.b16 %v3309, %v3307
        %v3436 = vpack.c.b16 %v3310, %v3308
        %v3437 = vpack.c.b16 %v3313, %v3311
        %v3438 = vpack.c.b16 %v3314, %v3312
        %v3439 = vpack.c.b16 %v3317, %v3315
        %v3440 = vpack.c.b16 %v3318, %v3316
        %v3441 = vpack.c.b16 %v3321, %v3319
        %v3442 = vpack.c.b16 %v3322, %v3320
        %v3443 = vpack.c.b16 %v3325, %v3323
        %v3444 = vpack.c.b16 %v3326, %v3324
        %v3445 = vpack.c.b16 %v3329, %v3327
        %v3446 = vpack.c.b16 %v3330, %v3328
        %v3447 = vpack.c.b16 %v3333, %v3331
        %v3448 = vpack.c.b16 %v3334, %v3332
        %v3449 = vpack.c.b16 %v3337, %v3335
        %v3450 = vpack.c.b16 %v3338, %v3336
        %v3451 = vpack.c.b16 %v3341, %v3339
        %v3452 = vpack.c.b16 %v3342, %v3340
        %v3453 = vpack.c.b16 %v3345, %v3343
        %v3454 = vpack.c.b16 %v3346, %v3344
        %v3455 = vpack.c.b16 %v3349, %v3347
        %v3456 = vpack.c.b16 %v3350, %v3348
        %v3457 = vpack.c.b16 %v3353, %v3351
        %v3458 = vpack.c.b16 %v3354, %v3352
        %v3459 = vpack.c.b16 %v3357, %v3355
        %v3460 = vpack.c.b16 %v3358, %v3356
        %v3461 = vpack.c.b16 %v3361, %v3359
        %v3462 = vpack.c.b16 %v3362, %v3360
        %v3463 = vpack.c.b16 %v3365, %v3363
        %v3464 = vpack.c.b16 %v3366, %v3364
        %v3465 = vpack.c.b16 %v3369, %v3367
        %v3466 = vpack.c.b16 %v3370, %v3368
        %v3467 = vpack.c.b16 %v3373, %v3371
        %v3468 = vpack.c.b16 %v3374, %v3372
        %v3469 = vpack.c.b16 %v3377, %v3375
        %v3470 = vpack.c.b16 %v3378, %v3376
        %v3471 = vpack.c.b16 %v3381, %v3379
        %v3472 = vpack.c.b16 %v3382, %v3380
        %v3473 = vpack.c.b16 %v3385, %v3383
        %v3474 = vpack.c.b16 %v3386, %v3384
        %v3475 = vpack.c.b16 %v3389, %v3387
        %v3476 = vpack.c.b16 %v3390, %v3388
        %v3477 = vpack.c.b16 %v3393, %v3391
        %v3478 = vpack.c.b16 %v3394, %v3392
        %v3479 = vpack.c.b16 %v3397, %v3395
        %v3480 = vpack.c.b16 %v3398, %v3396
        %v3481 = vpack.c.b16 %v3401, %v3399
        %v3482 = vpack.c.b16 %v3402, %v3400
        %v3483 = vpack.c.b16 %v3405, %v3403
        %v3484 = vpack.c.b16 %v3406, %v3404
        %v3485 = vpack.c.b16 %v3409, %v3407
        %v3486 = vpack.c.b16 %v3410, %v3408
        %v3487 = vpack.c.b16 %v3413, %v3411
        %v3488 = vpack.c.b16 %v3414, %v3412
        %v3489 = vpack.c.b16 %v3417, %v3415
        %v3490 = vpack.c.b16 %v3418, %v3416
        %v3491 = vpack.c.b16 %v3421, %v3419
        %v3492 = vpack.c.b16 %v3422, %v3420
        %v3493 = vpack.c.b16 %v3425, %v3423
        %v3494 = vpack.c.b16 %v3426, %v3424
        %v3495 = vpack.c.b16 %v3429, %v3427
        %v3496 = vpack.c.b16 %v3430, %v3428
        %v3497 = vpack.c.b16 %v3433, %v3431
        %v3498 = vpack.c.b16 %v3434, %v3432
        %3563 = vmatpush.bf16.msra.mxu0 %v3449
        %3564 = vmatpush.bf16.msra.mxu0 %v3447
        %3565 = vmatpush.bf16.msra.mxu0 %v3445
        %3566 = vmatpush.bf16.msra.mxu0 %v3443
        %3567 = vmatpush.bf16.msra.mxu0 %v3441
        %3568 = vmatpush.bf16.msra.mxu0 %v3439
        %3569 = vmatpush.bf16.msra.mxu0 %v3437
        %3570 = vmatpush.bf16.msra.mxu0 %v3435
        %3571 = vmatmul.bf16.gmra.mxu0 %v2521
        %v3572 = vpop.f32.mrf.mxu0
        %v3573 = vadd.f32 %v3133, %v3572
        %v3574 = vpop.f32.mrf.mxu0
        %v3575 = vadd.f32 %v3135, %v3574
        %3576 = vmatmul.bf16.gmra.mxu0 %v2525
        %v3577 = vpop.f32.mrf.mxu0
        %v3578 = vadd.f32 %v3138, %v3577
        %v3579 = vpop.f32.mrf.mxu0
        %v3580 = vadd.f32 %v3140, %v3579
        %3581 = vmatmul.bf16.gmra.mxu0 %v2529
        %v3582 = vpop.f32.mrf.mxu0
        %v3583 = vadd.f32 %v3143, %v3582
        %v3584 = vpop.f32.mrf.mxu0
        %v3585 = vadd.f32 %v3145, %v3584
        %3586 = vdwg.mxu0
        %3587 = vmatpush.bf16.msra.mxu0 %v3465
        %3588 = vmatpush.bf16.msra.mxu0 %v3463
        %3589 = vmatpush.bf16.msra.mxu0 %v3461
        %3590 = vmatpush.bf16.msra.mxu0 %v3459
        %3591 = vmatpush.bf16.msra.mxu0 %v3457
        %3592 = vmatpush.bf16.msra.mxu0 %v3455
        %3593 = vmatpush.bf16.msra.mxu0 %v3453
        %3594 = vmatpush.bf16.msra.mxu0 %v3451
        %3595 = vmatmul.bf16.gmra.mxu0 %v2522
        %v3596 = vpop.f32.mrf.mxu0
        %v3597 = vadd.f32 %v3573, %v3596
        %v3598 = vpop.f32.mrf.mxu0
        %v3599 = vadd.f32 %v3575, %v3598
        %3600 = vmatmul.bf16.gmra.mxu0 %v2526
        %v3601 = vpop.f32.mrf.mxu0
        %v3602 = vadd.f32 %v3578, %v3601
        %v3603 = vpop.f32.mrf.mxu0
        %v3604 = vadd.f32 %v3580, %v3603
        %3605 = vmatmul.bf16.gmra.mxu0 %v2530
        %v3606 = vpop.f32.mrf.mxu0
        %v3607 = vadd.f32 %v3583, %v3606
        %v3608 = vpop.f32.mrf.mxu0
        %v3609 = vadd.f32 %v3585, %v3608
        %3610 = vdwg.mxu0
        %3611 = vmatpush.bf16.msra.mxu0 %v3481
        %3612 = vmatpush.bf16.msra.mxu0 %v3479
        %3613 = vmatpush.bf16.msra.mxu0 %v3477
        %3614 = vmatpush.bf16.msra.mxu0 %v3475
        %3615 = vmatpush.bf16.msra.mxu0 %v3473
        %3616 = vmatpush.bf16.msra.mxu0 %v3471
        %3617 = vmatpush.bf16.msra.mxu0 %v3469
        %3618 = vmatpush.bf16.msra.mxu0 %v3467
        %3619 = vmatmul.bf16.gmra.mxu0 %v2523
        %v3620 = vpop.f32.mrf.mxu0
        %v3621 = vadd.f32 %v3597, %v3620
        %v3622 = vpop.f32.mrf.mxu0
        %v3623 = vadd.f32 %v3599, %v3622
        %3624 = vmatmul.bf16.gmra.mxu0 %v2527
        %v3625 = vpop.f32.mrf.mxu0
        %v3626 = vadd.f32 %v3602, %v3625
        %v3627 = vpop.f32.mrf.mxu0
        %v3628 = vadd.f32 %v3604, %v3627
        %3629 = vmatmul.bf16.gmra.mxu0 %v2531
        %v3630 = vpop.f32.mrf.mxu0
        %v3631 = vadd.f32 %v3607, %v3630
        %v3632 = vpop.f32.mrf.mxu0
        %v3633 = vadd.f32 %v3609, %v3632
        %3634 = vdwg.mxu0
        %3635 = vmatpush.bf16.msra.mxu0 %v3497
        %3636 = vmatpush.bf16.msra.mxu0 %v3495
        %3637 = vmatpush.bf16.msra.mxu0 %v3493
        %3638 = vmatpush.bf16.msra.mxu0 %v3491
        %3639 = vmatpush.bf16.msra.mxu0 %v3489
        %3640 = vmatpush.bf16.msra.mxu0 %v3487
        %3641 = vmatpush.bf16.msra.mxu0 %v3485
        %3642 = vmatpush.bf16.msra.mxu0 %v3483
        %3643 = vmatmul.bf16.gmra.mxu0 %v2524
        %v3644 = vpop.f32.mrf.mxu0
        %v3645 = vadd.f32 %v3621, %v3644
        %v3646 = vpop.f32.mrf.mxu0
        %v3647 = vadd.f32 %v3623, %v3646
        %3648 = vmatmul.bf16.gmra.mxu0 %v2528
        %v3649 = vpop.f32.mrf.mxu0
        %v3650 = vadd.f32 %v3626, %v3649
        %v3651 = vpop.f32.mrf.mxu0
        %v3652 = vadd.f32 %v3628, %v3651
        %3653 = vmatmul.bf16.gmra.mxu0 %v2532
        %v3654 = vpop.f32.mrf.mxu0
        %v3655 = vadd.f32 %v3631, %v3654
        %v3656 = vpop.f32.mrf.mxu0
        %v3657 = vadd.f32 %v3633, %v3656
        %3658 = vdwg.mxu0
        %3659 = vmatpush.bf16.msra.mxu0 %v3450
        %3660 = vmatpush.bf16.msra.mxu0 %v3448
        %3661 = vmatpush.bf16.msra.mxu0 %v3446
        %3662 = vmatpush.bf16.msra.mxu0 %v3444
        %3663 = vmatpush.bf16.msra.mxu0 %v3442
        %3664 = vmatpush.bf16.msra.mxu0 %v3440
        %3665 = vmatpush.bf16.msra.mxu0 %v3438
        %3666 = vmatpush.bf16.msra.mxu0 %v3436
        %3667 = vmatmul.bf16.gmra.mxu0 %v2521
        %v3668 = vpop.f32.mrf.mxu0
        %v3669 = vadd.f32 %v3229, %v3668
        %v3670 = vpop.f32.mrf.mxu0
        %v3671 = vadd.f32 %v3231, %v3670
        %3672 = vmatmul.bf16.gmra.mxu0 %v2525
        %v3673 = vpop.f32.mrf.mxu0
        %v3674 = vadd.f32 %v3234, %v3673
        %v3675 = vpop.f32.mrf.mxu0
        %v3676 = vadd.f32 %v3236, %v3675
        %3677 = vmatmul.bf16.gmra.mxu0 %v2529
        %v3678 = vpop.f32.mrf.mxu0
        %v3679 = vadd.f32 %v3239, %v3678
        %v3680 = vpop.f32.mrf.mxu0
        %v3681 = vadd.f32 %v3241, %v3680
        %3682 = vdwg.mxu0
        %3683 = vmatpush.bf16.msra.mxu0 %v3466
        %3684 = vmatpush.bf16.msra.mxu0 %v3464
        %3685 = vmatpush.bf16.msra.mxu0 %v3462
        %3686 = vmatpush.bf16.msra.mxu0 %v3460
        %3687 = vmatpush.bf16.msra.mxu0 %v3458
        %3688 = vmatpush.bf16.msra.mxu0 %v3456
        %3689 = vmatpush.bf16.msra.mxu0 %v3454
        %3690 = vmatpush.bf16.msra.mxu0 %v3452
        %3691 = vmatmul.bf16.gmra.mxu0 %v2522
        %v3692 = vpop.f32.mrf.mxu0
        %v3693 = vadd.f32 %v3669, %v3692
        %v3694 = vpop.f32.mrf.mxu0
        %v3695 = vadd.f32 %v3671, %v3694
        %3696 = vmatmul.bf16.gmra.mxu0 %v2526
        %v3697 = vpop.f32.mrf.mxu0
        %v3698 = vadd.f32 %v3674, %v3697
        %v3699 = vpop.f32.mrf.mxu0
        %v3700 = vadd.f32 %v3676, %v3699
        %3701 = vmatmul.bf16.gmra.mxu0 %v2530
        %v3702 = vpop.f32.mrf.mxu0
        %v3703 = vadd.f32 %v3679, %v3702
        %v3704 = vpop.f32.mrf.mxu0
        %v3705 = vadd.f32 %v3681, %v3704
        %3706 = vdwg.mxu0
        %3707 = vmatpush.bf16.msra.mxu0 %v3482
        %3708 = vmatpush.bf16.msra.mxu0 %v3480
        %3709 = vmatpush.bf16.msra.mxu0 %v3478
        %3710 = vmatpush.bf16.msra.mxu0 %v3476
        %3711 = vmatpush.bf16.msra.mxu0 %v3474
        %3712 = vmatpush.bf16.msra.mxu0 %v3472
        %3713 = vmatpush.bf16.msra.mxu0 %v3470
        %3714 = vmatpush.bf16.msra.mxu0 %v3468
        %3715 = vmatmul.bf16.gmra.mxu0 %v2523
        %v3716 = vpop.f32.mrf.mxu0
        %v3717 = vadd.f32 %v3693, %v3716
        %v3718 = vpop.f32.mrf.mxu0
        %v3719 = vadd.f32 %v3695, %v3718
        %3720 = vmatmul.bf16.gmra.mxu0 %v2527
        %v3721 = vpop.f32.mrf.mxu0
        %v3722 = vadd.f32 %v3698, %v3721
        %v3723 = vpop.f32.mrf.mxu0
        %v3724 = vadd.f32 %v3700, %v3723
        %3725 = vmatmul.bf16.gmra.mxu0 %v2531
        %v3726 = vpop.f32.mrf.mxu0
        %v3727 = vadd.f32 %v3703, %v3726
        %v3728 = vpop.f32.mrf.mxu0
        %v3729 = vadd.f32 %v3705, %v3728
        %3730 = vdwg.mxu0
        %3731 = vmatpush.bf16.msra.mxu0 %v3498
        %3732 = vmatpush.bf16.msra.mxu0 %v3496
        %3733 = vmatpush.bf16.msra.mxu0 %v3494
        %3734 = vmatpush.bf16.msra.mxu0 %v3492
        %3735 = vmatpush.bf16.msra.mxu0 %v3490
        %3736 = vmatpush.bf16.msra.mxu0 %v3488
        %3737 = vmatpush.bf16.msra.mxu0 %v3486
        %3738 = vmatpush.bf16.msra.mxu0 %v3484
        %3739 = vmatmul.bf16.gmra.mxu0 %v2524
        %v3740 = vpop.f32.mrf.mxu0
        %v3741 = vadd.f32 %v3717, %v3740
        %v3742 = vpop.f32.mrf.mxu0
        %v3743 = vadd.f32 %v3719, %v3742
        %3744 = vmatmul.bf16.gmra.mxu0 %v2528
        %v3745 = vpop.f32.mrf.mxu0
        %v3746 = vadd.f32 %v3722, %v3745
        %v3747 = vpop.f32.mrf.mxu0
        %v3748 = vadd.f32 %v3724, %v3747
        %3749 = vmatmul.bf16.gmra.mxu0 %v2532
        %v3750 = vpop.f32.mrf.mxu0
        %v3751 = vadd.f32 %v3727, %v3750
        %v3752 = vpop.f32.mrf.mxu0
        %v3753 = vadd.f32 %v3729, %v3752
        %3754 = vdwg.mxu0
        %s3755 = scalar_lea.vmem %s4, 48
        %v3756 = vld [vmem:[%s3755] sm:$0xf]
        %v3757 = vld [vmem:[%s3755 + $0x4] sm:$0xf]
        %v3758 = vld [vmem:[%s3755 + $0x8] sm:$0xf]
        %v3759 = vld [vmem:[%s3755 + $0xc] sm:$0xf]
        %v3760 = vld [vmem:[%s3755 + $0x10] sm:$0xf]
        %v3761 = vld [vmem:[%s3755 + $0x14] sm:$0xf]
        %v3768 = vunpack.c.l.b16 %v3756
        %v3769 = vunpack.c.l.b16 %v3757
        %v3770 = vunpack.c.l.b16 %v3758
        %v3771 = vunpack.c.l.b16 %v3759
        %v3772 = vunpack.c.l.b16 %v3760
        %v3773 = vunpack.c.l.b16 %v3761
        %v3774 = vpack.c.b16 %v3769, %v3768
        %v3775 = vpack.c.b16 %v3771, %v3770
        %v3776 = vpack.c.b16 %v3773, %v3772
        %3780 = vmatpush.bf16.msra.mxu0 %v2333
        %3781 = vmatpush.bf16.msra.mxu0 %v2329
        %3782 = vmatpush.bf16.msra.mxu0 %v2325
        %3783 = vmatpush.bf16.msra.mxu0 %v2321
        %3784 = vmatpush.bf16.msra.mxu0 %v2317
        %3785 = vmatpush.bf16.msra.mxu0 %v2313
        %3786 = vmatpush.bf16.msra.mxu0 %v2309
        %3787 = vmatpush.bf16.msra.mxu0 %v2305
        %3788 = vmatmul.bf16.gmra.mxu0 %v3774
        %v3789 = vpop.f32.mrf.mxu0
        %v3790 = vadd.f32 0.0, %v3789
        %v3791 = vpop.f32.mrf.mxu0
        %v3792 = vadd.f32 0.0, %v3791
        %3793 = vmatmul.bf16.gmra.mxu0 %v3775
        %v3794 = vpop.f32.mrf.mxu0
        %v3795 = vadd.f32 0.0, %v3794
        %v3796 = vpop.f32.mrf.mxu0
        %v3797 = vadd.f32 0.0, %v3796
        %3798 = vmatmul.bf16.gmra.mxu0 %v3776
        %v3799 = vpop.f32.mrf.mxu0
        %v3800 = vadd.f32 0.0, %v3799
        %v3801 = vpop.f32.mrf.mxu0
        %v3802 = vadd.f32 0.0, %v3801
        %3803 = vdwg.mxu0
        %3804 = vmatpush.bf16.msra.mxu0 %v2334
        %3805 = vmatpush.bf16.msra.mxu0 %v2330
        %3806 = vmatpush.bf16.msra.mxu0 %v2326
        %3807 = vmatpush.bf16.msra.mxu0 %v2322
        %3808 = vmatpush.bf16.msra.mxu0 %v2318
        %3809 = vmatpush.bf16.msra.mxu0 %v2314
        %3810 = vmatpush.bf16.msra.mxu0 %v2310
        %3811 = vmatpush.bf16.msra.mxu0 %v2306
        %3812 = vmatmul.bf16.gmra.mxu0 %v3774
        %v3813 = vpop.f32.mrf.mxu0
        %v3814 = vadd.f32 0.0, %v3813
        %v3815 = vpop.f32.mrf.mxu0
        %v3816 = vadd.f32 0.0, %v3815
        %3817 = vmatmul.bf16.gmra.mxu0 %v3775
        %v3818 = vpop.f32.mrf.mxu0
        %v3819 = vadd.f32 0.0, %v3818
        %v3820 = vpop.f32.mrf.mxu0
        %v3821 = vadd.f32 0.0, %v3820
        %3822 = vmatmul.bf16.gmra.mxu0 %v3776
        %v3823 = vpop.f32.mrf.mxu0
        %v3824 = vadd.f32 0.0, %v3823
        %v3825 = vpop.f32.mrf.mxu0
        %v3826 = vadd.f32 0.0, %v3825
        %3827 = vdwg.mxu0
        %3828 = vmatpush.bf16.msra.mxu0 %v2335
        %3829 = vmatpush.bf16.msra.mxu0 %v2331
        %3830 = vmatpush.bf16.msra.mxu0 %v2327
        %3831 = vmatpush.bf16.msra.mxu0 %v2323
        %3832 = vmatpush.bf16.msra.mxu0 %v2319
        %3833 = vmatpush.bf16.msra.mxu0 %v2315
        %3834 = vmatpush.bf16.msra.mxu0 %v2311
        %3835 = vmatpush.bf16.msra.mxu0 %v2307
        %3836 = vmatmul.bf16.gmra.mxu0 %v3774
        %v3837 = vpop.f32.mrf.mxu0
        %v3838 = vadd.f32 0.0, %v3837
        %v3839 = vpop.f32.mrf.mxu0
        %v3840 = vadd.f32 0.0, %v3839
        %3841 = vmatmul.bf16.gmra.mxu0 %v3775
        %v3842 = vpop.f32.mrf.mxu0
        %v3843 = vadd.f32 0.0, %v3842
        %v3844 = vpop.f32.mrf.mxu0
        %v3845 = vadd.f32 0.0, %v3844
        %3846 = vmatmul.bf16.gmra.mxu0 %v3776
        %v3847 = vpop.f32.mrf.mxu0
        %v3848 = vadd.f32 0.0, %v3847
        %v3849 = vpop.f32.mrf.mxu0
        %v3850 = vadd.f32 0.0, %v3849
        %3851 = vdwg.mxu0
        %3852 = vmatpush.bf16.msra.mxu0 %v2336
        %3853 = vmatpush.bf16.msra.mxu0 %v2332
        %3854 = vmatpush.bf16.msra.mxu0 %v2328
        %3855 = vmatpush.bf16.msra.mxu0 %v2324
        %3856 = vmatpush.bf16.msra.mxu0 %v2320
        %3857 = vmatpush.bf16.msra.mxu0 %v2316
        %3858 = vmatpush.bf16.msra.mxu0 %v2312
        %3859 = vmatpush.bf16.msra.mxu0 %v2308
        %3860 = vmatmul.bf16.gmra.mxu0 %v3774
        %v3861 = vpop.f32.mrf.mxu0
        %v3862 = vadd.f32 0.0, %v3861
        %v3863 = vpop.f32.mrf.mxu0
        %v3864 = vadd.f32 0.0, %v3863
        %3865 = vmatmul.bf16.gmra.mxu0 %v3775
        %v3866 = vpop.f32.mrf.mxu0
        %v3867 = vadd.f32 0.0, %v3866
        %v3868 = vpop.f32.mrf.mxu0
        %v3869 = vadd.f32 0.0, %v3868
        %3870 = vmatmul.bf16.gmra.mxu0 %v3776
        %v3871 = vpop.f32.mrf.mxu0
        %v3872 = vadd.f32 0.0, %v3871
        %v3873 = vpop.f32.mrf.mxu0
        %v3874 = vadd.f32 0.0, %v3873
        %3875 = vdwg.mxu0
        %s3876 = scalar_lea.vmem %s5, 1024
        %v3877 = vld [vmem:[%s3876] sm:$0xff]
        %v3878 = vld [vmem:[%s3876 + $0x8] sm:$0xff]
        %v3879 = vld [vmem:[%s3876 + $0x10] sm:$0xff]
        %v3880 = vld [vmem:[%s3876 + $0x18] sm:$0xff]
        %v3881 = vld [vmem:[%s3876 + $0x20] sm:$0xff]
        %v3882 = vld [vmem:[%s3876 + $0x28] sm:$0xff]
        %v3883 = vld [vmem:[%s3876 + $0x30] sm:$0xff]
        %v3884 = vld [vmem:[%s3876 + $0x38] sm:$0xff]
        %v3885 = vld [vmem:[%s3876 + $0x40] sm:$0xff]
        %v3886 = vld [vmem:[%s3876 + $0x48] sm:$0xff]
        %v3887 = vld [vmem:[%s3876 + $0x50] sm:$0xff]
        %v3888 = vld [vmem:[%s3876 + $0x58] sm:$0xff]
        %v3889 = vld [vmem:[%s3876 + $0x60] sm:$0xff]
        %v3890 = vld [vmem:[%s3876 + $0x68] sm:$0xff]
        %v3891 = vld [vmem:[%s3876 + $0x70] sm:$0xff]
        %v3892 = vld [vmem:[%s3876 + $0x78] sm:$0xff]
        %v3893 = vld [vmem:[%s3876 + $0x80] sm:$0xff]
        %v3894 = vld [vmem:[%s3876 + $0x88] sm:$0xff]
        %v3895 = vld [vmem:[%s3876 + $0x90] sm:$0xff]
        %v3896 = vld [vmem:[%s3876 + $0x98] sm:$0xff]
        %v3897 = vld [vmem:[%s3876 + $0xa0] sm:$0xff]
        %v3898 = vld [vmem:[%s3876 + $0xa8] sm:$0xff]
        %v3899 = vld [vmem:[%s3876 + $0xb0] sm:$0xff]
        %v3900 = vld [vmem:[%s3876 + $0xb8] sm:$0xff]
        %v3901 = vld [vmem:[%s3876 + $0xc0] sm:$0xff]
        %v3902 = vld [vmem:[%s3876 + $0xc8] sm:$0xff]
        %v3903 = vld [vmem:[%s3876 + $0xd0] sm:$0xff]
        %v3904 = vld [vmem:[%s3876 + $0xd8] sm:$0xff]
        %v3905 = vld [vmem:[%s3876 + $0xe0] sm:$0xff]
        %v3906 = vld [vmem:[%s3876 + $0xe8] sm:$0xff]
        %v3907 = vld [vmem:[%s3876 + $0xf0] sm:$0xff]
        %v3908 = vld [vmem:[%s3876 + $0xf8] sm:$0xff]
        %v3909 = vld [vmem:[%s3876 + $0x100] sm:$0xff]
        %v3910 = vld [vmem:[%s3876 + $0x108] sm:$0xff]
        %v3911 = vld [vmem:[%s3876 + $0x110] sm:$0xff]
        %v3912 = vld [vmem:[%s3876 + $0x118] sm:$0xff]
        %v3913 = vld [vmem:[%s3876 + $0x120] sm:$0xff]
        %v3914 = vld [vmem:[%s3876 + $0x128] sm:$0xff]
        %v3915 = vld [vmem:[%s3876 + $0x130] sm:$0xff]
        %v3916 = vld [vmem:[%s3876 + $0x138] sm:$0xff]
        %v3917 = vld [vmem:[%s3876 + $0x140] sm:$0xff]
        %v3918 = vld [vmem:[%s3876 + $0x148] sm:$0xff]
        %v3919 = vld [vmem:[%s3876 + $0x150] sm:$0xff]
        %v3920 = vld [vmem:[%s3876 + $0x158] sm:$0xff]
        %v3921 = vld [vmem:[%s3876 + $0x160] sm:$0xff]
        %v3922 = vld [vmem:[%s3876 + $0x168] sm:$0xff]
        %v3923 = vld [vmem:[%s3876 + $0x170] sm:$0xff]
        %v3924 = vld [vmem:[%s3876 + $0x178] sm:$0xff]
        %v3925 = vld [vmem:[%s3876 + $0x180] sm:$0xff]
        %v3926 = vld [vmem:[%s3876 + $0x188] sm:$0xff]
        %v3927 = vld [vmem:[%s3876 + $0x190] sm:$0xff]
        %v3928 = vld [vmem:[%s3876 + $0x198] sm:$0xff]
        %v3929 = vld [vmem:[%s3876 + $0x1a0] sm:$0xff]
        %v3930 = vld [vmem:[%s3876 + $0x1a8] sm:$0xff]
        %v3931 = vld [vmem:[%s3876 + $0x1b0] sm:$0xff]
        %v3932 = vld [vmem:[%s3876 + $0x1b8] sm:$0xff]
        %v3933 = vld [vmem:[%s3876 + $0x1c0] sm:$0xff]
        %v3934 = vld [vmem:[%s3876 + $0x1c8] sm:$0xff]
        %v3935 = vld [vmem:[%s3876 + $0x1d0] sm:$0xff]
        %v3936 = vld [vmem:[%s3876 + $0x1d8] sm:$0xff]
        %v3937 = vld [vmem:[%s3876 + $0x1e0] sm:$0xff]
        %v3938 = vld [vmem:[%s3876 + $0x1e8] sm:$0xff]
        %v3939 = vld [vmem:[%s3876 + $0x1f0] sm:$0xff]
        %v3940 = vld [vmem:[%s3876 + $0x1f8] sm:$0xff]
        %v3941 = vpack.c.bf16 %v3792, %v3790
        %v3942 = vpack.c.bf16 %v3816, %v3814
        %v3943 = vpack.c.bf16 %v3840, %v3838
        %v3944 = vpack.c.bf16 %v3864, %v3862
        %v3945 = vpack.c.bf16 %v3797, %v3795
        %v3946 = vpack.c.bf16 %v3821, %v3819
        %v3947 = vpack.c.bf16 %v3845, %v3843
        %v3948 = vpack.c.bf16 %v3869, %v3867
        %v3949 = vpack.c.bf16 %v3802, %v3800
        %v3950 = vpack.c.bf16 %v3826, %v3824
        %v3951 = vpack.c.bf16 %v3850, %v3848
        %v3952 = vpack.c.bf16 %v3874, %v3872
        %v4017 = vunpack.c.l.b16 %v3877
        %v4018 = vunpack.c.h.b16 %v3877
        %v4019 = vunpack.c.l.b16 %v3878
        %v4020 = vunpack.c.h.b16 %v3878
        %v4021 = vunpack.c.l.b16 %v3879
        %v4022 = vunpack.c.h.b16 %v3879
        %v4023 = vunpack.c.l.b16 %v3880
        %v4024 = vunpack.c.h.b16 %v3880
        %v4025 = vunpack.c.l.b16 %v3881
        %v4026 = vunpack.c.h.b16 %v3881
        %v4027 = vunpack.c.l.b16 %v3882
        %v4028 = vunpack.c.h.b16 %v3882
        %v4029 = vunpack.c.l.b16 %v3883
        %v4030 = vunpack.c.h.b16 %v3883
        %v4031 = vunpack.c.l.b16 %v3884
        %v4032 = vunpack.c.h.b16 %v3884
        %v4033 = vunpack.c.l.b16 %v3885
        %v4034 = vunpack.c.h.b16 %v3885
        %v4035 = vunpack.c.l.b16 %v3886
        %v4036 = vunpack.c.h.b16 %v3886
        %v4037 = vunpack.c.l.b16 %v3887
        %v4038 = vunpack.c.h.b16 %v3887
        %v4039 = vunpack.c.l.b16 %v3888
        %v4040 = vunpack.c.h.b16 %v3888
        %v4041 = vunpack.c.l.b16 %v3889
        %v4042 = vunpack.c.h.b16 %v3889
        %v4043 = vunpack.c.l.b16 %v3890
        %v4044 = vunpack.c.h.b16 %v3890
        %v4045 = vunpack.c.l.b16 %v3891
        %v4046 = vunpack.c.h.b16 %v3891
        %v4047 = vunpack.c.l.b16 %v3892
        %v4048 = vunpack.c.h.b16 %v3892
        %v4049 = vunpack.c.l.b16 %v3893
        %v4050 = vunpack.c.h.b16 %v3893
        %v4051 = vunpack.c.l.b16 %v3894
        %v4052 = vunpack.c.h.b16 %v3894
        %v4053 = vunpack.c.l.b16 %v3895
        %v4054 = vunpack.c.h.b16 %v3895
        %v4055 = vunpack.c.l.b16 %v3896
        %v4056 = vunpack.c.h.b16 %v3896
        %v4057 = vunpack.c.l.b16 %v3897
        %v4058 = vunpack.c.h.b16 %v3897
        %v4059 = vunpack.c.l.b16 %v3898
        %v4060 = vunpack.c.h.b16 %v3898
        %v4061 = vunpack.c.l.b16 %v3899
        %v4062 = vunpack.c.h.b16 %v3899
        %v4063 = vunpack.c.l.b16 %v3900
        %v4064 = vunpack.c.h.b16 %v3900
        %v4065 = vunpack.c.l.b16 %v3901
        %v4066 = vunpack.c.h.b16 %v3901
        %v4067 = vunpack.c.l.b16 %v3902
        %v4068 = vunpack.c.h.b16 %v3902
        %v4069 = vunpack.c.l.b16 %v3903
        %v4070 = vunpack.c.h.b16 %v3903
        %v4071 = vunpack.c.l.b16 %v3904
        %v4072 = vunpack.c.h.b16 %v3904
        %v4073 = vunpack.c.l.b16 %v3905
        %v4074 = vunpack.c.h.b16 %v3905
        %v4075 = vunpack.c.l.b16 %v3906
        %v4076 = vunpack.c.h.b16 %v3906
        %v4077 = vunpack.c.l.b16 %v3907
        %v4078 = vunpack.c.h.b16 %v3907
        %v4079 = vunpack.c.l.b16 %v3908
        %v4080 = vunpack.c.h.b16 %v3908
        %v4081 = vunpack.c.l.b16 %v3909
        %v4082 = vunpack.c.h.b16 %v3909
        %v4083 = vunpack.c.l.b16 %v3910
        %v4084 = vunpack.c.h.b16 %v3910
        %v4085 = vunpack.c.l.b16 %v3911
        %v4086 = vunpack.c.h.b16 %v3911
        %v4087 = vunpack.c.l.b16 %v3912
        %v4088 = vunpack.c.h.b16 %v3912
        %v4089 = vunpack.c.l.b16 %v3913
        %v4090 = vunpack.c.h.b16 %v3913
        %v4091 = vunpack.c.l.b16 %v3914
        %v4092 = vunpack.c.h.b16 %v3914
        %v4093 = vunpack.c.l.b16 %v3915
        %v4094 = vunpack.c.h.b16 %v3915
        %v4095 = vunpack.c.l.b16 %v3916
        %v4096 = vunpack.c.h.b16 %v3916
        %v4097 = vunpack.c.l.b16 %v3917
        %v4098 = vunpack.c.h.b16 %v3917
        %v4099 = vunpack.c.l.b16 %v3918
        %v4100 = vunpack.c.h.b16 %v3918
        %v4101 = vunpack.c.l.b16 %v3919
        %v4102 = vunpack.c.h.b16 %v3919
        %v4103 = vunpack.c.l.b16 %v3920
        %v4104 = vunpack.c.h.b16 %v3920
        %v4105 = vunpack.c.l.b16 %v3921
        %v4106 = vunpack.c.h.b16 %v3921
        %v4107 = vunpack.c.l.b16 %v3922
        %v4108 = vunpack.c.h.b16 %v3922
        %v4109 = vunpack.c.l.b16 %v3923
        %v4110 = vunpack.c.h.b16 %v3923
        %v4111 = vunpack.c.l.b16 %v3924
        %v4112 = vunpack.c.h.b16 %v3924
        %v4113 = vunpack.c.l.b16 %v3925
        %v4114 = vunpack.c.h.b16 %v3925
        %v4115 = vunpack.c.l.b16 %v3926
        %v4116 = vunpack.c.h.b16 %v3926
        %v4117 = vunpack.c.l.b16 %v3927
        %v4118 = vunpack.c.h.b16 %v3927
        %v4119 = vunpack.c.l.b16 %v3928
        %v4120 = vunpack.c.h.b16 %v3928
        %v4121 = vunpack.c.l.b16 %v3929
        %v4122 = vunpack.c.h.b16 %v3929
        %v4123 = vunpack.c.l.b16 %v3930
        %v4124 = vunpack.c.h.b16 %v3930
        %v4125 = vunpack.c.l.b16 %v3931
        %v4126 = vunpack.c.h.b16 %v3931
        %v4127 = vunpack.c.l.b16 %v3932
        %v4128 = vunpack.c.h.b16 %v3932
        %v4129 = vunpack.c.l.b16 %v3933
        %v4130 = vunpack.c.h.b16 %v3933
        %v4131 = vunpack.c.l.b16 %v3934
        %v4132 = vunpack.c.h.b16 %v3934
        %v4133 = vunpack.c.l.b16 %v3935
        %v4134 = vunpack.c.h.b16 %v3935
        %v4135 = vunpack.c.l.b16 %v3936
        %v4136 = vunpack.c.h.b16 %v3936
        %v4137 = vunpack.c.l.b16 %v3937
        %v4138 = vunpack.c.h.b16 %v3937
        %v4139 = vunpack.c.l.b16 %v3938
        %v4140 = vunpack.c.h.b16 %v3938
        %v4141 = vunpack.c.l.b16 %v3939
        %v4142 = vunpack.c.h.b16 %v3939
        %v4143 = vunpack.c.l.b16 %v3940
        %v4144 = vunpack.c.h.b16 %v3940
        %v4145 = vpack.c.b16 %v4019, %v4017
        %v4146 = vpack.c.b16 %v4020, %v4018
        %v4147 = vpack.c.b16 %v4023, %v4021
        %v4148 = vpack.c.b16 %v4024, %v4022
        %v4149 = vpack.c.b16 %v4027, %v4025
        %v4150 = vpack.c.b16 %v4028, %v4026
        %v4151 = vpack.c.b16 %v4031, %v4029
        %v4152 = vpack.c.b16 %v4032, %v4030
        %v4153 = vpack.c.b16 %v4035, %v4033
        %v4154 = vpack.c.b16 %v4036, %v4034
        %v4155 = vpack.c.b16 %v4039, %v4037
        %v4156 = vpack.c.b16 %v4040, %v4038
        %v4157 = vpack.c.b16 %v4043, %v4041
        %v4158 = vpack.c.b16 %v4044, %v4042
        %v4159 = vpack.c.b16 %v4047, %v4045
        %v4160 = vpack.c.b16 %v4048, %v4046
        %v4161 = vpack.c.b16 %v4051, %v4049
        %v4162 = vpack.c.b16 %v4052, %v4050
        %v4163 = vpack.c.b16 %v4055, %v4053
        %v4164 = vpack.c.b16 %v4056, %v4054
        %v4165 = vpack.c.b16 %v4059, %v4057
        %v4166 = vpack.c.b16 %v4060, %v4058
        %v4167 = vpack.c.b16 %v4063, %v4061
        %v4168 = vpack.c.b16 %v4064, %v4062
        %v4169 = vpack.c.b16 %v4067, %v4065
        %v4170 = vpack.c.b16 %v4068, %v4066
        %v4171 = vpack.c.b16 %v4071, %v4069
        %v4172 = vpack.c.b16 %v4072, %v4070
        %v4173 = vpack.c.b16 %v4075, %v4073
        %v4174 = vpack.c.b16 %v4076, %v4074
        %v4175 = vpack.c.b16 %v4079, %v4077
        %v4176 = vpack.c.b16 %v4080, %v4078
        %v4177 = vpack.c.b16 %v4083, %v4081
        %v4178 = vpack.c.b16 %v4084, %v4082
        %v4179 = vpack.c.b16 %v4087, %v4085
        %v4180 = vpack.c.b16 %v4088, %v4086
        %v4181 = vpack.c.b16 %v4091, %v4089
        %v4182 = vpack.c.b16 %v4092, %v4090
        %v4183 = vpack.c.b16 %v4095, %v4093
        %v4184 = vpack.c.b16 %v4096, %v4094
        %v4185 = vpack.c.b16 %v4099, %v4097
        %v4186 = vpack.c.b16 %v4100, %v4098
        %v4187 = vpack.c.b16 %v4103, %v4101
        %v4188 = vpack.c.b16 %v4104, %v4102
        %v4189 = vpack.c.b16 %v4107, %v4105
        %v4190 = vpack.c.b16 %v4108, %v4106
        %v4191 = vpack.c.b16 %v4111, %v4109
        %v4192 = vpack.c.b16 %v4112, %v4110
        %v4193 = vpack.c.b16 %v4115, %v4113
        %v4194 = vpack.c.b16 %v4116, %v4114
        %v4195 = vpack.c.b16 %v4119, %v4117
        %v4196 = vpack.c.b16 %v4120, %v4118
        %v4197 = vpack.c.b16 %v4123, %v4121
        %v4198 = vpack.c.b16 %v4124, %v4122
        %v4199 = vpack.c.b16 %v4127, %v4125
        %v4200 = vpack.c.b16 %v4128, %v4126
        %v4201 = vpack.c.b16 %v4131, %v4129
        %v4202 = vpack.c.b16 %v4132, %v4130
        %v4203 = vpack.c.b16 %v4135, %v4133
        %v4204 = vpack.c.b16 %v4136, %v4134
        %v4205 = vpack.c.b16 %v4139, %v4137
        %v4206 = vpack.c.b16 %v4140, %v4138
        %v4207 = vpack.c.b16 %v4143, %v4141
        %v4208 = vpack.c.b16 %v4144, %v4142
        %4273 = vmatpush.bf16.msra.mxu0 %v4159
        %4274 = vmatpush.bf16.msra.mxu0 %v4157
        %4275 = vmatpush.bf16.msra.mxu0 %v4155
        %4276 = vmatpush.bf16.msra.mxu0 %v4153
        %4277 = vmatpush.bf16.msra.mxu0 %v4151
        %4278 = vmatpush.bf16.msra.mxu0 %v4149
        %4279 = vmatpush.bf16.msra.mxu0 %v4147
        %4280 = vmatpush.bf16.msra.mxu0 %v4145
        %4281 = vmatmul.bf16.gmra.mxu0 %v3941
        %v4282 = vpop.f32.mrf.mxu0
        %v4283 = vadd.f32 0.0, %v4282
        %v4284 = vpop.f32.mrf.mxu0
        %v4285 = vadd.f32 0.0, %v4284
        %4286 = vmatmul.bf16.gmra.mxu0 %v3945
        %v4287 = vpop.f32.mrf.mxu0
        %v4288 = vadd.f32 0.0, %v4287
        %v4289 = vpop.f32.mrf.mxu0
        %v4290 = vadd.f32 0.0, %v4289
        %4291 = vmatmul.bf16.gmra.mxu0 %v3949
        %v4292 = vpop.f32.mrf.mxu0
        %v4293 = vadd.f32 0.0, %v4292
        %v4294 = vpop.f32.mrf.mxu0
        %v4295 = vadd.f32 0.0, %v4294
        %4296 = vdwg.mxu0
        %4297 = vmatpush.bf16.msra.mxu0 %v4175
        %4298 = vmatpush.bf16.msra.mxu0 %v4173
        %4299 = vmatpush.bf16.msra.mxu0 %v4171
        %4300 = vmatpush.bf16.msra.mxu0 %v4169
        %4301 = vmatpush.bf16.msra.mxu0 %v4167
        %4302 = vmatpush.bf16.msra.mxu0 %v4165
        %4303 = vmatpush.bf16.msra.mxu0 %v4163
        %4304 = vmatpush.bf16.msra.mxu0 %v4161
        %4305 = vmatmul.bf16.gmra.mxu0 %v3942
        %v4306 = vpop.f32.mrf.mxu0
        %v4307 = vadd.f32 %v4283, %v4306
        %v4308 = vpop.f32.mrf.mxu0
        %v4309 = vadd.f32 %v4285, %v4308
        %4310 = vmatmul.bf16.gmra.mxu0 %v3946
        %v4311 = vpop.f32.mrf.mxu0
        %v4312 = vadd.f32 %v4288, %v4311
        %v4313 = vpop.f32.mrf.mxu0
        %v4314 = vadd.f32 %v4290, %v4313
        %4315 = vmatmul.bf16.gmra.mxu0 %v3950
        %v4316 = vpop.f32.mrf.mxu0
        %v4317 = vadd.f32 %v4293, %v4316
        %v4318 = vpop.f32.mrf.mxu0
        %v4319 = vadd.f32 %v4295, %v4318
        %4320 = vdwg.mxu0
        %4321 = vmatpush.bf16.msra.mxu0 %v4191
        %4322 = vmatpush.bf16.msra.mxu0 %v4189
        %4323 = vmatpush.bf16.msra.mxu0 %v4187
        %4324 = vmatpush.bf16.msra.mxu0 %v4185
        %4325 = vmatpush.bf16.msra.mxu0 %v4183
        %4326 = vmatpush.bf16.msra.mxu0 %v4181
        %4327 = vmatpush.bf16.msra.mxu0 %v4179
        %4328 = vmatpush.bf16.msra.mxu0 %v4177
        %4329 = vmatmul.bf16.gmra.mxu0 %v3943
        %v4330 = vpop.f32.mrf.mxu0
        %v4331 = vadd.f32 %v4307, %v4330
        %v4332 = vpop.f32.mrf.mxu0
        %v4333 = vadd.f32 %v4309, %v4332
        %4334 = vmatmul.bf16.gmra.mxu0 %v3947
        %v4335 = vpop.f32.mrf.mxu0
        %v4336 = vadd.f32 %v4312, %v4335
        %v4337 = vpop.f32.mrf.mxu0
        %v4338 = vadd.f32 %v4314, %v4337
        %4339 = vmatmul.bf16.gmra.mxu0 %v3951
        %v4340 = vpop.f32.mrf.mxu0
        %v4341 = vadd.f32 %v4317, %v4340
        %v4342 = vpop.f32.mrf.mxu0
        %v4343 = vadd.f32 %v4319, %v4342
        %4344 = vdwg.mxu0
        %4345 = vmatpush.bf16.msra.mxu0 %v4207
        %4346 = vmatpush.bf16.msra.mxu0 %v4205
        %4347 = vmatpush.bf16.msra.mxu0 %v4203
        %4348 = vmatpush.bf16.msra.mxu0 %v4201
        %4349 = vmatpush.bf16.msra.mxu0 %v4199
        %4350 = vmatpush.bf16.msra.mxu0 %v4197
        %4351 = vmatpush.bf16.msra.mxu0 %v4195
        %4352 = vmatpush.bf16.msra.mxu0 %v4193
        %4353 = vmatmul.bf16.gmra.mxu0 %v3944
        %v4354 = vpop.f32.mrf.mxu0
        %v4355 = vadd.f32 %v4331, %v4354
        %v4356 = vpop.f32.mrf.mxu0
        %v4357 = vadd.f32 %v4333, %v4356
        %4358 = vmatmul.bf16.gmra.mxu0 %v3948
        %v4359 = vpop.f32.mrf.mxu0
        %v4360 = vadd.f32 %v4336, %v4359
        %v4361 = vpop.f32.mrf.mxu0
        %v4362 = vadd.f32 %v4338, %v4361
        %4363 = vmatmul.bf16.gmra.mxu0 %v3952
        %v4364 = vpop.f32.mrf.mxu0
        %v4365 = vadd.f32 %v4341, %v4364
        %v4366 = vpop.f32.mrf.mxu0
        %v4367 = vadd.f32 %v4343, %v4366
        %4368 = vdwg.mxu0
        %4369 = vmatpush.bf16.msra.mxu0 %v4160
        %4370 = vmatpush.bf16.msra.mxu0 %v4158
        %4371 = vmatpush.bf16.msra.mxu0 %v4156
        %4372 = vmatpush.bf16.msra.mxu0 %v4154
        %4373 = vmatpush.bf16.msra.mxu0 %v4152
        %4374 = vmatpush.bf16.msra.mxu0 %v4150
        %4375 = vmatpush.bf16.msra.mxu0 %v4148
        %4376 = vmatpush.bf16.msra.mxu0 %v4146
        %4377 = vmatmul.bf16.gmra.mxu0 %v3941
        %v4378 = vpop.f32.mrf.mxu0
        %v4379 = vadd.f32 0.0, %v4378
        %v4380 = vpop.f32.mrf.mxu0
        %v4381 = vadd.f32 0.0, %v4380
        %4382 = vmatmul.bf16.gmra.mxu0 %v3945
        %v4383 = vpop.f32.mrf.mxu0
        %v4384 = vadd.f32 0.0, %v4383
        %v4385 = vpop.f32.mrf.mxu0
        %v4386 = vadd.f32 0.0, %v4385
        %4387 = vmatmul.bf16.gmra.mxu0 %v3949
        %v4388 = vpop.f32.mrf.mxu0
        %v4389 = vadd.f32 0.0, %v4388
        %v4390 = vpop.f32.mrf.mxu0
        %v4391 = vadd.f32 0.0, %v4390
        %4392 = vdwg.mxu0
        %4393 = vmatpush.bf16.msra.mxu0 %v4176
        %4394 = vmatpush.bf16.msra.mxu0 %v4174
        %4395 = vmatpush.bf16.msra.mxu0 %v4172
        %4396 = vmatpush.bf16.msra.mxu0 %v4170
        %4397 = vmatpush.bf16.msra.mxu0 %v4168
        %4398 = vmatpush.bf16.msra.mxu0 %v4166
        %4399 = vmatpush.bf16.msra.mxu0 %v4164
        %4400 = vmatpush.bf16.msra.mxu0 %v4162
        %4401 = vmatmul.bf16.gmra.mxu0 %v3942
        %v4402 = vpop.f32.mrf.mxu0
        %v4403 = vadd.f32 %v4379, %v4402
        %v4404 = vpop.f32.mrf.mxu0
        %v4405 = vadd.f32 %v4381, %v4404
        %4406 = vmatmul.bf16.gmra.mxu0 %v3946
        %v4407 = vpop.f32.mrf.mxu0
        %v4408 = vadd.f32 %v4384, %v4407
        %v4409 = vpop.f32.mrf.mxu0
        %v4410 = vadd.f32 %v4386, %v4409
        %4411 = vmatmul.bf16.gmra.mxu0 %v3950
        %v4412 = vpop.f32.mrf.mxu0
        %v4413 = vadd.f32 %v4389, %v4412
        %v4414 = vpop.f32.mrf.mxu0
        %v4415 = vadd.f32 %v4391, %v4414
        %4416 = vdwg.mxu0
        %4417 = vmatpush.bf16.msra.mxu0 %v4192
        %4418 = vmatpush.bf16.msra.mxu0 %v4190
        %4419 = vmatpush.bf16.msra.mxu0 %v4188
        %4420 = vmatpush.bf16.msra.mxu0 %v4186
        %4421 = vmatpush.bf16.msra.mxu0 %v4184
        %4422 = vmatpush.bf16.msra.mxu0 %v4182
        %4423 = vmatpush.bf16.msra.mxu0 %v4180
        %4424 = vmatpush.bf16.msra.mxu0 %v4178
        %4425 = vmatmul.bf16.gmra.mxu0 %v3943
        %v4426 = vpop.f32.mrf.mxu0
        %v4427 = vadd.f32 %v4403, %v4426
        %v4428 = vpop.f32.mrf.mxu0
        %v4429 = vadd.f32 %v4405, %v4428
        %4430 = vmatmul.bf16.gmra.mxu0 %v3947
        %v4431 = vpop.f32.mrf.mxu0
        %v4432 = vadd.f32 %v4408, %v4431
        %v4433 = vpop.f32.mrf.mxu0
        %v4434 = vadd.f32 %v4410, %v4433
        %4435 = vmatmul.bf16.gmra.mxu0 %v3951
        %v4436 = vpop.f32.mrf.mxu0
        %v4437 = vadd.f32 %v4413, %v4436
        %v4438 = vpop.f32.mrf.mxu0
        %v4439 = vadd.f32 %v4415, %v4438
        %4440 = vdwg.mxu0
        %4441 = vmatpush.bf16.msra.mxu0 %v4208
        %4442 = vmatpush.bf16.msra.mxu0 %v4206
        %4443 = vmatpush.bf16.msra.mxu0 %v4204
        %4444 = vmatpush.bf16.msra.mxu0 %v4202
        %4445 = vmatpush.bf16.msra.mxu0 %v4200
        %4446 = vmatpush.bf16.msra.mxu0 %v4198
        %4447 = vmatpush.bf16.msra.mxu0 %v4196
        %4448 = vmatpush.bf16.msra.mxu0 %v4194
        %4449 = vmatmul.bf16.gmra.mxu0 %v3944
        %v4450 = vpop.f32.mrf.mxu0
        %v4451 = vadd.f32 %v4427, %v4450
        %v4452 = vpop.f32.mrf.mxu0
        %v4453 = vadd.f32 %v4429, %v4452
        %4454 = vmatmul.bf16.gmra.mxu0 %v3948
        %v4455 = vpop.f32.mrf.mxu0
        %v4456 = vadd.f32 %v4432, %v4455
        %v4457 = vpop.f32.mrf.mxu0
        %v4458 = vadd.f32 %v4434, %v4457
        %4459 = vmatmul.bf16.gmra.mxu0 %v3952
        %v4460 = vpop.f32.mrf.mxu0
        %v4461 = vadd.f32 %v4437, %v4460
        %v4462 = vpop.f32.mrf.mxu0
        %v4463 = vadd.f32 %v4439, %v4462
        %4464 = vdwg.mxu0
        %v4465 = vadd.f32 %v3645, %v4355
        %v4466 = vadd.f32 %v3741, %v4451
        %v4467 = vadd.f32 %v3647, %v4357
        %v4468 = vadd.f32 %v3743, %v4453
        %v4469 = vadd.f32 %v3650, %v4360
        %v4470 = vadd.f32 %v3746, %v4456
        %v4471 = vadd.f32 %v3652, %v4362
        %v4472 = vadd.f32 %v3748, %v4458
        %v4473 = vadd.f32 %v3655, %v4365
        %v4474 = vadd.f32 %v3751, %v4461
        %v4475 = vadd.f32 %v3657, %v4367
        %v4476 = vadd.f32 %v3753, %v4463
        %s4477 = scalar_lea.vmem %s4, 72
        %v4478 = vld [vmem:[%s4477] sm:$0xf]
        %v4479 = vld [vmem:[%s4477 + $0x4] sm:$0xf]
        %v4480 = vld [vmem:[%s4477 + $0x8] sm:$0xf]
        %v4481 = vld [vmem:[%s4477 + $0xc] sm:$0xf]
        %v4482 = vld [vmem:[%s4477 + $0x10] sm:$0xf]
        %v4483 = vld [vmem:[%s4477 + $0x14] sm:$0xf]
        %v4490 = vunpack.c.l.b16 %v4478
        %v4491 = vunpack.c.l.b16 %v4479
        %v4492 = vunpack.c.l.b16 %v4480
        %v4493 = vunpack.c.l.b16 %v4481
        %v4494 = vunpack.c.l.b16 %v4482
        %v4495 = vunpack.c.l.b16 %v4483
        %v4496 = vpack.c.b16 %v4491, %v4490
        %v4497 = vpack.c.b16 %v4493, %v4492
        %v4498 = vpack.c.b16 %v4495, %v4494
        %4502 = vmatpush.bf16.msra.mxu0 %v2333
        %4503 = vmatpush.bf16.msra.mxu0 %v2329
        %4504 = vmatpush.bf16.msra.mxu0 %v2325
        %4505 = vmatpush.bf16.msra.mxu0 %v2321
        %4506 = vmatpush.bf16.msra.mxu0 %v2317
        %4507 = vmatpush.bf16.msra.mxu0 %v2313
        %4508 = vmatpush.bf16.msra.mxu0 %v2309
        %4509 = vmatpush.bf16.msra.mxu0 %v2305
        %4510 = vmatmul.bf16.gmra.mxu0 %v4496
        %v4511 = vpop.f32.mrf.mxu0
        %v4512 = vadd.f32 0.0, %v4511
        %v4513 = vpop.f32.mrf.mxu0
        %v4514 = vadd.f32 0.0, %v4513
        %4515 = vmatmul.bf16.gmra.mxu0 %v4497
        %v4516 = vpop.f32.mrf.mxu0
        %v4517 = vadd.f32 0.0, %v4516
        %v4518 = vpop.f32.mrf.mxu0
        %v4519 = vadd.f32 0.0, %v4518
        %4520 = vmatmul.bf16.gmra.mxu0 %v4498
        %v4521 = vpop.f32.mrf.mxu0
        %v4522 = vadd.f32 0.0, %v4521
        %v4523 = vpop.f32.mrf.mxu0
        %v4524 = vadd.f32 0.0, %v4523
        %4525 = vdwg.mxu0
        %4526 = vmatpush.bf16.msra.mxu0 %v2334
        %4527 = vmatpush.bf16.msra.mxu0 %v2330
        %4528 = vmatpush.bf16.msra.mxu0 %v2326
        %4529 = vmatpush.bf16.msra.mxu0 %v2322
        %4530 = vmatpush.bf16.msra.mxu0 %v2318
        %4531 = vmatpush.bf16.msra.mxu0 %v2314
        %4532 = vmatpush.bf16.msra.mxu0 %v2310
        %4533 = vmatpush.bf16.msra.mxu0 %v2306
        %4534 = vmatmul.bf16.gmra.mxu0 %v4496
        %v4535 = vpop.f32.mrf.mxu0
        %v4536 = vadd.f32 0.0, %v4535
        %v4537 = vpop.f32.mrf.mxu0
        %v4538 = vadd.f32 0.0, %v4537
        %4539 = vmatmul.bf16.gmra.mxu0 %v4497
        %v4540 = vpop.f32.mrf.mxu0
        %v4541 = vadd.f32 0.0, %v4540
        %v4542 = vpop.f32.mrf.mxu0
        %v4543 = vadd.f32 0.0, %v4542
        %4544 = vmatmul.bf16.gmra.mxu0 %v4498
        %v4545 = vpop.f32.mrf.mxu0
        %v4546 = vadd.f32 0.0, %v4545
        %v4547 = vpop.f32.mrf.mxu0
        %v4548 = vadd.f32 0.0, %v4547
        %4549 = vdwg.mxu0
        %4550 = vmatpush.bf16.msra.mxu0 %v2335
        %4551 = vmatpush.bf16.msra.mxu0 %v2331
        %4552 = vmatpush.bf16.msra.mxu0 %v2327
        %4553 = vmatpush.bf16.msra.mxu0 %v2323
        %4554 = vmatpush.bf16.msra.mxu0 %v2319
        %4555 = vmatpush.bf16.msra.mxu0 %v2315
        %4556 = vmatpush.bf16.msra.mxu0 %v2311
        %4557 = vmatpush.bf16.msra.mxu0 %v2307
        %4558 = vmatmul.bf16.gmra.mxu0 %v4496
        %v4559 = vpop.f32.mrf.mxu0
        %v4560 = vadd.f32 0.0, %v4559
        %v4561 = vpop.f32.mrf.mxu0
        %v4562 = vadd.f32 0.0, %v4561
        %4563 = vmatmul.bf16.gmra.mxu0 %v4497
        %v4564 = vpop.f32.mrf.mxu0
        %v4565 = vadd.f32 0.0, %v4564
        %v4566 = vpop.f32.mrf.mxu0
        %v4567 = vadd.f32 0.0, %v4566
        %4568 = vmatmul.bf16.gmra.mxu0 %v4498
        %v4569 = vpop.f32.mrf.mxu0
        %v4570 = vadd.f32 0.0, %v4569
        %v4571 = vpop.f32.mrf.mxu0
        %v4572 = vadd.f32 0.0, %v4571
        %4573 = vdwg.mxu0
        %4574 = vmatpush.bf16.msra.mxu0 %v2336
        %4575 = vmatpush.bf16.msra.mxu0 %v2332
        %4576 = vmatpush.bf16.msra.mxu0 %v2328
        %4577 = vmatpush.bf16.msra.mxu0 %v2324
        %4578 = vmatpush.bf16.msra.mxu0 %v2320
        %4579 = vmatpush.bf16.msra.mxu0 %v2316
        %4580 = vmatpush.bf16.msra.mxu0 %v2312
        %4581 = vmatpush.bf16.msra.mxu0 %v2308
        %4582 = vmatmul.bf16.gmra.mxu0 %v4496
        %v4583 = vpop.f32.mrf.mxu0
        %v4584 = vadd.f32 0.0, %v4583
        %v4585 = vpop.f32.mrf.mxu0
        %v4586 = vadd.f32 0.0, %v4585
        %4587 = vmatmul.bf16.gmra.mxu0 %v4497
        %v4588 = vpop.f32.mrf.mxu0
        %v4589 = vadd.f32 0.0, %v4588
        %v4590 = vpop.f32.mrf.mxu0
        %v4591 = vadd.f32 0.0, %v4590
        %4592 = vmatmul.bf16.gmra.mxu0 %v4498
        %v4593 = vpop.f32.mrf.mxu0
        %v4594 = vadd.f32 0.0, %v4593
        %v4595 = vpop.f32.mrf.mxu0
        %v4596 = vadd.f32 0.0, %v4595
        %4597 = vdwg.mxu0
        %s4598 = scalar_lea.vmem %s5, 1536
        %v4599 = vld [vmem:[%s4598] sm:$0xff]
        %v4600 = vld [vmem:[%s4598 + $0x8] sm:$0xff]
        %v4601 = vld [vmem:[%s4598 + $0x10] sm:$0xff]
        %v4602 = vld [vmem:[%s4598 + $0x18] sm:$0xff]
        %v4603 = vld [vmem:[%s4598 + $0x20] sm:$0xff]
        %v4604 = vld [vmem:[%s4598 + $0x28] sm:$0xff]
        %v4605 = vld [vmem:[%s4598 + $0x30] sm:$0xff]
        %v4606 = vld [vmem:[%s4598 + $0x38] sm:$0xff]
        %v4607 = vld [vmem:[%s4598 + $0x40] sm:$0xff]
        %v4608 = vld [vmem:[%s4598 + $0x48] sm:$0xff]
        %v4609 = vld [vmem:[%s4598 + $0x50] sm:$0xff]
        %v4610 = vld [vmem:[%s4598 + $0x58] sm:$0xff]
        %v4611 = vld [vmem:[%s4598 + $0x60] sm:$0xff]
        %v4612 = vld [vmem:[%s4598 + $0x68] sm:$0xff]
        %v4613 = vld [vmem:[%s4598 + $0x70] sm:$0xff]
        %v4614 = vld [vmem:[%s4598 + $0x78] sm:$0xff]
        %v4615 = vld [vmem:[%s4598 + $0x80] sm:$0xff]
        %v4616 = vld [vmem:[%s4598 + $0x88] sm:$0xff]
        %v4617 = vld [vmem:[%s4598 + $0x90] sm:$0xff]
        %v4618 = vld [vmem:[%s4598 + $0x98] sm:$0xff]
        %v4619 = vld [vmem:[%s4598 + $0xa0] sm:$0xff]
        %v4620 = vld [vmem:[%s4598 + $0xa8] sm:$0xff]
        %v4621 = vld [vmem:[%s4598 + $0xb0] sm:$0xff]
        %v4622 = vld [vmem:[%s4598 + $0xb8] sm:$0xff]
        %v4623 = vld [vmem:[%s4598 + $0xc0] sm:$0xff]
        %v4624 = vld [vmem:[%s4598 + $0xc8] sm:$0xff]
        %v4625 = vld [vmem:[%s4598 + $0xd0] sm:$0xff]
        %v4626 = vld [vmem:[%s4598 + $0xd8] sm:$0xff]
        %v4627 = vld [vmem:[%s4598 + $0xe0] sm:$0xff]
        %v4628 = vld [vmem:[%s4598 + $0xe8] sm:$0xff]
        %v4629 = vld [vmem:[%s4598 + $0xf0] sm:$0xff]
        %v4630 = vld [vmem:[%s4598 + $0xf8] sm:$0xff]
        %v4631 = vld [vmem:[%s4598 + $0x100] sm:$0xff]
        %v4632 = vld [vmem:[%s4598 + $0x108] sm:$0xff]
        %v4633 = vld [vmem:[%s4598 + $0x110] sm:$0xff]
        %v4634 = vld [vmem:[%s4598 + $0x118] sm:$0xff]
        %v4635 = vld [vmem:[%s4598 + $0x120] sm:$0xff]
        %v4636 = vld [vmem:[%s4598 + $0x128] sm:$0xff]
        %v4637 = vld [vmem:[%s4598 + $0x130] sm:$0xff]
        %v4638 = vld [vmem:[%s4598 + $0x138] sm:$0xff]
        %v4639 = vld [vmem:[%s4598 + $0x140] sm:$0xff]
        %v4640 = vld [vmem:[%s4598 + $0x148] sm:$0xff]
        %v4641 = vld [vmem:[%s4598 + $0x150] sm:$0xff]
        %v4642 = vld [vmem:[%s4598 + $0x158] sm:$0xff]
        %v4643 = vld [vmem:[%s4598 + $0x160] sm:$0xff]
        %v4644 = vld [vmem:[%s4598 + $0x168] sm:$0xff]
        %v4645 = vld [vmem:[%s4598 + $0x170] sm:$0xff]
        %v4646 = vld [vmem:[%s4598 + $0x178] sm:$0xff]
        %v4647 = vld [vmem:[%s4598 + $0x180] sm:$0xff]
        %v4648 = vld [vmem:[%s4598 + $0x188] sm:$0xff]
        %v4649 = vld [vmem:[%s4598 + $0x190] sm:$0xff]
        %v4650 = vld [vmem:[%s4598 + $0x198] sm:$0xff]
        %v4651 = vld [vmem:[%s4598 + $0x1a0] sm:$0xff]
        %v4652 = vld [vmem:[%s4598 + $0x1a8] sm:$0xff]
        %v4653 = vld [vmem:[%s4598 + $0x1b0] sm:$0xff]
        %v4654 = vld [vmem:[%s4598 + $0x1b8] sm:$0xff]
        %v4655 = vld [vmem:[%s4598 + $0x1c0] sm:$0xff]
        %v4656 = vld [vmem:[%s4598 + $0x1c8] sm:$0xff]
        %v4657 = vld [vmem:[%s4598 + $0x1d0] sm:$0xff]
        %v4658 = vld [vmem:[%s4598 + $0x1d8] sm:$0xff]
        %v4659 = vld [vmem:[%s4598 + $0x1e0] sm:$0xff]
        %v4660 = vld [vmem:[%s4598 + $0x1e8] sm:$0xff]
        %v4661 = vld [vmem:[%s4598 + $0x1f0] sm:$0xff]
        %v4662 = vld [vmem:[%s4598 + $0x1f8] sm:$0xff]
        %v4663 = vpack.c.bf16 %v4514, %v4512
        %v4664 = vpack.c.bf16 %v4538, %v4536
        %v4665 = vpack.c.bf16 %v4562, %v4560
        %v4666 = vpack.c.bf16 %v4586, %v4584
        %v4667 = vpack.c.bf16 %v4519, %v4517
        %v4668 = vpack.c.bf16 %v4543, %v4541
        %v4669 = vpack.c.bf16 %v4567, %v4565
        %v4670 = vpack.c.bf16 %v4591, %v4589
        %v4671 = vpack.c.bf16 %v4524, %v4522
        %v4672 = vpack.c.bf16 %v4548, %v4546
        %v4673 = vpack.c.bf16 %v4572, %v4570
        %v4674 = vpack.c.bf16 %v4596, %v4594
        %v4739 = vunpack.c.l.b16 %v4599
        %v4740 = vunpack.c.h.b16 %v4599
        %v4741 = vunpack.c.l.b16 %v4600
        %v4742 = vunpack.c.h.b16 %v4600
        %v4743 = vunpack.c.l.b16 %v4601
        %v4744 = vunpack.c.h.b16 %v4601
        %v4745 = vunpack.c.l.b16 %v4602
        %v4746 = vunpack.c.h.b16 %v4602
        %v4747 = vunpack.c.l.b16 %v4603
        %v4748 = vunpack.c.h.b16 %v4603
        %v4749 = vunpack.c.l.b16 %v4604
        %v4750 = vunpack.c.h.b16 %v4604
        %v4751 = vunpack.c.l.b16 %v4605
        %v4752 = vunpack.c.h.b16 %v4605
        %v4753 = vunpack.c.l.b16 %v4606
        %v4754 = vunpack.c.h.b16 %v4606
        %v4755 = vunpack.c.l.b16 %v4607
        %v4756 = vunpack.c.h.b16 %v4607
        %v4757 = vunpack.c.l.b16 %v4608
        %v4758 = vunpack.c.h.b16 %v4608
        %v4759 = vunpack.c.l.b16 %v4609
        %v4760 = vunpack.c.h.b16 %v4609
        %v4761 = vunpack.c.l.b16 %v4610
        %v4762 = vunpack.c.h.b16 %v4610
        %v4763 = vunpack.c.l.b16 %v4611
        %v4764 = vunpack.c.h.b16 %v4611
        %v4765 = vunpack.c.l.b16 %v4612
        %v4766 = vunpack.c.h.b16 %v4612
        %v4767 = vunpack.c.l.b16 %v4613
        %v4768 = vunpack.c.h.b16 %v4613
        %v4769 = vunpack.c.l.b16 %v4614
        %v4770 = vunpack.c.h.b16 %v4614
        %v4771 = vunpack.c.l.b16 %v4615
        %v4772 = vunpack.c.h.b16 %v4615
        %v4773 = vunpack.c.l.b16 %v4616
        %v4774 = vunpack.c.h.b16 %v4616
        %v4775 = vunpack.c.l.b16 %v4617
        %v4776 = vunpack.c.h.b16 %v4617
        %v4777 = vunpack.c.l.b16 %v4618
        %v4778 = vunpack.c.h.b16 %v4618
        %v4779 = vunpack.c.l.b16 %v4619
        %v4780 = vunpack.c.h.b16 %v4619
        %v4781 = vunpack.c.l.b16 %v4620
        %v4782 = vunpack.c.h.b16 %v4620
        %v4783 = vunpack.c.l.b16 %v4621
        %v4784 = vunpack.c.h.b16 %v4621
        %v4785 = vunpack.c.l.b16 %v4622
        %v4786 = vunpack.c.h.b16 %v4622
        %v4787 = vunpack.c.l.b16 %v4623
        %v4788 = vunpack.c.h.b16 %v4623
        %v4789 = vunpack.c.l.b16 %v4624
        %v4790 = vunpack.c.h.b16 %v4624
        %v4791 = vunpack.c.l.b16 %v4625
        %v4792 = vunpack.c.h.b16 %v4625
        %v4793 = vunpack.c.l.b16 %v4626
        %v4794 = vunpack.c.h.b16 %v4626
        %v4795 = vunpack.c.l.b16 %v4627
        %v4796 = vunpack.c.h.b16 %v4627
        %v4797 = vunpack.c.l.b16 %v4628
        %v4798 = vunpack.c.h.b16 %v4628
        %v4799 = vunpack.c.l.b16 %v4629
        %v4800 = vunpack.c.h.b16 %v4629
        %v4801 = vunpack.c.l.b16 %v4630
        %v4802 = vunpack.c.h.b16 %v4630
        %v4803 = vunpack.c.l.b16 %v4631
        %v4804 = vunpack.c.h.b16 %v4631
        %v4805 = vunpack.c.l.b16 %v4632
        %v4806 = vunpack.c.h.b16 %v4632
        %v4807 = vunpack.c.l.b16 %v4633
        %v4808 = vunpack.c.h.b16 %v4633
        %v4809 = vunpack.c.l.b16 %v4634
        %v4810 = vunpack.c.h.b16 %v4634
        %v4811 = vunpack.c.l.b16 %v4635
        %v4812 = vunpack.c.h.b16 %v4635
        %v4813 = vunpack.c.l.b16 %v4636
        %v4814 = vunpack.c.h.b16 %v4636
        %v4815 = vunpack.c.l.b16 %v4637
        %v4816 = vunpack.c.h.b16 %v4637
        %v4817 = vunpack.c.l.b16 %v4638
        %v4818 = vunpack.c.h.b16 %v4638
        %v4819 = vunpack.c.l.b16 %v4639
        %v4820 = vunpack.c.h.b16 %v4639
        %v4821 = vunpack.c.l.b16 %v4640
        %v4822 = vunpack.c.h.b16 %v4640
        %v4823 = vunpack.c.l.b16 %v4641
        %v4824 = vunpack.c.h.b16 %v4641
        %v4825 = vunpack.c.l.b16 %v4642
        %v4826 = vunpack.c.h.b16 %v4642
        %v4827 = vunpack.c.l.b16 %v4643
        %v4828 = vunpack.c.h.b16 %v4643
        %v4829 = vunpack.c.l.b16 %v4644
        %v4830 = vunpack.c.h.b16 %v4644
        %v4831 = vunpack.c.l.b16 %v4645
        %v4832 = vunpack.c.h.b16 %v4645
        %v4833 = vunpack.c.l.b16 %v4646
        %v4834 = vunpack.c.h.b16 %v4646
        %v4835 = vunpack.c.l.b16 %v4647
        %v4836 = vunpack.c.h.b16 %v4647
        %v4837 = vunpack.c.l.b16 %v4648
        %v4838 = vunpack.c.h.b16 %v4648
        %v4839 = vunpack.c.l.b16 %v4649
        %v4840 = vunpack.c.h.b16 %v4649
        %v4841 = vunpack.c.l.b16 %v4650
        %v4842 = vunpack.c.h.b16 %v4650
        %v4843 = vunpack.c.l.b16 %v4651
        %v4844 = vunpack.c.h.b16 %v4651
        %v4845 = vunpack.c.l.b16 %v4652
        %v4846 = vunpack.c.h.b16 %v4652
        %v4847 = vunpack.c.l.b16 %v4653
        %v4848 = vunpack.c.h.b16 %v4653
        %v4849 = vunpack.c.l.b16 %v4654
        %v4850 = vunpack.c.h.b16 %v4654
        %v4851 = vunpack.c.l.b16 %v4655
        %v4852 = vunpack.c.h.b16 %v4655
        %v4853 = vunpack.c.l.b16 %v4656
        %v4854 = vunpack.c.h.b16 %v4656
        %v4855 = vunpack.c.l.b16 %v4657
        %v4856 = vunpack.c.h.b16 %v4657
        %v4857 = vunpack.c.l.b16 %v4658
        %v4858 = vunpack.c.h.b16 %v4658
        %v4859 = vunpack.c.l.b16 %v4659
        %v4860 = vunpack.c.h.b16 %v4659
        %v4861 = vunpack.c.l.b16 %v4660
        %v4862 = vunpack.c.h.b16 %v4660
        %v4863 = vunpack.c.l.b16 %v4661
        %v4864 = vunpack.c.h.b16 %v4661
        %v4865 = vunpack.c.l.b16 %v4662
        %v4866 = vunpack.c.h.b16 %v4662
        %v4867 = vpack.c.b16 %v4741, %v4739
        %v4868 = vpack.c.b16 %v4742, %v4740
        %v4869 = vpack.c.b16 %v4745, %v4743
        %v4870 = vpack.c.b16 %v4746, %v4744
        %v4871 = vpack.c.b16 %v4749, %v4747
        %v4872 = vpack.c.b16 %v4750, %v4748
        %v4873 = vpack.c.b16 %v4753, %v4751
        %v4874 = vpack.c.b16 %v4754, %v4752
        %v4875 = vpack.c.b16 %v4757, %v4755
        %v4876 = vpack.c.b16 %v4758, %v4756
        %v4877 = vpack.c.b16 %v4761, %v4759
        %v4878 = vpack.c.b16 %v4762, %v4760
        %v4879 = vpack.c.b16 %v4765, %v4763
        %v4880 = vpack.c.b16 %v4766, %v4764
        %v4881 = vpack.c.b16 %v4769, %v4767
        %v4882 = vpack.c.b16 %v4770, %v4768
        %v4883 = vpack.c.b16 %v4773, %v4771
        %v4884 = vpack.c.b16 %v4774, %v4772
        %v4885 = vpack.c.b16 %v4777, %v4775
        %v4886 = vpack.c.b16 %v4778, %v4776
        %v4887 = vpack.c.b16 %v4781, %v4779
        %v4888 = vpack.c.b16 %v4782, %v4780
        %v4889 = vpack.c.b16 %v4785, %v4783
        %v4890 = vpack.c.b16 %v4786, %v4784
        %v4891 = vpack.c.b16 %v4789, %v4787
        %v4892 = vpack.c.b16 %v4790, %v4788
        %v4893 = vpack.c.b16 %v4793, %v4791
        %v4894 = vpack.c.b16 %v4794, %v4792
        %v4895 = vpack.c.b16 %v4797, %v4795
        %v4896 = vpack.c.b16 %v4798, %v4796
        %v4897 = vpack.c.b16 %v4801, %v4799
        %v4898 = vpack.c.b16 %v4802, %v4800
        %v4899 = vpack.c.b16 %v4805, %v4803
        %v4900 = vpack.c.b16 %v4806, %v4804
        %v4901 = vpack.c.b16 %v4809, %v4807
        %v4902 = vpack.c.b16 %v4810, %v4808
        %v4903 = vpack.c.b16 %v4813, %v4811
        %v4904 = vpack.c.b16 %v4814, %v4812
        %v4905 = vpack.c.b16 %v4817, %v4815
        %v4906 = vpack.c.b16 %v4818, %v4816
        %v4907 = vpack.c.b16 %v4821, %v4819
        %v4908 = vpack.c.b16 %v4822, %v4820
        %v4909 = vpack.c.b16 %v4825, %v4823
        %v4910 = vpack.c.b16 %v4826, %v4824
        %v4911 = vpack.c.b16 %v4829, %v4827
        %v4912 = vpack.c.b16 %v4830, %v4828
        %v4913 = vpack.c.b16 %v4833, %v4831
        %v4914 = vpack.c.b16 %v4834, %v4832
        %v4915 = vpack.c.b16 %v4837, %v4835
        %v4916 = vpack.c.b16 %v4838, %v4836
        %v4917 = vpack.c.b16 %v4841, %v4839
        %v4918 = vpack.c.b16 %v4842, %v4840
        %v4919 = vpack.c.b16 %v4845, %v4843
        %v4920 = vpack.c.b16 %v4846, %v4844
        %v4921 = vpack.c.b16 %v4849, %v4847
        %v4922 = vpack.c.b16 %v4850, %v4848
        %v4923 = vpack.c.b16 %v4853, %v4851
        %v4924 = vpack.c.b16 %v4854, %v4852
        %v4925 = vpack.c.b16 %v4857, %v4855
        %v4926 = vpack.c.b16 %v4858, %v4856
        %v4927 = vpack.c.b16 %v4861, %v4859
        %v4928 = vpack.c.b16 %v4862, %v4860
        %v4929 = vpack.c.b16 %v4865, %v4863
        %v4930 = vpack.c.b16 %v4866, %v4864
        %4995 = vmatpush.bf16.msra.mxu0 %v4881
        %4996 = vmatpush.bf16.msra.mxu0 %v4879
        %4997 = vmatpush.bf16.msra.mxu0 %v4877
        %4998 = vmatpush.bf16.msra.mxu0 %v4875
        %4999 = vmatpush.bf16.msra.mxu0 %v4873
        %5000 = vmatpush.bf16.msra.mxu0 %v4871
        %5001 = vmatpush.bf16.msra.mxu0 %v4869
        %5002 = vmatpush.bf16.msra.mxu0 %v4867
        %5003 = vmatmul.bf16.gmra.mxu0 %v4663
        %v5004 = vpop.f32.mrf.mxu0
        %v5005 = vadd.f32 0.0, %v5004
        %v5006 = vpop.f32.mrf.mxu0
        %v5007 = vadd.f32 0.0, %v5006
        %5008 = vmatmul.bf16.gmra.mxu0 %v4667
        %v5009 = vpop.f32.mrf.mxu0
        %v5010 = vadd.f32 0.0, %v5009
        %v5011 = vpop.f32.mrf.mxu0
        %v5012 = vadd.f32 0.0, %v5011
        %5013 = vmatmul.bf16.gmra.mxu0 %v4671
        %v5014 = vpop.f32.mrf.mxu0
        %v5015 = vadd.f32 0.0, %v5014
        %v5016 = vpop.f32.mrf.mxu0
        %v5017 = vadd.f32 0.0, %v5016
        %5018 = vdwg.mxu0
        %5019 = vmatpush.bf16.msra.mxu0 %v4897
        %5020 = vmatpush.bf16.msra.mxu0 %v4895
        %5021 = vmatpush.bf16.msra.mxu0 %v4893
        %5022 = vmatpush.bf16.msra.mxu0 %v4891
        %5023 = vmatpush.bf16.msra.mxu0 %v4889
        %5024 = vmatpush.bf16.msra.mxu0 %v4887
        %5025 = vmatpush.bf16.msra.mxu0 %v4885
        %5026 = vmatpush.bf16.msra.mxu0 %v4883
        %5027 = vmatmul.bf16.gmra.mxu0 %v4664
        %v5028 = vpop.f32.mrf.mxu0
        %v5029 = vadd.f32 %v5005, %v5028
        %v5030 = vpop.f32.mrf.mxu0
        %v5031 = vadd.f32 %v5007, %v5030
        %5032 = vmatmul.bf16.gmra.mxu0 %v4668
        %v5033 = vpop.f32.mrf.mxu0
        %v5034 = vadd.f32 %v5010, %v5033
        %v5035 = vpop.f32.mrf.mxu0
        %v5036 = vadd.f32 %v5012, %v5035
        %5037 = vmatmul.bf16.gmra.mxu0 %v4672
        %v5038 = vpop.f32.mrf.mxu0
        %v5039 = vadd.f32 %v5015, %v5038
        %v5040 = vpop.f32.mrf.mxu0
        %v5041 = vadd.f32 %v5017, %v5040
        %5042 = vdwg.mxu0
        %5043 = vmatpush.bf16.msra.mxu0 %v4913
        %5044 = vmatpush.bf16.msra.mxu0 %v4911
        %5045 = vmatpush.bf16.msra.mxu0 %v4909
        %5046 = vmatpush.bf16.msra.mxu0 %v4907
        %5047 = vmatpush.bf16.msra.mxu0 %v4905
        %5048 = vmatpush.bf16.msra.mxu0 %v4903
        %5049 = vmatpush.bf16.msra.mxu0 %v4901
        %5050 = vmatpush.bf16.msra.mxu0 %v4899
        %5051 = vmatmul.bf16.gmra.mxu0 %v4665
        %v5052 = vpop.f32.mrf.mxu0
        %v5053 = vadd.f32 %v5029, %v5052
        %v5054 = vpop.f32.mrf.mxu0
        %v5055 = vadd.f32 %v5031, %v5054
        %5056 = vmatmul.bf16.gmra.mxu0 %v4669
        %v5057 = vpop.f32.mrf.mxu0
        %v5058 = vadd.f32 %v5034, %v5057
        %v5059 = vpop.f32.mrf.mxu0
        %v5060 = vadd.f32 %v5036, %v5059
        %5061 = vmatmul.bf16.gmra.mxu0 %v4673
        %v5062 = vpop.f32.mrf.mxu0
        %v5063 = vadd.f32 %v5039, %v5062
        %v5064 = vpop.f32.mrf.mxu0
        %v5065 = vadd.f32 %v5041, %v5064
        %5066 = vdwg.mxu0
        %5067 = vmatpush.bf16.msra.mxu0 %v4929
        %5068 = vmatpush.bf16.msra.mxu0 %v4927
        %5069 = vmatpush.bf16.msra.mxu0 %v4925
        %5070 = vmatpush.bf16.msra.mxu0 %v4923
        %5071 = vmatpush.bf16.msra.mxu0 %v4921
        %5072 = vmatpush.bf16.msra.mxu0 %v4919
        %5073 = vmatpush.bf16.msra.mxu0 %v4917
        %5074 = vmatpush.bf16.msra.mxu0 %v4915
        %5075 = vmatmul.bf16.gmra.mxu0 %v4666
        %v5076 = vpop.f32.mrf.mxu0
        %v5077 = vadd.f32 %v5053, %v5076
        %v5078 = vpop.f32.mrf.mxu0
        %v5079 = vadd.f32 %v5055, %v5078
        %5080 = vmatmul.bf16.gmra.mxu0 %v4670
        %v5081 = vpop.f32.mrf.mxu0
        %v5082 = vadd.f32 %v5058, %v5081
        %v5083 = vpop.f32.mrf.mxu0
        %v5084 = vadd.f32 %v5060, %v5083
        %5085 = vmatmul.bf16.gmra.mxu0 %v4674
        %v5086 = vpop.f32.mrf.mxu0
        %v5087 = vadd.f32 %v5063, %v5086
        %v5088 = vpop.f32.mrf.mxu0
        %v5089 = vadd.f32 %v5065, %v5088
        %5090 = vdwg.mxu0
        %5091 = vmatpush.bf16.msra.mxu0 %v4882
        %5092 = vmatpush.bf16.msra.mxu0 %v4880
        %5093 = vmatpush.bf16.msra.mxu0 %v4878
        %5094 = vmatpush.bf16.msra.mxu0 %v4876
        %5095 = vmatpush.bf16.msra.mxu0 %v4874
        %5096 = vmatpush.bf16.msra.mxu0 %v4872
        %5097 = vmatpush.bf16.msra.mxu0 %v4870
        %5098 = vmatpush.bf16.msra.mxu0 %v4868
        %5099 = vmatmul.bf16.gmra.mxu0 %v4663
        %v5100 = vpop.f32.mrf.mxu0
        %v5101 = vadd.f32 0.0, %v5100
        %v5102 = vpop.f32.mrf.mxu0
        %v5103 = vadd.f32 0.0, %v5102
        %5104 = vmatmul.bf16.gmra.mxu0 %v4667
        %v5105 = vpop.f32.mrf.mxu0
        %v5106 = vadd.f32 0.0, %v5105
        %v5107 = vpop.f32.mrf.mxu0
        %v5108 = vadd.f32 0.0, %v5107
        %5109 = vmatmul.bf16.gmra.mxu0 %v4671
        %v5110 = vpop.f32.mrf.mxu0
        %v5111 = vadd.f32 0.0, %v5110
        %v5112 = vpop.f32.mrf.mxu0
        %v5113 = vadd.f32 0.0, %v5112
        %5114 = vdwg.mxu0
        %5115 = vmatpush.bf16.msra.mxu0 %v4898
        %5116 = vmatpush.bf16.msra.mxu0 %v4896
        %5117 = vmatpush.bf16.msra.mxu0 %v4894
        %5118 = vmatpush.bf16.msra.mxu0 %v4892
        %5119 = vmatpush.bf16.msra.mxu0 %v4890
        %5120 = vmatpush.bf16.msra.mxu0 %v4888
        %5121 = vmatpush.bf16.msra.mxu0 %v4886
        %5122 = vmatpush.bf16.msra.mxu0 %v4884
        %5123 = vmatmul.bf16.gmra.mxu0 %v4664
        %v5124 = vpop.f32.mrf.mxu0
        %v5125 = vadd.f32 %v5101, %v5124
        %v5126 = vpop.f32.mrf.mxu0
        %v5127 = vadd.f32 %v5103, %v5126
        %5128 = vmatmul.bf16.gmra.mxu0 %v4668
        %v5129 = vpop.f32.mrf.mxu0
        %v5130 = vadd.f32 %v5106, %v5129
        %v5131 = vpop.f32.mrf.mxu0
        %v5132 = vadd.f32 %v5108, %v5131
        %5133 = vmatmul.bf16.gmra.mxu0 %v4672
        %v5134 = vpop.f32.mrf.mxu0
        %v5135 = vadd.f32 %v5111, %v5134
        %v5136 = vpop.f32.mrf.mxu0
        %v5137 = vadd.f32 %v5113, %v5136
        %5138 = vdwg.mxu0
        %5139 = vmatpush.bf16.msra.mxu0 %v4914
        %5140 = vmatpush.bf16.msra.mxu0 %v4912
        %5141 = vmatpush.bf16.msra.mxu0 %v4910
        %5142 = vmatpush.bf16.msra.mxu0 %v4908
        %5143 = vmatpush.bf16.msra.mxu0 %v4906
        %5144 = vmatpush.bf16.msra.mxu0 %v4904
        %5145 = vmatpush.bf16.msra.mxu0 %v4902
        %5146 = vmatpush.bf16.msra.mxu0 %v4900
        %5147 = vmatmul.bf16.gmra.mxu0 %v4665
        %v5148 = vpop.f32.mrf.mxu0
        %v5149 = vadd.f32 %v5125, %v5148
        %v5150 = vpop.f32.mrf.mxu0
        %v5151 = vadd.f32 %v5127, %v5150
        %5152 = vmatmul.bf16.gmra.mxu0 %v4669
        %v5153 = vpop.f32.mrf.mxu0
        %v5154 = vadd.f32 %v5130, %v5153
        %v5155 = vpop.f32.mrf.mxu0
        %v5156 = vadd.f32 %v5132, %v5155
        %5157 = vmatmul.bf16.gmra.mxu0 %v4673
        %v5158 = vpop.f32.mrf.mxu0
        %v5159 = vadd.f32 %v5135, %v5158
        %v5160 = vpop.f32.mrf.mxu0
        %v5161 = vadd.f32 %v5137, %v5160
        %5162 = vdwg.mxu0
        %5163 = vmatpush.bf16.msra.mxu0 %v4930
        %5164 = vmatpush.bf16.msra.mxu0 %v4928
        %5165 = vmatpush.bf16.msra.mxu0 %v4926
        %5166 = vmatpush.bf16.msra.mxu0 %v4924
        %5167 = vmatpush.bf16.msra.mxu0 %v4922
        %5168 = vmatpush.bf16.msra.mxu0 %v4920
        %5169 = vmatpush.bf16.msra.mxu0 %v4918
        %5170 = vmatpush.bf16.msra.mxu0 %v4916
        %5171 = vmatmul.bf16.gmra.mxu0 %v4666
        %v5172 = vpop.f32.mrf.mxu0
        %v5173 = vadd.f32 %v5149, %v5172
        %v5174 = vpop.f32.mrf.mxu0
        %v5175 = vadd.f32 %v5151, %v5174
        %5176 = vmatmul.bf16.gmra.mxu0 %v4670
        %v5177 = vpop.f32.mrf.mxu0
        %v5178 = vadd.f32 %v5154, %v5177
        %v5179 = vpop.f32.mrf.mxu0
        %v5180 = vadd.f32 %v5156, %v5179
        %5181 = vmatmul.bf16.gmra.mxu0 %v4674
        %v5182 = vpop.f32.mrf.mxu0
        %v5183 = vadd.f32 %v5159, %v5182
        %v5184 = vpop.f32.mrf.mxu0
        %v5185 = vadd.f32 %v5161, %v5184
        %5186 = vdwg.mxu0
        %v5187 = vadd.f32 %v4465, %v5077
        %v5188 = vadd.f32 %v4466, %v5173
        %v5189 = vadd.f32 %v4467, %v5079
        %v5190 = vadd.f32 %v4468, %v5175
        %v5191 = vadd.f32 %v4469, %v5082
        %v5192 = vadd.f32 %v4470, %v5178
        %v5193 = vadd.f32 %v4471, %v5084
        %v5194 = vadd.f32 %v4472, %v5180
        %v5195 = vadd.f32 %v4473, %v5087
        %v5196 = vadd.f32 %v4474, %v5183
        %v5197 = vadd.f32 %v4475, %v5089
        %v5198 = vadd.f32 %v4476, %v5185
        %s5199 = scalar_lea.vmem %s4, 96
        %v5200 = vld [vmem:[%s5199] sm:$0xf]
        %v5201 = vld [vmem:[%s5199 + $0x4] sm:$0xf]
        %v5202 = vld [vmem:[%s5199 + $0x8] sm:$0xf]
        %v5203 = vld [vmem:[%s5199 + $0xc] sm:$0xf]
        %v5204 = vld [vmem:[%s5199 + $0x10] sm:$0xf]
        %v5205 = vld [vmem:[%s5199 + $0x14] sm:$0xf]
        %v5212 = vunpack.c.l.b16 %v5200
        %v5213 = vunpack.c.l.b16 %v5201
        %v5214 = vunpack.c.l.b16 %v5202
        %v5215 = vunpack.c.l.b16 %v5203
        %v5216 = vunpack.c.l.b16 %v5204
        %v5217 = vunpack.c.l.b16 %v5205
        %v5218 = vpack.c.b16 %v5213, %v5212
        %v5219 = vpack.c.b16 %v5215, %v5214
        %v5220 = vpack.c.b16 %v5217, %v5216
        %5224 = vmatpush.bf16.msra.mxu0 %v2333
        %5225 = vmatpush.bf16.msra.mxu0 %v2329
        %5226 = vmatpush.bf16.msra.mxu0 %v2325
        %5227 = vmatpush.bf16.msra.mxu0 %v2321
        %5228 = vmatpush.bf16.msra.mxu0 %v2317
        %5229 = vmatpush.bf16.msra.mxu0 %v2313
        %5230 = vmatpush.bf16.msra.mxu0 %v2309
        %5231 = vmatpush.bf16.msra.mxu0 %v2305
        %5232 = vmatmul.bf16.gmra.mxu0 %v5218
        %v5233 = vpop.f32.mrf.mxu0
        %v5234 = vadd.f32 0.0, %v5233
        %v5235 = vpop.f32.mrf.mxu0
        %v5236 = vadd.f32 0.0, %v5235
        %5237 = vmatmul.bf16.gmra.mxu0 %v5219
        %v5238 = vpop.f32.mrf.mxu0
        %v5239 = vadd.f32 0.0, %v5238
        %v5240 = vpop.f32.mrf.mxu0
        %v5241 = vadd.f32 0.0, %v5240
        %5242 = vmatmul.bf16.gmra.mxu0 %v5220
        %v5243 = vpop.f32.mrf.mxu0
        %v5244 = vadd.f32 0.0, %v5243
        %v5245 = vpop.f32.mrf.mxu0
        %v5246 = vadd.f32 0.0, %v5245
        %5247 = vdwg.mxu0
        %5248 = vmatpush.bf16.msra.mxu0 %v2334
        %5249 = vmatpush.bf16.msra.mxu0 %v2330
        %5250 = vmatpush.bf16.msra.mxu0 %v2326
        %5251 = vmatpush.bf16.msra.mxu0 %v2322
        %5252 = vmatpush.bf16.msra.mxu0 %v2318
        %5253 = vmatpush.bf16.msra.mxu0 %v2314
        %5254 = vmatpush.bf16.msra.mxu0 %v2310
        %5255 = vmatpush.bf16.msra.mxu0 %v2306
        %5256 = vmatmul.bf16.gmra.mxu0 %v5218
        %v5257 = vpop.f32.mrf.mxu0
        %v5258 = vadd.f32 0.0, %v5257
        %v5259 = vpop.f32.mrf.mxu0
        %v5260 = vadd.f32 0.0, %v5259
        %5261 = vmatmul.bf16.gmra.mxu0 %v5219
        %v5262 = vpop.f32.mrf.mxu0
        %v5263 = vadd.f32 0.0, %v5262
        %v5264 = vpop.f32.mrf.mxu0
        %v5265 = vadd.f32 0.0, %v5264
        %5266 = vmatmul.bf16.gmra.mxu0 %v5220
        %v5267 = vpop.f32.mrf.mxu0
        %v5268 = vadd.f32 0.0, %v5267
        %v5269 = vpop.f32.mrf.mxu0
        %v5270 = vadd.f32 0.0, %v5269
        %5271 = vdwg.mxu0
        %5272 = vmatpush.bf16.msra.mxu0 %v2335
        %5273 = vmatpush.bf16.msra.mxu0 %v2331
        %5274 = vmatpush.bf16.msra.mxu0 %v2327
        %5275 = vmatpush.bf16.msra.mxu0 %v2323
        %5276 = vmatpush.bf16.msra.mxu0 %v2319
        %5277 = vmatpush.bf16.msra.mxu0 %v2315
        %5278 = vmatpush.bf16.msra.mxu0 %v2311
        %5279 = vmatpush.bf16.msra.mxu0 %v2307
        %5280 = vmatmul.bf16.gmra.mxu0 %v5218
        %v5281 = vpop.f32.mrf.mxu0
        %v5282 = vadd.f32 0.0, %v5281
        %v5283 = vpop.f32.mrf.mxu0
        %v5284 = vadd.f32 0.0, %v5283
        %5285 = vmatmul.bf16.gmra.mxu0 %v5219
        %v5286 = vpop.f32.mrf.mxu0
        %v5287 = vadd.f32 0.0, %v5286
        %v5288 = vpop.f32.mrf.mxu0
        %v5289 = vadd.f32 0.0, %v5288
        %5290 = vmatmul.bf16.gmra.mxu0 %v5220
        %v5291 = vpop.f32.mrf.mxu0
        %v5292 = vadd.f32 0.0, %v5291
        %v5293 = vpop.f32.mrf.mxu0
        %v5294 = vadd.f32 0.0, %v5293
        %5295 = vdwg.mxu0
        %5296 = vmatpush.bf16.msra.mxu0 %v2336
        %5297 = vmatpush.bf16.msra.mxu0 %v2332
        %5298 = vmatpush.bf16.msra.mxu0 %v2328
        %5299 = vmatpush.bf16.msra.mxu0 %v2324
        %5300 = vmatpush.bf16.msra.mxu0 %v2320
        %5301 = vmatpush.bf16.msra.mxu0 %v2316
        %5302 = vmatpush.bf16.msra.mxu0 %v2312
        %5303 = vmatpush.bf16.msra.mxu0 %v2308
        %5304 = vmatmul.bf16.gmra.mxu0 %v5218
        %v5305 = vpop.f32.mrf.mxu0
        %v5306 = vadd.f32 0.0, %v5305
        %v5307 = vpop.f32.mrf.mxu0
        %v5308 = vadd.f32 0.0, %v5307
        %5309 = vmatmul.bf16.gmra.mxu0 %v5219
        %v5310 = vpop.f32.mrf.mxu0
        %v5311 = vadd.f32 0.0, %v5310
        %v5312 = vpop.f32.mrf.mxu0
        %v5313 = vadd.f32 0.0, %v5312
        %5314 = vmatmul.bf16.gmra.mxu0 %v5220
        %v5315 = vpop.f32.mrf.mxu0
        %v5316 = vadd.f32 0.0, %v5315
        %v5317 = vpop.f32.mrf.mxu0
        %v5318 = vadd.f32 0.0, %v5317
        %5319 = vdwg.mxu0
        %s5320 = scalar_lea.vmem %s5, 2048
        %v5321 = vld [vmem:[%s5320] sm:$0xff]
        %v5322 = vld [vmem:[%s5320 + $0x8] sm:$0xff]
        %v5323 = vld [vmem:[%s5320 + $0x10] sm:$0xff]
        %v5324 = vld [vmem:[%s5320 + $0x18] sm:$0xff]
        %v5325 = vld [vmem:[%s5320 + $0x20] sm:$0xff]
        %v5326 = vld [vmem:[%s5320 + $0x28] sm:$0xff]
        %v5327 = vld [vmem:[%s5320 + $0x30] sm:$0xff]
        %v5328 = vld [vmem:[%s5320 + $0x38] sm:$0xff]
        %v5329 = vld [vmem:[%s5320 + $0x40] sm:$0xff]
        %v5330 = vld [vmem:[%s5320 + $0x48] sm:$0xff]
        %v5331 = vld [vmem:[%s5320 + $0x50] sm:$0xff]
        %v5332 = vld [vmem:[%s5320 + $0x58] sm:$0xff]
        %v5333 = vld [vmem:[%s5320 + $0x60] sm:$0xff]
        %v5334 = vld [vmem:[%s5320 + $0x68] sm:$0xff]
        %v5335 = vld [vmem:[%s5320 + $0x70] sm:$0xff]
        %v5336 = vld [vmem:[%s5320 + $0x78] sm:$0xff]
        %v5337 = vld [vmem:[%s5320 + $0x80] sm:$0xff]
        %v5338 = vld [vmem:[%s5320 + $0x88] sm:$0xff]
        %v5339 = vld [vmem:[%s5320 + $0x90] sm:$0xff]
        %v5340 = vld [vmem:[%s5320 + $0x98] sm:$0xff]
        %v5341 = vld [vmem:[%s5320 + $0xa0] sm:$0xff]
        %v5342 = vld [vmem:[%s5320 + $0xa8] sm:$0xff]
        %v5343 = vld [vmem:[%s5320 + $0xb0] sm:$0xff]
        %v5344 = vld [vmem:[%s5320 + $0xb8] sm:$0xff]
        %v5345 = vld [vmem:[%s5320 + $0xc0] sm:$0xff]
        %v5346 = vld [vmem:[%s5320 + $0xc8] sm:$0xff]
        %v5347 = vld [vmem:[%s5320 + $0xd0] sm:$0xff]
        %v5348 = vld [vmem:[%s5320 + $0xd8] sm:$0xff]
        %v5349 = vld [vmem:[%s5320 + $0xe0] sm:$0xff]
        %v5350 = vld [vmem:[%s5320 + $0xe8] sm:$0xff]
        %v5351 = vld [vmem:[%s5320 + $0xf0] sm:$0xff]
        %v5352 = vld [vmem:[%s5320 + $0xf8] sm:$0xff]
        %v5353 = vld [vmem:[%s5320 + $0x100] sm:$0xff]
        %v5354 = vld [vmem:[%s5320 + $0x108] sm:$0xff]
        %v5355 = vld [vmem:[%s5320 + $0x110] sm:$0xff]
        %v5356 = vld [vmem:[%s5320 + $0x118] sm:$0xff]
        %v5357 = vld [vmem:[%s5320 + $0x120] sm:$0xff]
        %v5358 = vld [vmem:[%s5320 + $0x128] sm:$0xff]
        %v5359 = vld [vmem:[%s5320 + $0x130] sm:$0xff]
        %v5360 = vld [vmem:[%s5320 + $0x138] sm:$0xff]
        %v5361 = vld [vmem:[%s5320 + $0x140] sm:$0xff]
        %v5362 = vld [vmem:[%s5320 + $0x148] sm:$0xff]
        %v5363 = vld [vmem:[%s5320 + $0x150] sm:$0xff]
        %v5364 = vld [vmem:[%s5320 + $0x158] sm:$0xff]
        %v5365 = vld [vmem:[%s5320 + $0x160] sm:$0xff]
        %v5366 = vld [vmem:[%s5320 + $0x168] sm:$0xff]
        %v5367 = vld [vmem:[%s5320 + $0x170] sm:$0xff]
        %v5368 = vld [vmem:[%s5320 + $0x178] sm:$0xff]
        %v5369 = vld [vmem:[%s5320 + $0x180] sm:$0xff]
        %v5370 = vld [vmem:[%s5320 + $0x188] sm:$0xff]
        %v5371 = vld [vmem:[%s5320 + $0x190] sm:$0xff]
        %v5372 = vld [vmem:[%s5320 + $0x198] sm:$0xff]
        %v5373 = vld [vmem:[%s5320 + $0x1a0] sm:$0xff]
        %v5374 = vld [vmem:[%s5320 + $0x1a8] sm:$0xff]
        %v5375 = vld [vmem:[%s5320 + $0x1b0] sm:$0xff]
        %v5376 = vld [vmem:[%s5320 + $0x1b8] sm:$0xff]
        %v5377 = vld [vmem:[%s5320 + $0x1c0] sm:$0xff]
        %v5378 = vld [vmem:[%s5320 + $0x1c8] sm:$0xff]
        %v5379 = vld [vmem:[%s5320 + $0x1d0] sm:$0xff]
        %v5380 = vld [vmem:[%s5320 + $0x1d8] sm:$0xff]
        %v5381 = vld [vmem:[%s5320 + $0x1e0] sm:$0xff]
        %v5382 = vld [vmem:[%s5320 + $0x1e8] sm:$0xff]
        %v5383 = vld [vmem:[%s5320 + $0x1f0] sm:$0xff]
        %v5384 = vld [vmem:[%s5320 + $0x1f8] sm:$0xff]
        %v5385 = vpack.c.bf16 %v5236, %v5234
        %v5386 = vpack.c.bf16 %v5260, %v5258
        %v5387 = vpack.c.bf16 %v5284, %v5282
        %v5388 = vpack.c.bf16 %v5308, %v5306
        %v5389 = vpack.c.bf16 %v5241, %v5239
        %v5390 = vpack.c.bf16 %v5265, %v5263
        %v5391 = vpack.c.bf16 %v5289, %v5287
        %v5392 = vpack.c.bf16 %v5313, %v5311
        %v5393 = vpack.c.bf16 %v5246, %v5244
        %v5394 = vpack.c.bf16 %v5270, %v5268
        %v5395 = vpack.c.bf16 %v5294, %v5292
        %v5396 = vpack.c.bf16 %v5318, %v5316
        %v5461 = vunpack.c.l.b16 %v5321
        %v5462 = vunpack.c.h.b16 %v5321
        %v5463 = vunpack.c.l.b16 %v5322
        %v5464 = vunpack.c.h.b16 %v5322
        %v5465 = vunpack.c.l.b16 %v5323
        %v5466 = vunpack.c.h.b16 %v5323
        %v5467 = vunpack.c.l.b16 %v5324
        %v5468 = vunpack.c.h.b16 %v5324
        %v5469 = vunpack.c.l.b16 %v5325
        %v5470 = vunpack.c.h.b16 %v5325
        %v5471 = vunpack.c.l.b16 %v5326
        %v5472 = vunpack.c.h.b16 %v5326
        %v5473 = vunpack.c.l.b16 %v5327
        %v5474 = vunpack.c.h.b16 %v5327
        %v5475 = vunpack.c.l.b16 %v5328
        %v5476 = vunpack.c.h.b16 %v5328
        %v5477 = vunpack.c.l.b16 %v5329
        %v5478 = vunpack.c.h.b16 %v5329
        %v5479 = vunpack.c.l.b16 %v5330
        %v5480 = vunpack.c.h.b16 %v5330
        %v5481 = vunpack.c.l.b16 %v5331
        %v5482 = vunpack.c.h.b16 %v5331
        %v5483 = vunpack.c.l.b16 %v5332
        %v5484 = vunpack.c.h.b16 %v5332
        %v5485 = vunpack.c.l.b16 %v5333
        %v5486 = vunpack.c.h.b16 %v5333
        %v5487 = vunpack.c.l.b16 %v5334
        %v5488 = vunpack.c.h.b16 %v5334
        %v5489 = vunpack.c.l.b16 %v5335
        %v5490 = vunpack.c.h.b16 %v5335
        %v5491 = vunpack.c.l.b16 %v5336
        %v5492 = vunpack.c.h.b16 %v5336
        %v5493 = vunpack.c.l.b16 %v5337
        %v5494 = vunpack.c.h.b16 %v5337
        %v5495 = vunpack.c.l.b16 %v5338
        %v5496 = vunpack.c.h.b16 %v5338
        %v5497 = vunpack.c.l.b16 %v5339
        %v5498 = vunpack.c.h.b16 %v5339
        %v5499 = vunpack.c.l.b16 %v5340
        %v5500 = vunpack.c.h.b16 %v5340
        %v5501 = vunpack.c.l.b16 %v5341
        %v5502 = vunpack.c.h.b16 %v5341
        %v5503 = vunpack.c.l.b16 %v5342
        %v5504 = vunpack.c.h.b16 %v5342
        %v5505 = vunpack.c.l.b16 %v5343
        %v5506 = vunpack.c.h.b16 %v5343
        %v5507 = vunpack.c.l.b16 %v5344
        %v5508 = vunpack.c.h.b16 %v5344
        %v5509 = vunpack.c.l.b16 %v5345
        %v5510 = vunpack.c.h.b16 %v5345
        %v5511 = vunpack.c.l.b16 %v5346
        %v5512 = vunpack.c.h.b16 %v5346
        %v5513 = vunpack.c.l.b16 %v5347
        %v5514 = vunpack.c.h.b16 %v5347
        %v5515 = vunpack.c.l.b16 %v5348
        %v5516 = vunpack.c.h.b16 %v5348
        %v5517 = vunpack.c.l.b16 %v5349
        %v5518 = vunpack.c.h.b16 %v5349
        %v5519 = vunpack.c.l.b16 %v5350
        %v5520 = vunpack.c.h.b16 %v5350
        %v5521 = vunpack.c.l.b16 %v5351
        %v5522 = vunpack.c.h.b16 %v5351
        %v5523 = vunpack.c.l.b16 %v5352
        %v5524 = vunpack.c.h.b16 %v5352
        %v5525 = vunpack.c.l.b16 %v5353
        %v5526 = vunpack.c.h.b16 %v5353
        %v5527 = vunpack.c.l.b16 %v5354
        %v5528 = vunpack.c.h.b16 %v5354
        %v5529 = vunpack.c.l.b16 %v5355
        %v5530 = vunpack.c.h.b16 %v5355
        %v5531 = vunpack.c.l.b16 %v5356
        %v5532 = vunpack.c.h.b16 %v5356
        %v5533 = vunpack.c.l.b16 %v5357
        %v5534 = vunpack.c.h.b16 %v5357
        %v5535 = vunpack.c.l.b16 %v5358
        %v5536 = vunpack.c.h.b16 %v5358
        %v5537 = vunpack.c.l.b16 %v5359
        %v5538 = vunpack.c.h.b16 %v5359
        %v5539 = vunpack.c.l.b16 %v5360
        %v5540 = vunpack.c.h.b16 %v5360
        %v5541 = vunpack.c.l.b16 %v5361
        %v5542 = vunpack.c.h.b16 %v5361
        %v5543 = vunpack.c.l.b16 %v5362
        %v5544 = vunpack.c.h.b16 %v5362
        %v5545 = vunpack.c.l.b16 %v5363
        %v5546 = vunpack.c.h.b16 %v5363
        %v5547 = vunpack.c.l.b16 %v5364
        %v5548 = vunpack.c.h.b16 %v5364
        %v5549 = vunpack.c.l.b16 %v5365
        %v5550 = vunpack.c.h.b16 %v5365
        %v5551 = vunpack.c.l.b16 %v5366
        %v5552 = vunpack.c.h.b16 %v5366
        %v5553 = vunpack.c.l.b16 %v5367
        %v5554 = vunpack.c.h.b16 %v5367
        %v5555 = vunpack.c.l.b16 %v5368
        %v5556 = vunpack.c.h.b16 %v5368
        %v5557 = vunpack.c.l.b16 %v5369
        %v5558 = vunpack.c.h.b16 %v5369
        %v5559 = vunpack.c.l.b16 %v5370
        %v5560 = vunpack.c.h.b16 %v5370
        %v5561 = vunpack.c.l.b16 %v5371
        %v5562 = vunpack.c.h.b16 %v5371
        %v5563 = vunpack.c.l.b16 %v5372
        %v5564 = vunpack.c.h.b16 %v5372
        %v5565 = vunpack.c.l.b16 %v5373
        %v5566 = vunpack.c.h.b16 %v5373
        %v5567 = vunpack.c.l.b16 %v5374
        %v5568 = vunpack.c.h.b16 %v5374
        %v5569 = vunpack.c.l.b16 %v5375
        %v5570 = vunpack.c.h.b16 %v5375
        %v5571 = vunpack.c.l.b16 %v5376
        %v5572 = vunpack.c.h.b16 %v5376
        %v5573 = vunpack.c.l.b16 %v5377
        %v5574 = vunpack.c.h.b16 %v5377
        %v5575 = vunpack.c.l.b16 %v5378
        %v5576 = vunpack.c.h.b16 %v5378
        %v5577 = vunpack.c.l.b16 %v5379
        %v5578 = vunpack.c.h.b16 %v5379
        %v5579 = vunpack.c.l.b16 %v5380
        %v5580 = vunpack.c.h.b16 %v5380
        %v5581 = vunpack.c.l.b16 %v5381
        %v5582 = vunpack.c.h.b16 %v5381
        %v5583 = vunpack.c.l.b16 %v5382
        %v5584 = vunpack.c.h.b16 %v5382
        %v5585 = vunpack.c.l.b16 %v5383
        %v5586 = vunpack.c.h.b16 %v5383
        %v5587 = vunpack.c.l.b16 %v5384
        %v5588 = vunpack.c.h.b16 %v5384
        %v5589 = vpack.c.b16 %v5463, %v5461
        %v5590 = vpack.c.b16 %v5464, %v5462
        %v5591 = vpack.c.b16 %v5467, %v5465
        %v5592 = vpack.c.b16 %v5468, %v5466
        %v5593 = vpack.c.b16 %v5471, %v5469
        %v5594 = vpack.c.b16 %v5472, %v5470
        %v5595 = vpack.c.b16 %v5475, %v5473
        %v5596 = vpack.c.b16 %v5476, %v5474
        %v5597 = vpack.c.b16 %v5479, %v5477
        %v5598 = vpack.c.b16 %v5480, %v5478
        %v5599 = vpack.c.b16 %v5483, %v5481
        %v5600 = vpack.c.b16 %v5484, %v5482
        %v5601 = vpack.c.b16 %v5487, %v5485
        %v5602 = vpack.c.b16 %v5488, %v5486
        %v5603 = vpack.c.b16 %v5491, %v5489
        %v5604 = vpack.c.b16 %v5492, %v5490
        %v5605 = vpack.c.b16 %v5495, %v5493
        %v5606 = vpack.c.b16 %v5496, %v5494
        %v5607 = vpack.c.b16 %v5499, %v5497
        %v5608 = vpack.c.b16 %v5500, %v5498
        %v5609 = vpack.c.b16 %v5503, %v5501
        %v5610 = vpack.c.b16 %v5504, %v5502
        %v5611 = vpack.c.b16 %v5507, %v5505
        %v5612 = vpack.c.b16 %v5508, %v5506
        %v5613 = vpack.c.b16 %v5511, %v5509
        %v5614 = vpack.c.b16 %v5512, %v5510
        %v5615 = vpack.c.b16 %v5515, %v5513
        %v5616 = vpack.c.b16 %v5516, %v5514
        %v5617 = vpack.c.b16 %v5519, %v5517
        %v5618 = vpack.c.b16 %v5520, %v5518
        %v5619 = vpack.c.b16 %v5523, %v5521
        %v5620 = vpack.c.b16 %v5524, %v5522
        %v5621 = vpack.c.b16 %v5527, %v5525
        %v5622 = vpack.c.b16 %v5528, %v5526
        %v5623 = vpack.c.b16 %v5531, %v5529
        %v5624 = vpack.c.b16 %v5532, %v5530
        %v5625 = vpack.c.b16 %v5535, %v5533
        %v5626 = vpack.c.b16 %v5536, %v5534
        %v5627 = vpack.c.b16 %v5539, %v5537
        %v5628 = vpack.c.b16 %v5540, %v5538
        %v5629 = vpack.c.b16 %v5543, %v5541
        %v5630 = vpack.c.b16 %v5544, %v5542
        %v5631 = vpack.c.b16 %v5547, %v5545
        %v5632 = vpack.c.b16 %v5548, %v5546
        %v5633 = vpack.c.b16 %v5551, %v5549
        %v5634 = vpack.c.b16 %v5552, %v5550
        %v5635 = vpack.c.b16 %v5555, %v5553
        %v5636 = vpack.c.b16 %v5556, %v5554
        %v5637 = vpack.c.b16 %v5559, %v5557
        %v5638 = vpack.c.b16 %v5560, %v5558
        %v5639 = vpack.c.b16 %v5563, %v5561
        %v5640 = vpack.c.b16 %v5564, %v5562
        %v5641 = vpack.c.b16 %v5567, %v5565
        %v5642 = vpack.c.b16 %v5568, %v5566
        %v5643 = vpack.c.b16 %v5571, %v5569
        %v5644 = vpack.c.b16 %v5572, %v5570
        %v5645 = vpack.c.b16 %v5575, %v5573
        %v5646 = vpack.c.b16 %v5576, %v5574
        %v5647 = vpack.c.b16 %v5579, %v5577
        %v5648 = vpack.c.b16 %v5580, %v5578
        %v5649 = vpack.c.b16 %v5583, %v5581
        %v5650 = vpack.c.b16 %v5584, %v5582
        %v5651 = vpack.c.b16 %v5587, %v5585
        %v5652 = vpack.c.b16 %v5588, %v5586
        %5717 = vmatpush.bf16.msra.mxu0 %v5603
        %5718 = vmatpush.bf16.msra.mxu0 %v5601
        %5719 = vmatpush.bf16.msra.mxu0 %v5599
        %5720 = vmatpush.bf16.msra.mxu0 %v5597
        %5721 = vmatpush.bf16.msra.mxu0 %v5595
        %5722 = vmatpush.bf16.msra.mxu0 %v5593
        %5723 = vmatpush.bf16.msra.mxu0 %v5591
        %5724 = vmatpush.bf16.msra.mxu0 %v5589
        %5725 = vmatmul.bf16.gmra.mxu0 %v5385
        %v5726 = vpop.f32.mrf.mxu0
        %v5727 = vadd.f32 0.0, %v5726
        %v5728 = vpop.f32.mrf.mxu0
        %v5729 = vadd.f32 0.0, %v5728
        %5730 = vmatmul.bf16.gmra.mxu0 %v5389
        %v5731 = vpop.f32.mrf.mxu0
        %v5732 = vadd.f32 0.0, %v5731
        %v5733 = vpop.f32.mrf.mxu0
        %v5734 = vadd.f32 0.0, %v5733
        %5735 = vmatmul.bf16.gmra.mxu0 %v5393
        %v5736 = vpop.f32.mrf.mxu0
        %v5737 = vadd.f32 0.0, %v5736
        %v5738 = vpop.f32.mrf.mxu0
        %v5739 = vadd.f32 0.0, %v5738
        %5740 = vdwg.mxu0
        %5741 = vmatpush.bf16.msra.mxu0 %v5619
        %5742 = vmatpush.bf16.msra.mxu0 %v5617
        %5743 = vmatpush.bf16.msra.mxu0 %v5615
        %5744 = vmatpush.bf16.msra.mxu0 %v5613
        %5745 = vmatpush.bf16.msra.mxu0 %v5611
        %5746 = vmatpush.bf16.msra.mxu0 %v5609
        %5747 = vmatpush.bf16.msra.mxu0 %v5607
        %5748 = vmatpush.bf16.msra.mxu0 %v5605
        %5749 = vmatmul.bf16.gmra.mxu0 %v5386
        %v5750 = vpop.f32.mrf.mxu0
        %v5751 = vadd.f32 %v5727, %v5750
        %v5752 = vpop.f32.mrf.mxu0
        %v5753 = vadd.f32 %v5729, %v5752
        %5754 = vmatmul.bf16.gmra.mxu0 %v5390
        %v5755 = vpop.f32.mrf.mxu0
        %v5756 = vadd.f32 %v5732, %v5755
        %v5757 = vpop.f32.mrf.mxu0
        %v5758 = vadd.f32 %v5734, %v5757
        %5759 = vmatmul.bf16.gmra.mxu0 %v5394
        %v5760 = vpop.f32.mrf.mxu0
        %v5761 = vadd.f32 %v5737, %v5760
        %v5762 = vpop.f32.mrf.mxu0
        %v5763 = vadd.f32 %v5739, %v5762
        %5764 = vdwg.mxu0
        %5765 = vmatpush.bf16.msra.mxu0 %v5635
        %5766 = vmatpush.bf16.msra.mxu0 %v5633
        %5767 = vmatpush.bf16.msra.mxu0 %v5631
        %5768 = vmatpush.bf16.msra.mxu0 %v5629
        %5769 = vmatpush.bf16.msra.mxu0 %v5627
        %5770 = vmatpush.bf16.msra.mxu0 %v5625
        %5771 = vmatpush.bf16.msra.mxu0 %v5623
        %5772 = vmatpush.bf16.msra.mxu0 %v5621
        %5773 = vmatmul.bf16.gmra.mxu0 %v5387
        %v5774 = vpop.f32.mrf.mxu0
        %v5775 = vadd.f32 %v5751, %v5774
        %v5776 = vpop.f32.mrf.mxu0
        %v5777 = vadd.f32 %v5753, %v5776
        %5778 = vmatmul.bf16.gmra.mxu0 %v5391
        %v5779 = vpop.f32.mrf.mxu0
        %v5780 = vadd.f32 %v5756, %v5779
        %v5781 = vpop.f32.mrf.mxu0
        %v5782 = vadd.f32 %v5758, %v5781
        %5783 = vmatmul.bf16.gmra.mxu0 %v5395
        %v5784 = vpop.f32.mrf.mxu0
        %v5785 = vadd.f32 %v5761, %v5784
        %v5786 = vpop.f32.mrf.mxu0
        %v5787 = vadd.f32 %v5763, %v5786
        %5788 = vdwg.mxu0
        %5789 = vmatpush.bf16.msra.mxu0 %v5651
        %5790 = vmatpush.bf16.msra.mxu0 %v5649
        %5791 = vmatpush.bf16.msra.mxu0 %v5647
        %5792 = vmatpush.bf16.msra.mxu0 %v5645
        %5793 = vmatpush.bf16.msra.mxu0 %v5643
        %5794 = vmatpush.bf16.msra.mxu0 %v5641
        %5795 = vmatpush.bf16.msra.mxu0 %v5639
        %5796 = vmatpush.bf16.msra.mxu0 %v5637
        %5797 = vmatmul.bf16.gmra.mxu0 %v5388
        %v5798 = vpop.f32.mrf.mxu0
        %v5799 = vadd.f32 %v5775, %v5798
        %v5800 = vpop.f32.mrf.mxu0
        %v5801 = vadd.f32 %v5777, %v5800
        %5802 = vmatmul.bf16.gmra.mxu0 %v5392
        %v5803 = vpop.f32.mrf.mxu0
        %v5804 = vadd.f32 %v5780, %v5803
        %v5805 = vpop.f32.mrf.mxu0
        %v5806 = vadd.f32 %v5782, %v5805
        %5807 = vmatmul.bf16.gmra.mxu0 %v5396
        %v5808 = vpop.f32.mrf.mxu0
        %v5809 = vadd.f32 %v5785, %v5808
        %v5810 = vpop.f32.mrf.mxu0
        %v5811 = vadd.f32 %v5787, %v5810
        %5812 = vdwg.mxu0
        %5813 = vmatpush.bf16.msra.mxu0 %v5604
        %5814 = vmatpush.bf16.msra.mxu0 %v5602
        %5815 = vmatpush.bf16.msra.mxu0 %v5600
        %5816 = vmatpush.bf16.msra.mxu0 %v5598
        %5817 = vmatpush.bf16.msra.mxu0 %v5596
        %5818 = vmatpush.bf16.msra.mxu0 %v5594
        %5819 = vmatpush.bf16.msra.mxu0 %v5592
        %5820 = vmatpush.bf16.msra.mxu0 %v5590
        %5821 = vmatmul.bf16.gmra.mxu0 %v5385
        %v5822 = vpop.f32.mrf.mxu0
        %v5823 = vadd.f32 0.0, %v5822
        %v5824 = vpop.f32.mrf.mxu0
        %v5825 = vadd.f32 0.0, %v5824
        %5826 = vmatmul.bf16.gmra.mxu0 %v5389
        %v5827 = vpop.f32.mrf.mxu0
        %v5828 = vadd.f32 0.0, %v5827
        %v5829 = vpop.f32.mrf.mxu0
        %v5830 = vadd.f32 0.0, %v5829
        %5831 = vmatmul.bf16.gmra.mxu0 %v5393
        %v5832 = vpop.f32.mrf.mxu0
        %v5833 = vadd.f32 0.0, %v5832
        %v5834 = vpop.f32.mrf.mxu0
        %v5835 = vadd.f32 0.0, %v5834
        %5836 = vdwg.mxu0
        %5837 = vmatpush.bf16.msra.mxu0 %v5620
        %5838 = vmatpush.bf16.msra.mxu0 %v5618
        %5839 = vmatpush.bf16.msra.mxu0 %v5616
        %5840 = vmatpush.bf16.msra.mxu0 %v5614
        %5841 = vmatpush.bf16.msra.mxu0 %v5612
        %5842 = vmatpush.bf16.msra.mxu0 %v5610
        %5843 = vmatpush.bf16.msra.mxu0 %v5608
        %5844 = vmatpush.bf16.msra.mxu0 %v5606
        %5845 = vmatmul.bf16.gmra.mxu0 %v5386
        %v5846 = vpop.f32.mrf.mxu0
        %v5847 = vadd.f32 %v5823, %v5846
        %v5848 = vpop.f32.mrf.mxu0
        %v5849 = vadd.f32 %v5825, %v5848
        %5850 = vmatmul.bf16.gmra.mxu0 %v5390
        %v5851 = vpop.f32.mrf.mxu0
        %v5852 = vadd.f32 %v5828, %v5851
        %v5853 = vpop.f32.mrf.mxu0
        %v5854 = vadd.f32 %v5830, %v5853
        %5855 = vmatmul.bf16.gmra.mxu0 %v5394
        %v5856 = vpop.f32.mrf.mxu0
        %v5857 = vadd.f32 %v5833, %v5856
        %v5858 = vpop.f32.mrf.mxu0
        %v5859 = vadd.f32 %v5835, %v5858
        %5860 = vdwg.mxu0
        %5861 = vmatpush.bf16.msra.mxu0 %v5636
        %5862 = vmatpush.bf16.msra.mxu0 %v5634
        %5863 = vmatpush.bf16.msra.mxu0 %v5632
        %5864 = vmatpush.bf16.msra.mxu0 %v5630
        %5865 = vmatpush.bf16.msra.mxu0 %v5628
        %5866 = vmatpush.bf16.msra.mxu0 %v5626
        %5867 = vmatpush.bf16.msra.mxu0 %v5624
        %5868 = vmatpush.bf16.msra.mxu0 %v5622
        %5869 = vmatmul.bf16.gmra.mxu0 %v5387
        %v5870 = vpop.f32.mrf.mxu0
        %v5871 = vadd.f32 %v5847, %v5870
        %v5872 = vpop.f32.mrf.mxu0
        %v5873 = vadd.f32 %v5849, %v5872
        %5874 = vmatmul.bf16.gmra.mxu0 %v5391
        %v5875 = vpop.f32.mrf.mxu0
        %v5876 = vadd.f32 %v5852, %v5875
        %v5877 = vpop.f32.mrf.mxu0
        %v5878 = vadd.f32 %v5854, %v5877
        %5879 = vmatmul.bf16.gmra.mxu0 %v5395
        %v5880 = vpop.f32.mrf.mxu0
        %v5881 = vadd.f32 %v5857, %v5880
        %v5882 = vpop.f32.mrf.mxu0
        %v5883 = vadd.f32 %v5859, %v5882
        %5884 = vdwg.mxu0
        %5885 = vmatpush.bf16.msra.mxu0 %v5652
        %5886 = vmatpush.bf16.msra.mxu0 %v5650
        %5887 = vmatpush.bf16.msra.mxu0 %v5648
        %5888 = vmatpush.bf16.msra.mxu0 %v5646
        %5889 = vmatpush.bf16.msra.mxu0 %v5644
        %5890 = vmatpush.bf16.msra.mxu0 %v5642
        %5891 = vmatpush.bf16.msra.mxu0 %v5640
        %5892 = vmatpush.bf16.msra.mxu0 %v5638
        %5893 = vmatmul.bf16.gmra.mxu0 %v5388
        %v5894 = vpop.f32.mrf.mxu0
        %v5895 = vadd.f32 %v5871, %v5894
        %v5896 = vpop.f32.mrf.mxu0
        %v5897 = vadd.f32 %v5873, %v5896
        %5898 = vmatmul.bf16.gmra.mxu0 %v5392
        %v5899 = vpop.f32.mrf.mxu0
        %v5900 = vadd.f32 %v5876, %v5899
        %v5901 = vpop.f32.mrf.mxu0
        %v5902 = vadd.f32 %v5878, %v5901
        %5903 = vmatmul.bf16.gmra.mxu0 %v5396
        %v5904 = vpop.f32.mrf.mxu0
        %v5905 = vadd.f32 %v5881, %v5904
        %v5906 = vpop.f32.mrf.mxu0
        %v5907 = vadd.f32 %v5883, %v5906
        %5908 = vdwg.mxu0
        %v5909 = vadd.f32 %v5187, %v5799
        %v5910 = vadd.f32 %v5188, %v5895
        %v5911 = vadd.f32 %v5189, %v5801
        %v5912 = vadd.f32 %v5190, %v5897
        %v5913 = vadd.f32 %v5191, %v5804
        %v5914 = vadd.f32 %v5192, %v5900
        %v5915 = vadd.f32 %v5193, %v5806
        %v5916 = vadd.f32 %v5194, %v5902
        %v5917 = vadd.f32 %v5195, %v5809
        %v5918 = vadd.f32 %v5196, %v5905
        %v5919 = vadd.f32 %v5197, %v5811
        %v5920 = vadd.f32 %v5198, %v5907
        %v5921 = vld [vmem:[%s6] sm:$0x3]
        %v5923 = vperm.slane %v5921, 0
        %v5924 = vperm.slane %v5921, 1
        %v5927 = vadd.f32 %v5909, %v5923
        %v5928 = vadd.f32 %v5910, %v5924
        %v5929 = vadd.f32 %v5911, %v5923
        %v5930 = vadd.f32 %v5912, %v5924
        %v5931 = vadd.f32 %v5913, %v5923
        %v5932 = vadd.f32 %v5914, %v5924
        %v5933 = vadd.f32 %v5915, %v5923
        %v5934 = vadd.f32 %v5916, %v5924
        %v5935 = vadd.f32 %v5917, %v5923
        %v5936 = vadd.f32 %v5918, %v5924
        %v5937 = vadd.f32 %v5919, %v5923
        %v5938 = vadd.f32 %v5920, %v5924
        %vm5939 = vcmp.gt.f32.partialorder %v5927, 0.0
        %vm5940 = vcmp.gt.f32.partialorder %v5928, 0.0
        %vm5941 = vcmp.gt.f32.partialorder %v5929, 0.0
        %vm5942 = vcmp.gt.f32.partialorder %v5930, 0.0
        %vm5943 = vcmp.gt.f32.partialorder %v5931, 0.0
        %vm5944 = vcmp.gt.f32.partialorder %v5932, 0.0
        %vm5945 = vcmp.gt.f32.partialorder %v5933, 0.0
        %vm5946 = vcmp.gt.f32.partialorder %v5934, 0.0
        %vm5947 = vcmp.gt.f32.partialorder %v5935, 0.0
        %vm5948 = vcmp.gt.f32.partialorder %v5936, 0.0
        %vm5949 = vcmp.gt.f32.partialorder %v5937, 0.0
        %vm5950 = vcmp.gt.f32.partialorder %v5938, 0.0
        %v5951 = vmul.f32 %v5927, 0.01
        %v5952 = vmul.f32 %v5928, 0.01
        %v5953 = vmul.f32 %v5929, 0.01
        %v5954 = vmul.f32 %v5930, 0.01
        %v5955 = vmul.f32 %v5931, 0.01
        %v5956 = vmul.f32 %v5932, 0.01
        %v5957 = vmul.f32 %v5933, 0.01
        %v5958 = vmul.f32 %v5934, 0.01
        %v5959 = vmul.f32 %v5935, 0.01
        %v5960 = vmul.f32 %v5936, 0.01
        %v5961 = vmul.f32 %v5937, 0.01
        %v5962 = vmul.f32 %v5938, 0.01
        %v5963 = vsel %vm5939, %v5927, %v5951
        %v5964 = vsel %vm5940, %v5928, %v5952
        %v5965 = vsel %vm5941, %v5929, %v5953
        %v5966 = vsel %vm5942, %v5930, %v5954
        %v5967 = vsel %vm5943, %v5931, %v5955
        %v5968 = vsel %vm5944, %v5932, %v5956
        %v5969 = vsel %vm5945, %v5933, %v5957
        %v5970 = vsel %vm5946, %v5934, %v5958
        %v5971 = vsel %vm5947, %v5935, %v5959
        %v5972 = vsel %vm5948, %v5936, %v5960
        %v5973 = vsel %vm5949, %v5937, %v5961
        %v5974 = vsel %vm5950, %v5938, %v5962
        %v5975 = vld [vmem:[%s9] sm:$0x1]
        %v5976 = vld [vmem:[%s730] sm:$0xff]
        %v5977 = vld [vmem:[%s8] sm:$0x1]
        %5979 = vset.pattern.permute.xlu0 0
        %5980 = vperm.xlu0 %5979, %v5976
        %v5981 = vpop.permute.xlu0 %5980
        %v5984 = vperm.slane %v5977, 0
        %v5986 = vmul.f32 %v5981, %v5984
        %v5988 = vperm.slane %v5975, 0
        %v5990 = vadd.f32 %v5988, %v5986
        %v5991 = vld [vmem:[%s7] sm:$0xf]
        %v5992 = vld [vmem:[%s7 + $0x4] sm:$0xf]
        %v5993 = vld [vmem:[%s7 + $0x8] sm:$0xf]
        %v5994 = vld [vmem:[%s7 + $0xc] sm:$0xf]
        %v5995 = vld [vmem:[%s7 + $0x10] sm:$0xf]
        %v5996 = vld [vmem:[%s7 + $0x14] sm:$0xf]
        %v5997 = vld [vmem:[%s7 + $0x18] sm:$0xf]
        %v5998 = vld [vmem:[%s7 + $0x1c] sm:$0xf]
        %v5999 = vld [vmem:[%s7 + $0x20] sm:$0xf]
        %v6000 = vld [vmem:[%s7 + $0x24] sm:$0xf]
        %v6001 = vld [vmem:[%s7 + $0x28] sm:$0xf]
        %v6002 = vld [vmem:[%s7 + $0x2c] sm:$0xf]
        %v6003 = vld [vmem:[%s7 + $0x30] sm:$0xf]
        %v6004 = vld [vmem:[%s7 + $0x34] sm:$0xf]
        %v6005 = vld [vmem:[%s7 + $0x38] sm:$0xf]
        %v6006 = vld [vmem:[%s7 + $0x3c] sm:$0xf]
        %v6007 = vld [vmem:[%s7 + $0x40] sm:$0xf]
        %v6008 = vld [vmem:[%s7 + $0x44] sm:$0xf]
        %v6009 = vld [vmem:[%s7 + $0x48] sm:$0xf]
        %v6010 = vld [vmem:[%s7 + $0x4c] sm:$0xf]
        %v6011 = vld [vmem:[%s7 + $0x50] sm:$0xf]
        %v6012 = vld [vmem:[%s7 + $0x54] sm:$0xf]
        %v6013 = vld [vmem:[%s7 + $0x58] sm:$0xf]
        %v6014 = vld [vmem:[%s7 + $0x5c] sm:$0xf]
        %v6015 = vld [vmem:[%s7 + $0x60] sm:$0xf]
        %v6016 = vld [vmem:[%s7 + $0x64] sm:$0xf]
        %v6017 = vld [vmem:[%s7 + $0x68] sm:$0xf]
        %v6018 = vld [vmem:[%s7 + $0x6c] sm:$0xf]
        %v6019 = vld [vmem:[%s7 + $0x70] sm:$0xf]
        %v6020 = vld [vmem:[%s7 + $0x74] sm:$0xf]
        %v6021 = vld [vmem:[%s7 + $0x78] sm:$0xf]
        %v6022 = vld [vmem:[%s7 + $0x7c] sm:$0xf]
        %v6023 = vpack.c.bf16 %v5963, %v5963
        %v6024 = vpack.c.bf16 %v5964, %v5964
        %v6057 = vunpack.c.l.b16 %v5991
        %v6058 = vunpack.c.l.b16 %v5992
        %v6059 = vunpack.c.l.b16 %v5993
        %v6060 = vunpack.c.l.b16 %v5994
        %v6061 = vunpack.c.l.b16 %v5995
        %v6062 = vunpack.c.l.b16 %v5996
        %v6063 = vunpack.c.l.b16 %v5997
        %v6064 = vunpack.c.l.b16 %v5998
        %v6065 = vunpack.c.l.b16 %v5999
        %v6066 = vunpack.c.l.b16 %v6000
        %v6067 = vunpack.c.l.b16 %v6001
        %v6068 = vunpack.c.l.b16 %v6002
        %v6069 = vunpack.c.l.b16 %v6003
        %v6070 = vunpack.c.l.b16 %v6004
        %v6071 = vunpack.c.l.b16 %v6005
        %v6072 = vunpack.c.l.b16 %v6006
        %v6073 = vunpack.c.l.b16 %v6007
        %v6074 = vunpack.c.l.b16 %v6008
        %v6075 = vunpack.c.l.b16 %v6009
        %v6076 = vunpack.c.l.b16 %v6010
        %v6077 = vunpack.c.l.b16 %v6011
        %v6078 = vunpack.c.l.b16 %v6012
        %v6079 = vunpack.c.l.b16 %v6013
        %v6080 = vunpack.c.l.b16 %v6014
        %v6081 = vunpack.c.l.b16 %v6015
        %v6082 = vunpack.c.l.b16 %v6016
        %v6083 = vunpack.c.l.b16 %v6017
        %v6084 = vunpack.c.l.b16 %v6018
        %v6085 = vunpack.c.l.b16 %v6019
        %v6086 = vunpack.c.l.b16 %v6020
        %v6087 = vunpack.c.l.b16 %v6021
        %v6088 = vunpack.c.l.b16 %v6022
        %v6089 = vpack.c.b16 %v6058, %v6057
        %v6090 = vpack.c.b16 %v6060, %v6059
        %v6091 = vpack.c.b16 %v6062, %v6061
        %v6092 = vpack.c.b16 %v6064, %v6063
        %v6093 = vpack.c.b16 %v6066, %v6065
        %v6094 = vpack.c.b16 %v6068, %v6067
        %v6095 = vpack.c.b16 %v6070, %v6069
        %v6096 = vpack.c.b16 %v6072, %v6071
        %v6097 = vpack.c.b16 %v6074, %v6073
        %v6098 = vpack.c.b16 %v6076, %v6075
        %v6099 = vpack.c.b16 %v6078, %v6077
        %v6100 = vpack.c.b16 %v6080, %v6079
        %v6101 = vpack.c.b16 %v6082, %v6081
        %v6102 = vpack.c.b16 %v6084, %v6083
        %v6103 = vpack.c.b16 %v6086, %v6085
        %v6104 = vpack.c.b16 %v6088, %v6087
        %6121 = vmatpush.bf16.msra.mxu0 %v6096
        %6122 = vmatpush.bf16.msra.mxu0 %v6095
        %6123 = vmatpush.bf16.msra.mxu0 %v6094
        %6124 = vmatpush.bf16.msra.mxu0 %v6093
        %6125 = vmatpush.bf16.msra.mxu0 %v6092
        %6126 = vmatpush.bf16.msra.mxu0 %v6091
        %6127 = vmatpush.bf16.msra.mxu0 %v6090
        %6128 = vmatpush.bf16.msra.mxu0 %v6089
        %6129 = vmatmul.bf16.gmra.mxu0 %v6023
        %v6130 = vpop.f32.mrf.mxu0
        %v6131 = vadd.f32 0.0, %v6130
        %v6132 = vpop.f32.mrf.mxu0
        %6133 = vdwg.mxu0
        %6134 = vmatpush.bf16.msra.mxu0 %v6104
        %6135 = vmatpush.bf16.msra.mxu0 %v6103
        %6136 = vmatpush.bf16.msra.mxu0 %v6102
        %6137 = vmatpush.bf16.msra.mxu0 %v6101
        %6138 = vmatpush.bf16.msra.mxu0 %v6100
        %6139 = vmatpush.bf16.msra.mxu0 %v6099
        %6140 = vmatpush.bf16.msra.mxu0 %v6098
        %6141 = vmatpush.bf16.msra.mxu0 %v6097
        %6142 = vmatmul.bf16.gmra.mxu0 %v6024
        %v6143 = vpop.f32.mrf.mxu0
        %v6144 = vadd.f32 %v6131, %v6143
        %v6145 = vpop.f32.mrf.mxu0
        %6146 = vdwg.mxu0
        %v6147 = vadd.f32 %v5990, %v6144
        %s6148 = scalar_lea.vmem %s7, 128
        %v6149 = vld [vmem:[%s6148] sm:$0xf]
        %v6150 = vld [vmem:[%s6148 + $0x4] sm:$0xf]
        %v6151 = vld [vmem:[%s6148 + $0x8] sm:$0xf]
        %v6152 = vld [vmem:[%s6148 + $0xc] sm:$0xf]
        %v6153 = vld [vmem:[%s6148 + $0x10] sm:$0xf]
        %v6154 = vld [vmem:[%s6148 + $0x14] sm:$0xf]
        %v6155 = vld [vmem:[%s6148 + $0x18] sm:$0xf]
        %v6156 = vld [vmem:[%s6148 + $0x1c] sm:$0xf]
        %v6157 = vld [vmem:[%s6148 + $0x20] sm:$0xf]
        %v6158 = vld [vmem:[%s6148 + $0x24] sm:$0xf]
        %v6159 = vld [vmem:[%s6148 + $0x28] sm:$0xf]
        %v6160 = vld [vmem:[%s6148 + $0x2c] sm:$0xf]
        %v6161 = vld [vmem:[%s6148 + $0x30] sm:$0xf]
        %v6162 = vld [vmem:[%s6148 + $0x34] sm:$0xf]
        %v6163 = vld [vmem:[%s6148 + $0x38] sm:$0xf]
        %v6164 = vld [vmem:[%s6148 + $0x3c] sm:$0xf]
        %v6165 = vld [vmem:[%s6148 + $0x40] sm:$0xf]
        %v6166 = vld [vmem:[%s6148 + $0x44] sm:$0xf]
        %v6167 = vld [vmem:[%s6148 + $0x48] sm:$0xf]
        %v6168 = vld [vmem:[%s6148 + $0x4c] sm:$0xf]
        %v6169 = vld [vmem:[%s6148 + $0x50] sm:$0xf]
        %v6170 = vld [vmem:[%s6148 + $0x54] sm:$0xf]
        %v6171 = vld [vmem:[%s6148 + $0x58] sm:$0xf]
        %v6172 = vld [vmem:[%s6148 + $0x5c] sm:$0xf]
        %v6173 = vld [vmem:[%s6148 + $0x60] sm:$0xf]
        %v6174 = vld [vmem:[%s6148 + $0x64] sm:$0xf]
        %v6175 = vld [vmem:[%s6148 + $0x68] sm:$0xf]
        %v6176 = vld [vmem:[%s6148 + $0x6c] sm:$0xf]
        %v6177 = vld [vmem:[%s6148 + $0x70] sm:$0xf]
        %v6178 = vld [vmem:[%s6148 + $0x74] sm:$0xf]
        %v6179 = vld [vmem:[%s6148 + $0x78] sm:$0xf]
        %v6180 = vld [vmem:[%s6148 + $0x7c] sm:$0xf]
        %v6181 = vpack.c.bf16 %v5965, %v5965
        %v6182 = vpack.c.bf16 %v5966, %v5966
        %v6215 = vunpack.c.l.b16 %v6149
        %v6216 = vunpack.c.l.b16 %v6150
        %v6217 = vunpack.c.l.b16 %v6151
        %v6218 = vunpack.c.l.b16 %v6152
        %v6219 = vunpack.c.l.b16 %v6153
        %v6220 = vunpack.c.l.b16 %v6154
        %v6221 = vunpack.c.l.b16 %v6155
        %v6222 = vunpack.c.l.b16 %v6156
        %v6223 = vunpack.c.l.b16 %v6157
        %v6224 = vunpack.c.l.b16 %v6158
        %v6225 = vunpack.c.l.b16 %v6159
        %v6226 = vunpack.c.l.b16 %v6160
        %v6227 = vunpack.c.l.b16 %v6161
        %v6228 = vunpack.c.l.b16 %v6162
        %v6229 = vunpack.c.l.b16 %v6163
        %v6230 = vunpack.c.l.b16 %v6164
        %v6231 = vunpack.c.l.b16 %v6165
        %v6232 = vunpack.c.l.b16 %v6166
        %v6233 = vunpack.c.l.b16 %v6167
        %v6234 = vunpack.c.l.b16 %v6168
        %v6235 = vunpack.c.l.b16 %v6169
        %v6236 = vunpack.c.l.b16 %v6170
        %v6237 = vunpack.c.l.b16 %v6171
        %v6238 = vunpack.c.l.b16 %v6172
        %v6239 = vunpack.c.l.b16 %v6173
        %v6240 = vunpack.c.l.b16 %v6174
        %v6241 = vunpack.c.l.b16 %v6175
        %v6242 = vunpack.c.l.b16 %v6176
        %v6243 = vunpack.c.l.b16 %v6177
        %v6244 = vunpack.c.l.b16 %v6178
        %v6245 = vunpack.c.l.b16 %v6179
        %v6246 = vunpack.c.l.b16 %v6180
        %v6247 = vpack.c.b16 %v6216, %v6215
        %v6248 = vpack.c.b16 %v6218, %v6217
        %v6249 = vpack.c.b16 %v6220, %v6219
        %v6250 = vpack.c.b16 %v6222, %v6221
        %v6251 = vpack.c.b16 %v6224, %v6223
        %v6252 = vpack.c.b16 %v6226, %v6225
        %v6253 = vpack.c.b16 %v6228, %v6227
        %v6254 = vpack.c.b16 %v6230, %v6229
        %v6255 = vpack.c.b16 %v6232, %v6231
        %v6256 = vpack.c.b16 %v6234, %v6233
        %v6257 = vpack.c.b16 %v6236, %v6235
        %v6258 = vpack.c.b16 %v6238, %v6237
        %v6259 = vpack.c.b16 %v6240, %v6239
        %v6260 = vpack.c.b16 %v6242, %v6241
        %v6261 = vpack.c.b16 %v6244, %v6243
        %v6262 = vpack.c.b16 %v6246, %v6245
        %6279 = vmatpush.bf16.msra.mxu0 %v6254
        %6280 = vmatpush.bf16.msra.mxu0 %v6253
        %6281 = vmatpush.bf16.msra.mxu0 %v6252
        %6282 = vmatpush.bf16.msra.mxu0 %v6251
        %6283 = vmatpush.bf16.msra.mxu0 %v6250
        %6284 = vmatpush.bf16.msra.mxu0 %v6249
        %6285 = vmatpush.bf16.msra.mxu0 %v6248
        %6286 = vmatpush.bf16.msra.mxu0 %v6247
        %6287 = vmatmul.bf16.gmra.mxu0 %v6181
        %v6288 = vpop.f32.mrf.mxu0
        %v6289 = vadd.f32 0.0, %v6288
        %v6290 = vpop.f32.mrf.mxu0
        %6291 = vdwg.mxu0
        %6292 = vmatpush.bf16.msra.mxu0 %v6262
        %6293 = vmatpush.bf16.msra.mxu0 %v6261
        %6294 = vmatpush.bf16.msra.mxu0 %v6260
        %6295 = vmatpush.bf16.msra.mxu0 %v6259
        %6296 = vmatpush.bf16.msra.mxu0 %v6258
        %6297 = vmatpush.bf16.msra.mxu0 %v6257
        %6298 = vmatpush.bf16.msra.mxu0 %v6256
        %6299 = vmatpush.bf16.msra.mxu0 %v6255
        %6300 = vmatmul.bf16.gmra.mxu0 %v6182
        %v6301 = vpop.f32.mrf.mxu0
        %v6302 = vadd.f32 %v6289, %v6301
        %v6303 = vpop.f32.mrf.mxu0
        %6304 = vdwg.mxu0
        %v6305 = vadd.f32 %v6147, %v6302
        %s6306 = scalar_lea.vmem %s7, 256
        %v6307 = vld [vmem:[%s6306] sm:$0xf]
        %v6308 = vld [vmem:[%s6306 + $0x4] sm:$0xf]
        %v6309 = vld [vmem:[%s6306 + $0x8] sm:$0xf]
        %v6310 = vld [vmem:[%s6306 + $0xc] sm:$0xf]
        %v6311 = vld [vmem:[%s6306 + $0x10] sm:$0xf]
        %v6312 = vld [vmem:[%s6306 + $0x14] sm:$0xf]
        %v6313 = vld [vmem:[%s6306 + $0x18] sm:$0xf]
        %v6314 = vld [vmem:[%s6306 + $0x1c] sm:$0xf]
        %v6315 = vld [vmem:[%s6306 + $0x20] sm:$0xf]
        %v6316 = vld [vmem:[%s6306 + $0x24] sm:$0xf]
        %v6317 = vld [vmem:[%s6306 + $0x28] sm:$0xf]
        %v6318 = vld [vmem:[%s6306 + $0x2c] sm:$0xf]
        %v6319 = vld [vmem:[%s6306 + $0x30] sm:$0xf]
        %v6320 = vld [vmem:[%s6306 + $0x34] sm:$0xf]
        %v6321 = vld [vmem:[%s6306 + $0x38] sm:$0xf]
        %v6322 = vld [vmem:[%s6306 + $0x3c] sm:$0xf]
        %v6323 = vld [vmem:[%s6306 + $0x40] sm:$0xf]
        %v6324 = vld [vmem:[%s6306 + $0x44] sm:$0xf]
        %v6325 = vld [vmem:[%s6306 + $0x48] sm:$0xf]
        %v6326 = vld [vmem:[%s6306 + $0x4c] sm:$0xf]
        %v6327 = vld [vmem:[%s6306 + $0x50] sm:$0xf]
        %v6328 = vld [vmem:[%s6306 + $0x54] sm:$0xf]
        %v6329 = vld [vmem:[%s6306 + $0x58] sm:$0xf]
        %v6330 = vld [vmem:[%s6306 + $0x5c] sm:$0xf]
        %v6331 = vld [vmem:[%s6306 + $0x60] sm:$0xf]
        %v6332 = vld [vmem:[%s6306 + $0x64] sm:$0xf]
        %v6333 = vld [vmem:[%s6306 + $0x68] sm:$0xf]
        %v6334 = vld [vmem:[%s6306 + $0x6c] sm:$0xf]
        %v6335 = vld [vmem:[%s6306 + $0x70] sm:$0xf]
        %v6336 = vld [vmem:[%s6306 + $0x74] sm:$0xf]
        %v6337 = vld [vmem:[%s6306 + $0x78] sm:$0xf]
        %v6338 = vld [vmem:[%s6306 + $0x7c] sm:$0xf]
        %v6339 = vpack.c.bf16 %v5967, %v5967
        %v6340 = vpack.c.bf16 %v5968, %v5968
        %v6373 = vunpack.c.l.b16 %v6307
        %v6374 = vunpack.c.l.b16 %v6308
        %v6375 = vunpack.c.l.b16 %v6309
        %v6376 = vunpack.c.l.b16 %v6310
        %v6377 = vunpack.c.l.b16 %v6311
        %v6378 = vunpack.c.l.b16 %v6312
        %v6379 = vunpack.c.l.b16 %v6313
        %v6380 = vunpack.c.l.b16 %v6314
        %v6381 = vunpack.c.l.b16 %v6315
        %v6382 = vunpack.c.l.b16 %v6316
        %v6383 = vunpack.c.l.b16 %v6317
        %v6384 = vunpack.c.l.b16 %v6318
        %v6385 = vunpack.c.l.b16 %v6319
        %v6386 = vunpack.c.l.b16 %v6320
        %v6387 = vunpack.c.l.b16 %v6321
        %v6388 = vunpack.c.l.b16 %v6322
        %v6389 = vunpack.c.l.b16 %v6323
        %v6390 = vunpack.c.l.b16 %v6324
        %v6391 = vunpack.c.l.b16 %v6325
        %v6392 = vunpack.c.l.b16 %v6326
        %v6393 = vunpack.c.l.b16 %v6327
        %v6394 = vunpack.c.l.b16 %v6328
        %v6395 = vunpack.c.l.b16 %v6329
        %v6396 = vunpack.c.l.b16 %v6330
        %v6397 = vunpack.c.l.b16 %v6331
        %v6398 = vunpack.c.l.b16 %v6332
        %v6399 = vunpack.c.l.b16 %v6333
        %v6400 = vunpack.c.l.b16 %v6334
        %v6401 = vunpack.c.l.b16 %v6335
        %v6402 = vunpack.c.l.b16 %v6336
        %v6403 = vunpack.c.l.b16 %v6337
        %v6404 = vunpack.c.l.b16 %v6338
        %v6405 = vpack.c.b16 %v6374, %v6373
        %v6406 = vpack.c.b16 %v6376, %v6375
        %v6407 = vpack.c.b16 %v6378, %v6377
        %v6408 = vpack.c.b16 %v6380, %v6379
        %v6409 = vpack.c.b16 %v6382, %v6381
        %v6410 = vpack.c.b16 %v6384, %v6383
        %v6411 = vpack.c.b16 %v6386, %v6385
        %v6412 = vpack.c.b16 %v6388, %v6387
        %v6413 = vpack.c.b16 %v6390, %v6389
        %v6414 = vpack.c.b16 %v6392, %v6391
        %v6415 = vpack.c.b16 %v6394, %v6393
        %v6416 = vpack.c.b16 %v6396, %v6395
        %v6417 = vpack.c.b16 %v6398, %v6397
        %v6418 = vpack.c.b16 %v6400, %v6399
        %v6419 = vpack.c.b16 %v6402, %v6401
        %v6420 = vpack.c.b16 %v6404, %v6403
        %6437 = vmatpush.bf16.msra.mxu0 %v6412
        %6438 = vmatpush.bf16.msra.mxu0 %v6411
        %6439 = vmatpush.bf16.msra.mxu0 %v6410
        %6440 = vmatpush.bf16.msra.mxu0 %v6409
        %6441 = vmatpush.bf16.msra.mxu0 %v6408
        %6442 = vmatpush.bf16.msra.mxu0 %v6407
        %6443 = vmatpush.bf16.msra.mxu0 %v6406
        %6444 = vmatpush.bf16.msra.mxu0 %v6405
        %6445 = vmatmul.bf16.gmra.mxu0 %v6339
        %v6446 = vpop.f32.mrf.mxu0
        %v6447 = vadd.f32 0.0, %v6446
        %v6448 = vpop.f32.mrf.mxu0
        %6449 = vdwg.mxu0
        %6450 = vmatpush.bf16.msra.mxu0 %v6420
        %6451 = vmatpush.bf16.msra.mxu0 %v6419
        %6452 = vmatpush.bf16.msra.mxu0 %v6418
        %6453 = vmatpush.bf16.msra.mxu0 %v6417
        %6454 = vmatpush.bf16.msra.mxu0 %v6416
        %6455 = vmatpush.bf16.msra.mxu0 %v6415
        %6456 = vmatpush.bf16.msra.mxu0 %v6414
        %6457 = vmatpush.bf16.msra.mxu0 %v6413
        %6458 = vmatmul.bf16.gmra.mxu0 %v6340
        %v6459 = vpop.f32.mrf.mxu0
        %v6460 = vadd.f32 %v6447, %v6459
        %v6461 = vpop.f32.mrf.mxu0
        %6462 = vdwg.mxu0
        %v6463 = vadd.f32 %v6305, %v6460
        %s6464 = scalar_lea.vmem %s7, 384
        %v6465 = vld [vmem:[%s6464] sm:$0xf]
        %v6466 = vld [vmem:[%s6464 + $0x4] sm:$0xf]
        %v6467 = vld [vmem:[%s6464 + $0x8] sm:$0xf]
        %v6468 = vld [vmem:[%s6464 + $0xc] sm:$0xf]
        %v6469 = vld [vmem:[%s6464 + $0x10] sm:$0xf]
        %v6470 = vld [vmem:[%s6464 + $0x14] sm:$0xf]
        %v6471 = vld [vmem:[%s6464 + $0x18] sm:$0xf]
        %v6472 = vld [vmem:[%s6464 + $0x1c] sm:$0xf]
        %v6473 = vld [vmem:[%s6464 + $0x20] sm:$0xf]
        %v6474 = vld [vmem:[%s6464 + $0x24] sm:$0xf]
        %v6475 = vld [vmem:[%s6464 + $0x28] sm:$0xf]
        %v6476 = vld [vmem:[%s6464 + $0x2c] sm:$0xf]
        %v6477 = vld [vmem:[%s6464 + $0x30] sm:$0xf]
        %v6478 = vld [vmem:[%s6464 + $0x34] sm:$0xf]
        %v6479 = vld [vmem:[%s6464 + $0x38] sm:$0xf]
        %v6480 = vld [vmem:[%s6464 + $0x3c] sm:$0xf]
        %v6481 = vld [vmem:[%s6464 + $0x40] sm:$0xf]
        %v6482 = vld [vmem:[%s6464 + $0x44] sm:$0xf]
        %v6483 = vld [vmem:[%s6464 + $0x48] sm:$0xf]
        %v6484 = vld [vmem:[%s6464 + $0x4c] sm:$0xf]
        %v6485 = vld [vmem:[%s6464 + $0x50] sm:$0xf]
        %v6486 = vld [vmem:[%s6464 + $0x54] sm:$0xf]
        %v6487 = vld [vmem:[%s6464 + $0x58] sm:$0xf]
        %v6488 = vld [vmem:[%s6464 + $0x5c] sm:$0xf]
        %v6489 = vld [vmem:[%s6464 + $0x60] sm:$0xf]
        %v6490 = vld [vmem:[%s6464 + $0x64] sm:$0xf]
        %v6491 = vld [vmem:[%s6464 + $0x68] sm:$0xf]
        %v6492 = vld [vmem:[%s6464 + $0x6c] sm:$0xf]
        %v6493 = vld [vmem:[%s6464 + $0x70] sm:$0xf]
        %v6494 = vld [vmem:[%s6464 + $0x74] sm:$0xf]
        %v6495 = vld [vmem:[%s6464 + $0x78] sm:$0xf]
        %v6496 = vld [vmem:[%s6464 + $0x7c] sm:$0xf]
        %v6497 = vpack.c.bf16 %v5969, %v5969
        %v6498 = vpack.c.bf16 %v5970, %v5970
        %v6531 = vunpack.c.l.b16 %v6465
        %v6532 = vunpack.c.l.b16 %v6466
        %v6533 = vunpack.c.l.b16 %v6467
        %v6534 = vunpack.c.l.b16 %v6468
        %v6535 = vunpack.c.l.b16 %v6469
        %v6536 = vunpack.c.l.b16 %v6470
        %v6537 = vunpack.c.l.b16 %v6471
        %v6538 = vunpack.c.l.b16 %v6472
        %v6539 = vunpack.c.l.b16 %v6473
        %v6540 = vunpack.c.l.b16 %v6474
        %v6541 = vunpack.c.l.b16 %v6475
        %v6542 = vunpack.c.l.b16 %v6476
        %v6543 = vunpack.c.l.b16 %v6477
        %v6544 = vunpack.c.l.b16 %v6478
        %v6545 = vunpack.c.l.b16 %v6479
        %v6546 = vunpack.c.l.b16 %v6480
        %v6547 = vunpack.c.l.b16 %v6481
        %v6548 = vunpack.c.l.b16 %v6482
        %v6549 = vunpack.c.l.b16 %v6483
        %v6550 = vunpack.c.l.b16 %v6484
        %v6551 = vunpack.c.l.b16 %v6485
        %v6552 = vunpack.c.l.b16 %v6486
        %v6553 = vunpack.c.l.b16 %v6487
        %v6554 = vunpack.c.l.b16 %v6488
        %v6555 = vunpack.c.l.b16 %v6489
        %v6556 = vunpack.c.l.b16 %v6490
        %v6557 = vunpack.c.l.b16 %v6491
        %v6558 = vunpack.c.l.b16 %v6492
        %v6559 = vunpack.c.l.b16 %v6493
        %v6560 = vunpack.c.l.b16 %v6494
        %v6561 = vunpack.c.l.b16 %v6495
        %v6562 = vunpack.c.l.b16 %v6496
        %v6563 = vpack.c.b16 %v6532, %v6531
        %v6564 = vpack.c.b16 %v6534, %v6533
        %v6565 = vpack.c.b16 %v6536, %v6535
        %v6566 = vpack.c.b16 %v6538, %v6537
        %v6567 = vpack.c.b16 %v6540, %v6539
        %v6568 = vpack.c.b16 %v6542, %v6541
        %v6569 = vpack.c.b16 %v6544, %v6543
        %v6570 = vpack.c.b16 %v6546, %v6545
        %v6571 = vpack.c.b16 %v6548, %v6547
        %v6572 = vpack.c.b16 %v6550, %v6549
        %v6573 = vpack.c.b16 %v6552, %v6551
        %v6574 = vpack.c.b16 %v6554, %v6553
        %v6575 = vpack.c.b16 %v6556, %v6555
        %v6576 = vpack.c.b16 %v6558, %v6557
        %v6577 = vpack.c.b16 %v6560, %v6559
        %v6578 = vpack.c.b16 %v6562, %v6561
        %6595 = vmatpush.bf16.msra.mxu0 %v6570
        %6596 = vmatpush.bf16.msra.mxu0 %v6569
        %6597 = vmatpush.bf16.msra.mxu0 %v6568
        %6598 = vmatpush.bf16.msra.mxu0 %v6567
        %6599 = vmatpush.bf16.msra.mxu0 %v6566
        %6600 = vmatpush.bf16.msra.mxu0 %v6565
        %6601 = vmatpush.bf16.msra.mxu0 %v6564
        %6602 = vmatpush.bf16.msra.mxu0 %v6563
        %6603 = vmatmul.bf16.gmra.mxu0 %v6497
        %v6604 = vpop.f32.mrf.mxu0
        %v6605 = vadd.f32 0.0, %v6604
        %v6606 = vpop.f32.mrf.mxu0
        %6607 = vdwg.mxu0
        %6608 = vmatpush.bf16.msra.mxu0 %v6578
        %6609 = vmatpush.bf16.msra.mxu0 %v6577
        %6610 = vmatpush.bf16.msra.mxu0 %v6576
        %6611 = vmatpush.bf16.msra.mxu0 %v6575
        %6612 = vmatpush.bf16.msra.mxu0 %v6574
        %6613 = vmatpush.bf16.msra.mxu0 %v6573
        %6614 = vmatpush.bf16.msra.mxu0 %v6572
        %6615 = vmatpush.bf16.msra.mxu0 %v6571
        %6616 = vmatmul.bf16.gmra.mxu0 %v6498
        %v6617 = vpop.f32.mrf.mxu0
        %v6618 = vadd.f32 %v6605, %v6617
        %v6619 = vpop.f32.mrf.mxu0
        %6620 = vdwg.mxu0
        %v6621 = vadd.f32 %v6463, %v6618
        %s6622 = scalar_lea.vmem %s7, 512
        %v6623 = vld [vmem:[%s6622] sm:$0xf]
        %v6624 = vld [vmem:[%s6622 + $0x4] sm:$0xf]
        %v6625 = vld [vmem:[%s6622 + $0x8] sm:$0xf]
        %v6626 = vld [vmem:[%s6622 + $0xc] sm:$0xf]
        %v6627 = vld [vmem:[%s6622 + $0x10] sm:$0xf]
        %v6628 = vld [vmem:[%s6622 + $0x14] sm:$0xf]
        %v6629 = vld [vmem:[%s6622 + $0x18] sm:$0xf]
        %v6630 = vld [vmem:[%s6622 + $0x1c] sm:$0xf]
        %v6631 = vld [vmem:[%s6622 + $0x20] sm:$0xf]
        %v6632 = vld [vmem:[%s6622 + $0x24] sm:$0xf]
        %v6633 = vld [vmem:[%s6622 + $0x28] sm:$0xf]
        %v6634 = vld [vmem:[%s6622 + $0x2c] sm:$0xf]
        %v6635 = vld [vmem:[%s6622 + $0x30] sm:$0xf]
        %v6636 = vld [vmem:[%s6622 + $0x34] sm:$0xf]
        %v6637 = vld [vmem:[%s6622 + $0x38] sm:$0xf]
        %v6638 = vld [vmem:[%s6622 + $0x3c] sm:$0xf]
        %v6639 = vld [vmem:[%s6622 + $0x40] sm:$0xf]
        %v6640 = vld [vmem:[%s6622 + $0x44] sm:$0xf]
        %v6641 = vld [vmem:[%s6622 + $0x48] sm:$0xf]
        %v6642 = vld [vmem:[%s6622 + $0x4c] sm:$0xf]
        %v6643 = vld [vmem:[%s6622 + $0x50] sm:$0xf]
        %v6644 = vld [vmem:[%s6622 + $0x54] sm:$0xf]
        %v6645 = vld [vmem:[%s6622 + $0x58] sm:$0xf]
        %v6646 = vld [vmem:[%s6622 + $0x5c] sm:$0xf]
        %v6647 = vld [vmem:[%s6622 + $0x60] sm:$0xf]
        %v6648 = vld [vmem:[%s6622 + $0x64] sm:$0xf]
        %v6649 = vld [vmem:[%s6622 + $0x68] sm:$0xf]
        %v6650 = vld [vmem:[%s6622 + $0x6c] sm:$0xf]
        %v6651 = vld [vmem:[%s6622 + $0x70] sm:$0xf]
        %v6652 = vld [vmem:[%s6622 + $0x74] sm:$0xf]
        %v6653 = vld [vmem:[%s6622 + $0x78] sm:$0xf]
        %v6654 = vld [vmem:[%s6622 + $0x7c] sm:$0xf]
        %v6655 = vpack.c.bf16 %v5971, %v5971
        %v6656 = vpack.c.bf16 %v5972, %v5972
        %v6689 = vunpack.c.l.b16 %v6623
        %v6690 = vunpack.c.l.b16 %v6624
        %v6691 = vunpack.c.l.b16 %v6625
        %v6692 = vunpack.c.l.b16 %v6626
        %v6693 = vunpack.c.l.b16 %v6627
        %v6694 = vunpack.c.l.b16 %v6628
        %v6695 = vunpack.c.l.b16 %v6629
        %v6696 = vunpack.c.l.b16 %v6630
        %v6697 = vunpack.c.l.b16 %v6631
        %v6698 = vunpack.c.l.b16 %v6632
        %v6699 = vunpack.c.l.b16 %v6633
        %v6700 = vunpack.c.l.b16 %v6634
        %v6701 = vunpack.c.l.b16 %v6635
        %v6702 = vunpack.c.l.b16 %v6636
        %v6703 = vunpack.c.l.b16 %v6637
        %v6704 = vunpack.c.l.b16 %v6638
        %v6705 = vunpack.c.l.b16 %v6639
        %v6706 = vunpack.c.l.b16 %v6640
        %v6707 = vunpack.c.l.b16 %v6641
        %v6708 = vunpack.c.l.b16 %v6642
        %v6709 = vunpack.c.l.b16 %v6643
        %v6710 = vunpack.c.l.b16 %v6644
        %v6711 = vunpack.c.l.b16 %v6645
        %v6712 = vunpack.c.l.b16 %v6646
        %v6713 = vunpack.c.l.b16 %v6647
        %v6714 = vunpack.c.l.b16 %v6648
        %v6715 = vunpack.c.l.b16 %v6649
        %v6716 = vunpack.c.l.b16 %v6650
        %v6717 = vunpack.c.l.b16 %v6651
        %v6718 = vunpack.c.l.b16 %v6652
        %v6719 = vunpack.c.l.b16 %v6653
        %v6720 = vunpack.c.l.b16 %v6654
        %v6721 = vpack.c.b16 %v6690, %v6689
        %v6722 = vpack.c.b16 %v6692, %v6691
        %v6723 = vpack.c.b16 %v6694, %v6693
        %v6724 = vpack.c.b16 %v6696, %v6695
        %v6725 = vpack.c.b16 %v6698, %v6697
        %v6726 = vpack.c.b16 %v6700, %v6699
        %v6727 = vpack.c.b16 %v6702, %v6701
        %v6728 = vpack.c.b16 %v6704, %v6703
        %v6729 = vpack.c.b16 %v6706, %v6705
        %v6730 = vpack.c.b16 %v6708, %v6707
        %v6731 = vpack.c.b16 %v6710, %v6709
        %v6732 = vpack.c.b16 %v6712, %v6711
        %v6733 = vpack.c.b16 %v6714, %v6713
        %v6734 = vpack.c.b16 %v6716, %v6715
        %v6735 = vpack.c.b16 %v6718, %v6717
        %v6736 = vpack.c.b16 %v6720, %v6719
        %6753 = vmatpush.bf16.msra.mxu0 %v6728
        %6754 = vmatpush.bf16.msra.mxu0 %v6727
        %6755 = vmatpush.bf16.msra.mxu0 %v6726
        %6756 = vmatpush.bf16.msra.mxu0 %v6725
        %6757 = vmatpush.bf16.msra.mxu0 %v6724
        %6758 = vmatpush.bf16.msra.mxu0 %v6723
        %6759 = vmatpush.bf16.msra.mxu0 %v6722
        %6760 = vmatpush.bf16.msra.mxu0 %v6721
        %6761 = vmatmul.bf16.gmra.mxu0 %v6655
        %v6762 = vpop.f32.mrf.mxu0
        %v6763 = vadd.f32 0.0, %v6762
        %v6764 = vpop.f32.mrf.mxu0
        %6765 = vdwg.mxu0
        %6766 = vmatpush.bf16.msra.mxu0 %v6736
        %6767 = vmatpush.bf16.msra.mxu0 %v6735
        %6768 = vmatpush.bf16.msra.mxu0 %v6734
        %6769 = vmatpush.bf16.msra.mxu0 %v6733
        %6770 = vmatpush.bf16.msra.mxu0 %v6732
        %6771 = vmatpush.bf16.msra.mxu0 %v6731
        %6772 = vmatpush.bf16.msra.mxu0 %v6730
        %6773 = vmatpush.bf16.msra.mxu0 %v6729
        %6774 = vmatmul.bf16.gmra.mxu0 %v6656
        %v6775 = vpop.f32.mrf.mxu0
        %v6776 = vadd.f32 %v6763, %v6775
        %v6777 = vpop.f32.mrf.mxu0
        %6778 = vdwg.mxu0
        %v6779 = vadd.f32 %v6621, %v6776
        %s6780 = scalar_lea.vmem %s7, 640
        %v6781 = vld [vmem:[%s6780] sm:$0xf]
        %v6782 = vld [vmem:[%s6780 + $0x4] sm:$0xf]
        %v6783 = vld [vmem:[%s6780 + $0x8] sm:$0xf]
        %v6784 = vld [vmem:[%s6780 + $0xc] sm:$0xf]
        %v6785 = vld [vmem:[%s6780 + $0x10] sm:$0xf]
        %v6786 = vld [vmem:[%s6780 + $0x14] sm:$0xf]
        %v6787 = vld [vmem:[%s6780 + $0x18] sm:$0xf]
        %v6788 = vld [vmem:[%s6780 + $0x1c] sm:$0xf]
        %v6789 = vld [vmem:[%s6780 + $0x20] sm:$0xf]
        %v6790 = vld [vmem:[%s6780 + $0x24] sm:$0xf]
        %v6791 = vld [vmem:[%s6780 + $0x28] sm:$0xf]
        %v6792 = vld [vmem:[%s6780 + $0x2c] sm:$0xf]
        %v6793 = vld [vmem:[%s6780 + $0x30] sm:$0xf]
        %v6794 = vld [vmem:[%s6780 + $0x34] sm:$0xf]
        %v6795 = vld [vmem:[%s6780 + $0x38] sm:$0xf]
        %v6796 = vld [vmem:[%s6780 + $0x3c] sm:$0xf]
        %v6797 = vld [vmem:[%s6780 + $0x40] sm:$0xf]
        %v6798 = vld [vmem:[%s6780 + $0x44] sm:$0xf]
        %v6799 = vld [vmem:[%s6780 + $0x48] sm:$0xf]
        %v6800 = vld [vmem:[%s6780 + $0x4c] sm:$0xf]
        %v6801 = vld [vmem:[%s6780 + $0x50] sm:$0xf]
        %v6802 = vld [vmem:[%s6780 + $0x54] sm:$0xf]
        %v6803 = vld [vmem:[%s6780 + $0x58] sm:$0xf]
        %v6804 = vld [vmem:[%s6780 + $0x5c] sm:$0xf]
        %v6805 = vld [vmem:[%s6780 + $0x60] sm:$0xf]
        %v6806 = vld [vmem:[%s6780 + $0x64] sm:$0xf]
        %v6807 = vld [vmem:[%s6780 + $0x68] sm:$0xf]
        %v6808 = vld [vmem:[%s6780 + $0x6c] sm:$0xf]
        %v6809 = vld [vmem:[%s6780 + $0x70] sm:$0xf]
        %v6810 = vld [vmem:[%s6780 + $0x74] sm:$0xf]
        %v6811 = vld [vmem:[%s6780 + $0x78] sm:$0xf]
        %v6812 = vld [vmem:[%s6780 + $0x7c] sm:$0xf]
        %v6813 = vpack.c.bf16 %v5973, %v5973
        %v6814 = vpack.c.bf16 %v5974, %v5974
        %v6847 = vunpack.c.l.b16 %v6781
        %v6848 = vunpack.c.l.b16 %v6782
        %v6849 = vunpack.c.l.b16 %v6783
        %v6850 = vunpack.c.l.b16 %v6784
        %v6851 = vunpack.c.l.b16 %v6785
        %v6852 = vunpack.c.l.b16 %v6786
        %v6853 = vunpack.c.l.b16 %v6787
        %v6854 = vunpack.c.l.b16 %v6788
        %v6855 = vunpack.c.l.b16 %v6789
        %v6856 = vunpack.c.l.b16 %v6790
        %v6857 = vunpack.c.l.b16 %v6791
        %v6858 = vunpack.c.l.b16 %v6792
        %v6859 = vunpack.c.l.b16 %v6793
        %v6860 = vunpack.c.l.b16 %v6794
        %v6861 = vunpack.c.l.b16 %v6795
        %v6862 = vunpack.c.l.b16 %v6796
        %v6863 = vunpack.c.l.b16 %v6797
        %v6864 = vunpack.c.l.b16 %v6798
        %v6865 = vunpack.c.l.b16 %v6799
        %v6866 = vunpack.c.l.b16 %v6800
        %v6867 = vunpack.c.l.b16 %v6801
        %v6868 = vunpack.c.l.b16 %v6802
        %v6869 = vunpack.c.l.b16 %v6803
        %v6870 = vunpack.c.l.b16 %v6804
        %v6871 = vunpack.c.l.b16 %v6805
        %v6872 = vunpack.c.l.b16 %v6806
        %v6873 = vunpack.c.l.b16 %v6807
        %v6874 = vunpack.c.l.b16 %v6808
        %v6875 = vunpack.c.l.b16 %v6809
        %v6876 = vunpack.c.l.b16 %v6810
        %v6877 = vunpack.c.l.b16 %v6811
        %v6878 = vunpack.c.l.b16 %v6812
        %v6879 = vpack.c.b16 %v6848, %v6847
        %v6880 = vpack.c.b16 %v6850, %v6849
        %v6881 = vpack.c.b16 %v6852, %v6851
        %v6882 = vpack.c.b16 %v6854, %v6853
        %v6883 = vpack.c.b16 %v6856, %v6855
        %v6884 = vpack.c.b16 %v6858, %v6857
        %v6885 = vpack.c.b16 %v6860, %v6859
        %v6886 = vpack.c.b16 %v6862, %v6861
        %v6887 = vpack.c.b16 %v6864, %v6863
        %v6888 = vpack.c.b16 %v6866, %v6865
        %v6889 = vpack.c.b16 %v6868, %v6867
        %v6890 = vpack.c.b16 %v6870, %v6869
        %v6891 = vpack.c.b16 %v6872, %v6871
        %v6892 = vpack.c.b16 %v6874, %v6873
        %v6893 = vpack.c.b16 %v6876, %v6875
        %v6894 = vpack.c.b16 %v6878, %v6877
        %6911 = vmatpush.bf16.msra.mxu0 %v6886
        %6912 = vmatpush.bf16.msra.mxu0 %v6885
        %6913 = vmatpush.bf16.msra.mxu0 %v6884
        %6914 = vmatpush.bf16.msra.mxu0 %v6883
        %6915 = vmatpush.bf16.msra.mxu0 %v6882
        %6916 = vmatpush.bf16.msra.mxu0 %v6881
        %6917 = vmatpush.bf16.msra.mxu0 %v6880
        %6918 = vmatpush.bf16.msra.mxu0 %v6879
        %6919 = vmatmul.bf16.gmra.mxu0 %v6813
        %v6920 = vpop.f32.mrf.mxu0
        %v6921 = vadd.f32 0.0, %v6920
        %v6922 = vpop.f32.mrf.mxu0
        %6923 = vdwg.mxu0
        %6924 = vmatpush.bf16.msra.mxu0 %v6894
        %6925 = vmatpush.bf16.msra.mxu0 %v6893
        %6926 = vmatpush.bf16.msra.mxu0 %v6892
        %6927 = vmatpush.bf16.msra.mxu0 %v6891
        %6928 = vmatpush.bf16.msra.mxu0 %v6890
        %6929 = vmatpush.bf16.msra.mxu0 %v6889
        %6930 = vmatpush.bf16.msra.mxu0 %v6888
        %6931 = vmatpush.bf16.msra.mxu0 %v6887
        %6932 = vmatmul.bf16.gmra.mxu0 %v6814
        %v6933 = vpop.f32.mrf.mxu0
        %v6934 = vadd.f32 %v6921, %v6933
        %v6935 = vpop.f32.mrf.mxu0
        %6936 = vdwg.mxu0
        %v6937 = vadd.f32 %v6779, %v6934
        %vm6938 = vcmp.gt.f32.partialorder %v6937, 0.0
        %v6939 = vmul.f32 %v6937, 0.01
        %v6940 = vsel %vm6938, %v6937, %v6939
        %v6941 = vld [vmem:[%s12] sm:$0x1]
        %v6942 = vld [vmem:[%s11] sm:$0x1]
        %v6944 = vperm.slane %v6942, 0
        %v6946 = vmul.f32 %v5981, %v6944
        %v6948 = vperm.slane %v6941, 0
        %v6950 = vadd.f32 %v6948, %v6946
        %v6951 = vld [vmem:[%s10] sm:$0xf]
        %v6952 = vld [vmem:[%s10 + $0x4] sm:$0xf]
        %v6953 = vld [vmem:[%s10 + $0x8] sm:$0xf]
        %v6954 = vld [vmem:[%s10 + $0xc] sm:$0xf]
        %v6955 = vld [vmem:[%s10 + $0x10] sm:$0xf]
        %v6956 = vld [vmem:[%s10 + $0x14] sm:$0xf]
        %v6957 = vld [vmem:[%s10 + $0x18] sm:$0xf]
        %v6958 = vld [vmem:[%s10 + $0x1c] sm:$0xf]
        %v6959 = vld [vmem:[%s10 + $0x20] sm:$0xf]
        %v6960 = vld [vmem:[%s10 + $0x24] sm:$0xf]
        %v6961 = vld [vmem:[%s10 + $0x28] sm:$0xf]
        %v6962 = vld [vmem:[%s10 + $0x2c] sm:$0xf]
        %v6963 = vld [vmem:[%s10 + $0x30] sm:$0xf]
        %v6964 = vld [vmem:[%s10 + $0x34] sm:$0xf]
        %v6965 = vld [vmem:[%s10 + $0x38] sm:$0xf]
        %v6966 = vld [vmem:[%s10 + $0x3c] sm:$0xf]
        %v6967 = vpack.c.bf16 %v6940, %v6940
        %v6984 = vunpack.c.l.b16 %v6951
        %v6985 = vunpack.c.l.b16 %v6952
        %v6986 = vunpack.c.l.b16 %v6953
        %v6987 = vunpack.c.l.b16 %v6954
        %v6988 = vunpack.c.l.b16 %v6955
        %v6989 = vunpack.c.l.b16 %v6956
        %v6990 = vunpack.c.l.b16 %v6957
        %v6991 = vunpack.c.l.b16 %v6958
        %v6992 = vunpack.c.l.b16 %v6959
        %v6993 = vunpack.c.l.b16 %v6960
        %v6994 = vunpack.c.l.b16 %v6961
        %v6995 = vunpack.c.l.b16 %v6962
        %v6996 = vunpack.c.l.b16 %v6963
        %v6997 = vunpack.c.l.b16 %v6964
        %v6998 = vunpack.c.l.b16 %v6965
        %v6999 = vunpack.c.l.b16 %v6966
        %v7000 = vpack.c.b16 %v6985, %v6984
        %v7001 = vpack.c.b16 %v6987, %v6986
        %v7002 = vpack.c.b16 %v6989, %v6988
        %v7003 = vpack.c.b16 %v6991, %v6990
        %v7004 = vpack.c.b16 %v6993, %v6992
        %v7005 = vpack.c.b16 %v6995, %v6994
        %v7006 = vpack.c.b16 %v6997, %v6996
        %v7007 = vpack.c.b16 %v6999, %v6998
        %7016 = vmatpush.bf16.msra.mxu0 %v7007
        %7017 = vmatpush.bf16.msra.mxu0 %v7006
        %7018 = vmatpush.bf16.msra.mxu0 %v7005
        %7019 = vmatpush.bf16.msra.mxu0 %v7004
        %7020 = vmatpush.bf16.msra.mxu0 %v7003
        %7021 = vmatpush.bf16.msra.mxu0 %v7002
        %7022 = vmatpush.bf16.msra.mxu0 %v7001
        %7023 = vmatpush.bf16.msra.mxu0 %v7000
        %7024 = vmatmul.bf16.gmra.mxu0 %v6967
        %v7025 = vpop.f32.mrf.mxu0
        %v7026 = vadd.f32 0.0, %v7025
        %v7027 = vpop.f32.mrf.mxu0
        %7028 = vdwg.mxu0
        %v7029 = vadd.f32 %v6950, %v7026
        %vm7030 = vcmp.gt.f32.partialorder %v7029, 0.0
        %v7031 = vmul.f32 %v7029, 0.01
        %v7032 = vsel %vm7030, %v7029, %v7031
        %v7033 = vld [vmem:[%s13] sm:$0xf]
        %v7034 = vld [vmem:[%s13 + $0x4] sm:$0xf]
        %v7035 = vld [vmem:[%s13 + $0x8] sm:$0xf]
        %v7036 = vld [vmem:[%s13 + $0xc] sm:$0xf]
        %v7037 = vld [vmem:[%s13 + $0x10] sm:$0xf]
        %v7038 = vld [vmem:[%s13 + $0x14] sm:$0xf]
        %v7039 = vld [vmem:[%s13 + $0x18] sm:$0xf]
        %v7040 = vld [vmem:[%s13 + $0x1c] sm:$0xf]
        %v7041 = vld [vmem:[%s13 + $0x20] sm:$0xf]
        %v7042 = vld [vmem:[%s13 + $0x24] sm:$0xf]
        %v7043 = vld [vmem:[%s13 + $0x28] sm:$0xf]
        %v7044 = vld [vmem:[%s13 + $0x2c] sm:$0xf]
        %v7045 = vld [vmem:[%s13 + $0x30] sm:$0xf]
        %v7046 = vld [vmem:[%s13 + $0x34] sm:$0xf]
        %v7047 = vld [vmem:[%s13 + $0x38] sm:$0xf]
        %v7048 = vld [vmem:[%s13 + $0x3c] sm:$0xf]
        %v7049 = vpack.c.bf16 %v7032, %v7032
        %v7050 = vld [vmem:[%s14] sm:$0x1]
        %v7052 = vperm.slane %v7050, 0
        %v7070 = vunpack.c.l.b16 %v7033
        %v7071 = vunpack.c.l.b16 %v7034
        %v7072 = vunpack.c.l.b16 %v7035
        %v7073 = vunpack.c.l.b16 %v7036
        %v7074 = vunpack.c.l.b16 %v7037
        %v7075 = vunpack.c.l.b16 %v7038
        %v7076 = vunpack.c.l.b16 %v7039
        %v7077 = vunpack.c.l.b16 %v7040
        %v7078 = vunpack.c.l.b16 %v7041
        %v7079 = vunpack.c.l.b16 %v7042
        %v7080 = vunpack.c.l.b16 %v7043
        %v7081 = vunpack.c.l.b16 %v7044
        %v7082 = vunpack.c.l.b16 %v7045
        %v7083 = vunpack.c.l.b16 %v7046
        %v7084 = vunpack.c.l.b16 %v7047
        %v7085 = vunpack.c.l.b16 %v7048
        %v7086 = vpack.c.b16 %v7071, %v7070
        %v7087 = vpack.c.b16 %v7073, %v7072
        %v7088 = vpack.c.b16 %v7075, %v7074
        %v7089 = vpack.c.b16 %v7077, %v7076
        %v7090 = vpack.c.b16 %v7079, %v7078
        %v7091 = vpack.c.b16 %v7081, %v7080
        %v7092 = vpack.c.b16 %v7083, %v7082
        %v7093 = vpack.c.b16 %v7085, %v7084
        %7102 = vmatpush.bf16.msra.mxu0 %v7093
        %7103 = vmatpush.bf16.msra.mxu0 %v7092
        %7104 = vmatpush.bf16.msra.mxu0 %v7091
        %7105 = vmatpush.bf16.msra.mxu0 %v7090
        %7106 = vmatpush.bf16.msra.mxu0 %v7089
        %7107 = vmatpush.bf16.msra.mxu0 %v7088
        %7108 = vmatpush.bf16.msra.mxu0 %v7087
        %7109 = vmatpush.bf16.msra.mxu0 %v7086
        %7110 = vmatmul.bf16.gmra.mxu0 %v7049
        %v7111 = vpop.f32.mrf.mxu0
        %v7112 = vadd.f32 %v7052, %v7111
        %v7113 = vpop.f32.mrf.mxu0
        %7114 = vdwg.mxu0
        %v7115 = vlaneseq
        %v7116 = vand.u32 %v7115, 127
        %vm7117 = vcmp.eq.s32.totalorder %v7116, 1
        %v7118 = vand.u32 2147483647, %v7112
        %v7119 = vadd.f32 %v7118, 0.01
        %v7120 = vsel %vm7117, %v7119, %v7112
        %7121 = vst [vmem:[%s734] sm:$0xff] %v7120
        %p7122 = scmp.lt.s32.totalorder %s26, 1
        %s7123 = scalar_select %p7122, %s26, 1
        %s7124 = smul.addr %s7123, 8
        %s7125 = scalar_lea.vmem %s15, %s7124
        // Predicated region
        $region119: #{conv_mid_forward.1} parent=113 // pred_check
          %p7126 = pneg %p369
        $region120: #{conv_mid_forward.1} parent=113 // pred_check_branch
          %7128 = sbr.rel (%p7126) target = $region122
        $region121: #{conv_mid_forward.1} parent=113 // pred_region
          _
        $region122: #{conv_mid_forward.1} parent=113 // pred_fallthru
          _
      $region114: #{conv_mid_forward.1} parent=5 // pred_fallthru
        _
      %p7129 = scmp.le.s32.totalorder 2, %s21
      // Predicated region
      $region123: #{conv_mid_forward.1} parent=5 // pred_check
        %p7130 = pneg %p7129
      $region124: #{conv_mid_forward.1} parent=5 // pred_check_branch
        %7132 = sbr.rel (%p7130) target = $region126
      $region125: #{conv_mid_forward.1} parent=5 // pred_region
        %s7133 = ssub.s32 %s21, 2
        // Predicated region
        $region127: #{conv_mid_forward.1} parent=125 // pred_check
          %p7134 = pneg %p375
        $region128: #{conv_mid_forward.1} parent=125 // pred_check_branch
          %7136 = sbr.rel (%p7134) target = $region130
        $region129: #{conv_mid_forward.1} parent=125 // pred_region
          %p7137 = scmp.lt.s32.totalorder %s27, 1
          %s7138 = scalar_select %p7137, %s27, 1
          %s7139 = smul.addr %s7138, 8
          %s7140 = scalar_lea.vmem %s15, %s7139
        $region130: #{conv_mid_forward.1} parent=125 // pred_fallthru
          _
      $region126: #{conv_mid_forward.1} parent=5 // pred_fallthru
        _
    $region6: #{conv_mid_forward.1} parent=1 // loop_footer
      %s25 = sadd.s32 1, %s21
    $region7: #{conv_mid_forward.1} parent=1 // loop_footer_branch
      %20 = sbr.rel target = $region3
    $region8: #{conv_mid_forward.1} parent=1 // loop_exit
      _

</llo_original>
